<compile_context>
chip_gen: v5e
topology: v5e:2x2
jax: 0.10.0
libtpu: 0.0.40
codegen_flags: <defaults>
</compile_context>

<pallas_src>
import numpy as np
import jax
import jax.numpy as jnp
from jax import lax
from jax.experimental import pallas as pl
from jax.experimental.pallas import tpu as pltpu


# ----------------------------------------------------------------------------
# Kernel 1: fused MultilogueNet recurrence for all 3 modalities
#   grid = (3,) over modality; time loop unrolled in-kernel; Linear fused.
#   Per-modality party inputs are zero-padded to a common width so the party
#   GRU weights stack along the modality grid axis.
# ----------------------------------------------------------------------------
def fused_multilogue_kernel(
    U_ref, Uc_ref, qm_ref, esp_ref,
    g_wih_ref, g_whh_ref, g_bih_ref, g_bhh_ref,      # global GRUCell
    p_wih_ref, p_whh_ref, p_bih_ref, p_bhh_ref,      # party GRUCell (padded)
    e_wi_ref, e_wib_ref, e_uh_ref, e_uhb_ref,        # emotion new_gru_cell
    attn_w_ref,                                      # SimpleAttention (1, Dg)
    lin_w_ref, lin_b_ref,                            # fused Linear(D_e, D_h)
    hid_ref,                                         # out: (B, S, D_h)
):
    S, B, _ = Uc_ref.shape
    P = qm_ref.shape[-1]
    Dg = g_whh_ref.shape[0]
    Dp = p_whh_ref.shape[0]
    De = e_uh_ref.shape[0]

    # weights are loaded once and reused across the (unrolled) time loop
    g_wih = g_wih_ref[...]; g_whh = g_whh_ref[...]
    g_bih = g_bih_ref[...]; g_bhh = g_bhh_ref[...]
    p_wih = p_wih_ref[...]; p_whh = p_whh_ref[...]
    p_bih = p_bih_ref[...]; p_bhh = p_bhh_ref[...]
    e_wi = e_wi_ref[...];   e_wib = e_wib_ref[...]
    e_uh = e_uh_ref[...];   e_uhb = e_uhb_ref[...]
    attn_w = attn_w_ref[...]                         # (1, Dg)
    lin_w = lin_w_ref[...]; lin_b = lin_b_ref[...]
    p_iota = lax.broadcasted_iota(jnp.int32, (B, P), 1)

    def gru(x, h, w_ih, w_hh, b_ih, b_hh, H):
        gi = jnp.dot(x, w_ih, preferred_element_type=jnp.float32) + b_ih
        gh = jnp.dot(h, w_hh, preferred_element_type=jnp.float32) + b_hh
        r = jax.nn.sigmoid(gi[:, 0:H] + gh[:, 0:H])
        z = jax.nn.sigmoid(gi[:, H:2 * H] + gh[:, H:2 * H])
        n = jnp.tanh(gi[:, 2 * H:3 * H] + r * gh[:, 2 * H:3 * H])
        return (1.0 - z) * n + z * h

    g_hist = []                                       # global states g_0..g_{t-1}
    q_prev = [jnp.zeros((B, Dp), jnp.float32) for _ in range(P)]
    g_prev = jnp.zeros((B, Dg), jnp.float32)
    e_prev = jnp.zeros((B, De), jnp.float32)

    for t in range(S):                                # unrolled (S is small)
        U = U_ref[t]                                  # (B, Dm_max), zero-padded
        Uc = Uc_ref[t]                                # (B, Dmc)
        qm = qm_ref[t]                                # (B, P)
        esp = esp_ref[t]                              # (B, 2)

        # --- party selection: one-hot of argmax over parties (first max) ---
        row_max = jnp.max(qm, axis=1, keepdims=True)
        first_idx = jnp.min(jnp.where(qm == row_max, p_iota, P),
                            axis=1, keepdims=True)
        sel = (p_iota == first_idx).astype(jnp.float32)           # (B, P)

        q0_sel = sel[:, 0:1] * q_prev[0]
        for p in range(1, P):
            q0_sel = q0_sel + sel[:, p:p + 1] * q_prev[p]         # (B, Dp)

        # --- global state GRU ---
        g_new = gru(jnp.concatenate([Uc, q0_sel], axis=1), g_prev,
                    g_wih, g_whh, g_bih, g_bhh, Dg)

        # --- SimpleAttention over the history (softmax over previous steps) ---
        if t == 0:
            c_ = jnp.zeros((B, Dg), jnp.float32)
        else:
            scores = [jnp.sum(g * attn_w, axis=-1, keepdims=True)
                      for g in g_hist]                            # (B, 1) each
            m = scores[0]
            for s_ in scores[1:]:
                m = jnp.maximum(m, s_)
            exps = [jnp.exp(s_ - m) for s_ in scores]
            denom = exps[0]
            for x_ in exps[1:]:
                denom = denom + x_
            inv = 1.0 / denom
            c_ = (exps[0] * inv) * g_hist[0]
            for x_, g in zip(exps[1:], g_hist[1:]):
                c_ = c_ + (x_ * inv) * g                          # (B, Dg)
        g_hist.append(g_new)   # current step excluded from its own attention

        # --- party GRU: input matmul shared across parties ---
        x_in = jnp.concatenate([U, c_], axis=1)                   # (B, Dm_max+Dg)
        gi = jnp.dot(x_in, p_wih, preferred_element_type=jnp.float32) + p_bih
        q_new = []
        for p in range(P):
            h = q_prev[p]
            gh = jnp.dot(h, p_whh, preferred_element_type=jnp.float32) + p_bhh
            r = jax.nn.sigmoid(gi[:, 0:Dp] + gh[:, 0:Dp])
            z = jax.nn.sigmoid(gi[:, Dp:2 * Dp] + gh[:, Dp:2 * Dp])
            n = jnp.tanh(gi[:, 2 * Dp:3 * Dp] + r * gh[:, 2 * Dp:3 * Dp])
            qs = (1.0 - z) * n + z * h
            m_col = qm[:, p:p + 1]
            q_new.append(h * (1.0 - m_col) + qs * m_col)

        # --- emotion cell (custom GRU-like) ---
        s_t = sel[:, 0:1] * q_new[0]
        for p in range(1, P):
            s_t = s_t + sel[:, p:p + 1] * q_new[p]                # (B, Dp)
        r_t = 1.0 - esp[:, 1:2]                                   # (B, 1)
        cand = jnp.tanh(
            jnp.dot(s_t, e_wi, preferred_element_type=jnp.float32) + e_wib
            + jnp.dot(r_t * e_prev, e_uh, preferred_element_type=jnp.float32)
            + e_uhb)
        e_new = r_t * e_prev + (1.0 - r_t) * cand                 # (B, De)

        # --- fused Linear(D_e -> D_h), written batch-major ---
        hid_ref[:, t:t + 1, :] = (
            jnp.dot(e_new, lin_w, preferred_element_type=jnp.float32)
            + lin_b)[:, None, :]

        g_prev, q_prev, e_prev = g_new, q_new, e_new


def fused_multilogue_hidden(U_pad, U_context, qmask, esp, packed):
    _, S, B, Dm_max = U_pad.shape
    Dh = packed["lin_w_t"].shape[1]

    stacked = [packed[k] for k in
               ("g_wih_t", "g_whh_t", "g_bih", "g_bhh",
                "p_wih_t", "p_whh_t", "p_bih", "p_bhh",
                "e_wi_t", "e_wib", "e_uh_t", "e_uhb", "attn_w")]

    def per_modality(a):
        return pl.BlockSpec((None,) + a.shape[1:],
                            lambda m, _n=a.ndim - 1: (m,) + (0,) * _n)

    def shared(a):
        return pl.BlockSpec(a.shape, lambda m, _nd=a.ndim: (0,) * _nd)

    in_specs = ([per_modality(U_pad), shared(U_context), shared(qmask),
                 shared(esp)]
                + [per_modality(w) for w in stacked]
                + [shared(packed["lin_w_t"]), shared(packed["lin_b"])])

    return pl.pallas_call(
        fused_multilogue_kernel,
        out_shape=jax.ShapeDtypeStruct((3, B, S, Dh), jnp.float32),
        grid=(3,),
        in_specs=in_specs,
        out_specs=pl.BlockSpec((None, B, S, Dh), lambda m: (m, 0, 0, 0)),
        compiler_params=pltpu.CompilerParams(
            dimension_semantics=("parallel",)),
    )(U_pad, U_context, qmask, esp, *stacked,
      packed["lin_w_t"], packed["lin_b"])


# ----------------------------------------------------------------------------
# Kernel 2: fused BiModalAttention (3 pairs) + feature concat + 3*tanh head
#   grid = (B,) over batch; feats (S, 9*Dh) never leaves VMEM.
# ----------------------------------------------------------------------------
def attention_head_kernel(hid_ref, w_ref, b_ref, out_ref):
    ht = hid_ref[0]          # (S, Dh)  text
    ha = hid_ref[1]          # (S, Dh)  audio
    hv = hid_ref[2]          # (S, Dh)  video

    def bimodal(x, y):
        dn = (((1,), (1,)), ((), ()))
        c1 = lax.dot_general(x, y, dn, preferred_element_type=jnp.float32)
        c2 = lax.dot_general(y, x, dn, preferred_element_type=jnp.float32)
        n1 = jax.nn.softmax(c1, axis=-1)
        n2 = jax.nn.softmax(c2, axis=-1)
        o1 = jnp.dot(n1, y, preferred_element_type=jnp.float32)
        o2 = jnp.dot(n2, x, preferred_element_type=jnp.float32)
        return o1 * x, o2 * y

    at1, at2 = bimodal(ht, ha)        # hidden_at
    va1, va2 = bimodal(hv, ha)        # hidden_va
    tv1, tv2 = bimodal(ht, hv)        # hidden_tv

    feats = jnp.concatenate([at1, at2, va1, va2, tv1, tv2, ht, ha, hv],
                            axis=1)                               # (S, 9*Dh)
    z = jnp.dot(feats, w_ref[...],
                preferred_element_type=jnp.float32) + b_ref[...]  # (S, 1)
    out_ref[...] = 3.0 * jnp.tanh(z)


def attention_head(hid, smax_w_t, smax_b):
    _, B, S, Dh = hid.shape
    return pl.pallas_call(
        attention_head_kernel,
        out_shape=jax.ShapeDtypeStruct((B, S, 1), jnp.float32),
        grid=(B,),
        in_specs=[pl.BlockSpec((3, None, S, Dh), lambda b: (0, b, 0, 0)),
                  pl.BlockSpec(smax_w_t.shape, lambda b: (0, 0)),
                  pl.BlockSpec(smax_b.shape, lambda b: (0, 0))],
        out_specs=pl.BlockSpec((None, S, 1), lambda b: (b, 0, 0)),
        compiler_params=pltpu.CompilerParams(
            dimension_semantics=("parallel",)),
    )(hid, smax_w_t, smax_b)


# ----------------------------------------------------------------------------
# RegressionModel forward (glue in JAX, compute in the two fused kernels)
# ----------------------------------------------------------------------------
def regression_forward(packed, U_t, U_a, U_v, U_context, qmask, umask, esp):
    del umask  # unused by the original forward
    Dg = packed["g_whh_t"].shape[1]
    Dm_max = packed["p_wih_t"].shape[1] - Dg

    def pad_last(x):
        return jnp.pad(x, ((0, 0), (0, 0), (0, Dm_max - x.shape[-1])))

    U_pad = jnp.stack([pad_last(U_t), pad_last(U_a), pad_last(U_v)], axis=0)

    hid = fused_multilogue_hidden(U_pad, U_context, qmask, esp, packed)
    pred = attention_head(hid, packed["smax_w_t"], packed["smax_b"])
    return pred.reshape(-1)                                       # (B*S,)


# ----------------------------------------------------------------------------
# Parameter packing: stack the 3 modality nets along a leading axis so the
# recurrence kernel can select per-modality weights with its grid index.
# ----------------------------------------------------------------------------
def pack_params(params, Dm_list):
    nets = [params["net_t"], params["net_a"], params["net_v"]]
    Dm_max = max(Dm_list)

    def stack(name):
        return jnp.stack([n[name] for n in nets], axis=0)

    def pad_p_wih(w, Dm_m):
        if Dm_m == Dm_max:
            return w
        pad = jnp.zeros((Dm_max - Dm_m, w.shape[1]), w.dtype)
        # rows [0:Dm_m] -> U part, rows [Dm_m:] -> c_ part; re-align the c_
        # rows to start at Dm_max so the kernel can use zero-padded U.
        return jnp.concatenate([w[:Dm_m], pad, w[Dm_m:]], axis=0)

    packed = {name: stack(name) for name in
              ("g_wih_t", "g_whh_t", "g_bih", "g_bhh",
               "p_whh_t", "p_bih", "p_bhh",
               "e_wi_t", "e_wib", "e_uh_t", "e_uhb", "attn_w")}
    packed["p_wih_t"] = jnp.stack(
        [pad_p_wih(n["p_wih_t"], dm) for n, dm in zip(nets, Dm_list)], axis=0)
    packed["lin_w_t"] = params["linear_w_t"]
    packed["lin_b"] = params["linear_b"]
    packed["smax_w_t"] = params["smax_w_t"]
    packed["smax_b"] = params["smax_b"]
    return packed


# ----------------------------------------------------------------------------
# Deterministic parameter initialization (PyTorch-style uniform bounds)
# ----------------------------------------------------------------------------
def _linear_params(key, fan_in, fan_out, bias=True):
    bound = 1.0 / np.sqrt(fan_in)
    kw, kb = jax.random.split(key)
    W = jax.random.uniform(kw, (fan_out, fan_in), jnp.float32, -bound, bound)
    b = (jax.random.uniform(kb, (fan_out,), jnp.float32, -bound, bound)
         if bias else None)
    return W, b


def _gru_params(key, input_dim, hidden):
    bound = 1.0 / np.sqrt(hidden)
    ks = jax.random.split(key, 4)
    w_ih = jax.random.uniform(ks[0], (3 * hidden, input_dim), jnp.float32,
                              -bound, bound)
    w_hh = jax.random.uniform(ks[1], (3 * hidden, hidden), jnp.float32,
                              -bound, bound)
    b_ih = jax.random.uniform(ks[2], (3 * hidden,), jnp.float32, -bound, bound)
    b_hh = jax.random.uniform(ks[3], (3 * hidden,), jnp.float32, -bound, bound)
    return w_ih, w_hh, b_ih, b_hh


def init_multilogue_params(key, Dm, Dmc, Dg, Dp, De):
    k = jax.random.split(key, 5)
    g_wih, g_whh, g_bih, g_bhh = _gru_params(k[0], Dmc + Dp, Dg)
    p_wih, p_whh, p_bih, p_bhh = _gru_params(k[1], Dm + Dg, Dp)
    e_wi_W, e_wi_b = _linear_params(k[2], Dp, De)
    e_uh_W, e_uh_b = _linear_params(k[3], De, De)
    attn_W, _ = _linear_params(k[4], Dg, 1, bias=False)
    return dict(
        g_wih_t=g_wih.T, g_whh_t=g_whh.T,
        g_bih=g_bih.reshape(1, -1), g_bhh=g_bhh.reshape(1, -1),
        p_wih_t=p_wih.T, p_whh_t=p_whh.T,
        p_bih=p_bih.reshape(1, -1), p_bhh=p_bhh.reshape(1, -1),
        e_wi_t=e_wi_W.T, e_wib=e_wi_b.reshape(1, -1),
        e_uh_t=e_uh_W.T, e_uhb=e_uh_b.reshape(1, -1),
        attn_w=attn_W,                     # (1, Dg)
    )


# ----------------------------------------------------------------------------
# Pure-JAX reference (same math, no Pallas) for verification
# ----------------------------------------------------------------------------
def _gru_cell(x, h, w_ih_t, w_hh_t, b_ih, b_hh):
    H = h.shape[-1]
    gi = jnp.dot(x, w_ih_t, preferred_element_type=jnp.float32) + b_ih
    gh = jnp.dot(h, w_hh_t, preferred_element_type=jnp.float32) + b_hh
    r = jax.nn.sigmoid(gi[:, 0:H] + gh[:, 0:H])
    z = jax.nn.sigmoid(gi[:, H:2 * H] + gh[:, H:2 * H])
    n = jnp.tanh(gi[:, 2 * H:3 * H] + r * gh[:, 2 * H:3 * H])
    return (1.0 - z) * n + z * h


def ref_multilogue(U, Uc, qmask, esp, p):
    S, B, _ = U.shape
    P = qmask.shape[-1]
    Dg = p["g_whh_t"].shape[0]
    Dp = p["p_whh_t"].shape[0]
    De = p["e_uh_t"].shape[0]
    g_hist, es = [], []
    q = jnp.zeros((B, P, Dp), jnp.float32)
    e_state = jnp.zeros((B, De), jnp.float32)
    for t in range(S):
        qm = qmask[t]
        sel = jax.nn.one_hot(jnp.argmax(qm, axis=1), P, dtype=jnp.float32)
        q0_sel = jnp.einsum("bp,bpd->bd", sel, q)
        g_prev = g_hist[-1] if g_hist else jnp.zeros((B, Dg), jnp.float32)
        g_new = _gru_cell(jnp.concatenate([Uc[t], q0_sel], axis=1), g_prev,
                          p["g_wih_t"], p["g_whh_t"], p["g_bih"], p["g_bhh"])
        if not g_hist:
            c_ = jnp.zeros((B, Dg), jnp.float32)
        else:
            hist = jnp.stack(g_hist, 0)
            score = jnp.sum(hist * p["attn_w"].reshape(1, 1, Dg), axis=-1)
            alpha = jax.nn.softmax(score, axis=0)
            c_ = jnp.sum(alpha[:, :, None] * hist, axis=0)
        g_hist.append(g_new)
        Uc_cat = jnp.concatenate([U[t], c_], axis=1)
        x_p = jnp.broadcast_to(Uc_cat[:, None, :],
                               (B, P, Uc_cat.shape[-1])).reshape(B * P, -1)
        qs = _gru_cell(x_p, q.reshape(B * P, Dp),
                       p["p_wih_t"], p["p_whh_t"], p["p_bih"],
                       p["p_bhh"]).reshape(B, P, Dp)
        q = q * (1.0 - qm[:, :, None]) + qs * qm[:, :, None]
        r_t = 1.0 - esp[t][:, 1:2]
        s_t = jnp.einsum("bp,bpd->bd", sel, q)
        cand = jnp.tanh(s_t @ p["e_wi_t"] + p["e_wib"]
                        + (r_t * e_state) @ p["e_uh_t"] + p["e_uhb"])
        e_state = r_t * e_state + (1.0 - r_t) * cand
        es.append(e_state)
    return jnp.stack(es, 0)


def ref_bimodal(h1, h2):
    x = jnp.transpose(h1, (1, 0, 2))
    y = jnp.transpose(h2, (1, 0, 2))
    n1 = jax.nn.softmax(jnp.einsum("bsd,btd->bst", x, y), -1)
    n2 = jax.nn.softmax(jnp.einsum("bsd,btd->bst", y, x), -1)
    o1 = jnp.einsum("bst,btd->bsd", n1, y)
    o2 = jnp.einsum("bst,btd->bsd", n2, x)
    return jnp.transpose(jnp.concatenate([o1 * x, o2 * y], -1), (1, 0, 2))


def ref_forward(params, U_t, U_a, U_v, Uc, qmask, umask, esp):
    del umask
    emo_t = ref_multilogue(U_t, Uc, qmask, esp, params["net_t"])
    emo_a = ref_multilogue(U_a, Uc, qmask, esp, params["net_a"])
    emo_v = ref_multilogue(U_v, Uc, qmask, esp, params["net_v"])
    hid_t = emo_t @ params["linear_w_t"] + params["linear_b"]
    hid_a = emo_a @ params["linear_w_t"] + params["linear_b"]
    hid_v = emo_v @ params["linear_w_t"] + params["linear_b"]
    feats = jnp.concatenate([ref_bimodal(hid_t, hid_a),
                             ref_bimodal(hid_v, hid_a),
                             ref_bimodal(hid_t, hid_v),
                             hid_t, hid_a, hid_v], axis=-1)
    pred = 3.0 * jnp.tanh(feats @ params["smax_w_t"] + params["smax_b"])[..., 0]
    return jnp.transpose(pred, (1, 0)).reshape(-1)


# ----------------------------------------------------------------------------
if __name__ == "__main__":
    S, B, P = 6, 2, 2
    D_m_t, D_m_a, D_m_v, D_mc = 24, 12, 16, 20
    D_g, D_p, D_e, D_h = 32, 24, 16, 32

    key = jax.random.PRNGKey(0)
    keys = jax.random.split(key, 12)

    params = {
        "net_t": init_multilogue_params(keys[0], D_m_t, D_mc, D_g, D_p, D_e),
        "net_a": init_multilogue_params(keys[1], D_m_a, D_mc, D_g, D_p, D_e),
        "net_v": init_multilogue_params(keys[2], D_m_v, D_mc, D_g, D_p, D_e),
    }
    lw, lb = _linear_params(keys[3], D_e, D_h)
    sw, sb = _linear_params(keys[4], 9 * D_h, 1)
    params["linear_w_t"] = lw.T
    params["linear_b"] = lb.reshape(1, -1)
    params["smax_w_t"] = sw.T
    params["smax_b"] = sb.reshape(1, -1)

    packed = pack_params(params, [D_m_t, D_m_a, D_m_v])

    U_t = jax.random.normal(keys[5], (S, B, D_m_t), jnp.float32)
    U_a = jax.random.normal(keys[6], (S, B, D_m_a), jnp.float32)
    U_v = jax.random.normal(keys[7], (S, B, D_m_v), jnp.float32)
    U_c = jax.random.normal(keys[8], (S, B, D_mc), jnp.float32)
    speaker = jax.random.randint(keys[9], (S, B), 0, P)
    qmask = jax.nn.one_hot(speaker, P, dtype=jnp.float32)       # (S, B, P)
    umask = jnp.ones((B, S), jnp.float32)                       # unused
    esp = jax.nn.softmax(
        jax.random.normal(keys[10], (S, B, 2), jnp.float32), axis=-1)

    out = jax.jit(regression_forward)(packed, U_t, U_a, U_v, U_c,
                                      qmask, umask, esp)
    out = jax.block_until_ready(out)

    ref = ref_forward(params, U_t, U_a, U_v, U_c, qmask, umask, esp)

    assert out.shape == (B * S,)
    assert bool(jnp.all(jnp.isfinite(out)))
    np.testing.assert_allclose(np.asarray(out), np.asarray(ref),
                               atol=3e-2, rtol=2e-2)
    print("KERNEL_OK")
</pallas_src>

<mosaic_0001>
module attributes {stable_mosaic.version = 11 : i64} {
  func.func @fused_multilogue_kernel(%arg0: i32, %arg1: memref<1x6x2x24xf32, #tpu.memory_space<vmem>>, %arg2: memref<6x2x20xf32, #tpu.memory_space<vmem>>, %arg3: memref<6x2x2xf32, #tpu.memory_space<vmem>>, %arg4: memref<6x2x2xf32, #tpu.memory_space<vmem>>, %arg5: memref<1x44x96xf32, #tpu.memory_space<vmem>>, %arg6: memref<1x32x96xf32, #tpu.memory_space<vmem>>, %arg7: memref<1x1x96xf32, #tpu.memory_space<vmem>>, %arg8: memref<1x1x96xf32, #tpu.memory_space<vmem>>, %arg9: memref<1x56x72xf32, #tpu.memory_space<vmem>>, %arg10: memref<1x24x72xf32, #tpu.memory_space<vmem>>, %arg11: memref<1x1x72xf32, #tpu.memory_space<vmem>>, %arg12: memref<1x1x72xf32, #tpu.memory_space<vmem>>, %arg13: memref<1x24x16xf32, #tpu.memory_space<vmem>>, %arg14: memref<1x1x16xf32, #tpu.memory_space<vmem>>, %arg15: memref<1x16x16xf32, #tpu.memory_space<vmem>>, %arg16: memref<1x1x16xf32, #tpu.memory_space<vmem>>, %arg17: memref<1x1x32xf32, #tpu.memory_space<vmem>>, %arg18: memref<16x32xf32, #tpu.memory_space<vmem>>, %arg19: memref<1x32xf32, #tpu.memory_space<vmem>>, %arg20: memref<1x2x6x32xf32, #tpu.memory_space<vmem>>) attributes {dimension_semantics = [#tpu.dimension_semantics<parallel>], iteration_bounds = array<i64: 3>, scalar_prefetch = 0 : i64, scratch_operands = 0 : i64, tpu.core_type = #tpu.core_type<tc>, window_params = [{transform_indices = @transform_0, window_bounds = array<i64: 1, 6, 2, 24>}, {pipeline_mode = #tpu.pipeline_mode<synchronous>, transform_indices = @transform_1, window_bounds = array<i64: 6, 2, 20>}, {pipeline_mode = #tpu.pipeline_mode<synchronous>, transform_indices = @transform_2, window_bounds = array<i64: 6, 2, 2>}, {pipeline_mode = #tpu.pipeline_mode<synchronous>, transform_indices = @transform_3, window_bounds = array<i64: 6, 2, 2>}, {transform_indices = @transform_4, window_bounds = array<i64: 1, 44, 96>}, {transform_indices = @transform_5, window_bounds = array<i64: 1, 32, 96>}, {transform_indices = @transform_6, window_bounds = array<i64: 1, 1, 96>}, {transform_indices = @transform_7, window_bounds = array<i64: 1, 1, 96>}, {transform_indices = @transform_8, window_bounds = array<i64: 1, 56, 72>}, {transform_indices = @transform_9, window_bounds = array<i64: 1, 24, 72>}, {transform_indices = @transform_10, window_bounds = array<i64: 1, 1, 72>}, {transform_indices = @transform_11, window_bounds = array<i64: 1, 1, 72>}, {transform_indices = @transform_12, window_bounds = array<i64: 1, 24, 16>}, {transform_indices = @transform_13, window_bounds = array<i64: 1, 1, 16>}, {transform_indices = @transform_14, window_bounds = array<i64: 1, 16, 16>}, {transform_indices = @transform_15, window_bounds = array<i64: 1, 1, 16>}, {transform_indices = @transform_16, window_bounds = array<i64: 1, 1, 32>}, {pipeline_mode = #tpu.pipeline_mode<synchronous>, transform_indices = @transform_17, window_bounds = array<i64: 16, 32>}, {pipeline_mode = #tpu.pipeline_mode<synchronous>, transform_indices = @transform_18, window_bounds = array<i64: 1, 32>}, {transform_indices = @transform_19, window_bounds = array<i64: 1, 2, 6, 32>}]} {
    %c0 = arith.constant 0 : index
    %c0_0 = arith.constant 0 : index
    %c0_1 = arith.constant 0 : index
    %0 = vector.load %arg5[%c0, %c0_0, %c0_1] : memref<1x44x96xf32, #tpu.memory_space<vmem>>, vector<1x44x96xf32>
    %1 = vector.shape_cast %0 : vector<1x44x96xf32> to vector<44x96xf32>
    %c0_2 = arith.constant 0 : index
    %c0_3 = arith.constant 0 : index
    %c0_4 = arith.constant 0 : index
    %2 = vector.load %arg6[%c0_2, %c0_3, %c0_4] : memref<1x32x96xf32, #tpu.memory_space<vmem>>, vector<1x32x96xf32>
    %3 = vector.shape_cast %2 : vector<1x32x96xf32> to vector<32x96xf32>
    %c0_5 = arith.constant 0 : index
    %c0_6 = arith.constant 0 : index
    %c0_7 = arith.constant 0 : index
    %4 = vector.load %arg7[%c0_5, %c0_6, %c0_7] : memref<1x1x96xf32, #tpu.memory_space<vmem>>, vector<1x1x96xf32>
    %5 = vector.shape_cast %4 : vector<1x1x96xf32> to vector<1x96xf32>
    %c0_8 = arith.constant 0 : index
    %c0_9 = arith.constant 0 : index
    %c0_10 = arith.constant 0 : index
    %6 = vector.load %arg8[%c0_8, %c0_9, %c0_10] : memref<1x1x96xf32, #tpu.memory_space<vmem>>, vector<1x1x96xf32>
    %7 = vector.shape_cast %6 : vector<1x1x96xf32> to vector<1x96xf32>
    %c0_11 = arith.constant 0 : index
    %c0_12 = arith.constant 0 : index
    %c0_13 = arith.constant 0 : index
    %8 = vector.load %arg9[%c0_11, %c0_12, %c0_13] : memref<1x56x72xf32, #tpu.memory_space<vmem>>, vector<1x56x72xf32>
    %9 = vector.shape_cast %8 : vector<1x56x72xf32> to vector<56x72xf32>
    %c0_14 = arith.constant 0 : index
    %c0_15 = arith.constant 0 : index
    %c0_16 = arith.constant 0 : index
    %10 = vector.load %arg10[%c0_14, %c0_15, %c0_16] : memref<1x24x72xf32, #tpu.memory_space<vmem>>, vector<1x24x72xf32>
    %11 = vector.shape_cast %10 : vector<1x24x72xf32> to vector<24x72xf32>
    %c0_17 = arith.constant 0 : index
    %c0_18 = arith.constant 0 : index
    %c0_19 = arith.constant 0 : index
    %12 = vector.load %arg11[%c0_17, %c0_18, %c0_19] : memref<1x1x72xf32, #tpu.memory_space<vmem>>, vector<1x1x72xf32>
    %13 = vector.shape_cast %12 : vector<1x1x72xf32> to vector<1x72xf32>
    %c0_20 = arith.constant 0 : index
    %c0_21 = arith.constant 0 : index
    %c0_22 = arith.constant 0 : index
    %14 = vector.load %arg12[%c0_20, %c0_21, %c0_22] : memref<1x1x72xf32, #tpu.memory_space<vmem>>, vector<1x1x72xf32>
    %15 = vector.shape_cast %14 : vector<1x1x72xf32> to vector<1x72xf32>
    %c0_23 = arith.constant 0 : index
    %c0_24 = arith.constant 0 : index
    %c0_25 = arith.constant 0 : index
    %16 = vector.load %arg13[%c0_23, %c0_24, %c0_25] : memref<1x24x16xf32, #tpu.memory_space<vmem>>, vector<1x24x16xf32>
    %17 = vector.shape_cast %16 : vector<1x24x16xf32> to vector<24x16xf32>
    %c0_26 = arith.constant 0 : index
    %c0_27 = arith.constant 0 : index
    %c0_28 = arith.constant 0 : index
    %18 = vector.load %arg14[%c0_26, %c0_27, %c0_28] : memref<1x1x16xf32, #tpu.memory_space<vmem>>, vector<1x1x16xf32>
    %19 = vector.shape_cast %18 : vector<1x1x16xf32> to vector<1x16xf32>
    %c0_29 = arith.constant 0 : index
    %c0_30 = arith.constant 0 : index
    %c0_31 = arith.constant 0 : index
    %20 = vector.load %arg15[%c0_29, %c0_30, %c0_31] : memref<1x16x16xf32, #tpu.memory_space<vmem>>, vector<1x16x16xf32>
    %21 = vector.shape_cast %20 : vector<1x16x16xf32> to vector<16x16xf32>
    %c0_32 = arith.constant 0 : index
    %c0_33 = arith.constant 0 : index
    %c0_34 = arith.constant 0 : index
    %22 = vector.load %arg16[%c0_32, %c0_33, %c0_34] : memref<1x1x16xf32, #tpu.memory_space<vmem>>, vector<1x1x16xf32>
    %23 = vector.shape_cast %22 : vector<1x1x16xf32> to vector<1x16xf32>
    %c0_35 = arith.constant 0 : index
    %c0_36 = arith.constant 0 : index
    %c0_37 = arith.constant 0 : index
    %24 = vector.load %arg17[%c0_35, %c0_36, %c0_37] : memref<1x1x32xf32, #tpu.memory_space<vmem>>, vector<1x1x32xf32>
    %25 = vector.shape_cast %24 : vector<1x1x32xf32> to vector<1x32xf32>
    %c0_38 = arith.constant 0 : index
    %c0_39 = arith.constant 0 : index
    %26 = vector.load %arg18[%c0_38, %c0_39] : memref<16x32xf32, #tpu.memory_space<vmem>>, vector<16x32xf32>
    %c0_40 = arith.constant 0 : index
    %c0_41 = arith.constant 0 : index
    %27 = vector.load %arg19[%c0_40, %c0_41] : memref<1x32xf32, #tpu.memory_space<vmem>>, vector<1x32xf32>
    %28 = tpu.iota {dimensions = array<i32: 1>} : vector<2x2xi32>
    %cst = arith.constant 0.000000e+00 : f32
    %29 = vector.broadcast %cst : f32 to vector<2x24xf32>
    %cst_42 = arith.constant 0.000000e+00 : f32
    %30 = vector.broadcast %cst_42 : f32 to vector<2x24xf32>
    %cst_43 = arith.constant 0.000000e+00 : f32
    %31 = vector.broadcast %cst_43 : f32 to vector<2x32xf32>
    %cst_44 = arith.constant 0.000000e+00 : f32
    %32 = vector.broadcast %cst_44 : f32 to vector<2x16xf32>
    %c0_45 = arith.constant 0 : index
    %c0_46 = arith.constant 0 : index
    %c0_47 = arith.constant 0 : index
    %c0_48 = arith.constant 0 : index
    %33 = vector.load %arg1[%c0_45, %c0_46, %c0_47, %c0_48] : memref<1x6x2x24xf32, #tpu.memory_space<vmem>>, vector<1x1x2x24xf32>
    %34 = vector.shape_cast %33 : vector<1x1x2x24xf32> to vector<2x24xf32>
    %c0_49 = arith.constant 0 : index
    %c0_50 = arith.constant 0 : index
    %c0_51 = arith.constant 0 : index
    %35 = vector.load %arg2[%c0_49, %c0_50, %c0_51] : memref<6x2x20xf32, #tpu.memory_space<vmem>>, vector<1x2x20xf32>
    %36 = vector.shape_cast %35 : vector<1x2x20xf32> to vector<2x20xf32>
    %c0_52 = arith.constant 0 : index
    %c0_53 = arith.constant 0 : index
    %c0_54 = arith.constant 0 : index
    %37 = vector.load %arg3[%c0_52, %c0_53, %c0_54] : memref<6x2x2xf32, #tpu.memory_space<vmem>>, vector<1x2x2xf32>
    %38 = vector.shape_cast %37 : vector<1x2x2xf32> to vector<2x2xf32>
    %c0_55 = arith.constant 0 : index
    %c0_56 = arith.constant 0 : index
    %c0_57 = arith.constant 0 : index
    %39 = vector.load %arg4[%c0_55, %c0_56, %c0_57] : memref<6x2x2xf32, #tpu.memory_space<vmem>>, vector<1x2x2xf32>
    %40 = vector.shape_cast %39 : vector<1x2x2xf32> to vector<2x2xf32>
    %cst_58 = arith.constant dense<0xFF800000> : vector<2xf32>
    %41 = vector.multi_reduction <maximumf>, %38, %cst_58 [1] : vector<2x2xf32> to vector<2xf32>
    %42 = vector.shape_cast %41 : vector<2xf32> to vector<2x1xf32>
    %43 = vector.broadcast %42 : vector<2x1xf32> to vector<2x2xf32>
    %44 = arith.cmpf oeq, %38, %43 : vector<2x2xf32>
    %c2_i32 = arith.constant 2 : i32
    %45 = vector.broadcast %c2_i32 : i32 to vector<2x2xi32>
    %46 = arith.select %44, %28, %45 : vector<2x2xi1>, vector<2x2xi32>
    %cst_59 = arith.constant dense<2147483647> : vector<2xi32>
    %47 = vector.multi_reduction <minsi>, %46, %cst_59 [1] : vector<2x2xi32> to vector<2xi32>
    %48 = vector.shape_cast %47 : vector<2xi32> to vector<2x1xi32>
    %49 = vector.broadcast %48 : vector<2x1xi32> to vector<2x2xi32>
    %50 = arith.cmpi eq, %28, %49 : vector<2x2xi32>
    %51 = arith.extui %50 : vector<2x2xi1> to vector<2x2xi32>
    %52 = arith.sitofp %51 : vector<2x2xi32> to vector<2x2xf32>
    %53 = vector.extract_strided_slice %52 {offsets = [0, 0], sizes = [2, 1], strides = [1, 1]} : vector<2x2xf32> to vector<2x1xf32>
    %54 = vector.broadcast %53 : vector<2x1xf32> to vector<2x24xf32>
    %55 = arith.mulf %54, %29 : vector<2x24xf32>
    %56 = vector.extract_strided_slice %52 {offsets = [0, 1], sizes = [2, 1], strides = [1, 1]} : vector<2x2xf32> to vector<2x1xf32>
    %57 = vector.broadcast %56 : vector<2x1xf32> to vector<2x24xf32>
    %58 = arith.mulf %57, %30 : vector<2x24xf32>
    %59 = arith.addf %55, %58 : vector<2x24xf32>
    %60 = tpu.concatenate %36, %59 in 1 : vector<2x20xf32>, vector<2x24xf32> -> vector<2x44xf32>
    %cst_60 = arith.constant dense<0.000000e+00> : vector<2x96xf32>
    %61 = tpu.matmul %60, %1, %cst_60 {dimension_numbers = #tpu.dot_dimension_numbers<[1], [0], [0], [1], [0, 0, 1, 1], [], []>} : vector<2x44xf32>, vector<44x96xf32>, vector<2x96xf32> -> vector<2x96xf32>
    %62 = vector.broadcast %5 : vector<1x96xf32> to vector<2x96xf32>
    %63 = arith.addf %61, %62 : vector<2x96xf32>
    %cst_61 = arith.constant dense<0.000000e+00> : vector<2x96xf32>
    %64 = tpu.matmul %31, %3, %cst_61 {dimension_numbers = #tpu.dot_dimension_numbers<[1], [0], [0], [1], [0, 0, 1, 1], [], []>} : vector<2x32xf32>, vector<32x96xf32>, vector<2x96xf32> -> vector<2x96xf32>
    %65 = vector.broadcast %7 : vector<1x96xf32> to vector<2x96xf32>
    %66 = arith.addf %64, %65 : vector<2x96xf32>
    %67 = vector.extract_strided_slice %63 {offsets = [0, 0], sizes = [2, 32], strides = [1, 1]} : vector<2x96xf32> to vector<2x32xf32>
    %68 = vector.extract_strided_slice %66 {offsets = [0, 0], sizes = [2, 32], strides = [1, 1]} : vector<2x96xf32> to vector<2x32xf32>
    %69 = arith.addf %67, %68 : vector<2x32xf32>
    %70 = arith.negf %69 : vector<2x32xf32>
    %71 = math.exp %70 : vector<2x32xf32>
    %cst_62 = arith.constant 1.000000e+00 : f32
    %72 = vector.broadcast %cst_62 : f32 to vector<2x32xf32>
    %73 = arith.addf %72, %71 : vector<2x32xf32>
    %74 = arith.divf %72, %73 : vector<2x32xf32>
    %75 = vector.extract_strided_slice %63 {offsets = [0, 32], sizes = [2, 32], strides = [1, 1]} : vector<2x96xf32> to vector<2x32xf32>
    %76 = vector.extract_strided_slice %66 {offsets = [0, 32], sizes = [2, 32], strides = [1, 1]} : vector<2x96xf32> to vector<2x32xf32>
    %77 = arith.addf %75, %76 : vector<2x32xf32>
    %78 = arith.negf %77 : vector<2x32xf32>
    %79 = math.exp %78 : vector<2x32xf32>
    %cst_63 = arith.constant 1.000000e+00 : f32
    %80 = vector.broadcast %cst_63 : f32 to vector<2x32xf32>
    %81 = arith.addf %80, %79 : vector<2x32xf32>
    %82 = arith.divf %80, %81 : vector<2x32xf32>
    %83 = vector.extract_strided_slice %63 {offsets = [0, 64], sizes = [2, 32], strides = [1, 1]} : vector<2x96xf32> to vector<2x32xf32>
    %84 = vector.extract_strided_slice %66 {offsets = [0, 64], sizes = [2, 32], strides = [1, 1]} : vector<2x96xf32> to vector<2x32xf32>
    %85 = arith.mulf %74, %84 : vector<2x32xf32>
    %86 = arith.addf %83, %85 : vector<2x32xf32>
    %87 = math.tanh %86 : vector<2x32xf32>
    %cst_64 = arith.constant 1.000000e+00 : f32
    %88 = vector.broadcast %cst_64 : f32 to vector<2x32xf32>
    %89 = arith.subf %88, %82 : vector<2x32xf32>
    %90 = arith.mulf %89, %87 : vector<2x32xf32>
    %91 = arith.mulf %82, %31 : vector<2x32xf32>
    %92 = arith.addf %90, %91 : vector<2x32xf32>
    %cst_65 = arith.constant 0.000000e+00 : f32
    %93 = vector.broadcast %cst_65 : f32 to vector<2x32xf32>
    %94 = tpu.concatenate %34, %93 in 1 : vector<2x24xf32>, vector<2x32xf32> -> vector<2x56xf32>
    %cst_66 = arith.constant dense<0.000000e+00> : vector<2x72xf32>
    %95 = tpu.matmul %94, %9, %cst_66 {dimension_numbers = #tpu.dot_dimension_numbers<[1], [0], [0], [1], [0, 0, 1, 1], [], []>} : vector<2x56xf32>, vector<56x72xf32>, vector<2x72xf32> -> vector<2x72xf32>
    %96 = vector.broadcast %13 : vector<1x72xf32> to vector<2x72xf32>
    %97 = arith.addf %95, %96 : vector<2x72xf32>
    %cst_67 = arith.constant dense<0.000000e+00> : vector<2x72xf32>
    %98 = tpu.matmul %29, %11, %cst_67 {dimension_numbers = #tpu.dot_dimension_numbers<[1], [0], [0], [1], [0, 0, 1, 1], [], []>} : vector<2x24xf32>, vector<24x72xf32>, vector<2x72xf32> -> vector<2x72xf32>
    %99 = vector.broadcast %15 : vector<1x72xf32> to vector<2x72xf32>
    %100 = arith.addf %98, %99 : vector<2x72xf32>
    %101 = vector.extract_strided_slice %97 {offsets = [0, 0], sizes = [2, 24], strides = [1, 1]} : vector<2x72xf32> to vector<2x24xf32>
    %102 = vector.extract_strided_slice %100 {offsets = [0, 0], sizes = [2, 24], strides = [1, 1]} : vector<2x72xf32> to vector<2x24xf32>
    %103 = arith.addf %101, %102 : vector<2x24xf32>
    %104 = arith.negf %103 : vector<2x24xf32>
    %105 = math.exp %104 : vector<2x24xf32>
    %cst_68 = arith.constant 1.000000e+00 : f32
    %106 = vector.broadcast %cst_68 : f32 to vector<2x24xf32>
    %107 = arith.addf %106, %105 : vector<2x24xf32>
    %108 = arith.divf %106, %107 : vector<2x24xf32>
    %109 = vector.extract_strided_slice %97 {offsets = [0, 24], sizes = [2, 24], strides = [1, 1]} : vector<2x72xf32> to vector<2x24xf32>
    %110 = vector.extract_strided_slice %100 {offsets = [0, 24], sizes = [2, 24], strides = [1, 1]} : vector<2x72xf32> to vector<2x24xf32>
    %111 = arith.addf %109, %110 : vector<2x24xf32>
    %112 = arith.negf %111 : vector<2x24xf32>
    %113 = math.exp %112 : vector<2x24xf32>
    %cst_69 = arith.constant 1.000000e+00 : f32
    %114 = vector.broadcast %cst_69 : f32 to vector<2x24xf32>
    %115 = arith.addf %114, %113 : vector<2x24xf32>
    %116 = arith.divf %114, %115 : vector<2x24xf32>
    %117 = vector.extract_strided_slice %97 {offsets = [0, 48], sizes = [2, 24], strides = [1, 1]} : vector<2x72xf32> to vector<2x24xf32>
    %118 = vector.extract_strided_slice %100 {offsets = [0, 48], sizes = [2, 24], strides = [1, 1]} : vector<2x72xf32> to vector<2x24xf32>
    %119 = arith.mulf %108, %118 : vector<2x24xf32>
    %120 = arith.addf %117, %119 : vector<2x24xf32>
    %121 = math.tanh %120 : vector<2x24xf32>
    %cst_70 = arith.constant 1.000000e+00 : f32
    %122 = vector.broadcast %cst_70 : f32 to vector<2x24xf32>
    %123 = arith.subf %122, %116 : vector<2x24xf32>
    %124 = arith.mulf %123, %121 : vector<2x24xf32>
    %125 = arith.mulf %116, %29 : vector<2x24xf32>
    %126 = arith.addf %124, %125 : vector<2x24xf32>
    %127 = vector.extract_strided_slice %38 {offsets = [0, 0], sizes = [2, 1], strides = [1, 1]} : vector<2x2xf32> to vector<2x1xf32>
    %cst_71 = arith.constant 1.000000e+00 : f32
    %128 = vector.broadcast %cst_71 : f32 to vector<2x1xf32>
    %129 = arith.subf %128, %127 : vector<2x1xf32>
    %130 = vector.broadcast %129 : vector<2x1xf32> to vector<2x24xf32>
    %131 = arith.mulf %29, %130 : vector<2x24xf32>
    %132 = vector.broadcast %127 : vector<2x1xf32> to vector<2x24xf32>
    %133 = arith.mulf %126, %132 : vector<2x24xf32>
    %134 = arith.addf %131, %133 : vector<2x24xf32>
    %cst_72 = arith.constant dense<0.000000e+00> : vector<2x72xf32>
    %135 = tpu.matmul %30, %11, %cst_72 {dimension_numbers = #tpu.dot_dimension_numbers<[1], [0], [0], [1], [0, 0, 1, 1], [], []>} : vector<2x24xf32>, vector<24x72xf32>, vector<2x72xf32> -> vector<2x72xf32>
    %136 = vector.broadcast %15 : vector<1x72xf32> to vector<2x72xf32>
    %137 = arith.addf %135, %136 : vector<2x72xf32>
    %138 = vector.extract_strided_slice %97 {offsets = [0, 0], sizes = [2, 24], strides = [1, 1]} : vector<2x72xf32> to vector<2x24xf32>
    %139 = vector.extract_strided_slice %137 {offsets = [0, 0], sizes = [2, 24], strides = [1, 1]} : vector<2x72xf32> to vector<2x24xf32>
    %140 = arith.addf %138, %139 : vector<2x24xf32>
    %141 = arith.negf %140 : vector<2x24xf32>
    %142 = math.exp %141 : vector<2x24xf32>
    %cst_73 = arith.constant 1.000000e+00 : f32
    %143 = vector.broadcast %cst_73 : f32 to vector<2x24xf32>
    %144 = arith.addf %143, %142 : vector<2x24xf32>
    %145 = arith.divf %143, %144 : vector<2x24xf32>
    %146 = vector.extract_strided_slice %97 {offsets = [0, 24], sizes = [2, 24], strides = [1, 1]} : vector<2x72xf32> to vector<2x24xf32>
    %147 = vector.extract_strided_slice %137 {offsets = [0, 24], sizes = [2, 24], strides = [1, 1]} : vector<2x72xf32> to vector<2x24xf32>
    %148 = arith.addf %146, %147 : vector<2x24xf32>
    %149 = arith.negf %148 : vector<2x24xf32>
    %150 = math.exp %149 : vector<2x24xf32>
    %cst_74 = arith.constant 1.000000e+00 : f32
    %151 = vector.broadcast %cst_74 : f32 to vector<2x24xf32>
    %152 = arith.addf %151, %150 : vector<2x24xf32>
    %153 = arith.divf %151, %152 : vector<2x24xf32>
    %154 = vector.extract_strided_slice %97 {offsets = [0, 48], sizes = [2, 24], strides = [1, 1]} : vector<2x72xf32> to vector<2x24xf32>
    %155 = vector.extract_strided_slice %137 {offsets = [0, 48], sizes = [2, 24], strides = [1, 1]} : vector<2x72xf32> to vector<2x24xf32>
    %156 = arith.mulf %145, %155 : vector<2x24xf32>
    %157 = arith.addf %154, %156 : vector<2x24xf32>
    %158 = math.tanh %157 : vector<2x24xf32>
    %cst_75 = arith.constant 1.000000e+00 : f32
    %159 = vector.broadcast %cst_75 : f32 to vector<2x24xf32>
    %160 = arith.subf %159, %153 : vector<2x24xf32>
    %161 = arith.mulf %160, %158 : vector<2x24xf32>
    %162 = arith.mulf %153, %30 : vector<2x24xf32>
    %163 = arith.addf %161, %162 : vector<2x24xf32>
    %164 = vector.extract_strided_slice %38 {offsets = [0, 1], sizes = [2, 1], strides = [1, 1]} : vector<2x2xf32> to vector<2x1xf32>
    %cst_76 = arith.constant 1.000000e+00 : f32
    %165 = vector.broadcast %cst_76 : f32 to vector<2x1xf32>
    %166 = arith.subf %165, %164 : vector<2x1xf32>
    %167 = vector.broadcast %166 : vector<2x1xf32> to vector<2x24xf32>
    %168 = arith.mulf %30, %167 : vector<2x24xf32>
    %169 = vector.broadcast %164 : vector<2x1xf32> to vector<2x24xf32>
    %170 = arith.mulf %163, %169 : vector<2x24xf32>
    %171 = arith.addf %168, %170 : vector<2x24xf32>
    %172 = vector.extract_strided_slice %52 {offsets = [0, 0], sizes = [2, 1], strides = [1, 1]} : vector<2x2xf32> to vector<2x1xf32>
    %173 = vector.broadcast %172 : vector<2x1xf32> to vector<2x24xf32>
    %174 = arith.mulf %173, %134 : vector<2x24xf32>
    %175 = vector.extract_strided_slice %52 {offsets = [0, 1], sizes = [2, 1], strides = [1, 1]} : vector<2x2xf32> to vector<2x1xf32>
    %176 = vector.broadcast %175 : vector<2x1xf32> to vector<2x24xf32>
    %177 = arith.mulf %176, %171 : vector<2x24xf32>
    %178 = arith.addf %174, %177 : vector<2x24xf32>
    %179 = vector.extract_strided_slice %40 {offsets = [0, 1], sizes = [2, 1], strides = [1, 1]} : vector<2x2xf32> to vector<2x1xf32>
    %cst_77 = arith.constant 1.000000e+00 : f32
    %180 = vector.broadcast %cst_77 : f32 to vector<2x1xf32>
    %181 = arith.subf %180, %179 : vector<2x1xf32>
    %cst_78 = arith.constant dense<0.000000e+00> : vector<2x16xf32>
    %182 = tpu.matmul %178, %17, %cst_78 {dimension_numbers = #tpu.dot_dimension_numbers<[1], [0], [0], [1], [0, 0, 1, 1], [], []>} : vector<2x24xf32>, vector<24x16xf32>, vector<2x16xf32> -> vector<2x16xf32>
    %183 = vector.broadcast %19 : vector<1x16xf32> to vector<2x16xf32>
    %184 = arith.addf %182, %183 : vector<2x16xf32>
    %185 = vector.broadcast %181 : vector<2x1xf32> to vector<2x16xf32>
    %186 = arith.mulf %185, %32 : vector<2x16xf32>
    %cst_79 = arith.constant dense<0.000000e+00> : vector<2x16xf32>
    %187 = tpu.matmul %186, %21, %cst_79 {dimension_numbers = #tpu.dot_dimension_numbers<[1], [0], [0], [1], [0, 0, 1, 1], [], []>} : vector<2x16xf32>, vector<16x16xf32>, vector<2x16xf32> -> vector<2x16xf32>
    %188 = arith.addf %184, %187 : vector<2x16xf32>
    %189 = vector.broadcast %23 : vector<1x16xf32> to vector<2x16xf32>
    %190 = arith.addf %188, %189 : vector<2x16xf32>
    %191 = math.tanh %190 : vector<2x16xf32>
    %192 = vector.broadcast %181 : vector<2x1xf32> to vector<2x16xf32>
    %193 = arith.mulf %192, %32 : vector<2x16xf32>
    %cst_80 = arith.constant 1.000000e+00 : f32
    %194 = vector.broadcast %cst_80 : f32 to vector<2x1xf32>
    %195 = arith.subf %194, %181 : vector<2x1xf32>
    %196 = vector.broadcast %195 : vector<2x1xf32> to vector<2x16xf32>
    %197 = arith.mulf %196, %191 : vector<2x16xf32>
    %198 = arith.addf %193, %197 : vector<2x16xf32>
    %cst_81 = arith.constant dense<0.000000e+00> : vector<2x32xf32>
    %199 = tpu.matmul %198, %26, %cst_81 {dimension_numbers = #tpu.dot_dimension_numbers<[1], [0], [0], [1], [0, 0, 1, 1], [], []>} : vector<2x16xf32>, vector<16x32xf32>, vector<2x32xf32> -> vector<2x32xf32>
    %200 = vector.broadcast %27 : vector<1x32xf32> to vector<2x32xf32>
    %201 = arith.addf %199, %200 : vector<2x32xf32>
    %202 = vector.shape_cast %201 : vector<2x32xf32> to vector<2x1x32xf32>
    %c0_82 = arith.constant 0 : index
    %c0_83 = arith.constant 0 : index
    %c0_84 = arith.constant 0 : index
    %c0_85 = arith.constant 0 : index
    %203 = vector.load %arg20[%c0_82, %c0_83, %c0_84, %c0_85] : memref<1x2x6x32xf32, #tpu.memory_space<vmem>>, vector<1x2x1x32xf32>
    %204 = vector.shape_cast %203 : vector<1x2x1x32xf32> to vector<2x1x32xf32>
    %205 = vector.shape_cast %202 : vector<2x1x32xf32> to vector<1x2x1x32xf32>
    tpu.vector_store %arg20[%c0_82, %c0_83, %c0_84, %c0_85], %205 {strides = array<i32>} : memref<1x2x6x32xf32, #tpu.memory_space<vmem>>, vector<1x2x1x32xf32>,
    %c0_86 = arith.constant 0 : index
    %c1 = arith.constant 1 : index
    %c0_87 = arith.constant 0 : index
    %c0_88 = arith.constant 0 : index
    %206 = vector.load %arg1[%c0_86, %c1, %c0_87, %c0_88] : memref<1x6x2x24xf32, #tpu.memory_space<vmem>>, vector<1x1x2x24xf32>
    %207 = vector.shape_cast %206 : vector<1x1x2x24xf32> to vector<2x24xf32>
    %c1_89 = arith.constant 1 : index
    %c0_90 = arith.constant 0 : index
    %c0_91 = arith.constant 0 : index
    %208 = vector.load %arg2[%c1_89, %c0_90, %c0_91] : memref<6x2x20xf32, #tpu.memory_space<vmem>>, vector<1x2x20xf32>
    %209 = vector.shape_cast %208 : vector<1x2x20xf32> to vector<2x20xf32>
    %c1_92 = arith.constant 1 : index
    %c0_93 = arith.constant 0 : index
    %c0_94 = arith.constant 0 : index
    %210 = vector.load %arg3[%c1_92, %c0_93, %c0_94] : memref<6x2x2xf32, #tpu.memory_space<vmem>>, vector<1x2x2xf32>
    %211 = vector.shape_cast %210 : vector<1x2x2xf32> to vector<2x2xf32>
    %c1_95 = arith.constant 1 : index
    %c0_96 = arith.constant 0 : index
    %c0_97 = arith.constant 0 : index
    %212 = vector.load %arg4[%c1_95, %c0_96, %c0_97] : memref<6x2x2xf32, #tpu.memory_space<vmem>>, vector<1x2x2xf32>
    %213 = vector.shape_cast %212 : vector<1x2x2xf32> to vector<2x2xf32>
    %cst_98 = arith.constant dense<0xFF800000> : vector<2xf32>
    %214 = vector.multi_reduction <maximumf>, %211, %cst_98 [1] : vector<2x2xf32> to vector<2xf32>
    %215 = vector.shape_cast %214 : vector<2xf32> to vector<2x1xf32>
    %216 = vector.broadcast %215 : vector<2x1xf32> to vector<2x2xf32>
    %217 = arith.cmpf oeq, %211, %216 : vector<2x2xf32>
    %c2_i32_99 = arith.constant 2 : i32
    %218 = vector.broadcast %c2_i32_99 : i32 to vector<2x2xi32>
    %219 = arith.select %217, %28, %218 : vector<2x2xi1>, vector<2x2xi32>
    %cst_100 = arith.constant dense<2147483647> : vector<2xi32>
    %220 = vector.multi_reduction <minsi>, %219, %cst_100 [1] : vector<2x2xi32> to vector<2xi32>
    %221 = vector.shape_cast %220 : vector<2xi32> to vector<2x1xi32>
    %222 = vector.broadcast %221 : vector<2x1xi32> to vector<2x2xi32>
    %223 = arith.cmpi eq, %28, %222 : vector<2x2xi32>
    %224 = arith.extui %223 : vector<2x2xi1> to vector<2x2xi32>
    %225 = arith.sitofp %224 : vector<2x2xi32> to vector<2x2xf32>
    %226 = vector.extract_strided_slice %225 {offsets = [0, 0], sizes = [2, 1], strides = [1, 1]} : vector<2x2xf32> to vector<2x1xf32>
    %227 = vector.broadcast %226 : vector<2x1xf32> to vector<2x24xf32>
    %228 = arith.mulf %227, %134 : vector<2x24xf32>
    %229 = vector.extract_strided_slice %225 {offsets = [0, 1], sizes = [2, 1], strides = [1, 1]} : vector<2x2xf32> to vector<2x1xf32>
    %230 = vector.broadcast %229 : vector<2x1xf32> to vector<2x24xf32>
    %231 = arith.mulf %230, %171 : vector<2x24xf32>
    %232 = arith.addf %228, %231 : vector<2x24xf32>
    %233 = tpu.concatenate %209, %232 in 1 : vector<2x20xf32>, vector<2x24xf32> -> vector<2x44xf32>
    %cst_101 = arith.constant dense<0.000000e+00> : vector<2x96xf32>
    %234 = tpu.matmul %233, %1, %cst_101 {dimension_numbers = #tpu.dot_dimension_numbers<[1], [0], [0], [1], [0, 0, 1, 1], [], []>} : vector<2x44xf32>, vector<44x96xf32>, vector<2x96xf32> -> vector<2x96xf32>
    %235 = vector.broadcast %5 : vector<1x96xf32> to vector<2x96xf32>
    %236 = arith.addf %234, %235 : vector<2x96xf32>
    %cst_102 = arith.constant dense<0.000000e+00> : vector<2x96xf32>
    %237 = tpu.matmul %92, %3, %cst_102 {dimension_numbers = #tpu.dot_dimension_numbers<[1], [0], [0], [1], [0, 0, 1, 1], [], []>} : vector<2x32xf32>, vector<32x96xf32>, vector<2x96xf32> -> vector<2x96xf32>
    %238 = vector.broadcast %7 : vector<1x96xf32> to vector<2x96xf32>
    %239 = arith.addf %237, %238 : vector<2x96xf32>
    %240 = vector.extract_strided_slice %236 {offsets = [0, 0], sizes = [2, 32], strides = [1, 1]} : vector<2x96xf32> to vector<2x32xf32>
    %241 = vector.extract_strided_slice %239 {offsets = [0, 0], sizes = [2, 32], strides = [1, 1]} : vector<2x96xf32> to vector<2x32xf32>
    %242 = arith.addf %240, %241 : vector<2x32xf32>
    %243 = arith.negf %242 : vector<2x32xf32>
    %244 = math.exp %243 : vector<2x32xf32>
    %cst_103 = arith.constant 1.000000e+00 : f32
    %245 = vector.broadcast %cst_103 : f32 to vector<2x32xf32>
    %246 = arith.addf %245, %244 : vector<2x32xf32>
    %247 = arith.divf %245, %246 : vector<2x32xf32>
    %248 = vector.extract_strided_slice %236 {offsets = [0, 32], sizes = [2, 32], strides = [1, 1]} : vector<2x96xf32> to vector<2x32xf32>
    %249 = vector.extract_strided_slice %239 {offsets = [0, 32], sizes = [2, 32], strides = [1, 1]} : vector<2x96xf32> to vector<2x32xf32>
    %250 = arith.addf %248, %249 : vector<2x32xf32>
    %251 = arith.negf %250 : vector<2x32xf32>
    %252 = math.exp %251 : vector<2x32xf32>
    %cst_104 = arith.constant 1.000000e+00 : f32
    %253 = vector.broadcast %cst_104 : f32 to vector<2x32xf32>
    %254 = arith.addf %253, %252 : vector<2x32xf32>
    %255 = arith.divf %253, %254 : vector<2x32xf32>
    %256 = vector.extract_strided_slice %236 {offsets = [0, 64], sizes = [2, 32], strides = [1, 1]} : vector<2x96xf32> to vector<2x32xf32>
    %257 = vector.extract_strided_slice %239 {offsets = [0, 64], sizes = [2, 32], strides = [1, 1]} : vector<2x96xf32> to vector<2x32xf32>
    %258 = arith.mulf %247, %257 : vector<2x32xf32>
    %259 = arith.addf %256, %258 : vector<2x32xf32>
    %260 = math.tanh %259 : vector<2x32xf32>
    %cst_105 = arith.constant 1.000000e+00 : f32
    %261 = vector.broadcast %cst_105 : f32 to vector<2x32xf32>
    %262 = arith.subf %261, %255 : vector<2x32xf32>
    %263 = arith.mulf %262, %260 : vector<2x32xf32>
    %264 = arith.mulf %255, %92 : vector<2x32xf32>
    %265 = arith.addf %263, %264 : vector<2x32xf32>
    %266 = vector.broadcast %25 : vector<1x32xf32> to vector<2x32xf32>
    %267 = arith.mulf %92, %266 : vector<2x32xf32>
    %cst_106 = arith.constant dense<0.000000e+00> : vector<2xf32>
    %268 = vector.multi_reduction <add>, %267, %cst_106 [1] : vector<2x32xf32> to vector<2xf32>
    %269 = vector.shape_cast %268 : vector<2xf32> to vector<2x1xf32>
    %270 = arith.subf %269, %269 : vector<2x1xf32>
    %271 = math.exp %270 : vector<2x1xf32>
    %cst_107 = arith.constant 1.000000e+00 : f32
    %272 = vector.broadcast %cst_107 : f32 to vector<2x1xf32>
    %273 = arith.divf %272, %271 : vector<2x1xf32>
    %274 = arith.mulf %271, %273 : vector<2x1xf32>
    %275 = vector.broadcast %274 : vector<2x1xf32> to vector<2x32xf32>
    %276 = arith.mulf %275, %92 : vector<2x32xf32>
    %277 = tpu.concatenate %207, %276 in 1 : vector<2x24xf32>, vector<2x32xf32> -> vector<2x56xf32>
    %cst_108 = arith.constant dense<0.000000e+00> : vector<2x72xf32>
    %278 = tpu.matmul %277, %9, %cst_108 {dimension_numbers = #tpu.dot_dimension_numbers<[1], [0], [0], [1], [0, 0, 1, 1], [], []>} : vector<2x56xf32>, vector<56x72xf32>, vector<2x72xf32> -> vector<2x72xf32>
    %279 = vector.broadcast %13 : vector<1x72xf32> to vector<2x72xf32>
    %280 = arith.addf %278, %279 : vector<2x72xf32>
    %cst_109 = arith.constant dense<0.000000e+00> : vector<2x72xf32>
    %281 = tpu.matmul %134, %11, %cst_109 {dimension_numbers = #tpu.dot_dimension_numbers<[1], [0], [0], [1], [0, 0, 1, 1], [], []>} : vector<2x24xf32>, vector<24x72xf32>, vector<2x72xf32> -> vector<2x72xf32>
    %282 = vector.broadcast %15 : vector<1x72xf32> to vector<2x72xf32>
    %283 = arith.addf %281, %282 : vector<2x72xf32>
    %284 = vector.extract_strided_slice %280 {offsets = [0, 0], sizes = [2, 24], strides = [1, 1]} : vector<2x72xf32> to vector<2x24xf32>
    %285 = vector.extract_strided_slice %283 {offsets = [0, 0], sizes = [2, 24], strides = [1, 1]} : vector<2x72xf32> to vector<2x24xf32>
    %286 = arith.addf %284, %285 : vector<2x24xf32>
    %287 = arith.negf %286 : vector<2x24xf32>
    %288 = math.exp %287 : vector<2x24xf32>
    %cst_110 = arith.constant 1.000000e+00 : f32
    %289 = vector.broadcast %cst_110 : f32 to vector<2x24xf32>
    %290 = arith.addf %289, %288 : vector<2x24xf32>
    %291 = arith.divf %289, %290 : vector<2x24xf32>
    %292 = vector.extract_strided_slice %280 {offsets = [0, 24], sizes = [2, 24], strides = [1, 1]} : vector<2x72xf32> to vector<2x24xf32>
    %293 = vector.extract_strided_slice %283 {offsets = [0, 24], sizes = [2, 24], strides = [1, 1]} : vector<2x72xf32> to vector<2x24xf32>
    %294 = arith.addf %292, %293 : vector<2x24xf32>
    %295 = arith.negf %294 : vector<2x24xf32>
    %296 = math.exp %295 : vector<2x24xf32>
    %cst_111 = arith.constant 1.000000e+00 : f32
    %297 = vector.broadcast %cst_111 : f32 to vector<2x24xf32>
    %298 = arith.addf %297, %296 : vector<2x24xf32>
    %299 = arith.divf %297, %298 : vector<2x24xf32>
    %300 = vector.extract_strided_slice %280 {offsets = [0, 48], sizes = [2, 24], strides = [1, 1]} : vector<2x72xf32> to vector<2x24xf32>
    %301 = vector.extract_strided_slice %283 {offsets = [0, 48], sizes = [2, 24], strides = [1, 1]} : vector<2x72xf32> to vector<2x24xf32>
    %302 = arith.mulf %291, %301 : vector<2x24xf32>
    %303 = arith.addf %300, %302 : vector<2x24xf32>
    %304 = math.tanh %303 : vector<2x24xf32>
    %cst_112 = arith.constant 1.000000e+00 : f32
    %305 = vector.broadcast %cst_112 : f32 to vector<2x24xf32>
    %306 = arith.subf %305, %299 : vector<2x24xf32>
    %307 = arith.mulf %306, %304 : vector<2x24xf32>
    %308 = arith.mulf %299, %134 : vector<2x24xf32>
    %309 = arith.addf %307, %308 : vector<2x24xf32>
    %310 = vector.extract_strided_slice %211 {offsets = [0, 0], sizes = [2, 1], strides = [1, 1]} : vector<2x2xf32> to vector<2x1xf32>
    %cst_113 = arith.constant 1.000000e+00 : f32
    %311 = vector.broadcast %cst_113 : f32 to vector<2x1xf32>
    %312 = arith.subf %311, %310 : vector<2x1xf32>
    %313 = vector.broadcast %312 : vector<2x1xf32> to vector<2x24xf32>
    %314 = arith.mulf %134, %313 : vector<2x24xf32>
    %315 = vector.broadcast %310 : vector<2x1xf32> to vector<2x24xf32>
    %316 = arith.mulf %309, %315 : vector<2x24xf32>
    %317 = arith.addf %314, %316 : vector<2x24xf32>
    %cst_114 = arith.constant dense<0.000000e+00> : vector<2x72xf32>
    %318 = tpu.matmul %171, %11, %cst_114 {dimension_numbers = #tpu.dot_dimension_numbers<[1], [0], [0], [1], [0, 0, 1, 1], [], []>} : vector<2x24xf32>, vector<24x72xf32>, vector<2x72xf32> -> vector<2x72xf32>
    %319 = vector.broadcast %15 : vector<1x72xf32> to vector<2x72xf32>
    %320 = arith.addf %318, %319 : vector<2x72xf32>
    %321 = vector.extract_strided_slice %280 {offsets = [0, 0], sizes = [2, 24], strides = [1, 1]} : vector<2x72xf32> to vector<2x24xf32>
    %322 = vector.extract_strided_slice %320 {offsets = [0, 0], sizes = [2, 24], strides = [1, 1]} : vector<2x72xf32> to vector<2x24xf32>
    %323 = arith.addf %321, %322 : vector<2x24xf32>
    %324 = arith.negf %323 : vector<2x24xf32>
    %325 = math.exp %324 : vector<2x24xf32>
    %cst_115 = arith.constant 1.000000e+00 : f32
    %326 = vector.broadcast %cst_115 : f32 to vector<2x24xf32>
    %327 = arith.addf %326, %325 : vector<2x24xf32>
    %328 = arith.divf %326, %327 : vector<2x24xf32>
    %329 = vector.extract_strided_slice %280 {offsets = [0, 24], sizes = [2, 24], strides = [1, 1]} : vector<2x72xf32> to vector<2x24xf32>
    %330 = vector.extract_strided_slice %320 {offsets = [0, 24], sizes = [2, 24], strides = [1, 1]} : vector<2x72xf32> to vector<2x24xf32>
    %331 = arith.addf %329, %330 : vector<2x24xf32>
    %332 = arith.negf %331 : vector<2x24xf32>
    %333 = math.exp %332 : vector<2x24xf32>
    %cst_116 = arith.constant 1.000000e+00 : f32
    %334 = vector.broadcast %cst_116 : f32 to vector<2x24xf32>
    %335 = arith.addf %334, %333 : vector<2x24xf32>
    %336 = arith.divf %334, %335 : vector<2x24xf32>
    %337 = vector.extract_strided_slice %280 {offsets = [0, 48], sizes = [2, 24], strides = [1, 1]} : vector<2x72xf32> to vector<2x24xf32>
    %338 = vector.extract_strided_slice %320 {offsets = [0, 48], sizes = [2, 24], strides = [1, 1]} : vector<2x72xf32> to vector<2x24xf32>
    %339 = arith.mulf %328, %338 : vector<2x24xf32>
    %340 = arith.addf %337, %339 : vector<2x24xf32>
    %341 = math.tanh %340 : vector<2x24xf32>
    %cst_117 = arith.constant 1.000000e+00 : f32
    %342 = vector.broadcast %cst_117 : f32 to vector<2x24xf32>
    %343 = arith.subf %342, %336 : vector<2x24xf32>
    %344 = arith.mulf %343, %341 : vector<2x24xf32>
    %345 = arith.mulf %336, %171 : vector<2x24xf32>
    %346 = arith.addf %344, %345 : vector<2x24xf32>
    %347 = vector.extract_strided_slice %211 {offsets = [0, 1], sizes = [2, 1], strides = [1, 1]} : vector<2x2xf32> to vector<2x1xf32>
    %cst_118 = arith.constant 1.000000e+00 : f32
    %348 = vector.broadcast %cst_118 : f32 to vector<2x1xf32>
    %349 = arith.subf %348, %347 : vector<2x1xf32>
    %350 = vector.broadcast %349 : vector<2x1xf32> to vector<2x24xf32>
    %351 = arith.mulf %171, %350 : vector<2x24xf32>
    %352 = vector.broadcast %347 : vector<2x1xf32> to vector<2x24xf32>
    %353 = arith.mulf %346, %352 : vector<2x24xf32>
    %354 = arith.addf %351, %353 : vector<2x24xf32>
    %355 = vector.extract_strided_slice %225 {offsets = [0, 0], sizes = [2, 1], strides = [1, 1]} : vector<2x2xf32> to vector<2x1xf32>
    %356 = vector.broadcast %355 : vector<2x1xf32> to vector<2x24xf32>
    %357 = arith.mulf %356, %317 : vector<2x24xf32>
    %358 = vector.extract_strided_slice %225 {offsets = [0, 1], sizes = [2, 1], strides = [1, 1]} : vector<2x2xf32> to vector<2x1xf32>
    %359 = vector.broadcast %358 : vector<2x1xf32> to vector<2x24xf32>
    %360 = arith.mulf %359, %354 : vector<2x24xf32>
    %361 = arith.addf %357, %360 : vector<2x24xf32>
    %362 = vector.extract_strided_slice %213 {offsets = [0, 1], sizes = [2, 1], strides = [1, 1]} : vector<2x2xf32> to vector<2x1xf32>
    %cst_119 = arith.constant 1.000000e+00 : f32
    %363 = vector.broadcast %cst_119 : f32 to vector<2x1xf32>
    %364 = arith.subf %363, %362 : vector<2x1xf32>
    %cst_120 = arith.constant dense<0.000000e+00> : vector<2x16xf32>
    %365 = tpu.matmul %361, %17, %cst_120 {dimension_numbers = #tpu.dot_dimension_numbers<[1], [0], [0], [1], [0, 0, 1, 1], [], []>} : vector<2x24xf32>, vector<24x16xf32>, vector<2x16xf32> -> vector<2x16xf32>
    %366 = vector.broadcast %19 : vector<1x16xf32> to vector<2x16xf32>
    %367 = arith.addf %365, %366 : vector<2x16xf32>
    %368 = vector.broadcast %364 : vector<2x1xf32> to vector<2x16xf32>
    %369 = arith.mulf %368, %198 : vector<2x16xf32>
    %cst_121 = arith.constant dense<0.000000e+00> : vector<2x16xf32>
    %370 = tpu.matmul %369, %21, %cst_121 {dimension_numbers = #tpu.dot_dimension_numbers<[1], [0], [0], [1], [0, 0, 1, 1], [], []>} : vector<2x16xf32>, vector<16x16xf32>, vector<2x16xf32> -> vector<2x16xf32>
    %371 = arith.addf %367, %370 : vector<2x16xf32>
    %372 = vector.broadcast %23 : vector<1x16xf32> to vector<2x16xf32>
    %373 = arith.addf %371, %372 : vector<2x16xf32>
    %374 = math.tanh %373 : vector<2x16xf32>
    %375 = vector.broadcast %364 : vector<2x1xf32> to vector<2x16xf32>
    %376 = arith.mulf %375, %198 : vector<2x16xf32>
    %cst_122 = arith.constant 1.000000e+00 : f32
    %377 = vector.broadcast %cst_122 : f32 to vector<2x1xf32>
    %378 = arith.subf %377, %364 : vector<2x1xf32>
    %379 = vector.broadcast %378 : vector<2x1xf32> to vector<2x16xf32>
    %380 = arith.mulf %379, %374 : vector<2x16xf32>
    %381 = arith.addf %376, %380 : vector<2x16xf32>
    %cst_123 = arith.constant dense<0.000000e+00> : vector<2x32xf32>
    %382 = tpu.matmul %381, %26, %cst_123 {dimension_numbers = #tpu.dot_dimension_numbers<[1], [0], [0], [1], [0, 0, 1, 1], [], []>} : vector<2x16xf32>, vector<16x32xf32>, vector<2x32xf32> -> vector<2x32xf32>
    %383 = vector.broadcast %27 : vector<1x32xf32> to vector<2x32xf32>
    %384 = arith.addf %382, %383 : vector<2x32xf32>
    %385 = vector.shape_cast %384 : vector<2x32xf32> to vector<2x1x32xf32>
    %c0_124 = arith.constant 0 : index
    %c0_125 = arith.constant 0 : index
    %c1_126 = arith.constant 1 : index
    %c0_127 = arith.constant 0 : index
    %386 = vector.load %arg20[%c0_124, %c0_125, %c1_126, %c0_127] : memref<1x2x6x32xf32, #tpu.memory_space<vmem>>, vector<1x2x1x32xf32>
    %387 = vector.shape_cast %386 : vector<1x2x1x32xf32> to vector<2x1x32xf32>
    %388 = vector.shape_cast %385 : vector<2x1x32xf32> to vector<1x2x1x32xf32>
    tpu.vector_store %arg20[%c0_124, %c0_125, %c1_126, %c0_127], %388 {strides = array<i32>} : memref<1x2x6x32xf32, #tpu.memory_space<vmem>>, vector<1x2x1x32xf32>,
    %c0_128 = arith.constant 0 : index
    %c2 = arith.constant 2 : index
    %c0_129 = arith.constant 0 : index
    %c0_130 = arith.constant 0 : index
    %389 = vector.load %arg1[%c0_128, %c2, %c0_129, %c0_130] : memref<1x6x2x24xf32, #tpu.memory_space<vmem>>, vector<1x1x2x24xf32>
    %390 = vector.shape_cast %389 : vector<1x1x2x24xf32> to vector<2x24xf32>
    %c2_131 = arith.constant 2 : index
    %c0_132 = arith.constant 0 : index
    %c0_133 = arith.constant 0 : index
    %391 = vector.load %arg2[%c2_131, %c0_132, %c0_133] : memref<6x2x20xf32, #tpu.memory_space<vmem>>, vector<1x2x20xf32>
    %392 = vector.shape_cast %391 : vector<1x2x20xf32> to vector<2x20xf32>
    %c2_134 = arith.constant 2 : index
    %c0_135 = arith.constant 0 : index
    %c0_136 = arith.constant 0 : index
    %393 = vector.load %arg3[%c2_134, %c0_135, %c0_136] : memref<6x2x2xf32, #tpu.memory_space<vmem>>, vector<1x2x2xf32>
    %394 = vector.shape_cast %393 : vector<1x2x2xf32> to vector<2x2xf32>
    %c2_137 = arith.constant 2 : index
    %c0_138 = arith.constant 0 : index
    %c0_139 = arith.constant 0 : index
    %395 = vector.load %arg4[%c2_137, %c0_138, %c0_139] : memref<6x2x2xf32, #tpu.memory_space<vmem>>, vector<1x2x2xf32>
    %396 = vector.shape_cast %395 : vector<1x2x2xf32> to vector<2x2xf32>
    %cst_140 = arith.constant dense<0xFF800000> : vector<2xf32>
    %397 = vector.multi_reduction <maximumf>, %394, %cst_140 [1] : vector<2x2xf32> to vector<2xf32>
    %398 = vector.shape_cast %397 : vector<2xf32> to vector<2x1xf32>
    %399 = vector.broadcast %398 : vector<2x1xf32> to vector<2x2xf32>
    %400 = arith.cmpf oeq, %394, %399 : vector<2x2xf32>
    %c2_i32_141 = arith.constant 2 : i32
    %401 = vector.broadcast %c2_i32_141 : i32 to vector<2x2xi32>
    %402 = arith.select %400, %28, %401 : vector<2x2xi1>, vector<2x2xi32>
    %cst_142 = arith.constant dense<2147483647> : vector<2xi32>
    %403 = vector.multi_reduction <minsi>, %402, %cst_142 [1] : vector<2x2xi32> to vector<2xi32>
    %404 = vector.shape_cast %403 : vector<2xi32> to vector<2x1xi32>
    %405 = vector.broadcast %404 : vector<2x1xi32> to vector<2x2xi32>
    %406 = arith.cmpi eq, %28, %405 : vector<2x2xi32>
    %407 = arith.extui %406 : vector<2x2xi1> to vector<2x2xi32>
    %408 = arith.sitofp %407 : vector<2x2xi32> to vector<2x2xf32>
    %409 = vector.extract_strided_slice %408 {offsets = [0, 0], sizes = [2, 1], strides = [1, 1]} : vector<2x2xf32> to vector<2x1xf32>
    %410 = vector.broadcast %409 : vector<2x1xf32> to vector<2x24xf32>
    %411 = arith.mulf %410, %317 : vector<2x24xf32>
    %412 = vector.extract_strided_slice %408 {offsets = [0, 1], sizes = [2, 1], strides = [1, 1]} : vector<2x2xf32> to vector<2x1xf32>
    %413 = vector.broadcast %412 : vector<2x1xf32> to vector<2x24xf32>
    %414 = arith.mulf %413, %354 : vector<2x24xf32>
    %415 = arith.addf %411, %414 : vector<2x24xf32>
    %416 = tpu.concatenate %392, %415 in 1 : vector<2x20xf32>, vector<2x24xf32> -> vector<2x44xf32>
    %cst_143 = arith.constant dense<0.000000e+00> : vector<2x96xf32>
    %417 = tpu.matmul %416, %1, %cst_143 {dimension_numbers = #tpu.dot_dimension_numbers<[1], [0], [0], [1], [0, 0, 1, 1], [], []>} : vector<2x44xf32>, vector<44x96xf32>, vector<2x96xf32> -> vector<2x96xf32>
    %418 = vector.broadcast %5 : vector<1x96xf32> to vector<2x96xf32>
    %419 = arith.addf %417, %418 : vector<2x96xf32>
    %cst_144 = arith.constant dense<0.000000e+00> : vector<2x96xf32>
    %420 = tpu.matmul %265, %3, %cst_144 {dimension_numbers = #tpu.dot_dimension_numbers<[1], [0], [0], [1], [0, 0, 1, 1], [], []>} : vector<2x32xf32>, vector<32x96xf32>, vector<2x96xf32> -> vector<2x96xf32>
    %421 = vector.broadcast %7 : vector<1x96xf32> to vector<2x96xf32>
    %422 = arith.addf %420, %421 : vector<2x96xf32>
    %423 = vector.extract_strided_slice %419 {offsets = [0, 0], sizes = [2, 32], strides = [1, 1]} : vector<2x96xf32> to vector<2x32xf32>
    %424 = vector.extract_strided_slice %422 {offsets = [0, 0], sizes = [2, 32], strides = [1, 1]} : vector<2x96xf32> to vector<2x32xf32>
    %425 = arith.addf %423, %424 : vector<2x32xf32>
    %426 = arith.negf %425 : vector<2x32xf32>
    %427 = math.exp %426 : vector<2x32xf32>
    %cst_145 = arith.constant 1.000000e+00 : f32
    %428 = vector.broadcast %cst_145 : f32 to vector<2x32xf32>
    %429 = arith.addf %428, %427 : vector<2x32xf32>
    %430 = arith.divf %428, %429 : vector<2x32xf32>
    %431 = vector.extract_strided_slice %419 {offsets = [0, 32], sizes = [2, 32], strides = [1, 1]} : vector<2x96xf32> to vector<2x32xf32>
    %432 = vector.extract_strided_slice %422 {offsets = [0, 32], sizes = [2, 32], strides = [1, 1]} : vector<2x96xf32> to vector<2x32xf32>
    %433 = arith.addf %431, %432 : vector<2x32xf32>
    %434 = arith.negf %433 : vector<2x32xf32>
    %435 = math.exp %434 : vector<2x32xf32>
    %cst_146 = arith.constant 1.000000e+00 : f32
    %436 = vector.broadcast %cst_146 : f32 to vector<2x32xf32>
    %437 = arith.addf %436, %435 : vector<2x32xf32>
    %438 = arith.divf %436, %437 : vector<2x32xf32>
    %439 = vector.extract_strided_slice %419 {offsets = [0, 64], sizes = [2, 32], strides = [1, 1]} : vector<2x96xf32> to vector<2x32xf32>
    %440 = vector.extract_strided_slice %422 {offsets = [0, 64], sizes = [2, 32], strides = [1, 1]} : vector<2x96xf32> to vector<2x32xf32>
    %441 = arith.mulf %430, %440 : vector<2x32xf32>
    %442 = arith.addf %439, %441 : vector<2x32xf32>
    %443 = math.tanh %442 : vector<2x32xf32>
    %cst_147 = arith.constant 1.000000e+00 : f32
    %444 = vector.broadcast %cst_147 : f32 to vector<2x32xf32>
    %445 = arith.subf %444, %438 : vector<2x32xf32>
    %446 = arith.mulf %445, %443 : vector<2x32xf32>
    %447 = arith.mulf %438, %265 : vector<2x32xf32>
    %448 = arith.addf %446, %447 : vector<2x32xf32>
    %449 = vector.broadcast %25 : vector<1x32xf32> to vector<2x32xf32>
    %450 = arith.mulf %92, %449 : vector<2x32xf32>
    %cst_148 = arith.constant dense<0.000000e+00> : vector<2xf32>
    %451 = vector.multi_reduction <add>, %450, %cst_148 [1] : vector<2x32xf32> to vector<2xf32>
    %452 = vector.shape_cast %451 : vector<2xf32> to vector<2x1xf32>
    %453 = vector.broadcast %25 : vector<1x32xf32> to vector<2x32xf32>
    %454 = arith.mulf %265, %453 : vector<2x32xf32>
    %cst_149 = arith.constant dense<0.000000e+00> : vector<2xf32>
    %455 = vector.multi_reduction <add>, %454, %cst_149 [1] : vector<2x32xf32> to vector<2xf32>
    %456 = vector.shape_cast %455 : vector<2xf32> to vector<2x1xf32>
    %457 = arith.maximumf %452, %456 : vector<2x1xf32>
    %458 = arith.subf %452, %457 : vector<2x1xf32>
    %459 = math.exp %458 : vector<2x1xf32>
    %460 = arith.subf %456, %457 : vector<2x1xf32>
    %461 = math.exp %460 : vector<2x1xf32>
    %462 = arith.addf %459, %461 : vector<2x1xf32>
    %cst_150 = arith.constant 1.000000e+00 : f32
    %463 = vector.broadcast %cst_150 : f32 to vector<2x1xf32>
    %464 = arith.divf %463, %462 : vector<2x1xf32>
    %465 = arith.mulf %459, %464 : vector<2x1xf32>
    %466 = vector.broadcast %465 : vector<2x1xf32> to vector<2x32xf32>
    %467 = arith.mulf %466, %92 : vector<2x32xf32>
    %468 = arith.mulf %461, %464 : vector<2x1xf32>
    %469 = vector.broadcast %468 : vector<2x1xf32> to vector<2x32xf32>
    %470 = arith.mulf %469, %265 : vector<2x32xf32>
    %471 = arith.addf %467, %470 : vector<2x32xf32>
    %472 = tpu.concatenate %390, %471 in 1 : vector<2x24xf32>, vector<2x32xf32> -> vector<2x56xf32>
    %cst_151 = arith.constant dense<0.000000e+00> : vector<2x72xf32>
    %473 = tpu.matmul %472, %9, %cst_151 {dimension_numbers = #tpu.dot_dimension_numbers<[1], [0], [0], [1], [0, 0, 1, 1], [], []>} : vector<2x56xf32>, vector<56x72xf32>, vector<2x72xf32> -> vector<2x72xf32>
    %474 = vector.broadcast %13 : vector<1x72xf32> to vector<2x72xf32>
    %475 = arith.addf %473, %474 : vector<2x72xf32>
    %cst_152 = arith.constant dense<0.000000e+00> : vector<2x72xf32>
    %476 = tpu.matmul %317, %11, %cst_152 {dimension_numbers = #tpu.dot_dimension_numbers<[1], [0], [0], [1], [0, 0, 1, 1], [], []>} : vector<2x24xf32>, vector<24x72xf32>, vector<2x72xf32> -> vector<2x72xf32>
    %477 = vector.broadcast %15 : vector<1x72xf32> to vector<2x72xf32>
    %478 = arith.addf %476, %477 : vector<2x72xf32>
    %479 = vector.extract_strided_slice %475 {offsets = [0, 0], sizes = [2, 24], strides = [1, 1]} : vector<2x72xf32> to vector<2x24xf32>
    %480 = vector.extract_strided_slice %478 {offsets = [0, 0], sizes = [2, 24], strides = [1, 1]} : vector<2x72xf32> to vector<2x24xf32>
    %481 = arith.addf %479, %480 : vector<2x24xf32>
    %482 = arith.negf %481 : vector<2x24xf32>
    %483 = math.exp %482 : vector<2x24xf32>
    %cst_153 = arith.constant 1.000000e+00 : f32
    %484 = vector.broadcast %cst_153 : f32 to vector<2x24xf32>
    %485 = arith.addf %484, %483 : vector<2x24xf32>
    %486 = arith.divf %484, %485 : vector<2x24xf32>
    %487 = vector.extract_strided_slice %475 {offsets = [0, 24], sizes = [2, 24], strides = [1, 1]} : vector<2x72xf32> to vector<2x24xf32>
    %488 = vector.extract_strided_slice %478 {offsets = [0, 24], sizes = [2, 24], strides = [1, 1]} : vector<2x72xf32> to vector<2x24xf32>
    %489 = arith.addf %487, %488 : vector<2x24xf32>
    %490 = arith.negf %489 : vector<2x24xf32>
    %491 = math.exp %490 : vector<2x24xf32>
    %cst_154 = arith.constant 1.000000e+00 : f32
    %492 = vector.broadcast %cst_154 : f32 to vector<2x24xf32>
    %493 = arith.addf %492, %491 : vector<2x24xf32>
    %494 = arith.divf %492, %493 : vector<2x24xf32>
    %495 = vector.extract_strided_slice %475 {offsets = [0, 48], sizes = [2, 24], strides = [1, 1]} : vector<2x72xf32> to vector<2x24xf32>
    %496 = vector.extract_strided_slice %478 {offsets = [0, 48], sizes = [2, 24], strides = [1, 1]} : vector<2x72xf32> to vector<2x24xf32>
    %497 = arith.mulf %486, %496 : vector<2x24xf32>
    %498 = arith.addf %495, %497 : vector<2x24xf32>
    %499 = math.tanh %498 : vector<2x24xf32>
    %cst_155 = arith.constant 1.000000e+00 : f32
    %500 = vector.broadcast %cst_155 : f32 to vector<2x24xf32>
    %501 = arith.subf %500, %494 : vector<2x24xf32>
    %502 = arith.mulf %501, %499 : vector<2x24xf32>
    %503 = arith.mulf %494, %317 : vector<2x24xf32>
    %504 = arith.addf %502, %503 : vector<2x24xf32>
    %505 = vector.extract_strided_slice %394 {offsets = [0, 0], sizes = [2, 1], strides = [1, 1]} : vector<2x2xf32> to vector<2x1xf32>
    %cst_156 = arith.constant 1.000000e+00 : f32
    %506 = vector.broadcast %cst_156 : f32 to vector<2x1xf32>
    %507 = arith.subf %506, %505 : vector<2x1xf32>
    %508 = vector.broadcast %507 : vector<2x1xf32> to vector<2x24xf32>
    %509 = arith.mulf %317, %508 : vector<2x24xf32>
    %510 = vector.broadcast %505 : vector<2x1xf32> to vector<2x24xf32>
    %511 = arith.mulf %504, %510 : vector<2x24xf32>
    %512 = arith.addf %509, %511 : vector<2x24xf32>
    %cst_157 = arith.constant dense<0.000000e+00> : vector<2x72xf32>
    %513 = tpu.matmul %354, %11, %cst_157 {dimension_numbers = #tpu.dot_dimension_numbers<[1], [0], [0], [1], [0, 0, 1, 1], [], []>} : vector<2x24xf32>, vector<24x72xf32>, vector<2x72xf32> -> vector<2x72xf32>
    %514 = vector.broadcast %15 : vector<1x72xf32> to vector<2x72xf32>
    %515 = arith.addf %513, %514 : vector<2x72xf32>
    %516 = vector.extract_strided_slice %475 {offsets = [0, 0], sizes = [2, 24], strides = [1, 1]} : vector<2x72xf32> to vector<2x24xf32>
    %517 = vector.extract_strided_slice %515 {offsets = [0, 0], sizes = [2, 24], strides = [1, 1]} : vector<2x72xf32> to vector<2x24xf32>
    %518 = arith.addf %516, %517 : vector<2x24xf32>
    %519 = arith.negf %518 : vector<2x24xf32>
    %520 = math.exp %519 : vector<2x24xf32>
    %cst_158 = arith.constant 1.000000e+00 : f32
    %521 = vector.broadcast %cst_158 : f32 to vector<2x24xf32>
    %522 = arith.addf %521, %520 : vector<2x24xf32>
    %523 = arith.divf %521, %522 : vector<2x24xf32>
    %524 = vector.extract_strided_slice %475 {offsets = [0, 24], sizes = [2, 24], strides = [1, 1]} : vector<2x72xf32> to vector<2x24xf32>
    %525 = vector.extract_strided_slice %515 {offsets = [0, 24], sizes = [2, 24], strides = [1, 1]} : vector<2x72xf32> to vector<2x24xf32>
    %526 = arith.addf %524, %525 : vector<2x24xf32>
    %527 = arith.negf %526 : vector<2x24xf32>
    %528 = math.exp %527 : vector<2x24xf32>
    %cst_159 = arith.constant 1.000000e+00 : f32
    %529 = vector.broadcast %cst_159 : f32 to vector<2x24xf32>
    %530 = arith.addf %529, %528 : vector<2x24xf32>
    %531 = arith.divf %529, %530 : vector<2x24xf32>
    %532 = vector.extract_strided_slice %475 {offsets = [0, 48], sizes = [2, 24], strides = [1, 1]} : vector<2x72xf32> to vector<2x24xf32>
    %533 = vector.extract_strided_slice %515 {offsets = [0, 48], sizes = [2, 24], strides = [1, 1]} : vector<2x72xf32> to vector<2x24xf32>
    %534 = arith.mulf %523, %533 : vector<2x24xf32>
    %535 = arith.addf %532, %534 : vector<2x24xf32>
    %536 = math.tanh %535 : vector<2x24xf32>
    %cst_160 = arith.constant 1.000000e+00 : f32
    %537 = vector.broadcast %cst_160 : f32 to vector<2x24xf32>
    %538 = arith.subf %537, %531 : vector<2x24xf32>
    %539 = arith.mulf %538, %536 : vector<2x24xf32>
    %540 = arith.mulf %531, %354 : vector<2x24xf32>
    %541 = arith.addf %539, %540 : vector<2x24xf32>
    %542 = vector.extract_strided_slice %394 {offsets = [0, 1], sizes = [2, 1], strides = [1, 1]} : vector<2x2xf32> to vector<2x1xf32>
    %cst_161 = arith.constant 1.000000e+00 : f32
    %543 = vector.broadcast %cst_161 : f32 to vector<2x1xf32>
    %544 = arith.subf %543, %542 : vector<2x1xf32>
    %545 = vector.broadcast %544 : vector<2x1xf32> to vector<2x24xf32>
    %546 = arith.mulf %354, %545 : vector<2x24xf32>
    %547 = vector.broadcast %542 : vector<2x1xf32> to vector<2x24xf32>
    %548 = arith.mulf %541, %547 : vector<2x24xf32>
    %549 = arith.addf %546, %548 : vector<2x24xf32>
    %550 = vector.extract_strided_slice %408 {offsets = [0, 0], sizes = [2, 1], strides = [1, 1]} : vector<2x2xf32> to vector<2x1xf32>
    %551 = vector.broadcast %550 : vector<2x1xf32> to vector<2x24xf32>
    %552 = arith.mulf %551, %512 : vector<2x24xf32>
    %553 = vector.extract_strided_slice %408 {offsets = [0, 1], sizes = [2, 1], strides = [1, 1]} : vector<2x2xf32> to vector<2x1xf32>
    %554 = vector.broadcast %553 : vector<2x1xf32> to vector<2x24xf32>
    %555 = arith.mulf %554, %549 : vector<2x24xf32>
    %556 = arith.addf %552, %555 : vector<2x24xf32>
    %557 = vector.extract_strided_slice %396 {offsets = [0, 1], sizes = [2, 1], strides = [1, 1]} : vector<2x2xf32> to vector<2x1xf32>
    %cst_162 = arith.constant 1.000000e+00 : f32
    %558 = vector.broadcast %cst_162 : f32 to vector<2x1xf32>
    %559 = arith.subf %558, %557 : vector<2x1xf32>
    %cst_163 = arith.constant dense<0.000000e+00> : vector<2x16xf32>
    %560 = tpu.matmul %556, %17, %cst_163 {dimension_numbers = #tpu.dot_dimension_numbers<[1], [0], [0], [1], [0, 0, 1, 1], [], []>} : vector<2x24xf32>, vector<24x16xf32>, vector<2x16xf32> -> vector<2x16xf32>
    %561 = vector.broadcast %19 : vector<1x16xf32> to vector<2x16xf32>
    %562 = arith.addf %560, %561 : vector<2x16xf32>
    %563 = vector.broadcast %559 : vector<2x1xf32> to vector<2x16xf32>
    %564 = arith.mulf %563, %381 : vector<2x16xf32>
    %cst_164 = arith.constant dense<0.000000e+00> : vector<2x16xf32>
    %565 = tpu.matmul %564, %21, %cst_164 {dimension_numbers = #tpu.dot_dimension_numbers<[1], [0], [0], [1], [0, 0, 1, 1], [], []>} : vector<2x16xf32>, vector<16x16xf32>, vector<2x16xf32> -> vector<2x16xf32>
    %566 = arith.addf %562, %565 : vector<2x16xf32>
    %567 = vector.broadcast %23 : vector<1x16xf32> to vector<2x16xf32>
    %568 = arith.addf %566, %567 : vector<2x16xf32>
    %569 = math.tanh %568 : vector<2x16xf32>
    %570 = vector.broadcast %559 : vector<2x1xf32> to vector<2x16xf32>
    %571 = arith.mulf %570, %381 : vector<2x16xf32>
    %cst_165 = arith.constant 1.000000e+00 : f32
    %572 = vector.broadcast %cst_165 : f32 to vector<2x1xf32>
    %573 = arith.subf %572, %559 : vector<2x1xf32>
    %574 = vector.broadcast %573 : vector<2x1xf32> to vector<2x16xf32>
    %575 = arith.mulf %574, %569 : vector<2x16xf32>
    %576 = arith.addf %571, %575 : vector<2x16xf32>
    %cst_166 = arith.constant dense<0.000000e+00> : vector<2x32xf32>
    %577 = tpu.matmul %576, %26, %cst_166 {dimension_numbers = #tpu.dot_dimension_numbers<[1], [0], [0], [1], [0, 0, 1, 1], [], []>} : vector<2x16xf32>, vector<16x32xf32>, vector<2x32xf32> -> vector<2x32xf32>
    %578 = vector.broadcast %27 : vector<1x32xf32> to vector<2x32xf32>
    %579 = arith.addf %577, %578 : vector<2x32xf32>
    %580 = vector.shape_cast %579 : vector<2x32xf32> to vector<2x1x32xf32>
    %c0_167 = arith.constant 0 : index
    %c0_168 = arith.constant 0 : index
    %c2_169 = arith.constant 2 : index
    %c0_170 = arith.constant 0 : index
    %581 = vector.load %arg20[%c0_167, %c0_168, %c2_169, %c0_170] : memref<1x2x6x32xf32, #tpu.memory_space<vmem>>, vector<1x2x1x32xf32>
    %582 = vector.shape_cast %581 : vector<1x2x1x32xf32> to vector<2x1x32xf32>
    %583 = vector.shape_cast %580 : vector<2x1x32xf32> to vector<1x2x1x32xf32>
    tpu.vector_store %arg20[%c0_167, %c0_168, %c2_169, %c0_170], %583 {strides = array<i32>} : memref<1x2x6x32xf32, #tpu.memory_space<vmem>>, vector<1x2x1x32xf32>,
    %c0_171 = arith.constant 0 : index
    %c3 = arith.constant 3 : index
    %c0_172 = arith.constant 0 : index
    %c0_173 = arith.constant 0 : index
    %584 = vector.load %arg1[%c0_171, %c3, %c0_172, %c0_173] : memref<1x6x2x24xf32, #tpu.memory_space<vmem>>, vector<1x1x2x24xf32>
    %585 = vector.shape_cast %584 : vector<1x1x2x24xf32> to vector<2x24xf32>
    %c3_174 = arith.constant 3 : index
    %c0_175 = arith.constant 0 : index
    %c0_176 = arith.constant 0 : index
    %586 = vector.load %arg2[%c3_174, %c0_175, %c0_176] : memref<6x2x20xf32, #tpu.memory_space<vmem>>, vector<1x2x20xf32>
    %587 = vector.shape_cast %586 : vector<1x2x20xf32> to vector<2x20xf32>
    %c3_177 = arith.constant 3 : index
    %c0_178 = arith.constant 0 : index
    %c0_179 = arith.constant 0 : index
    %588 = vector.load %arg3[%c3_177, %c0_178, %c0_179] : memref<6x2x2xf32, #tpu.memory_space<vmem>>, vector<1x2x2xf32>
    %589 = vector.shape_cast %588 : vector<1x2x2xf32> to vector<2x2xf32>
    %c3_180 = arith.constant 3 : index
    %c0_181 = arith.constant 0 : index
    %c0_182 = arith.constant 0 : index
    %590 = vector.load %arg4[%c3_180, %c0_181, %c0_182] : memref<6x2x2xf32, #tpu.memory_space<vmem>>, vector<1x2x2xf32>
    %591 = vector.shape_cast %590 : vector<1x2x2xf32> to vector<2x2xf32>
    %cst_183 = arith.constant dense<0xFF800000> : vector<2xf32>
    %592 = vector.multi_reduction <maximumf>, %589, %cst_183 [1] : vector<2x2xf32> to vector<2xf32>
    %593 = vector.shape_cast %592 : vector<2xf32> to vector<2x1xf32>
    %594 = vector.broadcast %593 : vector<2x1xf32> to vector<2x2xf32>
    %595 = arith.cmpf oeq, %589, %594 : vector<2x2xf32>
    %c2_i32_184 = arith.constant 2 : i32
    %596 = vector.broadcast %c2_i32_184 : i32 to vector<2x2xi32>
    %597 = arith.select %595, %28, %596 : vector<2x2xi1>, vector<2x2xi32>
    %cst_185 = arith.constant dense<2147483647> : vector<2xi32>
    %598 = vector.multi_reduction <minsi>, %597, %cst_185 [1] : vector<2x2xi32> to vector<2xi32>
    %599 = vector.shape_cast %598 : vector<2xi32> to vector<2x1xi32>
    %600 = vector.broadcast %599 : vector<2x1xi32> to vector<2x2xi32>
    %601 = arith.cmpi eq, %28, %600 : vector<2x2xi32>
    %602 = arith.extui %601 : vector<2x2xi1> to vector<2x2xi32>
    %603 = arith.sitofp %602 : vector<2x2xi32> to vector<2x2xf32>
    %604 = vector.extract_strided_slice %603 {offsets = [0, 0], sizes = [2, 1], strides = [1, 1]} : vector<2x2xf32> to vector<2x1xf32>
    %605 = vector.broadcast %604 : vector<2x1xf32> to vector<2x24xf32>
    %606 = arith.mulf %605, %512 : vector<2x24xf32>
    %607 = vector.extract_strided_slice %603 {offsets = [0, 1], sizes = [2, 1], strides = [1, 1]} : vector<2x2xf32> to vector<2x1xf32>
    %608 = vector.broadcast %607 : vector<2x1xf32> to vector<2x24xf32>
    %609 = arith.mulf %608, %549 : vector<2x24xf32>
    %610 = arith.addf %606, %609 : vector<2x24xf32>
    %611 = tpu.concatenate %587, %610 in 1 : vector<2x20xf32>, vector<2x24xf32> -> vector<2x44xf32>
    %cst_186 = arith.constant dense<0.000000e+00> : vector<2x96xf32>
    %612 = tpu.matmul %611, %1, %cst_186 {dimension_numbers = #tpu.dot_dimension_numbers<[1], [0], [0], [1], [0, 0, 1, 1], [], []>} : vector<2x44xf32>, vector<44x96xf32>, vector<2x96xf32> -> vector<2x96xf32>
    %613 = vector.broadcast %5 : vector<1x96xf32> to vector<2x96xf32>
    %614 = arith.addf %612, %613 : vector<2x96xf32>
    %cst_187 = arith.constant dense<0.000000e+00> : vector<2x96xf32>
    %615 = tpu.matmul %448, %3, %cst_187 {dimension_numbers = #tpu.dot_dimension_numbers<[1], [0], [0], [1], [0, 0, 1, 1], [], []>} : vector<2x32xf32>, vector<32x96xf32>, vector<2x96xf32> -> vector<2x96xf32>
    %616 = vector.broadcast %7 : vector<1x96xf32> to vector<2x96xf32>
    %617 = arith.addf %615, %616 : vector<2x96xf32>
    %618 = vector.extract_strided_slice %614 {offsets = [0, 0], sizes = [2, 32], strides = [1, 1]} : vector<2x96xf32> to vector<2x32xf32>
    %619 = vector.extract_strided_slice %617 {offsets = [0, 0], sizes = [2, 32], strides = [1, 1]} : vector<2x96xf32> to vector<2x32xf32>
    %620 = arith.addf %618, %619 : vector<2x32xf32>
    %621 = arith.negf %620 : vector<2x32xf32>
    %622 = math.exp %621 : vector<2x32xf32>
    %cst_188 = arith.constant 1.000000e+00 : f32
    %623 = vector.broadcast %cst_188 : f32 to vector<2x32xf32>
    %624 = arith.addf %623, %622 : vector<2x32xf32>
    %625 = arith.divf %623, %624 : vector<2x32xf32>
    %626 = vector.extract_strided_slice %614 {offsets = [0, 32], sizes = [2, 32], strides = [1, 1]} : vector<2x96xf32> to vector<2x32xf32>
    %627 = vector.extract_strided_slice %617 {offsets = [0, 32], sizes = [2, 32], strides = [1, 1]} : vector<2x96xf32> to vector<2x32xf32>
    %628 = arith.addf %626, %627 : vector<2x32xf32>
    %629 = arith.negf %628 : vector<2x32xf32>
    %630 = math.exp %629 : vector<2x32xf32>
    %cst_189 = arith.constant 1.000000e+00 : f32
    %631 = vector.broadcast %cst_189 : f32 to vector<2x32xf32>
    %632 = arith.addf %631, %630 : vector<2x32xf32>
    %633 = arith.divf %631, %632 : vector<2x32xf32>
    %634 = vector.extract_strided_slice %614 {offsets = [0, 64], sizes = [2, 32], strides = [1, 1]} : vector<2x96xf32> to vector<2x32xf32>
    %635 = vector.extract_strided_slice %617 {offsets = [0, 64], sizes = [2, 32], strides = [1, 1]} : vector<2x96xf32> to vector<2x32xf32>
    %636 = arith.mulf %625, %635 : vector<2x32xf32>
    %637 = arith.addf %634, %636 : vector<2x32xf32>
    %638 = math.tanh %637 : vector<2x32xf32>
    %cst_190 = arith.constant 1.000000e+00 : f32
    %639 = vector.broadcast %cst_190 : f32 to vector<2x32xf32>
    %640 = arith.subf %639, %633 : vector<2x32xf32>
    %641 = arith.mulf %640, %638 : vector<2x32xf32>
    %642 = arith.mulf %633, %448 : vector<2x32xf32>
    %643 = arith.addf %641, %642 : vector<2x32xf32>
    %644 = vector.broadcast %25 : vector<1x32xf32> to vector<2x32xf32>
    %645 = arith.mulf %92, %644 : vector<2x32xf32>
    %cst_191 = arith.constant dense<0.000000e+00> : vector<2xf32>
    %646 = vector.multi_reduction <add>, %645, %cst_191 [1] : vector<2x32xf32> to vector<2xf32>
    %647 = vector.shape_cast %646 : vector<2xf32> to vector<2x1xf32>
    %648 = vector.broadcast %25 : vector<1x32xf32> to vector<2x32xf32>
    %649 = arith.mulf %265, %648 : vector<2x32xf32>
    %cst_192 = arith.constant dense<0.000000e+00> : vector<2xf32>
    %650 = vector.multi_reduction <add>, %649, %cst_192 [1] : vector<2x32xf32> to vector<2xf32>
    %651 = vector.shape_cast %650 : vector<2xf32> to vector<2x1xf32>
    %652 = vector.broadcast %25 : vector<1x32xf32> to vector<2x32xf32>
    %653 = arith.mulf %448, %652 : vector<2x32xf32>
    %cst_193 = arith.constant dense<0.000000e+00> : vector<2xf32>
    %654 = vector.multi_reduction <add>, %653, %cst_193 [1] : vector<2x32xf32> to vector<2xf32>
    %655 = vector.shape_cast %654 : vector<2xf32> to vector<2x1xf32>
    %656 = arith.maximumf %647, %651 : vector<2x1xf32>
    %657 = arith.maximumf %656, %655 : vector<2x1xf32>
    %658 = arith.subf %647, %657 : vector<2x1xf32>
    %659 = math.exp %658 : vector<2x1xf32>
    %660 = arith.subf %651, %657 : vector<2x1xf32>
    %661 = math.exp %660 : vector<2x1xf32>
    %662 = arith.subf %655, %657 : vector<2x1xf32>
    %663 = math.exp %662 : vector<2x1xf32>
    %664 = arith.addf %659, %661 : vector<2x1xf32>
    %665 = arith.addf %664, %663 : vector<2x1xf32>
    %cst_194 = arith.constant 1.000000e+00 : f32
    %666 = vector.broadcast %cst_194 : f32 to vector<2x1xf32>
    %667 = arith.divf %666, %665 : vector<2x1xf32>
    %668 = arith.mulf %659, %667 : vector<2x1xf32>
    %669 = vector.broadcast %668 : vector<2x1xf32> to vector<2x32xf32>
    %670 = arith.mulf %669, %92 : vector<2x32xf32>
    %671 = arith.mulf %661, %667 : vector<2x1xf32>
    %672 = vector.broadcast %671 : vector<2x1xf32> to vector<2x32xf32>
    %673 = arith.mulf %672, %265 : vector<2x32xf32>
    %674 = arith.addf %670, %673 : vector<2x32xf32>
    %675 = arith.mulf %663, %667 : vector<2x1xf32>
    %676 = vector.broadcast %675 : vector<2x1xf32> to vector<2x32xf32>
    %677 = arith.mulf %676, %448 : vector<2x32xf32>
    %678 = arith.addf %674, %677 : vector<2x32xf32>
    %679 = tpu.concatenate %585, %678 in 1 : vector<2x24xf32>, vector<2x32xf32> -> vector<2x56xf32>
    %cst_195 = arith.constant dense<0.000000e+00> : vector<2x72xf32>
    %680 = tpu.matmul %679, %9, %cst_195 {dimension_numbers = #tpu.dot_dimension_numbers<[1], [0], [0], [1], [0, 0, 1, 1], [], []>} : vector<2x56xf32>, vector<56x72xf32>, vector<2x72xf32> -> vector<2x72xf32>
    %681 = vector.broadcast %13 : vector<1x72xf32> to vector<2x72xf32>
    %682 = arith.addf %680, %681 : vector<2x72xf32>
    %cst_196 = arith.constant dense<0.000000e+00> : vector<2x72xf32>
    %683 = tpu.matmul %512, %11, %cst_196 {dimension_numbers = #tpu.dot_dimension_numbers<[1], [0], [0], [1], [0, 0, 1, 1], [], []>} : vector<2x24xf32>, vector<24x72xf32>, vector<2x72xf32> -> vector<2x72xf32>
    %684 = vector.broadcast %15 : vector<1x72xf32> to vector<2x72xf32>
    %685 = arith.addf %683, %684 : vector<2x72xf32>
    %686 = vector.extract_strided_slice %682 {offsets = [0, 0], sizes = [2, 24], strides = [1, 1]} : vector<2x72xf32> to vector<2x24xf32>
    %687 = vector.extract_strided_slice %685 {offsets = [0, 0], sizes = [2, 24], strides = [1, 1]} : vector<2x72xf32> to vector<2x24xf32>
    %688 = arith.addf %686, %687 : vector<2x24xf32>
    %689 = arith.negf %688 : vector<2x24xf32>
    %690 = math.exp %689 : vector<2x24xf32>
    %cst_197 = arith.constant 1.000000e+00 : f32
    %691 = vector.broadcast %cst_197 : f32 to vector<2x24xf32>
    %692 = arith.addf %691, %690 : vector<2x24xf32>
    %693 = arith.divf %691, %692 : vector<2x24xf32>
    %694 = vector.extract_strided_slice %682 {offsets = [0, 24], sizes = [2, 24], strides = [1, 1]} : vector<2x72xf32> to vector<2x24xf32>
    %695 = vector.extract_strided_slice %685 {offsets = [0, 24], sizes = [2, 24], strides = [1, 1]} : vector<2x72xf32> to vector<2x24xf32>
    %696 = arith.addf %694, %695 : vector<2x24xf32>
    %697 = arith.negf %696 : vector<2x24xf32>
    %698 = math.exp %697 : vector<2x24xf32>
    %cst_198 = arith.constant 1.000000e+00 : f32
    %699 = vector.broadcast %cst_198 : f32 to vector<2x24xf32>
    %700 = arith.addf %699, %698 : vector<2x24xf32>
    %701 = arith.divf %699, %700 : vector<2x24xf32>
    %702 = vector.extract_strided_slice %682 {offsets = [0, 48], sizes = [2, 24], strides = [1, 1]} : vector<2x72xf32> to vector<2x24xf32>
    %703 = vector.extract_strided_slice %685 {offsets = [0, 48], sizes = [2, 24], strides = [1, 1]} : vector<2x72xf32> to vector<2x24xf32>
    %704 = arith.mulf %693, %703 : vector<2x24xf32>
    %705 = arith.addf %702, %704 : vector<2x24xf32>
    %706 = math.tanh %705 : vector<2x24xf32>
    %cst_199 = arith.constant 1.000000e+00 : f32
    %707 = vector.broadcast %cst_199 : f32 to vector<2x24xf32>
    %708 = arith.subf %707, %701 : vector<2x24xf32>
    %709 = arith.mulf %708, %706 : vector<2x24xf32>
    %710 = arith.mulf %701, %512 : vector<2x24xf32>
    %711 = arith.addf %709, %710 : vector<2x24xf32>
    %712 = vector.extract_strided_slice %589 {offsets = [0, 0], sizes = [2, 1], strides = [1, 1]} : vector<2x2xf32> to vector<2x1xf32>
    %cst_200 = arith.constant 1.000000e+00 : f32
    %713 = vector.broadcast %cst_200 : f32 to vector<2x1xf32>
    %714 = arith.subf %713, %712 : vector<2x1xf32>
    %715 = vector.broadcast %714 : vector<2x1xf32> to vector<2x24xf32>
    %716 = arith.mulf %512, %715 : vector<2x24xf32>
    %717 = vector.broadcast %712 : vector<2x1xf32> to vector<2x24xf32>
    %718 = arith.mulf %711, %717 : vector<2x24xf32>
    %719 = arith.addf %716, %718 : vector<2x24xf32>
    %cst_201 = arith.constant dense<0.000000e+00> : vector<2x72xf32>
    %720 = tpu.matmul %549, %11, %cst_201 {dimension_numbers = #tpu.dot_dimension_numbers<[1], [0], [0], [1], [0, 0, 1, 1], [], []>} : vector<2x24xf32>, vector<24x72xf32>, vector<2x72xf32> -> vector<2x72xf32>
    %721 = vector.broadcast %15 : vector<1x72xf32> to vector<2x72xf32>
    %722 = arith.addf %720, %721 : vector<2x72xf32>
    %723 = vector.extract_strided_slice %682 {offsets = [0, 0], sizes = [2, 24], strides = [1, 1]} : vector<2x72xf32> to vector<2x24xf32>
    %724 = vector.extract_strided_slice %722 {offsets = [0, 0], sizes = [2, 24], strides = [1, 1]} : vector<2x72xf32> to vector<2x24xf32>
    %725 = arith.addf %723, %724 : vector<2x24xf32>
    %726 = arith.negf %725 : vector<2x24xf32>
    %727 = math.exp %726 : vector<2x24xf32>
    %cst_202 = arith.constant 1.000000e+00 : f32
    %728 = vector.broadcast %cst_202 : f32 to vector<2x24xf32>
    %729 = arith.addf %728, %727 : vector<2x24xf32>
    %730 = arith.divf %728, %729 : vector<2x24xf32>
    %731 = vector.extract_strided_slice %682 {offsets = [0, 24], sizes = [2, 24], strides = [1, 1]} : vector<2x72xf32> to vector<2x24xf32>
    %732 = vector.extract_strided_slice %722 {offsets = [0, 24], sizes = [2, 24], strides = [1, 1]} : vector<2x72xf32> to vector<2x24xf32>
    %733 = arith.addf %731, %732 : vector<2x24xf32>
    %734 = arith.negf %733 : vector<2x24xf32>
    %735 = math.exp %734 : vector<2x24xf32>
    %cst_203 = arith.constant 1.000000e+00 : f32
    %736 = vector.broadcast %cst_203 : f32 to vector<2x24xf32>
    %737 = arith.addf %736, %735 : vector<2x24xf32>
    %738 = arith.divf %736, %737 : vector<2x24xf32>
    %739 = vector.extract_strided_slice %682 {offsets = [0, 48], sizes = [2, 24], strides = [1, 1]} : vector<2x72xf32> to vector<2x24xf32>
    %740 = vector.extract_strided_slice %722 {offsets = [0, 48], sizes = [2, 24], strides = [1, 1]} : vector<2x72xf32> to vector<2x24xf32>
    %741 = arith.mulf %730, %740 : vector<2x24xf32>
    %742 = arith.addf %739, %741 : vector<2x24xf32>
    %743 = math.tanh %742 : vector<2x24xf32>
    %cst_204 = arith.constant 1.000000e+00 : f32
    %744 = vector.broadcast %cst_204 : f32 to vector<2x24xf32>
    %745 = arith.subf %744, %738 : vector<2x24xf32>
    %746 = arith.mulf %745, %743 : vector<2x24xf32>
    %747 = arith.mulf %738, %549 : vector<2x24xf32>
    %748 = arith.addf %746, %747 : vector<2x24xf32>
    %749 = vector.extract_strided_slice %589 {offsets = [0, 1], sizes = [2, 1], strides = [1, 1]} : vector<2x2xf32> to vector<2x1xf32>
    %cst_205 = arith.constant 1.000000e+00 : f32
    %750 = vector.broadcast %cst_205 : f32 to vector<2x1xf32>
    %751 = arith.subf %750, %749 : vector<2x1xf32>
    %752 = vector.broadcast %751 : vector<2x1xf32> to vector<2x24xf32>
    %753 = arith.mulf %549, %752 : vector<2x24xf32>
    %754 = vector.broadcast %749 : vector<2x1xf32> to vector<2x24xf32>
    %755 = arith.mulf %748, %754 : vector<2x24xf32>
    %756 = arith.addf %753, %755 : vector<2x24xf32>
    %757 = vector.extract_strided_slice %603 {offsets = [0, 0], sizes = [2, 1], strides = [1, 1]} : vector<2x2xf32> to vector<2x1xf32>
    %758 = vector.broadcast %757 : vector<2x1xf32> to vector<2x24xf32>
    %759 = arith.mulf %758, %719 : vector<2x24xf32>
    %760 = vector.extract_strided_slice %603 {offsets = [0, 1], sizes = [2, 1], strides = [1, 1]} : vector<2x2xf32> to vector<2x1xf32>
    %761 = vector.broadcast %760 : vector<2x1xf32> to vector<2x24xf32>
    %762 = arith.mulf %761, %756 : vector<2x24xf32>
    %763 = arith.addf %759, %762 : vector<2x24xf32>
    %764 = vector.extract_strided_slice %591 {offsets = [0, 1], sizes = [2, 1], strides = [1, 1]} : vector<2x2xf32> to vector<2x1xf32>
    %cst_206 = arith.constant 1.000000e+00 : f32
    %765 = vector.broadcast %cst_206 : f32 to vector<2x1xf32>
    %766 = arith.subf %765, %764 : vector<2x1xf32>
    %cst_207 = arith.constant dense<0.000000e+00> : vector<2x16xf32>
    %767 = tpu.matmul %763, %17, %cst_207 {dimension_numbers = #tpu.dot_dimension_numbers<[1], [0], [0], [1], [0, 0, 1, 1], [], []>} : vector<2x24xf32>, vector<24x16xf32>, vector<2x16xf32> -> vector<2x16xf32>
    %768 = vector.broadcast %19 : vector<1x16xf32> to vector<2x16xf32>
    %769 = arith.addf %767, %768 : vector<2x16xf32>
    %770 = vector.broadcast %766 : vector<2x1xf32> to vector<2x16xf32>
    %771 = arith.mulf %770, %576 : vector<2x16xf32>
    %cst_208 = arith.constant dense<0.000000e+00> : vector<2x16xf32>
    %772 = tpu.matmul %771, %21, %cst_208 {dimension_numbers = #tpu.dot_dimension_numbers<[1], [0], [0], [1], [0, 0, 1, 1], [], []>} : vector<2x16xf32>, vector<16x16xf32>, vector<2x16xf32> -> vector<2x16xf32>
    %773 = arith.addf %769, %772 : vector<2x16xf32>
    %774 = vector.broadcast %23 : vector<1x16xf32> to vector<2x16xf32>
    %775 = arith.addf %773, %774 : vector<2x16xf32>
    %776 = math.tanh %775 : vector<2x16xf32>
    %777 = vector.broadcast %766 : vector<2x1xf32> to vector<2x16xf32>
    %778 = arith.mulf %777, %576 : vector<2x16xf32>
    %cst_209 = arith.constant 1.000000e+00 : f32
    %779 = vector.broadcast %cst_209 : f32 to vector<2x1xf32>
    %780 = arith.subf %779, %766 : vector<2x1xf32>
    %781 = vector.broadcast %780 : vector<2x1xf32> to vector<2x16xf32>
    %782 = arith.mulf %781, %776 : vector<2x16xf32>
    %783 = arith.addf %778, %782 : vector<2x16xf32>
    %cst_210 = arith.constant dense<0.000000e+00> : vector<2x32xf32>
    %784 = tpu.matmul %783, %26, %cst_210 {dimension_numbers = #tpu.dot_dimension_numbers<[1], [0], [0], [1], [0, 0, 1, 1], [], []>} : vector<2x16xf32>, vector<16x32xf32>, vector<2x32xf32> -> vector<2x32xf32>
    %785 = vector.broadcast %27 : vector<1x32xf32> to vector<2x32xf32>
    %786 = arith.addf %784, %785 : vector<2x32xf32>
    %787 = vector.shape_cast %786 : vector<2x32xf32> to vector<2x1x32xf32>
    %c0_211 = arith.constant 0 : index
    %c0_212 = arith.constant 0 : index
    %c3_213 = arith.constant 3 : index
    %c0_214 = arith.constant 0 : index
    %788 = vector.load %arg20[%c0_211, %c0_212, %c3_213, %c0_214] : memref<1x2x6x32xf32, #tpu.memory_space<vmem>>, vector<1x2x1x32xf32>
    %789 = vector.shape_cast %788 : vector<1x2x1x32xf32> to vector<2x1x32xf32>
    %790 = vector.shape_cast %787 : vector<2x1x32xf32> to vector<1x2x1x32xf32>
    tpu.vector_store %arg20[%c0_211, %c0_212, %c3_213, %c0_214], %790 {strides = array<i32>} : memref<1x2x6x32xf32, #tpu.memory_space<vmem>>, vector<1x2x1x32xf32>,
    %c0_215 = arith.constant 0 : index
    %c4 = arith.constant 4 : index
    %c0_216 = arith.constant 0 : index
    %c0_217 = arith.constant 0 : index
    %791 = vector.load %arg1[%c0_215, %c4, %c0_216, %c0_217] : memref<1x6x2x24xf32, #tpu.memory_space<vmem>>, vector<1x1x2x24xf32>
    %792 = vector.shape_cast %791 : vector<1x1x2x24xf32> to vector<2x24xf32>
    %c4_218 = arith.constant 4 : index
    %c0_219 = arith.constant 0 : index
    %c0_220 = arith.constant 0 : index
    %793 = vector.load %arg2[%c4_218, %c0_219, %c0_220] : memref<6x2x20xf32, #tpu.memory_space<vmem>>, vector<1x2x20xf32>
    %794 = vector.shape_cast %793 : vector<1x2x20xf32> to vector<2x20xf32>
    %c4_221 = arith.constant 4 : index
    %c0_222 = arith.constant 0 : index
    %c0_223 = arith.constant 0 : index
    %795 = vector.load %arg3[%c4_221, %c0_222, %c0_223] : memref<6x2x2xf32, #tpu.memory_space<vmem>>, vector<1x2x2xf32>
    %796 = vector.shape_cast %795 : vector<1x2x2xf32> to vector<2x2xf32>
    %c4_224 = arith.constant 4 : index
    %c0_225 = arith.constant 0 : index
    %c0_226 = arith.constant 0 : index
    %797 = vector.load %arg4[%c4_224, %c0_225, %c0_226] : memref<6x2x2xf32, #tpu.memory_space<vmem>>, vector<1x2x2xf32>
    %798 = vector.shape_cast %797 : vector<1x2x2xf32> to vector<2x2xf32>
    %cst_227 = arith.constant dense<0xFF800000> : vector<2xf32>
    %799 = vector.multi_reduction <maximumf>, %796, %cst_227 [1] : vector<2x2xf32> to vector<2xf32>
    %800 = vector.shape_cast %799 : vector<2xf32> to vector<2x1xf32>
    %801 = vector.broadcast %800 : vector<2x1xf32> to vector<2x2xf32>
    %802 = arith.cmpf oeq, %796, %801 : vector<2x2xf32>
    %c2_i32_228 = arith.constant 2 : i32
    %803 = vector.broadcast %c2_i32_228 : i32 to vector<2x2xi32>
    %804 = arith.select %802, %28, %803 : vector<2x2xi1>, vector<2x2xi32>
    %cst_229 = arith.constant dense<2147483647> : vector<2xi32>
    %805 = vector.multi_reduction <minsi>, %804, %cst_229 [1] : vector<2x2xi32> to vector<2xi32>
    %806 = vector.shape_cast %805 : vector<2xi32> to vector<2x1xi32>
    %807 = vector.broadcast %806 : vector<2x1xi32> to vector<2x2xi32>
    %808 = arith.cmpi eq, %28, %807 : vector<2x2xi32>
    %809 = arith.extui %808 : vector<2x2xi1> to vector<2x2xi32>
    %810 = arith.sitofp %809 : vector<2x2xi32> to vector<2x2xf32>
    %811 = vector.extract_strided_slice %810 {offsets = [0, 0], sizes = [2, 1], strides = [1, 1]} : vector<2x2xf32> to vector<2x1xf32>
    %812 = vector.broadcast %811 : vector<2x1xf32> to vector<2x24xf32>
    %813 = arith.mulf %812, %719 : vector<2x24xf32>
    %814 = vector.extract_strided_slice %810 {offsets = [0, 1], sizes = [2, 1], strides = [1, 1]} : vector<2x2xf32> to vector<2x1xf32>
    %815 = vector.broadcast %814 : vector<2x1xf32> to vector<2x24xf32>
    %816 = arith.mulf %815, %756 : vector<2x24xf32>
    %817 = arith.addf %813, %816 : vector<2x24xf32>
    %818 = tpu.concatenate %794, %817 in 1 : vector<2x20xf32>, vector<2x24xf32> -> vector<2x44xf32>
    %cst_230 = arith.constant dense<0.000000e+00> : vector<2x96xf32>
    %819 = tpu.matmul %818, %1, %cst_230 {dimension_numbers = #tpu.dot_dimension_numbers<[1], [0], [0], [1], [0, 0, 1, 1], [], []>} : vector<2x44xf32>, vector<44x96xf32>, vector<2x96xf32> -> vector<2x96xf32>
    %820 = vector.broadcast %5 : vector<1x96xf32> to vector<2x96xf32>
    %821 = arith.addf %819, %820 : vector<2x96xf32>
    %cst_231 = arith.constant dense<0.000000e+00> : vector<2x96xf32>
    %822 = tpu.matmul %643, %3, %cst_231 {dimension_numbers = #tpu.dot_dimension_numbers<[1], [0], [0], [1], [0, 0, 1, 1], [], []>} : vector<2x32xf32>, vector<32x96xf32>, vector<2x96xf32> -> vector<2x96xf32>
    %823 = vector.broadcast %7 : vector<1x96xf32> to vector<2x96xf32>
    %824 = arith.addf %822, %823 : vector<2x96xf32>
    %825 = vector.extract_strided_slice %821 {offsets = [0, 0], sizes = [2, 32], strides = [1, 1]} : vector<2x96xf32> to vector<2x32xf32>
    %826 = vector.extract_strided_slice %824 {offsets = [0, 0], sizes = [2, 32], strides = [1, 1]} : vector<2x96xf32> to vector<2x32xf32>
    %827 = arith.addf %825, %826 : vector<2x32xf32>
    %828 = arith.negf %827 : vector<2x32xf32>
    %829 = math.exp %828 : vector<2x32xf32>
    %cst_232 = arith.constant 1.000000e+00 : f32
    %830 = vector.broadcast %cst_232 : f32 to vector<2x32xf32>
    %831 = arith.addf %830, %829 : vector<2x32xf32>
    %832 = arith.divf %830, %831 : vector<2x32xf32>
    %833 = vector.extract_strided_slice %821 {offsets = [0, 32], sizes = [2, 32], strides = [1, 1]} : vector<2x96xf32> to vector<2x32xf32>
    %834 = vector.extract_strided_slice %824 {offsets = [0, 32], sizes = [2, 32], strides = [1, 1]} : vector<2x96xf32> to vector<2x32xf32>
    %835 = arith.addf %833, %834 : vector<2x32xf32>
    %836 = arith.negf %835 : vector<2x32xf32>
    %837 = math.exp %836 : vector<2x32xf32>
    %cst_233 = arith.constant 1.000000e+00 : f32
    %838 = vector.broadcast %cst_233 : f32 to vector<2x32xf32>
    %839 = arith.addf %838, %837 : vector<2x32xf32>
    %840 = arith.divf %838, %839 : vector<2x32xf32>
    %841 = vector.extract_strided_slice %821 {offsets = [0, 64], sizes = [2, 32], strides = [1, 1]} : vector<2x96xf32> to vector<2x32xf32>
    %842 = vector.extract_strided_slice %824 {offsets = [0, 64], sizes = [2, 32], strides = [1, 1]} : vector<2x96xf32> to vector<2x32xf32>
    %843 = arith.mulf %832, %842 : vector<2x32xf32>
    %844 = arith.addf %841, %843 : vector<2x32xf32>
    %845 = math.tanh %844 : vector<2x32xf32>
    %cst_234 = arith.constant 1.000000e+00 : f32
    %846 = vector.broadcast %cst_234 : f32 to vector<2x32xf32>
    %847 = arith.subf %846, %840 : vector<2x32xf32>
    %848 = arith.mulf %847, %845 : vector<2x32xf32>
    %849 = arith.mulf %840, %643 : vector<2x32xf32>
    %850 = arith.addf %848, %849 : vector<2x32xf32>
    %851 = vector.broadcast %25 : vector<1x32xf32> to vector<2x32xf32>
    %852 = arith.mulf %92, %851 : vector<2x32xf32>
    %cst_235 = arith.constant dense<0.000000e+00> : vector<2xf32>
    %853 = vector.multi_reduction <add>, %852, %cst_235 [1] : vector<2x32xf32> to vector<2xf32>
    %854 = vector.shape_cast %853 : vector<2xf32> to vector<2x1xf32>
    %855 = vector.broadcast %25 : vector<1x32xf32> to vector<2x32xf32>
    %856 = arith.mulf %265, %855 : vector<2x32xf32>
    %cst_236 = arith.constant dense<0.000000e+00> : vector<2xf32>
    %857 = vector.multi_reduction <add>, %856, %cst_236 [1] : vector<2x32xf32> to vector<2xf32>
    %858 = vector.shape_cast %857 : vector<2xf32> to vector<2x1xf32>
    %859 = vector.broadcast %25 : vector<1x32xf32> to vector<2x32xf32>
    %860 = arith.mulf %448, %859 : vector<2x32xf32>
    %cst_237 = arith.constant dense<0.000000e+00> : vector<2xf32>
    %861 = vector.multi_reduction <add>, %860, %cst_237 [1] : vector<2x32xf32> to vector<2xf32>
    %862 = vector.shape_cast %861 : vector<2xf32> to vector<2x1xf32>
    %863 = vector.broadcast %25 : vector<1x32xf32> to vector<2x32xf32>
    %864 = arith.mulf %643, %863 : vector<2x32xf32>
    %cst_238 = arith.constant dense<0.000000e+00> : vector<2xf32>
    %865 = vector.multi_reduction <add>, %864, %cst_238 [1] : vector<2x32xf32> to vector<2xf32>
    %866 = vector.shape_cast %865 : vector<2xf32> to vector<2x1xf32>
    %867 = arith.maximumf %854, %858 : vector<2x1xf32>
    %868 = arith.maximumf %867, %862 : vector<2x1xf32>
    %869 = arith.maximumf %868, %866 : vector<2x1xf32>
    %870 = arith.subf %854, %869 : vector<2x1xf32>
    %871 = math.exp %870 : vector<2x1xf32>
    %872 = arith.subf %858, %869 : vector<2x1xf32>
    %873 = math.exp %872 : vector<2x1xf32>
    %874 = arith.subf %862, %869 : vector<2x1xf32>
    %875 = math.exp %874 : vector<2x1xf32>
    %876 = arith.subf %866, %869 : vector<2x1xf32>
    %877 = math.exp %876 : vector<2x1xf32>
    %878 = arith.addf %871, %873 : vector<2x1xf32>
    %879 = arith.addf %878, %875 : vector<2x1xf32>
    %880 = arith.addf %879, %877 : vector<2x1xf32>
    %cst_239 = arith.constant 1.000000e+00 : f32
    %881 = vector.broadcast %cst_239 : f32 to vector<2x1xf32>
    %882 = arith.divf %881, %880 : vector<2x1xf32>
    %883 = arith.mulf %871, %882 : vector<2x1xf32>
    %884 = vector.broadcast %883 : vector<2x1xf32> to vector<2x32xf32>
    %885 = arith.mulf %884, %92 : vector<2x32xf32>
    %886 = arith.mulf %873, %882 : vector<2x1xf32>
    %887 = vector.broadcast %886 : vector<2x1xf32> to vector<2x32xf32>
    %888 = arith.mulf %887, %265 : vector<2x32xf32>
    %889 = arith.addf %885, %888 : vector<2x32xf32>
    %890 = arith.mulf %875, %882 : vector<2x1xf32>
    %891 = vector.broadcast %890 : vector<2x1xf32> to vector<2x32xf32>
    %892 = arith.mulf %891, %448 : vector<2x32xf32>
    %893 = arith.addf %889, %892 : vector<2x32xf32>
    %894 = arith.mulf %877, %882 : vector<2x1xf32>
    %895 = vector.broadcast %894 : vector<2x1xf32> to vector<2x32xf32>
    %896 = arith.mulf %895, %643 : vector<2x32xf32>
    %897 = arith.addf %893, %896 : vector<2x32xf32>
    %898 = tpu.concatenate %792, %897 in 1 : vector<2x24xf32>, vector<2x32xf32> -> vector<2x56xf32>
    %cst_240 = arith.constant dense<0.000000e+00> : vector<2x72xf32>
    %899 = tpu.matmul %898, %9, %cst_240 {dimension_numbers = #tpu.dot_dimension_numbers<[1], [0], [0], [1], [0, 0, 1, 1], [], []>} : vector<2x56xf32>, vector<56x72xf32>, vector<2x72xf32> -> vector<2x72xf32>
    %900 = vector.broadcast %13 : vector<1x72xf32> to vector<2x72xf32>
    %901 = arith.addf %899, %900 : vector<2x72xf32>
    %cst_241 = arith.constant dense<0.000000e+00> : vector<2x72xf32>
    %902 = tpu.matmul %719, %11, %cst_241 {dimension_numbers = #tpu.dot_dimension_numbers<[1], [0], [0], [1], [0, 0, 1, 1], [], []>} : vector<2x24xf32>, vector<24x72xf32>, vector<2x72xf32> -> vector<2x72xf32>
    %903 = vector.broadcast %15 : vector<1x72xf32> to vector<2x72xf32>
    %904 = arith.addf %902, %903 : vector<2x72xf32>
    %905 = vector.extract_strided_slice %901 {offsets = [0, 0], sizes = [2, 24], strides = [1, 1]} : vector<2x72xf32> to vector<2x24xf32>
    %906 = vector.extract_strided_slice %904 {offsets = [0, 0], sizes = [2, 24], strides = [1, 1]} : vector<2x72xf32> to vector<2x24xf32>
    %907 = arith.addf %905, %906 : vector<2x24xf32>
    %908 = arith.negf %907 : vector<2x24xf32>
    %909 = math.exp %908 : vector<2x24xf32>
    %cst_242 = arith.constant 1.000000e+00 : f32
    %910 = vector.broadcast %cst_242 : f32 to vector<2x24xf32>
    %911 = arith.addf %910, %909 : vector<2x24xf32>
    %912 = arith.divf %910, %911 : vector<2x24xf32>
    %913 = vector.extract_strided_slice %901 {offsets = [0, 24], sizes = [2, 24], strides = [1, 1]} : vector<2x72xf32> to vector<2x24xf32>
    %914 = vector.extract_strided_slice %904 {offsets = [0, 24], sizes = [2, 24], strides = [1, 1]} : vector<2x72xf32> to vector<2x24xf32>
    %915 = arith.addf %913, %914 : vector<2x24xf32>
    %916 = arith.negf %915 : vector<2x24xf32>
    %917 = math.exp %916 : vector<2x24xf32>
    %cst_243 = arith.constant 1.000000e+00 : f32
    %918 = vector.broadcast %cst_243 : f32 to vector<2x24xf32>
    %919 = arith.addf %918, %917 : vector<2x24xf32>
    %920 = arith.divf %918, %919 : vector<2x24xf32>
    %921 = vector.extract_strided_slice %901 {offsets = [0, 48], sizes = [2, 24], strides = [1, 1]} : vector<2x72xf32> to vector<2x24xf32>
    %922 = vector.extract_strided_slice %904 {offsets = [0, 48], sizes = [2, 24], strides = [1, 1]} : vector<2x72xf32> to vector<2x24xf32>
    %923 = arith.mulf %912, %922 : vector<2x24xf32>
    %924 = arith.addf %921, %923 : vector<2x24xf32>
    %925 = math.tanh %924 : vector<2x24xf32>
    %cst_244 = arith.constant 1.000000e+00 : f32
    %926 = vector.broadcast %cst_244 : f32 to vector<2x24xf32>
    %927 = arith.subf %926, %920 : vector<2x24xf32>
    %928 = arith.mulf %927, %925 : vector<2x24xf32>
    %929 = arith.mulf %920, %719 : vector<2x24xf32>
    %930 = arith.addf %928, %929 : vector<2x24xf32>
    %931 = vector.extract_strided_slice %796 {offsets = [0, 0], sizes = [2, 1], strides = [1, 1]} : vector<2x2xf32> to vector<2x1xf32>
    %cst_245 = arith.constant 1.000000e+00 : f32
    %932 = vector.broadcast %cst_245 : f32 to vector<2x1xf32>
    %933 = arith.subf %932, %931 : vector<2x1xf32>
    %934 = vector.broadcast %933 : vector<2x1xf32> to vector<2x24xf32>
    %935 = arith.mulf %719, %934 : vector<2x24xf32>
    %936 = vector.broadcast %931 : vector<2x1xf32> to vector<2x24xf32>
    %937 = arith.mulf %930, %936 : vector<2x24xf32>
    %938 = arith.addf %935, %937 : vector<2x24xf32>
    %cst_246 = arith.constant dense<0.000000e+00> : vector<2x72xf32>
    %939 = tpu.matmul %756, %11, %cst_246 {dimension_numbers = #tpu.dot_dimension_numbers<[1], [0], [0], [1], [0, 0, 1, 1], [], []>} : vector<2x24xf32>, vector<24x72xf32>, vector<2x72xf32> -> vector<2x72xf32>
    %940 = vector.broadcast %15 : vector<1x72xf32> to vector<2x72xf32>
    %941 = arith.addf %939, %940 : vector<2x72xf32>
    %942 = vector.extract_strided_slice %901 {offsets = [0, 0], sizes = [2, 24], strides = [1, 1]} : vector<2x72xf32> to vector<2x24xf32>
    %943 = vector.extract_strided_slice %941 {offsets = [0, 0], sizes = [2, 24], strides = [1, 1]} : vector<2x72xf32> to vector<2x24xf32>
    %944 = arith.addf %942, %943 : vector<2x24xf32>
    %945 = arith.negf %944 : vector<2x24xf32>
    %946 = math.exp %945 : vector<2x24xf32>
    %cst_247 = arith.constant 1.000000e+00 : f32
    %947 = vector.broadcast %cst_247 : f32 to vector<2x24xf32>
    %948 = arith.addf %947, %946 : vector<2x24xf32>
    %949 = arith.divf %947, %948 : vector<2x24xf32>
    %950 = vector.extract_strided_slice %901 {offsets = [0, 24], sizes = [2, 24], strides = [1, 1]} : vector<2x72xf32> to vector<2x24xf32>
    %951 = vector.extract_strided_slice %941 {offsets = [0, 24], sizes = [2, 24], strides = [1, 1]} : vector<2x72xf32> to vector<2x24xf32>
    %952 = arith.addf %950, %951 : vector<2x24xf32>
    %953 = arith.negf %952 : vector<2x24xf32>
    %954 = math.exp %953 : vector<2x24xf32>
    %cst_248 = arith.constant 1.000000e+00 : f32
    %955 = vector.broadcast %cst_248 : f32 to vector<2x24xf32>
    %956 = arith.addf %955, %954 : vector<2x24xf32>
    %957 = arith.divf %955, %956 : vector<2x24xf32>
    %958 = vector.extract_strided_slice %901 {offsets = [0, 48], sizes = [2, 24], strides = [1, 1]} : vector<2x72xf32> to vector<2x24xf32>
    %959 = vector.extract_strided_slice %941 {offsets = [0, 48], sizes = [2, 24], strides = [1, 1]} : vector<2x72xf32> to vector<2x24xf32>
    %960 = arith.mulf %949, %959 : vector<2x24xf32>
    %961 = arith.addf %958, %960 : vector<2x24xf32>
    %962 = math.tanh %961 : vector<2x24xf32>
    %cst_249 = arith.constant 1.000000e+00 : f32
    %963 = vector.broadcast %cst_249 : f32 to vector<2x24xf32>
    %964 = arith.subf %963, %957 : vector<2x24xf32>
    %965 = arith.mulf %964, %962 : vector<2x24xf32>
    %966 = arith.mulf %957, %756 : vector<2x24xf32>
    %967 = arith.addf %965, %966 : vector<2x24xf32>
    %968 = vector.extract_strided_slice %796 {offsets = [0, 1], sizes = [2, 1], strides = [1, 1]} : vector<2x2xf32> to vector<2x1xf32>
    %cst_250 = arith.constant 1.000000e+00 : f32
    %969 = vector.broadcast %cst_250 : f32 to vector<2x1xf32>
    %970 = arith.subf %969, %968 : vector<2x1xf32>
    %971 = vector.broadcast %970 : vector<2x1xf32> to vector<2x24xf32>
    %972 = arith.mulf %756, %971 : vector<2x24xf32>
    %973 = vector.broadcast %968 : vector<2x1xf32> to vector<2x24xf32>
    %974 = arith.mulf %967, %973 : vector<2x24xf32>
    %975 = arith.addf %972, %974 : vector<2x24xf32>
    %976 = vector.extract_strided_slice %810 {offsets = [0, 0], sizes = [2, 1], strides = [1, 1]} : vector<2x2xf32> to vector<2x1xf32>
    %977 = vector.broadcast %976 : vector<2x1xf32> to vector<2x24xf32>
    %978 = arith.mulf %977, %938 : vector<2x24xf32>
    %979 = vector.extract_strided_slice %810 {offsets = [0, 1], sizes = [2, 1], strides = [1, 1]} : vector<2x2xf32> to vector<2x1xf32>
    %980 = vector.broadcast %979 : vector<2x1xf32> to vector<2x24xf32>
    %981 = arith.mulf %980, %975 : vector<2x24xf32>
    %982 = arith.addf %978, %981 : vector<2x24xf32>
    %983 = vector.extract_strided_slice %798 {offsets = [0, 1], sizes = [2, 1], strides = [1, 1]} : vector<2x2xf32> to vector<2x1xf32>
    %cst_251 = arith.constant 1.000000e+00 : f32
    %984 = vector.broadcast %cst_251 : f32 to vector<2x1xf32>
    %985 = arith.subf %984, %983 : vector<2x1xf32>
    %cst_252 = arith.constant dense<0.000000e+00> : vector<2x16xf32>
    %986 = tpu.matmul %982, %17, %cst_252 {dimension_numbers = #tpu.dot_dimension_numbers<[1], [0], [0], [1], [0, 0, 1, 1], [], []>} : vector<2x24xf32>, vector<24x16xf32>, vector<2x16xf32> -> vector<2x16xf32>
    %987 = vector.broadcast %19 : vector<1x16xf32> to vector<2x16xf32>
    %988 = arith.addf %986, %987 : vector<2x16xf32>
    %989 = vector.broadcast %985 : vector<2x1xf32> to vector<2x16xf32>
    %990 = arith.mulf %989, %783 : vector<2x16xf32>
    %cst_253 = arith.constant dense<0.000000e+00> : vector<2x16xf32>
    %991 = tpu.matmul %990, %21, %cst_253 {dimension_numbers = #tpu.dot_dimension_numbers<[1], [0], [0], [1], [0, 0, 1, 1], [], []>} : vector<2x16xf32>, vector<16x16xf32>, vector<2x16xf32> -> vector<2x16xf32>
    %992 = arith.addf %988, %991 : vector<2x16xf32>
    %993 = vector.broadcast %23 : vector<1x16xf32> to vector<2x16xf32>
    %994 = arith.addf %992, %993 : vector<2x16xf32>
    %995 = math.tanh %994 : vector<2x16xf32>
    %996 = vector.broadcast %985 : vector<2x1xf32> to vector<2x16xf32>
    %997 = arith.mulf %996, %783 : vector<2x16xf32>
    %cst_254 = arith.constant 1.000000e+00 : f32
    %998 = vector.broadcast %cst_254 : f32 to vector<2x1xf32>
    %999 = arith.subf %998, %985 : vector<2x1xf32>
    %1000 = vector.broadcast %999 : vector<2x1xf32> to vector<2x16xf32>
    %1001 = arith.mulf %1000, %995 : vector<2x16xf32>
    %1002 = arith.addf %997, %1001 : vector<2x16xf32>
    %cst_255 = arith.constant dense<0.000000e+00> : vector<2x32xf32>
    %1003 = tpu.matmul %1002, %26, %cst_255 {dimension_numbers = #tpu.dot_dimension_numbers<[1], [0], [0], [1], [0, 0, 1, 1], [], []>} : vector<2x16xf32>, vector<16x32xf32>, vector<2x32xf32> -> vector<2x32xf32>
    %1004 = vector.broadcast %27 : vector<1x32xf32> to vector<2x32xf32>
    %1005 = arith.addf %1003, %1004 : vector<2x32xf32>
    %1006 = vector.shape_cast %1005 : vector<2x32xf32> to vector<2x1x32xf32>
    %c0_256 = arith.constant 0 : index
    %c0_257 = arith.constant 0 : index
    %c4_258 = arith.constant 4 : index
    %c0_259 = arith.constant 0 : index
    %1007 = vector.load %arg20[%c0_256, %c0_257, %c4_258, %c0_259] : memref<1x2x6x32xf32, #tpu.memory_space<vmem>>, vector<1x2x1x32xf32>
    %1008 = vector.shape_cast %1007 : vector<1x2x1x32xf32> to vector<2x1x32xf32>
    %1009 = vector.shape_cast %1006 : vector<2x1x32xf32> to vector<1x2x1x32xf32>
    tpu.vector_store %arg20[%c0_256, %c0_257, %c4_258, %c0_259], %1009 {strides = array<i32>} : memref<1x2x6x32xf32, #tpu.memory_space<vmem>>, vector<1x2x1x32xf32>,
    %c0_260 = arith.constant 0 : index
    %c5 = arith.constant 5 : index
    %c0_261 = arith.constant 0 : index
    %c0_262 = arith.constant 0 : index
    %1010 = vector.load %arg1[%c0_260, %c5, %c0_261, %c0_262] : memref<1x6x2x24xf32, #tpu.memory_space<vmem>>, vector<1x1x2x24xf32>
    %1011 = vector.shape_cast %1010 : vector<1x1x2x24xf32> to vector<2x24xf32>
    %c5_263 = arith.constant 5 : index
    %c0_264 = arith.constant 0 : index
    %c0_265 = arith.constant 0 : index
    %1012 = vector.load %arg3[%c5_263, %c0_264, %c0_265] : memref<6x2x2xf32, #tpu.memory_space<vmem>>, vector<1x2x2xf32>
    %1013 = vector.shape_cast %1012 : vector<1x2x2xf32> to vector<2x2xf32>
    %c5_266 = arith.constant 5 : index
    %c0_267 = arith.constant 0 : index
    %c0_268 = arith.constant 0 : index
    %1014 = vector.load %arg4[%c5_266, %c0_267, %c0_268] : memref<6x2x2xf32, #tpu.memory_space<vmem>>, vector<1x2x2xf32>
    %1015 = vector.shape_cast %1014 : vector<1x2x2xf32> to vector<2x2xf32>
    %cst_269 = arith.constant dense<0xFF800000> : vector<2xf32>
    %1016 = vector.multi_reduction <maximumf>, %1013, %cst_269 [1] : vector<2x2xf32> to vector<2xf32>
    %1017 = vector.shape_cast %1016 : vector<2xf32> to vector<2x1xf32>
    %1018 = vector.broadcast %1017 : vector<2x1xf32> to vector<2x2xf32>
    %1019 = arith.cmpf oeq, %1013, %1018 : vector<2x2xf32>
    %c2_i32_270 = arith.constant 2 : i32
    %1020 = vector.broadcast %c2_i32_270 : i32 to vector<2x2xi32>
    %1021 = arith.select %1019, %28, %1020 : vector<2x2xi1>, vector<2x2xi32>
    %cst_271 = arith.constant dense<2147483647> : vector<2xi32>
    %1022 = vector.multi_reduction <minsi>, %1021, %cst_271 [1] : vector<2x2xi32> to vector<2xi32>
    %1023 = vector.shape_cast %1022 : vector<2xi32> to vector<2x1xi32>
    %1024 = vector.broadcast %1023 : vector<2x1xi32> to vector<2x2xi32>
    %1025 = arith.cmpi eq, %28, %1024 : vector<2x2xi32>
    %1026 = arith.extui %1025 : vector<2x2xi1> to vector<2x2xi32>
    %1027 = arith.sitofp %1026 : vector<2x2xi32> to vector<2x2xf32>
    %1028 = vector.broadcast %25 : vector<1x32xf32> to vector<2x32xf32>
    %1029 = arith.mulf %92, %1028 : vector<2x32xf32>
    %cst_272 = arith.constant dense<0.000000e+00> : vector<2xf32>
    %1030 = vector.multi_reduction <add>, %1029, %cst_272 [1] : vector<2x32xf32> to vector<2xf32>
    %1031 = vector.shape_cast %1030 : vector<2xf32> to vector<2x1xf32>
    %1032 = vector.broadcast %25 : vector<1x32xf32> to vector<2x32xf32>
    %1033 = arith.mulf %265, %1032 : vector<2x32xf32>
    %cst_273 = arith.constant dense<0.000000e+00> : vector<2xf32>
    %1034 = vector.multi_reduction <add>, %1033, %cst_273 [1] : vector<2x32xf32> to vector<2xf32>
    %1035 = vector.shape_cast %1034 : vector<2xf32> to vector<2x1xf32>
    %1036 = vector.broadcast %25 : vector<1x32xf32> to vector<2x32xf32>
    %1037 = arith.mulf %448, %1036 : vector<2x32xf32>
    %cst_274 = arith.constant dense<0.000000e+00> : vector<2xf32>
    %1038 = vector.multi_reduction <add>, %1037, %cst_274 [1] : vector<2x32xf32> to vector<2xf32>
    %1039 = vector.shape_cast %1038 : vector<2xf32> to vector<2x1xf32>
    %1040 = vector.broadcast %25 : vector<1x32xf32> to vector<2x32xf32>
    %1041 = arith.mulf %643, %1040 : vector<2x32xf32>
    %cst_275 = arith.constant dense<0.000000e+00> : vector<2xf32>
    %1042 = vector.multi_reduction <add>, %1041, %cst_275 [1] : vector<2x32xf32> to vector<2xf32>
    %1043 = vector.shape_cast %1042 : vector<2xf32> to vector<2x1xf32>
    %1044 = vector.broadcast %25 : vector<1x32xf32> to vector<2x32xf32>
    %1045 = arith.mulf %850, %1044 : vector<2x32xf32>
    %cst_276 = arith.constant dense<0.000000e+00> : vector<2xf32>
    %1046 = vector.multi_reduction <add>, %1045, %cst_276 [1] : vector<2x32xf32> to vector<2xf32>
    %1047 = vector.shape_cast %1046 : vector<2xf32> to vector<2x1xf32>
    %1048 = arith.maximumf %1031, %1035 : vector<2x1xf32>
    %1049 = arith.maximumf %1048, %1039 : vector<2x1xf32>
    %1050 = arith.maximumf %1049, %1043 : vector<2x1xf32>
    %1051 = arith.maximumf %1050, %1047 : vector<2x1xf32>
    %1052 = arith.subf %1031, %1051 : vector<2x1xf32>
    %1053 = math.exp %1052 : vector<2x1xf32>
    %1054 = arith.subf %1035, %1051 : vector<2x1xf32>
    %1055 = math.exp %1054 : vector<2x1xf32>
    %1056 = arith.subf %1039, %1051 : vector<2x1xf32>
    %1057 = math.exp %1056 : vector<2x1xf32>
    %1058 = arith.subf %1043, %1051 : vector<2x1xf32>
    %1059 = math.exp %1058 : vector<2x1xf32>
    %1060 = arith.subf %1047, %1051 : vector<2x1xf32>
    %1061 = math.exp %1060 : vector<2x1xf32>
    %1062 = arith.addf %1053, %1055 : vector<2x1xf32>
    %1063 = arith.addf %1062, %1057 : vector<2x1xf32>
    %1064 = arith.addf %1063, %1059 : vector<2x1xf32>
    %1065 = arith.addf %1064, %1061 : vector<2x1xf32>
    %cst_277 = arith.constant 1.000000e+00 : f32
    %1066 = vector.broadcast %cst_277 : f32 to vector<2x1xf32>
    %1067 = arith.divf %1066, %1065 : vector<2x1xf32>
    %1068 = arith.mulf %1053, %1067 : vector<2x1xf32>
    %1069 = vector.broadcast %1068 : vector<2x1xf32> to vector<2x32xf32>
    %1070 = arith.mulf %1069, %92 : vector<2x32xf32>
    %1071 = arith.mulf %1055, %1067 : vector<2x1xf32>
    %1072 = vector.broadcast %1071 : vector<2x1xf32> to vector<2x32xf32>
    %1073 = arith.mulf %1072, %265 : vector<2x32xf32>
    %1074 = arith.addf %1070, %1073 : vector<2x32xf32>
    %1075 = arith.mulf %1057, %1067 : vector<2x1xf32>
    %1076 = vector.broadcast %1075 : vector<2x1xf32> to vector<2x32xf32>
    %1077 = arith.mulf %1076, %448 : vector<2x32xf32>
    %1078 = arith.addf %1074, %1077 : vector<2x32xf32>
    %1079 = arith.mulf %1059, %1067 : vector<2x1xf32>
    %1080 = vector.broadcast %1079 : vector<2x1xf32> to vector<2x32xf32>
    %1081 = arith.mulf %1080, %643 : vector<2x32xf32>
    %1082 = arith.addf %1078, %1081 : vector<2x32xf32>
    %1083 = arith.mulf %1061, %1067 : vector<2x1xf32>
    %1084 = vector.broadcast %1083 : vector<2x1xf32> to vector<2x32xf32>
    %1085 = arith.mulf %1084, %850 : vector<2x32xf32>
    %1086 = arith.addf %1082, %1085 : vector<2x32xf32>
    %1087 = tpu.concatenate %1011, %1086 in 1 : vector<2x24xf32>, vector<2x32xf32> -> vector<2x56xf32>
    %cst_278 = arith.constant dense<0.000000e+00> : vector<2x72xf32>
    %1088 = tpu.matmul %1087, %9, %cst_278 {dimension_numbers = #tpu.dot_dimension_numbers<[1], [0], [0], [1], [0, 0, 1, 1], [], []>} : vector<2x56xf32>, vector<56x72xf32>, vector<2x72xf32> -> vector<2x72xf32>
    %1089 = vector.broadcast %13 : vector<1x72xf32> to vector<2x72xf32>
    %1090 = arith.addf %1088, %1089 : vector<2x72xf32>
    %cst_279 = arith.constant dense<0.000000e+00> : vector<2x72xf32>
    %1091 = tpu.matmul %938, %11, %cst_279 {dimension_numbers = #tpu.dot_dimension_numbers<[1], [0], [0], [1], [0, 0, 1, 1], [], []>} : vector<2x24xf32>, vector<24x72xf32>, vector<2x72xf32> -> vector<2x72xf32>
    %1092 = vector.broadcast %15 : vector<1x72xf32> to vector<2x72xf32>
    %1093 = arith.addf %1091, %1092 : vector<2x72xf32>
    %1094 = vector.extract_strided_slice %1090 {offsets = [0, 0], sizes = [2, 24], strides = [1, 1]} : vector<2x72xf32> to vector<2x24xf32>
    %1095 = vector.extract_strided_slice %1093 {offsets = [0, 0], sizes = [2, 24], strides = [1, 1]} : vector<2x72xf32> to vector<2x24xf32>
    %1096 = arith.addf %1094, %1095 : vector<2x24xf32>
    %1097 = arith.negf %1096 : vector<2x24xf32>
    %1098 = math.exp %1097 : vector<2x24xf32>
    %cst_280 = arith.constant 1.000000e+00 : f32
    %1099 = vector.broadcast %cst_280 : f32 to vector<2x24xf32>
    %1100 = arith.addf %1099, %1098 : vector<2x24xf32>
    %1101 = arith.divf %1099, %1100 : vector<2x24xf32>
    %1102 = vector.extract_strided_slice %1090 {offsets = [0, 24], sizes = [2, 24], strides = [1, 1]} : vector<2x72xf32> to vector<2x24xf32>
    %1103 = vector.extract_strided_slice %1093 {offsets = [0, 24], sizes = [2, 24], strides = [1, 1]} : vector<2x72xf32> to vector<2x24xf32>
    %1104 = arith.addf %1102, %1103 : vector<2x24xf32>
    %1105 = arith.negf %1104 : vector<2x24xf32>
    %1106 = math.exp %1105 : vector<2x24xf32>
    %cst_281 = arith.constant 1.000000e+00 : f32
    %1107 = vector.broadcast %cst_281 : f32 to vector<2x24xf32>
    %1108 = arith.addf %1107, %1106 : vector<2x24xf32>
    %1109 = arith.divf %1107, %1108 : vector<2x24xf32>
    %1110 = vector.extract_strided_slice %1090 {offsets = [0, 48], sizes = [2, 24], strides = [1, 1]} : vector<2x72xf32> to vector<2x24xf32>
    %1111 = vector.extract_strided_slice %1093 {offsets = [0, 48], sizes = [2, 24], strides = [1, 1]} : vector<2x72xf32> to vector<2x24xf32>
    %1112 = arith.mulf %1101, %1111 : vector<2x24xf32>
    %1113 = arith.addf %1110, %1112 : vector<2x24xf32>
    %1114 = math.tanh %1113 : vector<2x24xf32>
    %cst_282 = arith.constant 1.000000e+00 : f32
    %1115 = vector.broadcast %cst_282 : f32 to vector<2x24xf32>
    %1116 = arith.subf %1115, %1109 : vector<2x24xf32>
    %1117 = arith.mulf %1116, %1114 : vector<2x24xf32>
    %1118 = arith.mulf %1109, %938 : vector<2x24xf32>
    %1119 = arith.addf %1117, %1118 : vector<2x24xf32>
    %1120 = vector.extract_strided_slice %1013 {offsets = [0, 0], sizes = [2, 1], strides = [1, 1]} : vector<2x2xf32> to vector<2x1xf32>
    %cst_283 = arith.constant 1.000000e+00 : f32
    %1121 = vector.broadcast %cst_283 : f32 to vector<2x1xf32>
    %1122 = arith.subf %1121, %1120 : vector<2x1xf32>
    %1123 = vector.broadcast %1122 : vector<2x1xf32> to vector<2x24xf32>
    %1124 = arith.mulf %938, %1123 : vector<2x24xf32>
    %1125 = vector.broadcast %1120 : vector<2x1xf32> to vector<2x24xf32>
    %1126 = arith.mulf %1119, %1125 : vector<2x24xf32>
    %1127 = arith.addf %1124, %1126 : vector<2x24xf32>
    %cst_284 = arith.constant dense<0.000000e+00> : vector<2x72xf32>
    %1128 = tpu.matmul %975, %11, %cst_284 {dimension_numbers = #tpu.dot_dimension_numbers<[1], [0], [0], [1], [0, 0, 1, 1], [], []>} : vector<2x24xf32>, vector<24x72xf32>, vector<2x72xf32> -> vector<2x72xf32>
    %1129 = vector.broadcast %15 : vector<1x72xf32> to vector<2x72xf32>
    %1130 = arith.addf %1128, %1129 : vector<2x72xf32>
    %1131 = vector.extract_strided_slice %1090 {offsets = [0, 0], sizes = [2, 24], strides = [1, 1]} : vector<2x72xf32> to vector<2x24xf32>
    %1132 = vector.extract_strided_slice %1130 {offsets = [0, 0], sizes = [2, 24], strides = [1, 1]} : vector<2x72xf32> to vector<2x24xf32>
    %1133 = arith.addf %1131, %1132 : vector<2x24xf32>
    %1134 = arith.negf %1133 : vector<2x24xf32>
    %1135 = math.exp %1134 : vector<2x24xf32>
    %cst_285 = arith.constant 1.000000e+00 : f32
    %1136 = vector.broadcast %cst_285 : f32 to vector<2x24xf32>
    %1137 = arith.addf %1136, %1135 : vector<2x24xf32>
    %1138 = arith.divf %1136, %1137 : vector<2x24xf32>
    %1139 = vector.extract_strided_slice %1090 {offsets = [0, 24], sizes = [2, 24], strides = [1, 1]} : vector<2x72xf32> to vector<2x24xf32>
    %1140 = vector.extract_strided_slice %1130 {offsets = [0, 24], sizes = [2, 24], strides = [1, 1]} : vector<2x72xf32> to vector<2x24xf32>
    %1141 = arith.addf %1139, %1140 : vector<2x24xf32>
    %1142 = arith.negf %1141 : vector<2x24xf32>
    %1143 = math.exp %1142 : vector<2x24xf32>
    %cst_286 = arith.constant 1.000000e+00 : f32
    %1144 = vector.broadcast %cst_286 : f32 to vector<2x24xf32>
    %1145 = arith.addf %1144, %1143 : vector<2x24xf32>
    %1146 = arith.divf %1144, %1145 : vector<2x24xf32>
    %1147 = vector.extract_strided_slice %1090 {offsets = [0, 48], sizes = [2, 24], strides = [1, 1]} : vector<2x72xf32> to vector<2x24xf32>
    %1148 = vector.extract_strided_slice %1130 {offsets = [0, 48], sizes = [2, 24], strides = [1, 1]} : vector<2x72xf32> to vector<2x24xf32>
    %1149 = arith.mulf %1138, %1148 : vector<2x24xf32>
    %1150 = arith.addf %1147, %1149 : vector<2x24xf32>
    %1151 = math.tanh %1150 : vector<2x24xf32>
    %cst_287 = arith.constant 1.000000e+00 : f32
    %1152 = vector.broadcast %cst_287 : f32 to vector<2x24xf32>
    %1153 = arith.subf %1152, %1146 : vector<2x24xf32>
    %1154 = arith.mulf %1153, %1151 : vector<2x24xf32>
    %1155 = arith.mulf %1146, %975 : vector<2x24xf32>
    %1156 = arith.addf %1154, %1155 : vector<2x24xf32>
    %1157 = vector.extract_strided_slice %1013 {offsets = [0, 1], sizes = [2, 1], strides = [1, 1]} : vector<2x2xf32> to vector<2x1xf32>
    %cst_288 = arith.constant 1.000000e+00 : f32
    %1158 = vector.broadcast %cst_288 : f32 to vector<2x1xf32>
    %1159 = arith.subf %1158, %1157 : vector<2x1xf32>
    %1160 = vector.broadcast %1159 : vector<2x1xf32> to vector<2x24xf32>
    %1161 = arith.mulf %975, %1160 : vector<2x24xf32>
    %1162 = vector.broadcast %1157 : vector<2x1xf32> to vector<2x24xf32>
    %1163 = arith.mulf %1156, %1162 : vector<2x24xf32>
    %1164 = arith.addf %1161, %1163 : vector<2x24xf32>
    %1165 = vector.extract_strided_slice %1027 {offsets = [0, 0], sizes = [2, 1], strides = [1, 1]} : vector<2x2xf32> to vector<2x1xf32>
    %1166 = vector.broadcast %1165 : vector<2x1xf32> to vector<2x24xf32>
    %1167 = arith.mulf %1166, %1127 : vector<2x24xf32>
    %1168 = vector.extract_strided_slice %1027 {offsets = [0, 1], sizes = [2, 1], strides = [1, 1]} : vector<2x2xf32> to vector<2x1xf32>
    %1169 = vector.broadcast %1168 : vector<2x1xf32> to vector<2x24xf32>
    %1170 = arith.mulf %1169, %1164 : vector<2x24xf32>
    %1171 = arith.addf %1167, %1170 : vector<2x24xf32>
    %1172 = vector.extract_strided_slice %1015 {offsets = [0, 1], sizes = [2, 1], strides = [1, 1]} : vector<2x2xf32> to vector<2x1xf32>
    %cst_289 = arith.constant 1.000000e+00 : f32
    %1173 = vector.broadcast %cst_289 : f32 to vector<2x1xf32>
    %1174 = arith.subf %1173, %1172 : vector<2x1xf32>
    %cst_290 = arith.constant dense<0.000000e+00> : vector<2x16xf32>
    %1175 = tpu.matmul %1171, %17, %cst_290 {dimension_numbers = #tpu.dot_dimension_numbers<[1], [0], [0], [1], [0, 0, 1, 1], [], []>} : vector<2x24xf32>, vector<24x16xf32>, vector<2x16xf32> -> vector<2x16xf32>
    %1176 = vector.broadcast %19 : vector<1x16xf32> to vector<2x16xf32>
    %1177 = arith.addf %1175, %1176 : vector<2x16xf32>
    %1178 = vector.broadcast %1174 : vector<2x1xf32> to vector<2x16xf32>
    %1179 = arith.mulf %1178, %1002 : vector<2x16xf32>
    %cst_291 = arith.constant dense<0.000000e+00> : vector<2x16xf32>
    %1180 = tpu.matmul %1179, %21, %cst_291 {dimension_numbers = #tpu.dot_dimension_numbers<[1], [0], [0], [1], [0, 0, 1, 1], [], []>} : vector<2x16xf32>, vector<16x16xf32>, vector<2x16xf32> -> vector<2x16xf32>
    %1181 = arith.addf %1177, %1180 : vector<2x16xf32>
    %1182 = vector.broadcast %23 : vector<1x16xf32> to vector<2x16xf32>
    %1183 = arith.addf %1181, %1182 : vector<2x16xf32>
    %1184 = math.tanh %1183 : vector<2x16xf32>
    %1185 = vector.broadcast %1174 : vector<2x1xf32> to vector<2x16xf32>
    %1186 = arith.mulf %1185, %1002 : vector<2x16xf32>
    %cst_292 = arith.constant 1.000000e+00 : f32
    %1187 = vector.broadcast %cst_292 : f32 to vector<2x1xf32>
    %1188 = arith.subf %1187, %1174 : vector<2x1xf32>
    %1189 = vector.broadcast %1188 : vector<2x1xf32> to vector<2x16xf32>
    %1190 = arith.mulf %1189, %1184 : vector<2x16xf32>
    %1191 = arith.addf %1186, %1190 : vector<2x16xf32>
    %cst_293 = arith.constant dense<0.000000e+00> : vector<2x32xf32>
    %1192 = tpu.matmul %1191, %26, %cst_293 {dimension_numbers = #tpu.dot_dimension_numbers<[1], [0], [0], [1], [0, 0, 1, 1], [], []>} : vector<2x16xf32>, vector<16x32xf32>, vector<2x32xf32> -> vector<2x32xf32>
    %1193 = vector.broadcast %27 : vector<1x32xf32> to vector<2x32xf32>
    %1194 = arith.addf %1192, %1193 : vector<2x32xf32>
    %1195 = vector.shape_cast %1194 : vector<2x32xf32> to vector<2x1x32xf32>
    %c0_294 = arith.constant 0 : index
    %c0_295 = arith.constant 0 : index
    %c5_296 = arith.constant 5 : index
    %c0_297 = arith.constant 0 : index
    %1196 = vector.load %arg20[%c0_294, %c0_295, %c5_296, %c0_297] : memref<1x2x6x32xf32, #tpu.memory_space<vmem>>, vector<1x2x1x32xf32>
    %1197 = vector.shape_cast %1196 : vector<1x2x1x32xf32> to vector<2x1x32xf32>
    %1198 = vector.shape_cast %1195 : vector<2x1x32xf32> to vector<1x2x1x32xf32>
    tpu.vector_store %arg20[%c0_294, %c0_295, %c5_296, %c0_297], %1198 {strides = array<i32>} : memref<1x2x6x32xf32, #tpu.memory_space<vmem>>, vector<1x2x1x32xf32>,
    return
  }
  func.func @transform_0(%arg0: i32) -> (i32, i32, i32, i32) {
    %c0_i32 = arith.constant 0 : i32
    %c0_i32_0 = arith.constant 0 : i32
    %c0_i32_1 = arith.constant 0 : i32
    %c0_i32_2 = arith.constant 0 : i32
    return %arg0, %c0_i32, %c0_i32_0, %c0_i32_1 : i32, i32, i32, i32
  }
  func.func @transform_1(%arg0: i32) -> (i32, i32, i32) {
    %c0_i32 = arith.constant 0 : i32
    %c0_i32_0 = arith.constant 0 : i32
    %c0_i32_1 = arith.constant 0 : i32
    %c0_i32_2 = arith.constant 0 : i32
    return %c0_i32, %c0_i32_0, %c0_i32_1 : i32, i32, i32
  }
  func.func @transform_2(%arg0: i32) -> (i32, i32, i32) {
    %c0_i32 = arith.constant 0 : i32
    %c0_i32_0 = arith.constant 0 : i32
    %c0_i32_1 = arith.constant 0 : i32
    %c0_i32_2 = arith.constant 0 : i32
    return %c0_i32, %c0_i32_0, %c0_i32_1 : i32, i32, i32
  }
  func.func @transform_3(%arg0: i32) -> (i32, i32, i32) {
    %c0_i32 = arith.constant 0 : i32
    %c0_i32_0 = arith.constant 0 : i32
    %c0_i32_1 = arith.constant 0 : i32
    %c0_i32_2 = arith.constant 0 : i32
    return %c0_i32, %c0_i32_0, %c0_i32_1 : i32, i32, i32
  }
  func.func @transform_4(%arg0: i32) -> (i32, i32, i32) {
    %c0_i32 = arith.constant 0 : i32
    %c0_i32_0 = arith.constant 0 : i32
    %c0_i32_1 = arith.constant 0 : i32
    return %arg0, %c0_i32, %c0_i32_0 : i32, i32, i32
  }
  func.func @transform_5(%arg0: i32) -> (i32, i32, i32) {
    %c0_i32 = arith.constant 0 : i32
    %c0_i32_0 = arith.constant 0 : i32
    %c0_i32_1 = arith.constant 0 : i32
    return %arg0, %c0_i32, %c0_i32_0 : i32, i32, i32
  }
  func.func @transform_6(%arg0: i32) -> (i32, i32, i32) {
    %c0_i32 = arith.constant 0 : i32
    %c0_i32_0 = arith.constant 0 : i32
    %c0_i32_1 = arith.constant 0 : i32
    return %arg0, %c0_i32, %c0_i32_0 : i32, i32, i32
  }
  func.func @transform_7(%arg0: i32) -> (i32, i32, i32) {
    %c0_i32 = arith.constant 0 : i32
    %c0_i32_0 = arith.constant 0 : i32
    %c0_i32_1 = arith.constant 0 : i32
    return %arg0, %c0_i32, %c0_i32_0 : i32, i32, i32
  }
  func.func @transform_8(%arg0: i32) -> (i32, i32, i32) {
    %c0_i32 = arith.constant 0 : i32
    %c0_i32_0 = arith.constant 0 : i32
    %c0_i32_1 = arith.constant 0 : i32
    return %arg0, %c0_i32, %c0_i32_0 : i32, i32, i32
  }
  func.func @transform_9(%arg0: i32) -> (i32, i32, i32) {
    %c0_i32 = arith.constant 0 : i32
    %c0_i32_0 = arith.constant 0 : i32
    %c0_i32_1 = arith.constant 0 : i32
    return %arg0, %c0_i32, %c0_i32_0 : i32, i32, i32
  }
  func.func @transform_10(%arg0: i32) -> (i32, i32, i32) {
    %c0_i32 = arith.constant 0 : i32
    %c0_i32_0 = arith.constant 0 : i32
    %c0_i32_1 = arith.constant 0 : i32
    return %arg0, %c0_i32, %c0_i32_0 : i32, i32, i32
  }
  func.func @transform_11(%arg0: i32) -> (i32, i32, i32) {
    %c0_i32 = arith.constant 0 : i32
    %c0_i32_0 = arith.constant 0 : i32
    %c0_i32_1 = arith.constant 0 : i32
    return %arg0, %c0_i32, %c0_i32_0 : i32, i32, i32
  }
  func.func @transform_12(%arg0: i32) -> (i32, i32, i32) {
    %c0_i32 = arith.constant 0 : i32
    %c0_i32_0 = arith.constant 0 : i32
    %c0_i32_1 = arith.constant 0 : i32
    return %arg0, %c0_i32, %c0_i32_0 : i32, i32, i32
  }
  func.func @transform_13(%arg0: i32) -> (i32, i32, i32) {
    %c0_i32 = arith.constant 0 : i32
    %c0_i32_0 = arith.constant 0 : i32
    %c0_i32_1 = arith.constant 0 : i32
    return %arg0, %c0_i32, %c0_i32_0 : i32, i32, i32
  }
  func.func @transform_14(%arg0: i32) -> (i32, i32, i32) {
    %c0_i32 = arith.constant 0 : i32
    %c0_i32_0 = arith.constant 0 : i32
    %c0_i32_1 = arith.constant 0 : i32
    return %arg0, %c0_i32, %c0_i32_0 : i32, i32, i32
  }
  func.func @transform_15(%arg0: i32) -> (i32, i32, i32) {
    %c0_i32 = arith.constant 0 : i32
    %c0_i32_0 = arith.constant 0 : i32
    %c0_i32_1 = arith.constant 0 : i32
    return %arg0, %c0_i32, %c0_i32_0 : i32, i32, i32
  }
  func.func @transform_16(%arg0: i32) -> (i32, i32, i32) {
    %c0_i32 = arith.constant 0 : i32
    %c0_i32_0 = arith.constant 0 : i32
    %c0_i32_1 = arith.constant 0 : i32
    return %arg0, %c0_i32, %c0_i32_0 : i32, i32, i32
  }
  func.func @transform_17(%arg0: i32) -> (i32, i32) {
    %c0_i32 = arith.constant 0 : i32
    %c0_i32_0 = arith.constant 0 : i32
    %c0_i32_1 = arith.constant 0 : i32
    return %c0_i32, %c0_i32_0 : i32, i32
  }
  func.func @transform_18(%arg0: i32) -> (i32, i32) {
    %c0_i32 = arith.constant 0 : i32
    %c0_i32_0 = arith.constant 0 : i32
    %c0_i32_1 = arith.constant 0 : i32
    return %c0_i32, %c0_i32_0 : i32, i32
  }
  func.func @transform_19(%arg0: i32) -> (i32, i32, i32, i32) {
    %c0_i32 = arith.constant 0 : i32
    %c0_i32_0 = arith.constant 0 : i32
    %c0_i32_1 = arith.constant 0 : i32
    %c0_i32_2 = arith.constant 0 : i32
    return %arg0, %c0_i32, %c0_i32_0, %c0_i32_1 : i32, i32, i32, i32
  }
}

module attributes {stable_mosaic.version = 11 : i64} {
  func.func @attention_head_kernel(%arg0: i32, %arg1: memref<3x1x6x32xf32, #tpu.memory_space<vmem>>, %arg2: memref<288x1xf32, #tpu.memory_space<vmem>>, %arg3: memref<1x1xf32, #tpu.memory_space<vmem>>, %arg4: memref<1x6x1xf32, #tpu.memory_space<vmem>>) attributes {dimension_semantics = [#tpu.dimension_semantics<parallel>], iteration_bounds = array<i64: 2>, scalar_prefetch = 0 : i64, scratch_operands = 0 : i64, tpu.core_type = #tpu.core_type<tc>, window_params = [{transform_indices = @transform_0, window_bounds = array<i64: 3, 1, 6, 32>}, {pipeline_mode = #tpu.pipeline_mode<synchronous>, transform_indices = @transform_1, window_bounds = array<i64: 288, 1>}, {pipeline_mode = #tpu.pipeline_mode<synchronous>, transform_indices = @transform_2, window_bounds = array<i64: 1, 1>}, {transform_indices = @transform_3, window_bounds = array<i64: 1, 6, 1>}]} {
    %c0 = arith.constant 0 : index
    %c0_0 = arith.constant 0 : index
    %c0_1 = arith.constant 0 : index
    %c0_2 = arith.constant 0 : index
    %0 = vector.load %arg1[%c0, %c0_0, %c0_1, %c0_2] : memref<3x1x6x32xf32, #tpu.memory_space<vmem>>, vector<1x1x6x32xf32>
    %1 = vector.shape_cast %0 : vector<1x1x6x32xf32> to vector<6x32xf32>
    %c1 = arith.constant 1 : index
    %c0_3 = arith.constant 0 : index
    %c0_4 = arith.constant 0 : index
    %c0_5 = arith.constant 0 : index
    %2 = vector.load %arg1[%c1, %c0_3, %c0_4, %c0_5] : memref<3x1x6x32xf32, #tpu.memory_space<vmem>>, vector<1x1x6x32xf32>
    %3 = vector.shape_cast %2 : vector<1x1x6x32xf32> to vector<6x32xf32>
    %c2 = arith.constant 2 : index
    %c0_6 = arith.constant 0 : index
    %c0_7 = arith.constant 0 : index
    %c0_8 = arith.constant 0 : index
    %4 = vector.load %arg1[%c2, %c0_6, %c0_7, %c0_8] : memref<3x1x6x32xf32, #tpu.memory_space<vmem>>, vector<1x1x6x32xf32>
    %5 = vector.shape_cast %4 : vector<1x1x6x32xf32> to vector<6x32xf32>
    %cst = arith.constant dense<0.000000e+00> : vector<6x6xf32>
    %6 = tpu.matmul %1, %3, %cst {dimension_numbers = #tpu.dot_dimension_numbers<[1], [1], [0], [0], [0, 0, 1, 0], [], []>} : vector<6x32xf32>, vector<6x32xf32>, vector<6x6xf32> -> vector<6x6xf32>
    %cst_9 = arith.constant dense<0.000000e+00> : vector<6x6xf32>
    %7 = tpu.matmul %3, %1, %cst_9 {dimension_numbers = #tpu.dot_dimension_numbers<[1], [1], [0], [0], [0, 0, 1, 0], [], []>} : vector<6x32xf32>, vector<6x32xf32>, vector<6x6xf32> -> vector<6x6xf32>
    %cst_10 = arith.constant dense<0xFF800000> : vector<6xf32>
    %8 = vector.multi_reduction <maximumf>, %6, %cst_10 [1] : vector<6x6xf32> to vector<6xf32>
    %cst_11 = arith.constant 0xFF800000 : f32
    %9 = vector.broadcast %cst_11 : f32 to vector<6xf32>
    %10 = arith.maximumf %9, %8 : vector<6xf32>
    %11 = vector.shape_cast %10 : vector<6xf32> to vector<6x1xf32>
    %12 = vector.broadcast %11 : vector<6x1xf32> to vector<6x6xf32>
    %13 = arith.subf %6, %12 : vector<6x6xf32>
    %14 = math.exp %13 : vector<6x6xf32>
    %cst_12 = arith.constant dense<0.000000e+00> : vector<6xf32>
    %15 = vector.multi_reduction <add>, %14, %cst_12 [1] : vector<6x6xf32> to vector<6xf32>
    %16 = vector.shape_cast %15 : vector<6xf32> to vector<6x1xf32>
    %17 = vector.broadcast %16 : vector<6x1xf32> to vector<6x6xf32>
    %18 = arith.divf %14, %17 : vector<6x6xf32>
    %cst_13 = arith.constant dense<0xFF800000> : vector<6xf32>
    %19 = vector.multi_reduction <maximumf>, %7, %cst_13 [1] : vector<6x6xf32> to vector<6xf32>
    %cst_14 = arith.constant 0xFF800000 : f32
    %20 = vector.broadcast %cst_14 : f32 to vector<6xf32>
    %21 = arith.maximumf %20, %19 : vector<6xf32>
    %22 = vector.shape_cast %21 : vector<6xf32> to vector<6x1xf32>
    %23 = vector.broadcast %22 : vector<6x1xf32> to vector<6x6xf32>
    %24 = arith.subf %7, %23 : vector<6x6xf32>
    %25 = math.exp %24 : vector<6x6xf32>
    %cst_15 = arith.constant dense<0.000000e+00> : vector<6xf32>
    %26 = vector.multi_reduction <add>, %25, %cst_15 [1] : vector<6x6xf32> to vector<6xf32>
    %27 = vector.shape_cast %26 : vector<6xf32> to vector<6x1xf32>
    %28 = vector.broadcast %27 : vector<6x1xf32> to vector<6x6xf32>
    %29 = arith.divf %25, %28 : vector<6x6xf32>
    %cst_16 = arith.constant dense<0.000000e+00> : vector<6x32xf32>
    %30 = tpu.matmul %18, %3, %cst_16 {dimension_numbers = #tpu.dot_dimension_numbers<[1], [0], [0], [1], [0, 0, 1, 1], [], []>} : vector<6x6xf32>, vector<6x32xf32>, vector<6x32xf32> -> vector<6x32xf32>
    %cst_17 = arith.constant dense<0.000000e+00> : vector<6x32xf32>
    %31 = tpu.matmul %29, %1, %cst_17 {dimension_numbers = #tpu.dot_dimension_numbers<[1], [0], [0], [1], [0, 0, 1, 1], [], []>} : vector<6x6xf32>, vector<6x32xf32>, vector<6x32xf32> -> vector<6x32xf32>
    %32 = arith.mulf %30, %1 : vector<6x32xf32>
    %33 = arith.mulf %31, %3 : vector<6x32xf32>
    %cst_18 = arith.constant dense<0.000000e+00> : vector<6x6xf32>
    %34 = tpu.matmul %5, %3, %cst_18 {dimension_numbers = #tpu.dot_dimension_numbers<[1], [1], [0], [0], [0, 0, 1, 0], [], []>} : vector<6x32xf32>, vector<6x32xf32>, vector<6x6xf32> -> vector<6x6xf32>
    %cst_19 = arith.constant dense<0.000000e+00> : vector<6x6xf32>
    %35 = tpu.matmul %3, %5, %cst_19 {dimension_numbers = #tpu.dot_dimension_numbers<[1], [1], [0], [0], [0, 0, 1, 0], [], []>} : vector<6x32xf32>, vector<6x32xf32>, vector<6x6xf32> -> vector<6x6xf32>
    %cst_20 = arith.constant dense<0xFF800000> : vector<6xf32>
    %36 = vector.multi_reduction <maximumf>, %34, %cst_20 [1] : vector<6x6xf32> to vector<6xf32>
    %cst_21 = arith.constant 0xFF800000 : f32
    %37 = vector.broadcast %cst_21 : f32 to vector<6xf32>
    %38 = arith.maximumf %37, %36 : vector<6xf32>
    %39 = vector.shape_cast %38 : vector<6xf32> to vector<6x1xf32>
    %40 = vector.broadcast %39 : vector<6x1xf32> to vector<6x6xf32>
    %41 = arith.subf %34, %40 : vector<6x6xf32>
    %42 = math.exp %41 : vector<6x6xf32>
    %cst_22 = arith.constant dense<0.000000e+00> : vector<6xf32>
    %43 = vector.multi_reduction <add>, %42, %cst_22 [1] : vector<6x6xf32> to vector<6xf32>
    %44 = vector.shape_cast %43 : vector<6xf32> to vector<6x1xf32>
    %45 = vector.broadcast %44 : vector<6x1xf32> to vector<6x6xf32>
    %46 = arith.divf %42, %45 : vector<6x6xf32>
    %cst_23 = arith.constant dense<0xFF800000> : vector<6xf32>
    %47 = vector.multi_reduction <maximumf>, %35, %cst_23 [1] : vector<6x6xf32> to vector<6xf32>
    %cst_24 = arith.constant 0xFF800000 : f32
    %48 = vector.broadcast %cst_24 : f32 to vector<6xf32>
    %49 = arith.maximumf %48, %47 : vector<6xf32>
    %50 = vector.shape_cast %49 : vector<6xf32> to vector<6x1xf32>
    %51 = vector.broadcast %50 : vector<6x1xf32> to vector<6x6xf32>
    %52 = arith.subf %35, %51 : vector<6x6xf32>
    %53 = math.exp %52 : vector<6x6xf32>
    %cst_25 = arith.constant dense<0.000000e+00> : vector<6xf32>
    %54 = vector.multi_reduction <add>, %53, %cst_25 [1] : vector<6x6xf32> to vector<6xf32>
    %55 = vector.shape_cast %54 : vector<6xf32> to vector<6x1xf32>
    %56 = vector.broadcast %55 : vector<6x1xf32> to vector<6x6xf32>
    %57 = arith.divf %53, %56 : vector<6x6xf32>
    %cst_26 = arith.constant dense<0.000000e+00> : vector<6x32xf32>
    %58 = tpu.matmul %46, %3, %cst_26 {dimension_numbers = #tpu.dot_dimension_numbers<[1], [0], [0], [1], [0, 0, 1, 1], [], []>} : vector<6x6xf32>, vector<6x32xf32>, vector<6x32xf32> -> vector<6x32xf32>
    %cst_27 = arith.constant dense<0.000000e+00> : vector<6x32xf32>
    %59 = tpu.matmul %57, %5, %cst_27 {dimension_numbers = #tpu.dot_dimension_numbers<[1], [0], [0], [1], [0, 0, 1, 1], [], []>} : vector<6x6xf32>, vector<6x32xf32>, vector<6x32xf32> -> vector<6x32xf32>
    %60 = arith.mulf %58, %5 : vector<6x32xf32>
    %61 = arith.mulf %59, %3 : vector<6x32xf32>
    %cst_28 = arith.constant dense<0.000000e+00> : vector<6x6xf32>
    %62 = tpu.matmul %1, %5, %cst_28 {dimension_numbers = #tpu.dot_dimension_numbers<[1], [1], [0], [0], [0, 0, 1, 0], [], []>} : vector<6x32xf32>, vector<6x32xf32>, vector<6x6xf32> -> vector<6x6xf32>
    %cst_29 = arith.constant dense<0.000000e+00> : vector<6x6xf32>
    %63 = tpu.matmul %5, %1, %cst_29 {dimension_numbers = #tpu.dot_dimension_numbers<[1], [1], [0], [0], [0, 0, 1, 0], [], []>} : vector<6x32xf32>, vector<6x32xf32>, vector<6x6xf32> -> vector<6x6xf32>
    %cst_30 = arith.constant dense<0xFF800000> : vector<6xf32>
    %64 = vector.multi_reduction <maximumf>, %62, %cst_30 [1] : vector<6x6xf32> to vector<6xf32>
    %cst_31 = arith.constant 0xFF800000 : f32
    %65 = vector.broadcast %cst_31 : f32 to vector<6xf32>
    %66 = arith.maximumf %65, %64 : vector<6xf32>
    %67 = vector.shape_cast %66 : vector<6xf32> to vector<6x1xf32>
    %68 = vector.broadcast %67 : vector<6x1xf32> to vector<6x6xf32>
    %69 = arith.subf %62, %68 : vector<6x6xf32>
    %70 = math.exp %69 : vector<6x6xf32>
    %cst_32 = arith.constant dense<0.000000e+00> : vector<6xf32>
    %71 = vector.multi_reduction <add>, %70, %cst_32 [1] : vector<6x6xf32> to vector<6xf32>
    %72 = vector.shape_cast %71 : vector<6xf32> to vector<6x1xf32>
    %73 = vector.broadcast %72 : vector<6x1xf32> to vector<6x6xf32>
    %74 = arith.divf %70, %73 : vector<6x6xf32>
    %cst_33 = arith.constant dense<0xFF800000> : vector<6xf32>
    %75 = vector.multi_reduction <maximumf>, %63, %cst_33 [1] : vector<6x6xf32> to vector<6xf32>
    %cst_34 = arith.constant 0xFF800000 : f32
    %76 = vector.broadcast %cst_34 : f32 to vector<6xf32>
    %77 = arith.maximumf %76, %75 : vector<6xf32>
    %78 = vector.shape_cast %77 : vector<6xf32> to vector<6x1xf32>
    %79 = vector.broadcast %78 : vector<6x1xf32> to vector<6x6xf32>
    %80 = arith.subf %63, %79 : vector<6x6xf32>
    %81 = math.exp %80 : vector<6x6xf32>
    %cst_35 = arith.constant dense<0.000000e+00> : vector<6xf32>
    %82 = vector.multi_reduction <add>, %81, %cst_35 [1] : vector<6x6xf32> to vector<6xf32>
    %83 = vector.shape_cast %82 : vector<6xf32> to vector<6x1xf32>
    %84 = vector.broadcast %83 : vector<6x1xf32> to vector<6x6xf32>
    %85 = arith.divf %81, %84 : vector<6x6xf32>
    %cst_36 = arith.constant dense<0.000000e+00> : vector<6x32xf32>
    %86 = tpu.matmul %74, %5, %cst_36 {dimension_numbers = #tpu.dot_dimension_numbers<[1], [0], [0], [1], [0, 0, 1, 1], [], []>} : vector<6x6xf32>, vector<6x32xf32>, vector<6x32xf32> -> vector<6x32xf32>
    %cst_37 = arith.constant dense<0.000000e+00> : vector<6x32xf32>
    %87 = tpu.matmul %85, %1, %cst_37 {dimension_numbers = #tpu.dot_dimension_numbers<[1], [0], [0], [1], [0, 0, 1, 1], [], []>} : vector<6x6xf32>, vector<6x32xf32>, vector<6x32xf32> -> vector<6x32xf32>
    %88 = arith.mulf %86, %1 : vector<6x32xf32>
    %89 = arith.mulf %87, %5 : vector<6x32xf32>
    %90 = tpu.concatenate %32, %33, %60, %61, %88, %89, %1, %3, %5 in 1 : vector<6x32xf32>, vector<6x32xf32>, vector<6x32xf32>, vector<6x32xf32>, vector<6x32xf32>, vector<6x32xf32>, vector<6x32xf32>, vector<6x32xf32>, vector<6x32xf32> -> vector<6x288xf32>
    %c0_38 = arith.constant 0 : index
    %c0_39 = arith.constant 0 : index
    %91 = vector.load %arg2[%c0_38, %c0_39] : memref<288x1xf32, #tpu.memory_space<vmem>>, vector<288x1xf32>
    %cst_40 = arith.constant dense<0.000000e+00> : vector<6x1xf32>
    %92 = tpu.matmul %90, %91, %cst_40 {dimension_numbers = #tpu.dot_dimension_numbers<[1], [0], [0], [1], [0, 0, 1, 1], [], []>} : vector<6x288xf32>, vector<288x1xf32>, vector<6x1xf32> -> vector<6x1xf32>
    %c0_41 = arith.constant 0 : index
    %c0_42 = arith.constant 0 : index
    %93 = vector.load %arg3[%c0_41, %c0_42] : memref<1x1xf32, #tpu.memory_space<vmem>>, vector<1x1xf32>
    %94 = vector.broadcast %93 : vector<1x1xf32> to vector<6x1xf32>
    %95 = arith.addf %92, %94 : vector<6x1xf32>
    %96 = math.tanh %95 : vector<6x1xf32>
    %cst_43 = arith.constant 3.000000e+00 : f32
    %97 = vector.broadcast %cst_43 : f32 to vector<6x1xf32>
    %98 = arith.mulf %97, %96 : vector<6x1xf32>
    %c0_44 = arith.constant 0 : index
    %c0_45 = arith.constant 0 : index
    %c0_46 = arith.constant 0 : index
    %99 = vector.load %arg4[%c0_44, %c0_45, %c0_46] : memref<1x6x1xf32, #tpu.memory_space<vmem>>, vector<1x6x1xf32>
    %100 = vector.shape_cast %99 : vector<1x6x1xf32> to vector<6x1xf32>
    %101 = vector.shape_cast %98 : vector<6x1xf32> to vector<1x6x1xf32>
    tpu.vector_store %arg4[%c0_44, %c0_45, %c0_46], %101 {strides = array<i32>} : memref<1x6x1xf32, #tpu.memory_space<vmem>>, vector<1x6x1xf32>,
    return
  }
  func.func @transform_0(%arg0: i32) -> (i32, i32, i32, i32) {
    %c0_i32 = arith.constant 0 : i32
    %c0_i32_0 = arith.constant 0 : i32
    %c0_i32_1 = arith.constant 0 : i32
    %c0_i32_2 = arith.constant 0 : i32
    return %c0_i32, %arg0, %c0_i32_0, %c0_i32_1 : i32, i32, i32, i32
  }
  func.func @transform_1(%arg0: i32) -> (i32, i32) {
    %c0_i32 = arith.constant 0 : i32
    %c0_i32_0 = arith.constant 0 : i32
    %c0_i32_1 = arith.constant 0 : i32
    return %c0_i32, %c0_i32_0 : i32, i32
  }
  func.func @transform_2(%arg0: i32) -> (i32, i32) {
    %c0_i32 = arith.constant 0 : i32
    %c0_i32_0 = arith.constant 0 : i32
    %c0_i32_1 = arith.constant 0 : i32
    return %c0_i32, %c0_i32_0 : i32, i32
  }
  func.func @transform_3(%arg0: i32) -> (i32, i32, i32) {
    %c0_i32 = arith.constant 0 : i32
    %c0_i32_0 = arith.constant 0 : i32
    %c0_i32_1 = arith.constant 0 : i32
    return %arg0, %c0_i32, %c0_i32_0 : i32, i32, i32
  }
}

</mosaic_0001>

<llo_original>
// kernel: regression_forward.3
$region0: #{regression_forward.3}
  #allocation0 [shape = 'u32[]', space=smem, size = 0x4, offset = 0x4, fixed_abs, tag = 'smem constant byte address 0x4 - core index']
  #allocation1 [shape = 'u32[72,128]{1,0:T(1,128)}', space=vmem, size = 0x9000, scoped, tag = 'internal scratch']
  #allocation2 [shape = 'f32[1,1]{1,0:T(1,128)S(1)}', space=vmem, size = 0x200, scoped, tag = 'scoped memory for regression_forward.3']
  %s0 = inlined_call_operand.vmem [shape: f32[3,2,6,32], index: 0, kind: input, shape index: {}]
  %s1 = inlined_call_operand.vmem [shape: f32[288,1], index: 1, kind: input, shape index: {}]
  %s2 = inlined_call_operand.<no memory space> [shape: f32[1,1], index: 2, kind: input, shape index: {}]
  %s3 = inlined_call_operand.vmem [shape: f32[2,6,1], index: 3, kind: output, shape index: {}]
  %s4 = sld [smem:[#allocation0]]
  $region83: #{regression_forward.3} parent=0
    _
  %s6 = ssub.s32 1, %s4
  %s7 = scalar_select 0, %s6, %s4
  %v8 = vstv %s2
  %9 = vst [vmem:[#allocation2] sm:$0x1] %v8
  $region1: #{regression_forward.3} parent=0
    #allocation3 [shape = 'u8[24576]{0}', space=vmem, size = 0x6000, scoped, tag = 'input window, operand 0']
    loop: start=0, step=1, limit=4
    $region2: #{regression_forward.3} parent=1 // loop_pre_header
      _
    $region3: #{regression_forward.3} parent=1 // loop_header
      %s11 = sphi 0, %s15
      %p12 = scmp.ge.s32.totalorder %s11, 4
      %s21 = sphi 0, %s23
      %s24 = sphi 0, %s21
      %s25 = sphi 0, %s24
      %s41 = sphi 0, %s25
      %s45 = sphi 0, %s45
      %s47 = sphi 0, %s45
      %s48 = sphi 0, %s47
      %s62 = sphi 0, %s48
      %s66 = sphi 0, %s66
      %s68 = sphi 0, %s66
      %s69 = sphi 0, %s68
      %s83 = sphi 0, %s69
      %s89 = sphi 0, %s91
      %s92 = sphi 0, %s89
      %s93 = sphi 0, %s92
      %s109 = sphi 0, %s93
    $region4: #{regression_forward.3} parent=1 // loop_header_branch
      %14 = sbr.rel (%p12) target = $region8
    $region5: #{regression_forward.3} parent=1 // loop_body
      %s16 = ssub.s32 %s11, 1
      %s17 = ssub.s32 %s11, 2
      %s18 = sadd.s32 %s11, 1
      %s19 = ssub.s32 %s11, %s18
      %p20 = scmp.eq.s32.totalorder %s19, 0
      %s22 = sadd.s32 %s21, 1
      %s23 = scalar_select %p20, %s21, %s22
      %p26 = pneg %p20
      %p27 = scmp.eq.s32.totalorder %s11, 1
      %p28 = por %p26, %p27
      %p29 = scmp.ne.s32.totalorder %s21, %s24
      %p30 = scmp.eq.s32.totalorder %s11, 0
      %p31 = por %p29, %p30
      %p32 = scmp.ne.s32.totalorder %s21, %s24
      %p33 = scmp.eq.s32.totalorder %s16, 1
      %p34 = por %p32, %p33
      %p35 = scmp.ne.s32.totalorder %s24, %s25
      %p36 = scmp.eq.s32.totalorder %s16, 0
      %p37 = por %p35, %p36
      %p38 = scmp.ne.s32.totalorder %s24, %s25
      %p39 = scmp.eq.s32.totalorder %s17, 1
      %p40 = por %p38, %p39
      %p42 = scmp.ne.s32.totalorder %s25, %s41
      %p43 = scmp.eq.s32.totalorder %s17, 0
      %p44 = por %p42, %p43
      %s46 = sadd.s32 %s45, 1
      %p49 = scmp.eq.s32.totalorder %s11, 1
      %p50 = scmp.ne.s32.totalorder %s45, %s47
      %p51 = scmp.eq.s32.totalorder %s11, 0
      %p52 = por %p50, %p51
      %p53 = scmp.ne.s32.totalorder %s45, %s47
      %p54 = scmp.eq.s32.totalorder %s16, 1
      %p55 = por %p53, %p54
      %p56 = scmp.ne.s32.totalorder %s47, %s48
      %p57 = scmp.eq.s32.totalorder %s16, 0
      %p58 = por %p56, %p57
      %p59 = scmp.ne.s32.totalorder %s47, %s48
      %p60 = scmp.eq.s32.totalorder %s17, 1
      %p61 = por %p59, %p60
      %p63 = scmp.ne.s32.totalorder %s48, %s62
      %p64 = scmp.eq.s32.totalorder %s17, 0
      %p65 = por %p63, %p64
      %s67 = sadd.s32 %s66, 1
      %p70 = scmp.eq.s32.totalorder %s11, 1
      %p71 = scmp.ne.s32.totalorder %s66, %s68
      %p72 = scmp.eq.s32.totalorder %s11, 0
      %p73 = por %p71, %p72
      %p74 = scmp.ne.s32.totalorder %s66, %s68
      %p75 = scmp.eq.s32.totalorder %s16, 1
      %p76 = por %p74, %p75
      %p77 = scmp.ne.s32.totalorder %s68, %s69
      %p78 = scmp.eq.s32.totalorder %s16, 0
      %p79 = por %p77, %p78
      %p80 = scmp.ne.s32.totalorder %s68, %s69
      %p81 = scmp.eq.s32.totalorder %s17, 1
      %p82 = por %p80, %p81
      %p84 = scmp.ne.s32.totalorder %s69, %s83
      %p85 = scmp.eq.s32.totalorder %s17, 0
      %p86 = por %p84, %p85
      %s87 = ssub.s32 %s11, %s18
      %p88 = scmp.eq.s32.totalorder %s87, 0
      %s90 = sadd.s32 %s89, 1
      %s91 = scalar_select %p88, %s89, %s90
      %p94 = pneg %p88
      %p95 = scmp.eq.s32.totalorder %s11, 1
      %p96 = por %p94, %p95
      %p97 = scmp.ne.s32.totalorder %s89, %s92
      %p98 = scmp.eq.s32.totalorder %s11, 0
      %p99 = por %p97, %p98
      %p100 = scmp.ne.s32.totalorder %s89, %s92
      %p101 = scmp.eq.s32.totalorder %s16, 1
      %p102 = por %p100, %p101
      %p103 = scmp.ne.s32.totalorder %s92, %s93
      %p104 = scmp.eq.s32.totalorder %s16, 0
      %p105 = por %p103, %p104
      %p106 = scmp.ne.s32.totalorder %s92, %s93
      %p107 = scmp.eq.s32.totalorder %s17, 1
      %p108 = por %p106, %p107
      %p110 = scmp.ne.s32.totalorder %s93, %s109
      %p111 = scmp.eq.s32.totalorder %s17, 0
      %p112 = por %p110, %p111
      %p113 = scmp.le.s32.totalorder 1, %s11
      %p114 = scmp.lt.s32.totalorder %s11, 3
      %p115 = pnand %p113, %p114
      %p116 = pneg %p115
      // Predicated region
      $region9: #{regression_forward.3} parent=5 // pred_check
        _
      $region10: #{regression_forward.3} parent=5 // pred_check_branch
        %118 = sbr.rel (%p115) target = $region12
      $region11: #{regression_forward.3} parent=5 // pred_region
        %s119 = ssub.s32 %s11, 1
        // Predicated region
        $region13: #{regression_forward.3} parent=11 // pred_check
          %p120 = pneg %p58
        $region14: #{regression_forward.3} parent=11 // pred_check_branch
          %122 = sbr.rel (%p120) target = $region16
        $region15: #{regression_forward.3} parent=11 // pred_region
          _
        $region16: #{regression_forward.3} parent=11 // pred_fallthru
          _
        // Predicated region
        $region17: #{regression_forward.3} parent=11 // pred_check
          %p123 = pneg %p79
        $region18: #{regression_forward.3} parent=11 // pred_check_branch
          %125 = sbr.rel (%p123) target = $region20
        $region19: #{regression_forward.3} parent=11 // pred_region
          _
        $region20: #{regression_forward.3} parent=11 // pred_fallthru
          _
      $region12: #{regression_forward.3} parent=5 // pred_fallthru
        _
      %p126 = scmp.lt.s32.totalorder %s11, 2
      // Predicated region
      $region21: #{regression_forward.3} parent=5 // pred_check
        %p127 = pneg %p126
      $region22: #{regression_forward.3} parent=5 // pred_check_branch
        %129 = sbr.rel (%p127) target = $region24
      $region23: #{regression_forward.3} parent=5 // pred_region
        // Predicated region
        $region25: #{regression_forward.3} parent=23 // pred_check
          %p130 = pneg %p31
        $region26: #{regression_forward.3} parent=23 // pred_check_branch
          %132 = sbr.rel (%p130) target = $region28
        $region27: #{regression_forward.3} parent=23 // pred_region
          %s133 = sand.u32 %s21, 1
          %s134 = sand.u32 %s21, 1
          %s135 = smul.addr %s134, 24
          %s136 = scalar_lea.vmem [#allocation3], %s135
          %s137 = smul.addr %s11, 8
          %s138 = scalar_lea.vmem %s0, %s137
          // Predicated region
          $region29: #{regression_forward.3} parent=27 // pred_check
            _
          $region30: #{regression_forward.3} parent=27 // pred_check_branch
            %140 = sbr.rel (0) target = $region32
          $region31: #{regression_forward.3} parent=27 // pred_region
            // Predicated region
            $region33: #{regression_forward.3} parent=31 // pred_check
              _
            $region34: #{regression_forward.3} parent=31 // pred_check_branch
              %142 = sbr.rel (0) target = $region36
            $region35: #{regression_forward.3} parent=31 // pred_region
              // Predicated region
              $region48: #{regression_forward.3} parent=35 // pred_check
                _
              $region49: #{regression_forward.3} parent=35 // pred_check_branch
                %162 = sbr.rel (0) target = $region51
              $region50: #{regression_forward.3} parent=35 // pred_region
                loop: start=0, step=1, limit=1
                $region52: #{regression_forward.3} parent=50 // loop_pre_header
                  _
                $region53: #{regression_forward.3} parent=50 // loop_header
                  %s164 = sphi 0, %s168
                  %p165 = scmp.ge.s32.totalorder %s164, 1
                  %s169 = sphi %s138, %s138
                  %s170 = sphi %s136, %s136
                $region54: #{regression_forward.3} parent=50 // loop_header_branch
                  %167 = sbr.rel (%p165) target = $region58
                $region55: #{regression_forward.3} parent=50 // loop_body
                  %v171 = vld [vmem:[%s169] sm:$0xff]
                  %172 = vst [vmem:[%s170] sm:$0xff] %v171
                  %v173 = vld [vmem:[%s169 + $0x10] sm:$0xff]
                  %174 = vst [vmem:[%s170 + $0x8] sm:$0xff] %v173
                  %v175 = vld [vmem:[%s169 + $0x20] sm:$0xff]
                  %176 = vst [vmem:[%s170 + $0x10] sm:$0xff] %v175
                $region56: #{regression_forward.3} parent=50 // loop_footer
                  %s168 = sadd.s32 1, %s164
                $region57: #{regression_forward.3} parent=50 // loop_footer_branch
                  %163 = sbr.rel target = $region53
                $region58: #{regression_forward.3} parent=50 // loop_exit
                  _
              $region51: #{regression_forward.3} parent=35 // pred_fallthru
                _
              // Predicated region
              $region59: #{regression_forward.3} parent=35 // pred_check
                _
              $region60: #{regression_forward.3} parent=35 // pred_check_branch
                %178 = sbr.rel target = $region62
              $region61: #{regression_forward.3} parent=35 // pred_region
                _
              $region62: #{regression_forward.3} parent=35 // pred_fallthru
                _
            $region36: #{regression_forward.3} parent=31 // pred_fallthru
              _
            // Predicated region
            $region37: #{regression_forward.3} parent=31 // pred_check
              _
            $region38: #{regression_forward.3} parent=31 // pred_check_branch
              %144 = sbr.rel target = $region40
            $region39: #{regression_forward.3} parent=31 // pred_region
              %s146 = ssub.s32 256, 1
              loop: start=0, step=1, limit=1
              $region41: #{regression_forward.3} parent=39 // loop_pre_header
                _
              $region42: #{regression_forward.3} parent=39 // loop_header
                %s148 = sphi 0, %s152
                %p149 = scmp.ge.s32.totalorder %s148, 1
                %s153 = sphi %s138, %s138
                %s154 = sphi %s136, %s136
              $region43: #{regression_forward.3} parent=39 // loop_header_branch
                %151 = sbr.rel (%p149) target = $region47
              $region44: #{regression_forward.3} parent=39 // loop_body
                %v155 = vld [vmem:[%s153] sm:%s146]
                %156 = vst [vmem:[%s154] sm:%s146] %v155
                %v157 = vld [vmem:[%s153 + $0x10] sm:%s146]
                %158 = vst [vmem:[%s154 + $0x8] sm:%s146] %v157
                %v159 = vld [vmem:[%s153 + $0x20] sm:%s146]
                %160 = vst [vmem:[%s154 + $0x10] sm:%s146] %v159
              $region45: #{regression_forward.3} parent=39 // loop_footer
                %s152 = sadd.s32 1, %s148
              $region46: #{regression_forward.3} parent=39 // loop_footer_branch
                %147 = sbr.rel target = $region42
              $region47: #{regression_forward.3} parent=39 // loop_exit
                _
            $region40: #{regression_forward.3} parent=31 // pred_fallthru
              _
          $region32: #{regression_forward.3} parent=27 // pred_fallthru
            _
          %179 = vnop
        $region28: #{regression_forward.3} parent=23 // pred_fallthru
          _
      $region24: #{regression_forward.3} parent=5 // pred_fallthru
        _
      %p180 = scmp.le.s32.totalorder 1, %s11
      %p181 = scmp.lt.s32.totalorder %s11, 3
      %p182 = pnand %p180, %p181
      %p183 = pneg %p182
      // Predicated region
      $region63: #{regression_forward.3} parent=5 // pred_check
        _
      $region64: #{regression_forward.3} parent=5 // pred_check_branch
        %185 = sbr.rel (%p182) target = $region66
      $region65: #{regression_forward.3} parent=5 // pred_region
        %s186 = ssub.s32 %s11, 1
        %s187 = sand.u32 %s24, 1
        %s188 = sand.u32 %s24, 1
        %s189 = smul.addr %s188, 24
        %s190 = scalar_lea.vmem [#allocation3], %s189
        // Predicated region
        $region67: #{regression_forward.3} parent=65 // pred_check
          %p191 = pneg %p37
        $region68: #{regression_forward.3} parent=65 // pred_check_branch
          %193 = sbr.rel (%p191) target = $region70
        $region69: #{regression_forward.3} parent=65 // pred_region
          _
        $region70: #{regression_forward.3} parent=65 // pred_fallthru
          _
        %s194 = sand.u32 %s24, 1
        %s195 = sand.u32 %s24, 1
        %s196 = smul.addr %s195, 24
        %s197 = scalar_lea.vmem [#allocation3], %s196
        %p198 = pneg %p37
        %p199 = pneg %p34
        %p200 = pneg %p58
        %p201 = pneg %p55
        %p202 = pneg %p79
        %p203 = pneg %p76
        %p204 = pneg %p105
        %p205 = pneg %p102
        %p206 = scmp.lt.s32.totalorder %s16, 1
        %s207 = scalar_select %p206, %s16, 1
        %s208 = smul.addr %s207, 8
        %s209 = scalar_lea.vmem %s3, %s208
        %p210 = scmp.lt.s32.totalorder %s16, 1
        %s211 = scalar_select %p210, %s16, 1
        %s212 = smul.addr %s211, 8
        %s213 = scalar_lea.vmem %s3, %s212
        %v214 = vld [vmem:[%s190] sm:$0x3f]
        %s215 = scalar_lea.vmem %s190, 8 [#allocation3]
        %v216 = vld [vmem:[%s215] sm:$0x3f]
        %s217 = scalar_lea.vmem %s190, 16 [#allocation3]
        %v218 = vld [vmem:[%s217] sm:$0x3f]
        %vm219 = vcmask 261120
        %v221 = vsel %vm219, %v214, 0
        %v224 = vsel %vm219, %v216, 0
        %226 = vmatpush.xpose.msra.mxu0 0.0
        %227 = vmatpush.xpose.msra.mxu0 0.0
        %228 = vmatpush.xpose.msra.mxu0 0.0
        %229 = vmatpush.xpose.msra.mxu0 0.0
        %230 = vmatpush.xpose.msra.mxu0 0.0
        %231 = vmatpush.xpose.msra.mxu0 0.0
        %232 = vmatpush.xpose.msra.mxu0 0.0
        %233 = vmatpush.xpose.msra.mxu0 0.0
        %234 = vmatpush.xpose.msra.mxu0 0.0
        %235 = vmatpush.xpose.msra.mxu0 0.0
        %236 = vmatpush.xpose.msra.mxu0 0.0
        %237 = vmatpush.xpose.msra.mxu0 0.0
        %238 = vmatpush.xpose.msra.mxu0 0.0
        %239 = vmatpush.xpose.msra.mxu0 0.0
        %240 = vmatpush.xpose.msra.mxu0 0.0
        %241 = vmatpush.xpose.msra.mxu0 %v224
        %242 = vmatmul.f32.gmra.mxu0 %v221
        %v243 = vpop.f32.mrf.mxu0
        %v244 = vadd.f32 0.0, %v243
        %245 = vdwg.mxu0
        %246 = vmatpush.xpose.msra.mxu0 0.0
        %247 = vmatpush.xpose.msra.mxu0 0.0
        %248 = vmatpush.xpose.msra.mxu0 0.0
        %249 = vmatpush.xpose.msra.mxu0 0.0
        %250 = vmatpush.xpose.msra.mxu0 0.0
        %251 = vmatpush.xpose.msra.mxu0 0.0
        %252 = vmatpush.xpose.msra.mxu0 0.0
        %253 = vmatpush.xpose.msra.mxu0 0.0
        %254 = vmatpush.xpose.msra.mxu0 0.0
        %255 = vmatpush.xpose.msra.mxu0 0.0
        %256 = vmatpush.xpose.msra.mxu0 0.0
        %257 = vmatpush.xpose.msra.mxu0 0.0
        %258 = vmatpush.xpose.msra.mxu0 0.0
        %259 = vmatpush.xpose.msra.mxu0 0.0
        %260 = vmatpush.xpose.msra.mxu0 0.0
        %261 = vmatpush.xpose.msra.mxu0 %v221
        %262 = vmatmul.f32.gmra.mxu0 %v224
        %v263 = vpop.f32.mrf.mxu0
        %v264 = vadd.f32 0.0, %v263
        %265 = vdwg.mxu0
        %vm266 = vcmask 46080
        %v267 = vsel %vm266, %v244, -inf
        %268 = vmax.xlane.f32.xlu0 %v267
        %v269 = vpop.xlane.xlu0 %268
        %v270 = vsub.f32 %v244, %v269
        %v271 = vmul.f32 %v270, 1.442695
        %v272 = vpow.pop %v271
        %v273 = vsel %vm266, %v272, 0.0
        %274 = vadd.xlane.f32.xlu0 %v273
        %v275 = vpop.xlane.xlu0 %274
        %v276 = vrcp.pop %v275
        %v277 = vmul.f32 %v275, %v276
        %v278 = vsub.f32 1.0, %v277
        %v279 = vmul.f32 %v276, %v278
        %v280 = vadd.f32 %v276, %v279
        %vm281 = vweird.f32 %v275
        %vm282 = vweird.f32 %v276
        %vm283 = vmor %vm281, %vm282
        %v284 = vsel %vm283, %v276, %v280
        %v285 = vand.u32 2147483647, %v275
        %vm286 = vcmp.eq.f32.partialorder %v285, 8.507059e+37
        %v287 = vand.u32 %v275, 2147483648
        %v288 = vor.u32 1.1754944e-38, %v287
        %v289 = vsel %vm286, %v288, %v284
        %v290 = vmul.f32 %v272, %v289
        %v291 = vsel %vm266, %v264, -inf
        %292 = vmax.xlane.f32.xlu0 %v291
        %v293 = vpop.xlane.xlu0 %292
        %v294 = vsub.f32 %v264, %v293
        %v295 = vmul.f32 %v294, 1.442695
        %v296 = vpow.pop %v295
        %v297 = vsel %vm266, %v296, 0.0
        %298 = vadd.xlane.f32.xlu0 %v297
        %v299 = vpop.xlane.xlu0 %298
        %v300 = vrcp.pop %v299
        %v301 = vmul.f32 %v299, %v300
        %v302 = vsub.f32 1.0, %v301
        %v303 = vmul.f32 %v300, %v302
        %v304 = vadd.f32 %v300, %v303
        %vm305 = vweird.f32 %v299
        %vm306 = vweird.f32 %v300
        %vm307 = vmor %vm305, %vm306
        %v308 = vsel %vm307, %v300, %v304
        %v309 = vand.u32 2147483647, %v299
        %vm310 = vcmp.eq.f32.partialorder %v309, 8.507059e+37
        %v311 = vand.u32 %v299, 2147483648
        %v312 = vor.u32 1.1754944e-38, %v311
        %v313 = vsel %vm310, %v312, %v308
        %v314 = vmul.f32 %v296, %v313
        %vm315 = vcmask 48128
        %v317 = vsel %vm315, %v290, 0
        %vm319 = vcmask 1045504
        %v320 = vsel %vm319, %v216, 0
        %322 = vmatpush.msra.mxu0 0.0
        %323 = vmatpush.msra.mxu0 0.0
        %324 = vmatpush.msra.mxu0 0.0
        %325 = vmatpush.msra.mxu0 0.0
        %326 = vmatpush.msra.mxu0 0.0
        %327 = vmatpush.msra.mxu0 0.0
        %328 = vmatpush.msra.mxu0 0.0
        %329 = vmatpush.msra.mxu0 0.0
        %330 = vmatpush.msra.mxu0 0.0
        %331 = vmatpush.msra.mxu0 0.0
        %332 = vmatpush.msra.mxu0 0.0
        %333 = vmatpush.msra.mxu0 0.0
        %334 = vmatpush.msra.mxu0 0.0
        %335 = vmatpush.msra.mxu0 0.0
        %336 = vmatpush.msra.mxu0 0.0
        %337 = vmatpush.msra.mxu0 %v320
        %338 = vmatmul.f32.gmra.mxu0 %v317
        %v339 = vpop.f32.mrf.mxu0
        %v340 = vadd.f32 0.0, %v339
        %341 = vdwg.mxu0
        %v343 = vsel %vm315, %v314, 0
        %v345 = vsel %vm319, %v214, 0
        %347 = vmatpush.msra.mxu0 0.0
        %348 = vmatpush.msra.mxu0 0.0
        %349 = vmatpush.msra.mxu0 0.0
        %350 = vmatpush.msra.mxu0 0.0
        %351 = vmatpush.msra.mxu0 0.0
        %352 = vmatpush.msra.mxu0 0.0
        %353 = vmatpush.msra.mxu0 0.0
        %354 = vmatpush.msra.mxu0 0.0
        %355 = vmatpush.msra.mxu0 0.0
        %356 = vmatpush.msra.mxu0 0.0
        %357 = vmatpush.msra.mxu0 0.0
        %358 = vmatpush.msra.mxu0 0.0
        %359 = vmatpush.msra.mxu0 0.0
        %360 = vmatpush.msra.mxu0 0.0
        %361 = vmatpush.msra.mxu0 0.0
        %362 = vmatpush.msra.mxu0 %v345
        %363 = vmatmul.f32.gmra.mxu0 %v343
        %v364 = vpop.f32.mrf.mxu0
        %v365 = vadd.f32 0.0, %v364
        %366 = vdwg.mxu0
        %v367 = vmul.f32 %v340, %v214
        %v368 = vmul.f32 %v365, %v216
        %v370 = vsel %vm219, %v218, 0
        %372 = vmatpush.xpose.msra.mxu0 0.0
        %373 = vmatpush.xpose.msra.mxu0 0.0
        %374 = vmatpush.xpose.msra.mxu0 0.0
        %375 = vmatpush.xpose.msra.mxu0 0.0
        %376 = vmatpush.xpose.msra.mxu0 0.0
        %377 = vmatpush.xpose.msra.mxu0 0.0
        %378 = vmatpush.xpose.msra.mxu0 0.0
        %379 = vmatpush.xpose.msra.mxu0 0.0
        %380 = vmatpush.xpose.msra.mxu0 0.0
        %381 = vmatpush.xpose.msra.mxu0 0.0
        %382 = vmatpush.xpose.msra.mxu0 0.0
        %383 = vmatpush.xpose.msra.mxu0 0.0
        %384 = vmatpush.xpose.msra.mxu0 0.0
        %385 = vmatpush.xpose.msra.mxu0 0.0
        %386 = vmatpush.xpose.msra.mxu0 0.0
        %387 = vmatpush.xpose.msra.mxu0 %v224
        %388 = vmatmul.f32.gmra.mxu0 %v370
        %v389 = vpop.f32.mrf.mxu0
        %v390 = vadd.f32 0.0, %v389
        %391 = vdwg.mxu0
        %392 = vmatpush.xpose.msra.mxu0 0.0
        %393 = vmatpush.xpose.msra.mxu0 0.0
        %394 = vmatpush.xpose.msra.mxu0 0.0
        %395 = vmatpush.xpose.msra.mxu0 0.0
        %396 = vmatpush.xpose.msra.mxu0 0.0
        %397 = vmatpush.xpose.msra.mxu0 0.0
        %398 = vmatpush.xpose.msra.mxu0 0.0
        %399 = vmatpush.xpose.msra.mxu0 0.0
        %400 = vmatpush.xpose.msra.mxu0 0.0
        %401 = vmatpush.xpose.msra.mxu0 0.0
        %402 = vmatpush.xpose.msra.mxu0 0.0
        %403 = vmatpush.xpose.msra.mxu0 0.0
        %404 = vmatpush.xpose.msra.mxu0 0.0
        %405 = vmatpush.xpose.msra.mxu0 0.0
        %406 = vmatpush.xpose.msra.mxu0 0.0
        %407 = vmatpush.xpose.msra.mxu0 %v370
        %408 = vmatmul.f32.gmra.mxu0 %v224
        %v409 = vpop.f32.mrf.mxu0
        %v410 = vadd.f32 0.0, %v409
        %411 = vdwg.mxu0
        %v412 = vsel %vm266, %v390, -inf
        %413 = vmax.xlane.f32.xlu0 %v412
        %v414 = vpop.xlane.xlu0 %413
        %v415 = vsub.f32 %v390, %v414
        %v416 = vmul.f32 %v415, 1.442695
        %v417 = vpow.pop %v416
        %v418 = vsel %vm266, %v417, 0.0
        %419 = vadd.xlane.f32.xlu0 %v418
        %v420 = vpop.xlane.xlu0 %419
        %v421 = vrcp.pop %v420
        %v422 = vmul.f32 %v420, %v421
        %v423 = vsub.f32 1.0, %v422
        %v424 = vmul.f32 %v421, %v423
        %v425 = vadd.f32 %v421, %v424
        %vm426 = vweird.f32 %v420
        %vm427 = vweird.f32 %v421
        %vm428 = vmor %vm426, %vm427
        %v429 = vsel %vm428, %v421, %v425
        %v430 = vand.u32 2147483647, %v420
        %vm431 = vcmp.eq.f32.partialorder %v430, 8.507059e+37
        %v432 = vand.u32 %v420, 2147483648
        %v433 = vor.u32 1.1754944e-38, %v432
        %v434 = vsel %vm431, %v433, %v429
        %v435 = vmul.f32 %v417, %v434
        %v436 = vsel %vm266, %v410, -inf
        %437 = vmax.xlane.f32.xlu0 %v436
        %v438 = vpop.xlane.xlu0 %437
        %v439 = vsub.f32 %v410, %v438
        %v440 = vmul.f32 %v439, 1.442695
        %v441 = vpow.pop %v440
        %v442 = vsel %vm266, %v441, 0.0
        %443 = vadd.xlane.f32.xlu0 %v442
        %v444 = vpop.xlane.xlu0 %443
        %v445 = vrcp.pop %v444
        %v446 = vmul.f32 %v444, %v445
        %v447 = vsub.f32 1.0, %v446
        %v448 = vmul.f32 %v445, %v447
        %v449 = vadd.f32 %v445, %v448
        %vm450 = vweird.f32 %v444
        %vm451 = vweird.f32 %v445
        %vm452 = vmor %vm450, %vm451
        %v453 = vsel %vm452, %v445, %v449
        %v454 = vand.u32 2147483647, %v444
        %vm455 = vcmp.eq.f32.partialorder %v454, 8.507059e+37
        %v456 = vand.u32 %v444, 2147483648
        %v457 = vor.u32 1.1754944e-38, %v456
        %v458 = vsel %vm455, %v457, %v453
        %v459 = vmul.f32 %v441, %v458
        %v461 = vsel %vm315, %v435, 0
        %463 = vmatpush.msra.mxu0 0.0
        %464 = vmatpush.msra.mxu0 0.0
        %465 = vmatpush.msra.mxu0 0.0
        %466 = vmatpush.msra.mxu0 0.0
        %467 = vmatpush.msra.mxu0 0.0
        %468 = vmatpush.msra.mxu0 0.0
        %469 = vmatpush.msra.mxu0 0.0
        %470 = vmatpush.msra.mxu0 0.0
        %471 = vmatpush.msra.mxu0 0.0
        %472 = vmatpush.msra.mxu0 0.0
        %473 = vmatpush.msra.mxu0 0.0
        %474 = vmatpush.msra.mxu0 0.0
        %475 = vmatpush.msra.mxu0 0.0
        %476 = vmatpush.msra.mxu0 0.0
        %477 = vmatpush.msra.mxu0 0.0
        %478 = vmatpush.msra.mxu0 %v320
        %479 = vmatmul.f32.gmra.mxu0 %v461
        %v480 = vpop.f32.mrf.mxu0
        %v481 = vadd.f32 0.0, %v480
        %482 = vdwg.mxu0
        %v484 = vsel %vm315, %v459, 0
        %v486 = vsel %vm319, %v218, 0
        %488 = vmatpush.msra.mxu0 0.0
        %489 = vmatpush.msra.mxu0 0.0
        %490 = vmatpush.msra.mxu0 0.0
        %491 = vmatpush.msra.mxu0 0.0
        %492 = vmatpush.msra.mxu0 0.0
        %493 = vmatpush.msra.mxu0 0.0
        %494 = vmatpush.msra.mxu0 0.0
        %495 = vmatpush.msra.mxu0 0.0
        %496 = vmatpush.msra.mxu0 0.0
        %497 = vmatpush.msra.mxu0 0.0
        %498 = vmatpush.msra.mxu0 0.0
        %499 = vmatpush.msra.mxu0 0.0
        %500 = vmatpush.msra.mxu0 0.0
        %501 = vmatpush.msra.mxu0 0.0
        %502 = vmatpush.msra.mxu0 0.0
        %503 = vmatpush.msra.mxu0 %v486
        %504 = vmatmul.f32.gmra.mxu0 %v484
        %v505 = vpop.f32.mrf.mxu0
        %v506 = vadd.f32 0.0, %v505
        %507 = vdwg.mxu0
        %v508 = vmul.f32 %v481, %v218
        %v509 = vmul.f32 %v506, %v216
        %510 = vmatpush.xpose.msra.mxu0 0.0
        %511 = vmatpush.xpose.msra.mxu0 0.0
        %512 = vmatpush.xpose.msra.mxu0 0.0
        %513 = vmatpush.xpose.msra.mxu0 0.0
        %514 = vmatpush.xpose.msra.mxu0 0.0
        %515 = vmatpush.xpose.msra.mxu0 0.0
        %516 = vmatpush.xpose.msra.mxu0 0.0
        %517 = vmatpush.xpose.msra.mxu0 0.0
        %518 = vmatpush.xpose.msra.mxu0 0.0
        %519 = vmatpush.xpose.msra.mxu0 0.0
        %520 = vmatpush.xpose.msra.mxu0 0.0
        %521 = vmatpush.xpose.msra.mxu0 0.0
        %522 = vmatpush.xpose.msra.mxu0 0.0
        %523 = vmatpush.xpose.msra.mxu0 0.0
        %524 = vmatpush.xpose.msra.mxu0 0.0
        %525 = vmatpush.xpose.msra.mxu0 %v370
        %526 = vmatmul.f32.gmra.mxu0 %v221
        %v527 = vpop.f32.mrf.mxu0
        %v528 = vadd.f32 0.0, %v527
        %529 = vdwg.mxu0
        %530 = vmatpush.xpose.msra.mxu0 0.0
        %531 = vmatpush.xpose.msra.mxu0 0.0
        %532 = vmatpush.xpose.msra.mxu0 0.0
        %533 = vmatpush.xpose.msra.mxu0 0.0
        %534 = vmatpush.xpose.msra.mxu0 0.0
        %535 = vmatpush.xpose.msra.mxu0 0.0
        %536 = vmatpush.xpose.msra.mxu0 0.0
        %537 = vmatpush.xpose.msra.mxu0 0.0
        %538 = vmatpush.xpose.msra.mxu0 0.0
        %539 = vmatpush.xpose.msra.mxu0 0.0
        %540 = vmatpush.xpose.msra.mxu0 0.0
        %541 = vmatpush.xpose.msra.mxu0 0.0
        %542 = vmatpush.xpose.msra.mxu0 0.0
        %543 = vmatpush.xpose.msra.mxu0 0.0
        %544 = vmatpush.xpose.msra.mxu0 0.0
        %545 = vmatpush.xpose.msra.mxu0 %v221
        %546 = vmatmul.f32.gmra.mxu0 %v370
        %v547 = vpop.f32.mrf.mxu0
        %v548 = vadd.f32 0.0, %v547
        %549 = vdwg.mxu0
        %v550 = vsel %vm266, %v528, -inf
        %551 = vmax.xlane.f32.xlu0 %v550
        %v552 = vpop.xlane.xlu0 %551
        %v553 = vsub.f32 %v528, %v552
        %v554 = vmul.f32 %v553, 1.442695
        %v555 = vpow.pop %v554
        %v556 = vsel %vm266, %v555, 0.0
        %557 = vadd.xlane.f32.xlu0 %v556
        %v558 = vpop.xlane.xlu0 %557
        %v559 = vrcp.pop %v558
        %v560 = vmul.f32 %v558, %v559
        %v561 = vsub.f32 1.0, %v560
        %v562 = vmul.f32 %v559, %v561
        %v563 = vadd.f32 %v559, %v562
        %vm564 = vweird.f32 %v558
        %vm565 = vweird.f32 %v559
        %vm566 = vmor %vm564, %vm565
        %v567 = vsel %vm566, %v559, %v563
        %v568 = vand.u32 2147483647, %v558
        %vm569 = vcmp.eq.f32.partialorder %v568, 8.507059e+37
        %v570 = vand.u32 %v558, 2147483648
        %v571 = vor.u32 1.1754944e-38, %v570
        %v572 = vsel %vm569, %v571, %v567
        %v573 = vmul.f32 %v555, %v572
        %v574 = vsel %vm266, %v548, -inf
        %575 = vmax.xlane.f32.xlu0 %v574
        %v576 = vpop.xlane.xlu0 %575
        %v577 = vsub.f32 %v548, %v576
        %v578 = vmul.f32 %v577, 1.442695
        %v579 = vpow.pop %v578
        %v580 = vsel %vm266, %v579, 0.0
        %581 = vadd.xlane.f32.xlu0 %v580
        %v582 = vpop.xlane.xlu0 %581
        %v583 = vrcp.pop %v582
        %v584 = vmul.f32 %v582, %v583
        %v585 = vsub.f32 1.0, %v584
        %v586 = vmul.f32 %v583, %v585
        %v587 = vadd.f32 %v583, %v586
        %vm588 = vweird.f32 %v582
        %vm589 = vweird.f32 %v583
        %vm590 = vmor %vm588, %vm589
        %v591 = vsel %vm590, %v583, %v587
        %v592 = vand.u32 2147483647, %v582
        %vm593 = vcmp.eq.f32.partialorder %v592, 8.507059e+37
        %v594 = vand.u32 %v582, 2147483648
        %v595 = vor.u32 1.1754944e-38, %v594
        %v596 = vsel %vm593, %v595, %v591
        %v597 = vmul.f32 %v579, %v596
        %v599 = vsel %vm315, %v573, 0
        %601 = vmatpush.msra.mxu0 0.0
        %602 = vmatpush.msra.mxu0 0.0
        %603 = vmatpush.msra.mxu0 0.0
        %604 = vmatpush.msra.mxu0 0.0
        %605 = vmatpush.msra.mxu0 0.0
        %606 = vmatpush.msra.mxu0 0.0
        %607 = vmatpush.msra.mxu0 0.0
        %608 = vmatpush.msra.mxu0 0.0
        %609 = vmatpush.msra.mxu0 0.0
        %610 = vmatpush.msra.mxu0 0.0
        %611 = vmatpush.msra.mxu0 0.0
        %612 = vmatpush.msra.mxu0 0.0
        %613 = vmatpush.msra.mxu0 0.0
        %614 = vmatpush.msra.mxu0 0.0
        %615 = vmatpush.msra.mxu0 0.0
        %616 = vmatpush.msra.mxu0 %v486
        %617 = vmatmul.f32.gmra.mxu0 %v599
        %v618 = vpop.f32.mrf.mxu0
        %v619 = vadd.f32 0.0, %v618
        %620 = vdwg.mxu0
        %v622 = vsel %vm315, %v597, 0
        %624 = vmatpush.msra.mxu0 0.0
        %625 = vmatpush.msra.mxu0 0.0
        %626 = vmatpush.msra.mxu0 0.0
        %627 = vmatpush.msra.mxu0 0.0
        %628 = vmatpush.msra.mxu0 0.0
        %629 = vmatpush.msra.mxu0 0.0
        %630 = vmatpush.msra.mxu0 0.0
        %631 = vmatpush.msra.mxu0 0.0
        %632 = vmatpush.msra.mxu0 0.0
        %633 = vmatpush.msra.mxu0 0.0
        %634 = vmatpush.msra.mxu0 0.0
        %635 = vmatpush.msra.mxu0 0.0
        %636 = vmatpush.msra.mxu0 0.0
        %637 = vmatpush.msra.mxu0 0.0
        %638 = vmatpush.msra.mxu0 0.0
        %639 = vmatpush.msra.mxu0 %v345
        %640 = vmatmul.f32.gmra.mxu0 %v622
        %v641 = vpop.f32.mrf.mxu0
        %v642 = vadd.f32 0.0, %v641
        %643 = vdwg.mxu0
        %v644 = vmul.f32 %v619, %v214
        %v645 = vmul.f32 %v642, %v218
        %647 = vrot.lane.b32.xlu0 %v368, 32
        %v648 = vpop.permute.xlu0 %647
        %651 = vrot.lane.b32.xlu0 %v508, 64
        %v652 = vpop.permute.xlu0 %651
        %655 = vrot.lane.b32.xlu0 %v509, 96
        %v656 = vpop.permute.xlu0 %655
        %659 = vrot.lane.b32.xlu0 %v645, 32
        %v660 = vpop.permute.xlu0 %659
        %662 = vrot.lane.b32.xlu0 %v214, 64
        %v663 = vpop.permute.xlu0 %662
        %665 = vrot.lane.b32.xlu0 %v216, 96
        %v666 = vpop.permute.xlu0 %665
        %v668 = vsel %vm219, %v367, %v648
        %vm669 = vcmask 523264
        %v670 = vsel %vm669, %v668, %v652
        %vm671 = vcmask 785408
        %v672 = vsel %vm671, %v670, %v656
        %v673 = vsel %vm219, %v644, %v660
        %v674 = vsel %vm669, %v673, %v663
        %v675 = vsel %vm671, %v674, %v666
        %v676 = vld [vmem:[%s1] sm:$0xff]
        %v677 = vld [vmem:[%s1 + $0x8] sm:$0xff]
        %v678 = vld [vmem:[%s1 + $0x10] sm:$0xff]
        %v679 = vld [vmem:[%s1 + $0x18] sm:$0xff]
        %v680 = vld [vmem:[%s1 + $0x20] sm:$0xff]
        %v681 = vld [vmem:[%s1 + $0x28] sm:$0xff]
        %v682 = vld [vmem:[%s1 + $0x30] sm:$0xff]
        %v683 = vld [vmem:[%s1 + $0x38] sm:$0xff]
        %v684 = vld [vmem:[%s1 + $0x40] sm:$0xff]
        %v685 = vld [vmem:[%s1 + $0x48] sm:$0xff]
        %v686 = vld [vmem:[%s1 + $0x50] sm:$0xff]
        %v687 = vld [vmem:[%s1 + $0x58] sm:$0xff]
        %v688 = vld [vmem:[%s1 + $0x60] sm:$0xff]
        %v689 = vld [vmem:[%s1 + $0x68] sm:$0xff]
        %v690 = vld [vmem:[%s1 + $0x70] sm:$0xff]
        %v691 = vld [vmem:[%s1 + $0x78] sm:$0xff]
        %v692 = vld [vmem:[%s1 + $0x80] sm:$0xff]
        %v693 = vld [vmem:[%s1 + $0x88] sm:$0xff]
        %v694 = vld [vmem:[%s1 + $0x90] sm:$0xff]
        %v695 = vld [vmem:[%s1 + $0x98] sm:$0xff]
        %v696 = vld [vmem:[%s1 + $0xa0] sm:$0xff]
        %v697 = vld [vmem:[%s1 + $0xa8] sm:$0xff]
        %v698 = vld [vmem:[%s1 + $0xb0] sm:$0xff]
        %v699 = vld [vmem:[%s1 + $0xb8] sm:$0xff]
        %v700 = vld [vmem:[%s1 + $0xc0] sm:$0xff]
        %v701 = vld [vmem:[%s1 + $0xc8] sm:$0xff]
        %v702 = vld [vmem:[%s1 + $0xd0] sm:$0xff]
        %v703 = vld [vmem:[%s1 + $0xd8] sm:$0xff]
        %v704 = vld [vmem:[%s1 + $0xe0] sm:$0xff]
        %v705 = vld [vmem:[%s1 + $0xe8] sm:$0xff]
        %v706 = vld [vmem:[%s1 + $0xf0] sm:$0xff]
        %v707 = vld [vmem:[%s1 + $0xf8] sm:$0xff]
        %v708 = vld [vmem:[%s1 + $0x100] sm:$0xff]
        %v709 = vld [vmem:[%s1 + $0x108] sm:$0xff]
        %v710 = vld [vmem:[%s1 + $0x110] sm:$0xff]
        %v711 = vld [vmem:[%s1 + $0x118] sm:$0xff]
        %v712 = vld [vmem:[#allocation2] sm:$0x1]
        %v714 = vperm.slane %v712, 0
        %716 = vmatpush.msra.mxu0 %v691
        %717 = vmatpush.msra.mxu0 %v690
        %718 = vmatpush.msra.mxu0 %v689
        %719 = vmatpush.msra.mxu0 %v688
        %720 = vmatpush.msra.mxu0 %v687
        %721 = vmatpush.msra.mxu0 %v686
        %722 = vmatpush.msra.mxu0 %v685
        %723 = vmatpush.msra.mxu0 %v684
        %724 = vmatpush.msra.mxu0 %v683
        %725 = vmatpush.msra.mxu0 %v682
        %726 = vmatpush.msra.mxu0 %v681
        %727 = vmatpush.msra.mxu0 %v680
        %728 = vmatpush.msra.mxu0 %v679
        %729 = vmatpush.msra.mxu0 %v678
        %730 = vmatpush.msra.mxu0 %v677
        %731 = vmatpush.msra.mxu0 %v676
        %732 = vmatmul.f32.gmra.mxu0 %v672
        %v733 = vpop.f32.mrf.mxu0
        %v734 = vadd.f32 %v714, %v733
        %735 = vdwg.mxu0
        %736 = vmatpush.msra.mxu0 %v707
        %737 = vmatpush.msra.mxu0 %v706
        %738 = vmatpush.msra.mxu0 %v705
        %739 = vmatpush.msra.mxu0 %v704
        %740 = vmatpush.msra.mxu0 %v703
        %741 = vmatpush.msra.mxu0 %v702
        %742 = vmatpush.msra.mxu0 %v701
        %743 = vmatpush.msra.mxu0 %v700
        %744 = vmatpush.msra.mxu0 %v699
        %745 = vmatpush.msra.mxu0 %v698
        %746 = vmatpush.msra.mxu0 %v697
        %747 = vmatpush.msra.mxu0 %v696
        %748 = vmatpush.msra.mxu0 %v695
        %749 = vmatpush.msra.mxu0 %v694
        %750 = vmatpush.msra.mxu0 %v693
        %751 = vmatpush.msra.mxu0 %v692
        %752 = vmatmul.f32.gmra.mxu0 %v675
        %v753 = vpop.f32.mrf.mxu0
        %v754 = vadd.f32 %v734, %v753
        %755 = vdwg.mxu0
        %756 = vmatpush.msra.mxu0 0.0
        %757 = vmatpush.msra.mxu0 0.0
        %758 = vmatpush.msra.mxu0 0.0
        %759 = vmatpush.msra.mxu0 0.0
        %760 = vmatpush.msra.mxu0 0.0
        %761 = vmatpush.msra.mxu0 0.0
        %762 = vmatpush.msra.mxu0 0.0
        %763 = vmatpush.msra.mxu0 0.0
        %764 = vmatpush.msra.mxu0 0.0
        %765 = vmatpush.msra.mxu0 0.0
        %766 = vmatpush.msra.mxu0 0.0
        %767 = vmatpush.msra.mxu0 0.0
        %768 = vmatpush.msra.mxu0 %v711
        %769 = vmatpush.msra.mxu0 %v710
        %770 = vmatpush.msra.mxu0 %v709
        %771 = vmatpush.msra.mxu0 %v708
        %772 = vmatmul.f32.gmra.mxu0 %v370
        %v773 = vpop.f32.mrf.mxu0
        %v774 = vadd.f32 %v754, %v773
        %775 = vdwg.mxu0
        %v776 = vtanh.pop %v774
        %v777 = vmul.f32 %v776, 3.0
        %vm778 = vcmask 5120
        %779 = vst.msk [vmem:[%s213] sm:$0x3f] %vm778, %v777
        %p780 = scmp.lt.s32.totalorder %s16, 1
        %s781 = scalar_select %p780, %s16, 1
        %s782 = smul.addr %s781, 8
        %s783 = scalar_lea.vmem %s3, %s782
        // Predicated region
        $region71: #{regression_forward.3} parent=65 // pred_check
          %p784 = pneg %p102
        $region72: #{regression_forward.3} parent=65 // pred_check_branch
          %786 = sbr.rel (%p784) target = $region74
        $region73: #{regression_forward.3} parent=65 // pred_region
          _
        $region74: #{regression_forward.3} parent=65 // pred_fallthru
          _
      $region66: #{regression_forward.3} parent=5 // pred_fallthru
        _
      %p787 = scmp.le.s32.totalorder 2, %s11
      // Predicated region
      $region75: #{regression_forward.3} parent=5 // pred_check
        %p788 = pneg %p787
      $region76: #{regression_forward.3} parent=5 // pred_check_branch
        %790 = sbr.rel (%p788) target = $region78
      $region77: #{regression_forward.3} parent=5 // pred_region
        %s791 = ssub.s32 %s11, 2
        // Predicated region
        $region79: #{regression_forward.3} parent=77 // pred_check
          %p792 = pneg %p108
        $region80: #{regression_forward.3} parent=77 // pred_check_branch
          %794 = sbr.rel (%p792) target = $region82
        $region81: #{regression_forward.3} parent=77 // pred_region
          %p795 = scmp.lt.s32.totalorder %s17, 1
          %s796 = scalar_select %p795, %s17, 1
          %s797 = smul.addr %s796, 8
          %s798 = scalar_lea.vmem %s3, %s797
        $region82: #{regression_forward.3} parent=77 // pred_fallthru
          _
      $region78: #{regression_forward.3} parent=5 // pred_fallthru
        _
    $region6: #{regression_forward.3} parent=1 // loop_footer
      %s15 = sadd.s32 1, %s11
    $region7: #{regression_forward.3} parent=1 // loop_footer_branch
      %10 = sbr.rel target = $region3
    $region8: #{regression_forward.3} parent=1 // loop_exit
      _

// kernel: regression_forward.2
$region0: #{regression_forward.2}
  #allocation0 [shape = 'u32[]', space=smem, size = 0x4, offset = 0x4, fixed_abs, tag = 'smem constant byte address 0x4 - core index']
  #allocation1 [shape = 'u32[72,128]{1,0:T(1,128)}', space=vmem, size = 0x9000, scoped, tag = 'internal scratch']
  %s0 = inlined_call_operand.vmem [shape: f32[3,6,2,24], index: 0, kind: input, shape index: {}]
  %s1 = inlined_call_operand.vmem [shape: f32[6,2,20], index: 1, kind: input, shape index: {}]
  %s2 = inlined_call_operand.vmem [shape: f32[6,2,2], index: 2, kind: input, shape index: {}]
  %s3 = inlined_call_operand.vmem [shape: f32[6,2,2], index: 3, kind: input, shape index: {}]
  %s4 = inlined_call_operand.vmem [shape: f32[3,44,96], index: 4, kind: input, shape index: {}]
  %s5 = inlined_call_operand.hbm [shape: f32[3,32,96], index: 5, kind: input, shape index: {}]
  %s6 = inlined_call_operand.vmem [shape: f32[3,1,96], index: 6, kind: input, shape index: {}]
  %s7 = inlined_call_operand.vmem [shape: f32[3,1,96], index: 7, kind: input, shape index: {}]
  %s8 = inlined_call_operand.hbm [shape: f32[3,56,72], index: 8, kind: input, shape index: {}]
  %s9 = inlined_call_operand.hbm [shape: f32[3,24,72], index: 9, kind: input, shape index: {}]
  %s10 = inlined_call_operand.vmem [shape: f32[3,1,72], index: 10, kind: input, shape index: {}]
  %s11 = inlined_call_operand.vmem [shape: f32[3,1,72], index: 11, kind: input, shape index: {}]
  %s12 = inlined_call_operand.vmem [shape: f32[3,24,16], index: 12, kind: input, shape index: {}]
  %s13 = inlined_call_operand.vmem [shape: f32[3,1,16], index: 13, kind: input, shape index: {}]
  %s14 = inlined_call_operand.hbm [shape: f32[3,16,16], index: 14, kind: input, shape index: {}]
  %s15 = inlined_call_operand.vmem [shape: f32[3,1,16], index: 15, kind: input, shape index: {}]
  %s16 = inlined_call_operand.hbm [shape: f32[3,1,32], index: 16, kind: input, shape index: {}]
  %s17 = inlined_call_operand.vmem [shape: f32[16,32], index: 17, kind: input, shape index: {}]
  %s18 = inlined_call_operand.vmem [shape: f32[1,32], index: 18, kind: input, shape index: {}]
  %s19 = inlined_call_operand.vmem [shape: f32[3,2,6,32], index: 19, kind: output, shape index: {}]
  %s20 = sld [smem:[#allocation0]]
  $region129: #{regression_forward.2} parent=0
    _
  %s22 = ssub.s32 1, %s20
  %s23 = scalar_select 0, %s22, %s20
  $region1: #{regression_forward.2} parent=0
    #allocation2 [shape = 'u8[32768]{0}', space=vmem, size = 0x8000, scoped, tag = 'input window, operand 5']
    #allocation3 [shape = 's32[2]{0}', space=sflag, size = 0x8, scoped, tag = 'scoped memory for regression_forward.2']
    #allocation4 [shape = 'u8[57344]{0}', space=vmem, size = 0xe000, scoped, tag = 'input window, operand 8']
    #allocation5 [shape = 's32[2]{0}', space=sflag, size = 0x8, scoped, tag = 'scoped memory for regression_forward.2']
    #allocation6 [shape = 'u8[24576]{0}', space=vmem, size = 0x6000, scoped, tag = 'input window, operand 9']
    #allocation7 [shape = 'u8[16384]{0}', space=vmem, size = 0x4000, scoped, tag = 'input window, operand 14']
    #allocation8 [shape = 's32[2]{0}', space=sflag, size = 0x8, scoped, tag = 'scoped memory for regression_forward.2']
    #allocation9 [shape = 'u8[1024]{0}', space=vmem, size = 0x400, scoped, tag = 'input window, operand 16']
    %24 = vsyncpa [#allocation3], 0
    %s25 = scalar_lea.sflag [#allocation3], 1
    %26 = vsyncpa %s25, 0
    %27 = vsyncpa [#allocation5], 0
    %s28 = scalar_lea.sflag [#allocation5], 1
    %29 = vsyncpa %s28, 0
    %30 = vsyncpa [#allocation8], 0
    %s31 = scalar_lea.sflag [#allocation8], 1
    %32 = vsyncpa %s31, 0
    loop: start=0, step=1, limit=5
    $region2: #{regression_forward.2} parent=1 // loop_pre_header
      _
    $region3: #{regression_forward.2} parent=1 // loop_header
      %s34 = sphi 0, %s38
      %p35 = scmp.ge.s32.totalorder %s34, 5
      %s44 = sphi 0, %s46
      %s47 = sphi 0, %s44
      %s48 = sphi 0, %s47
      %s64 = sphi 0, %s48
      %s68 = sphi 0, %s68
      %s70 = sphi 0, %s68
      %s71 = sphi 0, %s70
      %s85 = sphi 0, %s71
      %s89 = sphi 0, %s89
      %s91 = sphi 0, %s89
      %s92 = sphi 0, %s91
      %s106 = sphi 0, %s92
      %s110 = sphi 0, %s110
      %s112 = sphi 0, %s110
      %s113 = sphi 0, %s112
      %s127 = sphi 0, %s113
      %s133 = sphi 0, %s135
      %s136 = sphi 0, %s133
      %s137 = sphi 0, %s136
      %s153 = sphi 0, %s137
      %s159 = sphi 0, %s161
      %s162 = sphi 0, %s159
      %s163 = sphi 0, %s162
      %s179 = sphi 0, %s163
      %s185 = sphi 0, %s187
      %s188 = sphi 0, %s185
      %s189 = sphi 0, %s188
      %s205 = sphi 0, %s189
      %s211 = sphi 0, %s213
      %s214 = sphi 0, %s211
      %s215 = sphi 0, %s214
      %s231 = sphi 0, %s215
      %s237 = sphi 0, %s239
      %s240 = sphi 0, %s237
      %s241 = sphi 0, %s240
      %s257 = sphi 0, %s241
      %s263 = sphi 0, %s265
      %s266 = sphi 0, %s263
      %s267 = sphi 0, %s266
      %s283 = sphi 0, %s267
      %s289 = sphi 0, %s291
      %s292 = sphi 0, %s289
      %s293 = sphi 0, %s292
      %s309 = sphi 0, %s293
      %s315 = sphi 0, %s317
      %s318 = sphi 0, %s315
      %s319 = sphi 0, %s318
      %s335 = sphi 0, %s319
      %s341 = sphi 0, %s343
      %s344 = sphi 0, %s341
      %s345 = sphi 0, %s344
      %s361 = sphi 0, %s345
      %s367 = sphi 0, %s369
      %s370 = sphi 0, %s367
      %s371 = sphi 0, %s370
      %s387 = sphi 0, %s371
      %s393 = sphi 0, %s395
      %s396 = sphi 0, %s393
      %s397 = sphi 0, %s396
      %s413 = sphi 0, %s397
      %s419 = sphi 0, %s421
      %s422 = sphi 0, %s419
      %s423 = sphi 0, %s422
      %s439 = sphi 0, %s423
      %s445 = sphi 0, %s447
      %s448 = sphi 0, %s445
      %s449 = sphi 0, %s448
      %s465 = sphi 0, %s449
      %s469 = sphi 0, %s469
      %s471 = sphi 0, %s469
      %s472 = sphi 0, %s471
      %s486 = sphi 0, %s472
      %s490 = sphi 0, %s490
      %s492 = sphi 0, %s490
      %s493 = sphi 0, %s492
      %s507 = sphi 0, %s493
      %s513 = sphi 0, %s515
      %s516 = sphi 0, %s513
      %s517 = sphi 0, %s516
      %s533 = sphi 0, %s517
    $region4: #{regression_forward.2} parent=1 // loop_header_branch
      %37 = sbr.rel (%p35) target = $region8
    $region5: #{regression_forward.2} parent=1 // loop_body
      %s39 = ssub.s32 %s34, 1
      %s40 = ssub.s32 %s34, 2
      %s41 = sadd.s32 %s34, 1
      %s42 = ssub.s32 %s34, %s41
      %p43 = scmp.eq.s32.totalorder %s42, 0
      %s45 = sadd.s32 %s44, 1
      %s46 = scalar_select %p43, %s44, %s45
      %p49 = pneg %p43
      %p50 = scmp.eq.s32.totalorder %s34, 2
      %p51 = por %p49, %p50
      %p52 = scmp.ne.s32.totalorder %s44, %s47
      %p53 = scmp.eq.s32.totalorder %s34, 0
      %p54 = por %p52, %p53
      %p55 = scmp.ne.s32.totalorder %s44, %s47
      %p56 = scmp.eq.s32.totalorder %s39, 2
      %p57 = por %p55, %p56
      %p58 = scmp.ne.s32.totalorder %s47, %s48
      %p59 = scmp.eq.s32.totalorder %s39, 0
      %p60 = por %p58, %p59
      %p61 = scmp.ne.s32.totalorder %s47, %s48
      %p62 = scmp.eq.s32.totalorder %s40, 2
      %p63 = por %p61, %p62
      %p65 = scmp.ne.s32.totalorder %s48, %s64
      %p66 = scmp.eq.s32.totalorder %s40, 0
      %p67 = por %p65, %p66
      %s69 = sadd.s32 %s68, 1
      %p72 = scmp.eq.s32.totalorder %s34, 2
      %p73 = scmp.ne.s32.totalorder %s68, %s70
      %p74 = scmp.eq.s32.totalorder %s34, 0
      %p75 = por %p73, %p74
      %p76 = scmp.ne.s32.totalorder %s68, %s70
      %p77 = scmp.eq.s32.totalorder %s39, 2
      %p78 = por %p76, %p77
      %p79 = scmp.ne.s32.totalorder %s70, %s71
      %p80 = scmp.eq.s32.totalorder %s39, 0
      %p81 = por %p79, %p80
      %p82 = scmp.ne.s32.totalorder %s70, %s71
      %p83 = scmp.eq.s32.totalorder %s40, 2
      %p84 = por %p82, %p83
      %p86 = scmp.ne.s32.totalorder %s71, %s85
      %p87 = scmp.eq.s32.totalorder %s40, 0
      %p88 = por %p86, %p87
      %s90 = sadd.s32 %s89, 1
      %p93 = scmp.eq.s32.totalorder %s34, 2
      %p94 = scmp.ne.s32.totalorder %s89, %s91
      %p95 = scmp.eq.s32.totalorder %s34, 0
      %p96 = por %p94, %p95
      %p97 = scmp.ne.s32.totalorder %s89, %s91
      %p98 = scmp.eq.s32.totalorder %s39, 2
      %p99 = por %p97, %p98
      %p100 = scmp.ne.s32.totalorder %s91, %s92
      %p101 = scmp.eq.s32.totalorder %s39, 0
      %p102 = por %p100, %p101
      %p103 = scmp.ne.s32.totalorder %s91, %s92
      %p104 = scmp.eq.s32.totalorder %s40, 2
      %p105 = por %p103, %p104
      %p107 = scmp.ne.s32.totalorder %s92, %s106
      %p108 = scmp.eq.s32.totalorder %s40, 0
      %p109 = por %p107, %p108
      %s111 = sadd.s32 %s110, 1
      %p114 = scmp.eq.s32.totalorder %s34, 2
      %p115 = scmp.ne.s32.totalorder %s110, %s112
      %p116 = scmp.eq.s32.totalorder %s34, 0
      %p117 = por %p115, %p116
      %p118 = scmp.ne.s32.totalorder %s110, %s112
      %p119 = scmp.eq.s32.totalorder %s39, 2
      %p120 = por %p118, %p119
      %p121 = scmp.ne.s32.totalorder %s112, %s113
      %p122 = scmp.eq.s32.totalorder %s39, 0
      %p123 = por %p121, %p122
      %p124 = scmp.ne.s32.totalorder %s112, %s113
      %p125 = scmp.eq.s32.totalorder %s40, 2
      %p126 = por %p124, %p125
      %p128 = scmp.ne.s32.totalorder %s113, %s127
      %p129 = scmp.eq.s32.totalorder %s40, 0
      %p130 = por %p128, %p129
      %s131 = ssub.s32 %s34, %s41
      %p132 = scmp.eq.s32.totalorder %s131, 0
      %s134 = sadd.s32 %s133, 1
      %s135 = scalar_select %p132, %s133, %s134
      %p138 = pneg %p132
      %p139 = scmp.eq.s32.totalorder %s34, 2
      %p140 = por %p138, %p139
      %p141 = scmp.ne.s32.totalorder %s133, %s136
      %p142 = scmp.eq.s32.totalorder %s34, 0
      %p143 = por %p141, %p142
      %p144 = scmp.ne.s32.totalorder %s133, %s136
      %p145 = scmp.eq.s32.totalorder %s39, 2
      %p146 = por %p144, %p145
      %p147 = scmp.ne.s32.totalorder %s136, %s137
      %p148 = scmp.eq.s32.totalorder %s39, 0
      %p149 = por %p147, %p148
      %p150 = scmp.ne.s32.totalorder %s136, %s137
      %p151 = scmp.eq.s32.totalorder %s40, 2
      %p152 = por %p150, %p151
      %p154 = scmp.ne.s32.totalorder %s137, %s153
      %p155 = scmp.eq.s32.totalorder %s40, 0
      %p156 = por %p154, %p155
      %s157 = ssub.s32 %s34, %s41
      %p158 = scmp.eq.s32.totalorder %s157, 0
      %s160 = sadd.s32 %s159, 1
      %s161 = scalar_select %p158, %s159, %s160
      %p164 = pneg %p158
      %p165 = scmp.eq.s32.totalorder %s34, 2
      %p166 = por %p164, %p165
      %p167 = scmp.ne.s32.totalorder %s159, %s162
      %p168 = scmp.eq.s32.totalorder %s34, 0
      %p169 = por %p167, %p168
      %p170 = scmp.ne.s32.totalorder %s159, %s162
      %p171 = scmp.eq.s32.totalorder %s39, 2
      %p172 = por %p170, %p171
      %p173 = scmp.ne.s32.totalorder %s162, %s163
      %p174 = scmp.eq.s32.totalorder %s39, 0
      %p175 = por %p173, %p174
      %p176 = scmp.ne.s32.totalorder %s162, %s163
      %p177 = scmp.eq.s32.totalorder %s40, 2
      %p178 = por %p176, %p177
      %p180 = scmp.ne.s32.totalorder %s163, %s179
      %p181 = scmp.eq.s32.totalorder %s40, 0
      %p182 = por %p180, %p181
      %s183 = ssub.s32 %s34, %s41
      %p184 = scmp.eq.s32.totalorder %s183, 0
      %s186 = sadd.s32 %s185, 1
      %s187 = scalar_select %p184, %s185, %s186
      %p190 = pneg %p184
      %p191 = scmp.eq.s32.totalorder %s34, 2
      %p192 = por %p190, %p191
      %p193 = scmp.ne.s32.totalorder %s185, %s188
      %p194 = scmp.eq.s32.totalorder %s34, 0
      %p195 = por %p193, %p194
      %p196 = scmp.ne.s32.totalorder %s185, %s188
      %p197 = scmp.eq.s32.totalorder %s39, 2
      %p198 = por %p196, %p197
      %p199 = scmp.ne.s32.totalorder %s188, %s189
      %p200 = scmp.eq.s32.totalorder %s39, 0
      %p201 = por %p199, %p200
      %p202 = scmp.ne.s32.totalorder %s188, %s189
      %p203 = scmp.eq.s32.totalorder %s40, 2
      %p204 = por %p202, %p203
      %p206 = scmp.ne.s32.totalorder %s189, %s205
      %p207 = scmp.eq.s32.totalorder %s40, 0
      %p208 = por %p206, %p207
      %s209 = ssub.s32 %s34, %s41
      %p210 = scmp.eq.s32.totalorder %s209, 0
      %s212 = sadd.s32 %s211, 1
      %s213 = scalar_select %p210, %s211, %s212
      %p216 = pneg %p210
      %p217 = scmp.eq.s32.totalorder %s34, 2
      %p218 = por %p216, %p217
      %p219 = scmp.ne.s32.totalorder %s211, %s214
      %p220 = scmp.eq.s32.totalorder %s34, 0
      %p221 = por %p219, %p220
      %p222 = scmp.ne.s32.totalorder %s211, %s214
      %p223 = scmp.eq.s32.totalorder %s39, 2
      %p224 = por %p222, %p223
      %p225 = scmp.ne.s32.totalorder %s214, %s215
      %p226 = scmp.eq.s32.totalorder %s39, 0
      %p227 = por %p225, %p226
      %p228 = scmp.ne.s32.totalorder %s214, %s215
      %p229 = scmp.eq.s32.totalorder %s40, 2
      %p230 = por %p228, %p229
      %p232 = scmp.ne.s32.totalorder %s215, %s231
      %p233 = scmp.eq.s32.totalorder %s40, 0
      %p234 = por %p232, %p233
      %s235 = ssub.s32 %s34, %s41
      %p236 = scmp.eq.s32.totalorder %s235, 0
      %s238 = sadd.s32 %s237, 1
      %s239 = scalar_select %p236, %s237, %s238
      %p242 = pneg %p236
      %p243 = scmp.eq.s32.totalorder %s34, 2
      %p244 = por %p242, %p243
      %p245 = scmp.ne.s32.totalorder %s237, %s240
      %p246 = scmp.eq.s32.totalorder %s34, 0
      %p247 = por %p245, %p246
      %p248 = scmp.ne.s32.totalorder %s237, %s240
      %p249 = scmp.eq.s32.totalorder %s39, 2
      %p250 = por %p248, %p249
      %p251 = scmp.ne.s32.totalorder %s240, %s241
      %p252 = scmp.eq.s32.totalorder %s39, 0
      %p253 = por %p251, %p252
      %p254 = scmp.ne.s32.totalorder %s240, %s241
      %p255 = scmp.eq.s32.totalorder %s40, 2
      %p256 = por %p254, %p255
      %p258 = scmp.ne.s32.totalorder %s241, %s257
      %p259 = scmp.eq.s32.totalorder %s40, 0
      %p260 = por %p258, %p259
      %s261 = ssub.s32 %s34, %s41
      %p262 = scmp.eq.s32.totalorder %s261, 0
      %s264 = sadd.s32 %s263, 1
      %s265 = scalar_select %p262, %s263, %s264
      %p268 = pneg %p262
      %p269 = scmp.eq.s32.totalorder %s34, 2
      %p270 = por %p268, %p269
      %p271 = scmp.ne.s32.totalorder %s263, %s266
      %p272 = scmp.eq.s32.totalorder %s34, 0
      %p273 = por %p271, %p272
      %p274 = scmp.ne.s32.totalorder %s263, %s266
      %p275 = scmp.eq.s32.totalorder %s39, 2
      %p276 = por %p274, %p275
      %p277 = scmp.ne.s32.totalorder %s266, %s267
      %p278 = scmp.eq.s32.totalorder %s39, 0
      %p279 = por %p277, %p278
      %p280 = scmp.ne.s32.totalorder %s266, %s267
      %p281 = scmp.eq.s32.totalorder %s40, 2
      %p282 = por %p280, %p281
      %p284 = scmp.ne.s32.totalorder %s267, %s283
      %p285 = scmp.eq.s32.totalorder %s40, 0
      %p286 = por %p284, %p285
      %s287 = ssub.s32 %s34, %s41
      %p288 = scmp.eq.s32.totalorder %s287, 0
      %s290 = sadd.s32 %s289, 1
      %s291 = scalar_select %p288, %s289, %s290
      %p294 = pneg %p288
      %p295 = scmp.eq.s32.totalorder %s34, 2
      %p296 = por %p294, %p295
      %p297 = scmp.ne.s32.totalorder %s289, %s292
      %p298 = scmp.eq.s32.totalorder %s34, 0
      %p299 = por %p297, %p298
      %p300 = scmp.ne.s32.totalorder %s289, %s292
      %p301 = scmp.eq.s32.totalorder %s39, 2
      %p302 = por %p300, %p301
      %p303 = scmp.ne.s32.totalorder %s292, %s293
      %p304 = scmp.eq.s32.totalorder %s39, 0
      %p305 = por %p303, %p304
      %p306 = scmp.ne.s32.totalorder %s292, %s293
      %p307 = scmp.eq.s32.totalorder %s40, 2
      %p308 = por %p306, %p307
      %p310 = scmp.ne.s32.totalorder %s293, %s309
      %p311 = scmp.eq.s32.totalorder %s40, 0
      %p312 = por %p310, %p311
      %s313 = ssub.s32 %s34, %s41
      %p314 = scmp.eq.s32.totalorder %s313, 0
      %s316 = sadd.s32 %s315, 1
      %s317 = scalar_select %p314, %s315, %s316
      %p320 = pneg %p314
      %p321 = scmp.eq.s32.totalorder %s34, 2
      %p322 = por %p320, %p321
      %p323 = scmp.ne.s32.totalorder %s315, %s318
      %p324 = scmp.eq.s32.totalorder %s34, 0
      %p325 = por %p323, %p324
      %p326 = scmp.ne.s32.totalorder %s315, %s318
      %p327 = scmp.eq.s32.totalorder %s39, 2
      %p328 = por %p326, %p327
      %p329 = scmp.ne.s32.totalorder %s318, %s319
      %p330 = scmp.eq.s32.totalorder %s39, 0
      %p331 = por %p329, %p330
      %p332 = scmp.ne.s32.totalorder %s318, %s319
      %p333 = scmp.eq.s32.totalorder %s40, 2
      %p334 = por %p332, %p333
      %p336 = scmp.ne.s32.totalorder %s319, %s335
      %p337 = scmp.eq.s32.totalorder %s40, 0
      %p338 = por %p336, %p337
      %s339 = ssub.s32 %s34, %s41
      %p340 = scmp.eq.s32.totalorder %s339, 0
      %s342 = sadd.s32 %s341, 1
      %s343 = scalar_select %p340, %s341, %s342
      %p346 = pneg %p340
      %p347 = scmp.eq.s32.totalorder %s34, 2
      %p348 = por %p346, %p347
      %p349 = scmp.ne.s32.totalorder %s341, %s344
      %p350 = scmp.eq.s32.totalorder %s34, 0
      %p351 = por %p349, %p350
      %p352 = scmp.ne.s32.totalorder %s341, %s344
      %p353 = scmp.eq.s32.totalorder %s39, 2
      %p354 = por %p352, %p353
      %p355 = scmp.ne.s32.totalorder %s344, %s345
      %p356 = scmp.eq.s32.totalorder %s39, 0
      %p357 = por %p355, %p356
      %p358 = scmp.ne.s32.totalorder %s344, %s345
      %p359 = scmp.eq.s32.totalorder %s40, 2
      %p360 = por %p358, %p359
      %p362 = scmp.ne.s32.totalorder %s345, %s361
      %p363 = scmp.eq.s32.totalorder %s40, 0
      %p364 = por %p362, %p363
      %s365 = ssub.s32 %s34, %s41
      %p366 = scmp.eq.s32.totalorder %s365, 0
      %s368 = sadd.s32 %s367, 1
      %s369 = scalar_select %p366, %s367, %s368
      %p372 = pneg %p366
      %p373 = scmp.eq.s32.totalorder %s34, 2
      %p374 = por %p372, %p373
      %p375 = scmp.ne.s32.totalorder %s367, %s370
      %p376 = scmp.eq.s32.totalorder %s34, 0
      %p377 = por %p375, %p376
      %p378 = scmp.ne.s32.totalorder %s367, %s370
      %p379 = scmp.eq.s32.totalorder %s39, 2
      %p380 = por %p378, %p379
      %p381 = scmp.ne.s32.totalorder %s370, %s371
      %p382 = scmp.eq.s32.totalorder %s39, 0
      %p383 = por %p381, %p382
      %p384 = scmp.ne.s32.totalorder %s370, %s371
      %p385 = scmp.eq.s32.totalorder %s40, 2
      %p386 = por %p384, %p385
      %p388 = scmp.ne.s32.totalorder %s371, %s387
      %p389 = scmp.eq.s32.totalorder %s40, 0
      %p390 = por %p388, %p389
      %s391 = ssub.s32 %s34, %s41
      %p392 = scmp.eq.s32.totalorder %s391, 0
      %s394 = sadd.s32 %s393, 1
      %s395 = scalar_select %p392, %s393, %s394
      %p398 = pneg %p392
      %p399 = scmp.eq.s32.totalorder %s34, 2
      %p400 = por %p398, %p399
      %p401 = scmp.ne.s32.totalorder %s393, %s396
      %p402 = scmp.eq.s32.totalorder %s34, 0
      %p403 = por %p401, %p402
      %p404 = scmp.ne.s32.totalorder %s393, %s396
      %p405 = scmp.eq.s32.totalorder %s39, 2
      %p406 = por %p404, %p405
      %p407 = scmp.ne.s32.totalorder %s396, %s397
      %p408 = scmp.eq.s32.totalorder %s39, 0
      %p409 = por %p407, %p408
      %p410 = scmp.ne.s32.totalorder %s396, %s397
      %p411 = scmp.eq.s32.totalorder %s40, 2
      %p412 = por %p410, %p411
      %p414 = scmp.ne.s32.totalorder %s397, %s413
      %p415 = scmp.eq.s32.totalorder %s40, 0
      %p416 = por %p414, %p415
      %s417 = ssub.s32 %s34, %s41
      %p418 = scmp.eq.s32.totalorder %s417, 0
      %s420 = sadd.s32 %s419, 1
      %s421 = scalar_select %p418, %s419, %s420
      %p424 = pneg %p418
      %p425 = scmp.eq.s32.totalorder %s34, 2
      %p426 = por %p424, %p425
      %p427 = scmp.ne.s32.totalorder %s419, %s422
      %p428 = scmp.eq.s32.totalorder %s34, 0
      %p429 = por %p427, %p428
      %p430 = scmp.ne.s32.totalorder %s419, %s422
      %p431 = scmp.eq.s32.totalorder %s39, 2
      %p432 = por %p430, %p431
      %p433 = scmp.ne.s32.totalorder %s422, %s423
      %p434 = scmp.eq.s32.totalorder %s39, 0
      %p435 = por %p433, %p434
      %p436 = scmp.ne.s32.totalorder %s422, %s423
      %p437 = scmp.eq.s32.totalorder %s40, 2
      %p438 = por %p436, %p437
      %p440 = scmp.ne.s32.totalorder %s423, %s439
      %p441 = scmp.eq.s32.totalorder %s40, 0
      %p442 = por %p440, %p441
      %s443 = ssub.s32 %s34, %s41
      %p444 = scmp.eq.s32.totalorder %s443, 0
      %s446 = sadd.s32 %s445, 1
      %s447 = scalar_select %p444, %s445, %s446
      %p450 = pneg %p444
      %p451 = scmp.eq.s32.totalorder %s34, 2
      %p452 = por %p450, %p451
      %p453 = scmp.ne.s32.totalorder %s445, %s448
      %p454 = scmp.eq.s32.totalorder %s34, 0
      %p455 = por %p453, %p454
      %p456 = scmp.ne.s32.totalorder %s445, %s448
      %p457 = scmp.eq.s32.totalorder %s39, 2
      %p458 = por %p456, %p457
      %p459 = scmp.ne.s32.totalorder %s448, %s449
      %p460 = scmp.eq.s32.totalorder %s39, 0
      %p461 = por %p459, %p460
      %p462 = scmp.ne.s32.totalorder %s448, %s449
      %p463 = scmp.eq.s32.totalorder %s40, 2
      %p464 = por %p462, %p463
      %p466 = scmp.ne.s32.totalorder %s449, %s465
      %p467 = scmp.eq.s32.totalorder %s40, 0
      %p468 = por %p466, %p467
      %s470 = sadd.s32 %s469, 1
      %p473 = scmp.eq.s32.totalorder %s34, 2
      %p474 = scmp.ne.s32.totalorder %s469, %s471
      %p475 = scmp.eq.s32.totalorder %s34, 0
      %p476 = por %p474, %p475
      %p477 = scmp.ne.s32.totalorder %s469, %s471
      %p478 = scmp.eq.s32.totalorder %s39, 2
      %p479 = por %p477, %p478
      %p480 = scmp.ne.s32.totalorder %s471, %s472
      %p481 = scmp.eq.s32.totalorder %s39, 0
      %p482 = por %p480, %p481
      %p483 = scmp.ne.s32.totalorder %s471, %s472
      %p484 = scmp.eq.s32.totalorder %s40, 2
      %p485 = por %p483, %p484
      %p487 = scmp.ne.s32.totalorder %s472, %s486
      %p488 = scmp.eq.s32.totalorder %s40, 0
      %p489 = por %p487, %p488
      %s491 = sadd.s32 %s490, 1
      %p494 = scmp.eq.s32.totalorder %s34, 2
      %p495 = scmp.ne.s32.totalorder %s490, %s492
      %p496 = scmp.eq.s32.totalorder %s34, 0
      %p497 = por %p495, %p496
      %p498 = scmp.ne.s32.totalorder %s490, %s492
      %p499 = scmp.eq.s32.totalorder %s39, 2
      %p500 = por %p498, %p499
      %p501 = scmp.ne.s32.totalorder %s492, %s493
      %p502 = scmp.eq.s32.totalorder %s39, 0
      %p503 = por %p501, %p502
      %p504 = scmp.ne.s32.totalorder %s492, %s493
      %p505 = scmp.eq.s32.totalorder %s40, 2
      %p506 = por %p504, %p505
      %p508 = scmp.ne.s32.totalorder %s493, %s507
      %p509 = scmp.eq.s32.totalorder %s40, 0
      %p510 = por %p508, %p509
      %s511 = ssub.s32 %s34, %s41
      %p512 = scmp.eq.s32.totalorder %s511, 0
      %s514 = sadd.s32 %s513, 1
      %s515 = scalar_select %p512, %s513, %s514
      %p518 = pneg %p512
      %p519 = scmp.eq.s32.totalorder %s34, 2
      %p520 = por %p518, %p519
      %p521 = scmp.ne.s32.totalorder %s513, %s516
      %p522 = scmp.eq.s32.totalorder %s34, 0
      %p523 = por %p521, %p522
      %p524 = scmp.ne.s32.totalorder %s513, %s516
      %p525 = scmp.eq.s32.totalorder %s39, 2
      %p526 = por %p524, %p525
      %p527 = scmp.ne.s32.totalorder %s516, %s517
      %p528 = scmp.eq.s32.totalorder %s39, 0
      %p529 = por %p527, %p528
      %p530 = scmp.ne.s32.totalorder %s516, %s517
      %p531 = scmp.eq.s32.totalorder %s40, 2
      %p532 = por %p530, %p531
      %p534 = scmp.ne.s32.totalorder %s517, %s533
      %p535 = scmp.eq.s32.totalorder %s40, 0
      %p536 = por %p534, %p535
      %p537 = scmp.le.s32.totalorder 1, %s34
      %p538 = scmp.lt.s32.totalorder %s34, 4
      %p539 = pnand %p537, %p538
      %p540 = pneg %p539
      // Predicated region
      $region9: #{regression_forward.2} parent=5 // pred_check
        _
      $region10: #{regression_forward.2} parent=5 // pred_check_branch
        %542 = sbr.rel (%p539) target = $region12
      $region11: #{regression_forward.2} parent=5 // pred_region
        %s543 = ssub.s32 %s34, 1
        // Predicated region
        $region13: #{regression_forward.2} parent=11 // pred_check
          %p544 = pneg %p81
        $region14: #{regression_forward.2} parent=11 // pred_check_branch
          %546 = sbr.rel (%p544) target = $region16
        $region15: #{regression_forward.2} parent=11 // pred_region
          _
        $region16: #{regression_forward.2} parent=11 // pred_fallthru
          _
        // Predicated region
        $region17: #{regression_forward.2} parent=11 // pred_check
          %p547 = pneg %p102
        $region18: #{regression_forward.2} parent=11 // pred_check_branch
          %549 = sbr.rel (%p547) target = $region20
        $region19: #{regression_forward.2} parent=11 // pred_region
          _
        $region20: #{regression_forward.2} parent=11 // pred_fallthru
          _
        // Predicated region
        $region21: #{regression_forward.2} parent=11 // pred_check
          %p550 = pneg %p123
        $region22: #{regression_forward.2} parent=11 // pred_check_branch
          %552 = sbr.rel (%p550) target = $region24
        $region23: #{regression_forward.2} parent=11 // pred_region
          _
        $region24: #{regression_forward.2} parent=11 // pred_fallthru
          _
        // Predicated region
        $region25: #{regression_forward.2} parent=11 // pred_check
          %p553 = pneg %p482
        $region26: #{regression_forward.2} parent=11 // pred_check_branch
          %555 = sbr.rel (%p553) target = $region28
        $region27: #{regression_forward.2} parent=11 // pred_region
          _
        $region28: #{regression_forward.2} parent=11 // pred_fallthru
          _
        // Predicated region
        $region29: #{regression_forward.2} parent=11 // pred_check
          %p556 = pneg %p503
        $region30: #{regression_forward.2} parent=11 // pred_check_branch
          %558 = sbr.rel (%p556) target = $region32
        $region31: #{regression_forward.2} parent=11 // pred_region
          _
        $region32: #{regression_forward.2} parent=11 // pred_fallthru
          _
      $region12: #{regression_forward.2} parent=5 // pred_fallthru
        _
      %p559 = scmp.lt.s32.totalorder %s34, 3
      // Predicated region
      $region33: #{regression_forward.2} parent=5 // pred_check
        %p560 = pneg %p559
      $region34: #{regression_forward.2} parent=5 // pred_check_branch
        %562 = sbr.rel (%p560) target = $region36
      $region35: #{regression_forward.2} parent=5 // pred_region
        // Predicated region
        $region37: #{regression_forward.2} parent=35 // pred_check
          %p563 = pneg %p54
        $region38: #{regression_forward.2} parent=35 // pred_check_branch
          %565 = sbr.rel (%p563) target = $region40
        $region39: #{regression_forward.2} parent=35 // pred_region
          %p566 = scmp.lt.s32.totalorder %s34, 2
          %s567 = scalar_select %p566, %s34, 2
          %s568 = smul.addr %s567, 6
          %s569 = smul.addr %s568, 2
          %s570 = scalar_lea.vmem %s0, %s569
        $region40: #{regression_forward.2} parent=35 // pred_fallthru
          _
        // Predicated region
        $region41: #{regression_forward.2} parent=35 // pred_check
          %p571 = pneg %p143
        $region42: #{regression_forward.2} parent=35 // pred_check_branch
          %573 = sbr.rel (%p571) target = $region44
        $region43: #{regression_forward.2} parent=35 // pred_region
          %p574 = scmp.lt.s32.totalorder %s34, 2
          %s575 = scalar_select %p574, %s34, 2
          %s576 = smul.addr %s575, 6
          %s577 = smul.addr %s576, 8
          %s578 = scalar_lea.vmem %s4, %s577
        $region44: #{regression_forward.2} parent=35 // pred_fallthru
          _
        // Predicated region
        $region45: #{regression_forward.2} parent=35 // pred_check
          %p579 = pneg %p169
        $region46: #{regression_forward.2} parent=35 // pred_check_branch
          %581 = sbr.rel (%p579) target = $region48
        $region47: #{regression_forward.2} parent=35 // pred_region
          %s582 = sand.u32 %s159, 1
          %s583 = scalar_lea.sflag [#allocation3], %s582
          %s584 = sand.u32 %s159, 1
          %s585 = smul.addr %s584, 32
          %s586 = scalar_lea.vmem [#allocation2], %s585
          %588 = vsyncadd %s583, 0
          %s589 = smul.addr %s34, 4
          %s590 = smul.addr %s589, 8
          %s591 = scalar_lea.hbm %s5, %s590
          %s592 = sshll.u32 %s591, 4
          %s593 = int_to_ptr.hbm [resolvable:$true] %s592
          %s594 = sshll.u32 %s586, 4
          %s595 = int_to_ptr.vmem [resolvable:$true] %s594
          %600 = dma.hbm_to_vmem [thread:$0]  %s593, 512, %s595, %s583, 128, 128, 8
        $region48: #{regression_forward.2} parent=35 // pred_fallthru
          _
        // Predicated region
        $region49: #{regression_forward.2} parent=35 // pred_check
          %p601 = pneg %p195
        $region50: #{regression_forward.2} parent=35 // pred_check_branch
          %603 = sbr.rel (%p601) target = $region52
        $region51: #{regression_forward.2} parent=35 // pred_region
          %p604 = scmp.lt.s32.totalorder %s34, 2
          %s605 = scalar_select %p604, %s34, 2
          %s606 = scalar_lea.vmem %s6, %s605
        $region52: #{regression_forward.2} parent=35 // pred_fallthru
          _
        // Predicated region
        $region53: #{regression_forward.2} parent=35 // pred_check
          %p607 = pneg %p221
        $region54: #{regression_forward.2} parent=35 // pred_check_branch
          %609 = sbr.rel (%p607) target = $region56
        $region55: #{regression_forward.2} parent=35 // pred_region
          %p610 = scmp.lt.s32.totalorder %s34, 2
          %s611 = scalar_select %p610, %s34, 2
          %s612 = scalar_lea.vmem %s7, %s611
        $region56: #{regression_forward.2} parent=35 // pred_fallthru
          _
        // Predicated region
        $region57: #{regression_forward.2} parent=35 // pred_check
          %p613 = pneg %p247
        $region58: #{regression_forward.2} parent=35 // pred_check_branch
          %615 = sbr.rel (%p613) target = $region60
        $region59: #{regression_forward.2} parent=35 // pred_region
          %s616 = sand.u32 %s34, 1
          %s617 = scalar_lea.sflag [#allocation5], %s616
          %s618 = sand.u32 %s237, 1
          %s619 = smul.addr %s618, 56
          %s620 = scalar_lea.vmem [#allocation4], %s619
          %622 = vsyncadd %s617, 0
          %s623 = smul.addr %s34, 7
          %s624 = smul.addr %s623, 8
          %s625 = scalar_lea.hbm %s8, %s624
          %s626 = sshll.u32 %s625, 4
          %s627 = int_to_ptr.hbm [resolvable:$true] %s626
          %s628 = sshll.u32 %s620, 4
          %s629 = int_to_ptr.vmem [resolvable:$true] %s628
          %634 = dma.hbm_to_vmem [thread:$0]  %s627, 896, %s629, %s617, 128, 128, 8
        $region60: #{regression_forward.2} parent=35 // pred_fallthru
          _
        // Predicated region
        $region61: #{regression_forward.2} parent=35 // pred_check
          %p635 = pneg %p273
        $region62: #{regression_forward.2} parent=35 // pred_check_branch
          %637 = sbr.rel (%p635) target = $region64
        $region63: #{regression_forward.2} parent=35 // pred_region
          %s638 = sand.u32 %s34, 1
          %s639 = scalar_lea.sflag [#allocation5], %s638
          %s640 = sand.u32 %s263, 1
          %s641 = smul.addr %s640, 24
          %s642 = scalar_lea.vmem [#allocation6], %s641
          %644 = vsyncadd %s639, 0
          %s645 = smul.addr %s34, 3
          %s646 = smul.addr %s645, 8
          %s647 = scalar_lea.hbm %s9, %s646
          %s648 = sshll.u32 %s647, 4
          %s649 = int_to_ptr.hbm [resolvable:$true] %s648
          %s650 = sshll.u32 %s642, 4
          %s651 = int_to_ptr.vmem [resolvable:$true] %s650
          %656 = dma.hbm_to_vmem [thread:$0]  %s649, 384, %s651, %s639, 128, 128, 8
        $region64: #{regression_forward.2} parent=35 // pred_fallthru
          _
        // Predicated region
        $region65: #{regression_forward.2} parent=35 // pred_check
          %p657 = pneg %p299
        $region66: #{regression_forward.2} parent=35 // pred_check_branch
          %659 = sbr.rel (%p657) target = $region68
        $region67: #{regression_forward.2} parent=35 // pred_region
          %p660 = scmp.lt.s32.totalorder %s34, 2
          %s661 = scalar_select %p660, %s34, 2
          %s662 = scalar_lea.vmem %s10, %s661
        $region68: #{regression_forward.2} parent=35 // pred_fallthru
          _
        // Predicated region
        $region69: #{regression_forward.2} parent=35 // pred_check
          %p663 = pneg %p325
        $region70: #{regression_forward.2} parent=35 // pred_check_branch
          %665 = sbr.rel (%p663) target = $region72
        $region71: #{regression_forward.2} parent=35 // pred_region
          %p666 = scmp.lt.s32.totalorder %s34, 2
          %s667 = scalar_select %p666, %s34, 2
          %s668 = scalar_lea.vmem %s11, %s667
        $region72: #{regression_forward.2} parent=35 // pred_fallthru
          _
        // Predicated region
        $region73: #{regression_forward.2} parent=35 // pred_check
          %p669 = pneg %p351
        $region74: #{regression_forward.2} parent=35 // pred_check_branch
          %671 = sbr.rel (%p669) target = $region76
        $region75: #{regression_forward.2} parent=35 // pred_region
          %p672 = scmp.lt.s32.totalorder %s34, 2
          %s673 = scalar_select %p672, %s34, 2
          %s674 = smul.addr %s673, 3
          %s675 = smul.addr %s674, 8
          %s676 = scalar_lea.vmem %s12, %s675
        $region76: #{regression_forward.2} parent=35 // pred_fallthru
          _
        // Predicated region
        $region77: #{regression_forward.2} parent=35 // pred_check
          %p677 = pneg %p377
        $region78: #{regression_forward.2} parent=35 // pred_check_branch
          %679 = sbr.rel (%p677) target = $region80
        $region79: #{regression_forward.2} parent=35 // pred_region
          %p680 = scmp.lt.s32.totalorder %s34, 2
          %s681 = scalar_select %p680, %s34, 2
          %s682 = scalar_lea.vmem %s13, %s681
        $region80: #{regression_forward.2} parent=35 // pred_fallthru
          _
        // Predicated region
        $region81: #{regression_forward.2} parent=35 // pred_check
          %p683 = pneg %p403
        $region82: #{regression_forward.2} parent=35 // pred_check_branch
          %685 = sbr.rel (%p683) target = $region84
        $region83: #{regression_forward.2} parent=35 // pred_region
          %s686 = sand.u32 %s34, 1
          %s687 = scalar_lea.sflag [#allocation8], %s686
          %s688 = sand.u32 %s393, 1
          %s689 = smul.addr %s688, 16
          %s690 = scalar_lea.vmem [#allocation7], %s689
          %692 = vsyncadd %s687, 0
          %s693 = smul.addr %s34, 2
          %s694 = smul.addr %s693, 8
          %s695 = scalar_lea.hbm %s14, %s694
          %s696 = sshll.u32 %s695, 4
          %s697 = int_to_ptr.hbm [resolvable:$true] %s696
          %s698 = sshll.u32 %s690, 4
          %s699 = int_to_ptr.vmem [resolvable:$true] %s698
          %704 = dma.hbm_to_vmem [thread:$0]  %s697, 256, %s699, %s687, 128, 128, 8
        $region84: #{regression_forward.2} parent=35 // pred_fallthru
          _
        // Predicated region
        $region85: #{regression_forward.2} parent=35 // pred_check
          %p705 = pneg %p429
        $region86: #{regression_forward.2} parent=35 // pred_check_branch
          %707 = sbr.rel (%p705) target = $region88
        $region87: #{regression_forward.2} parent=35 // pred_region
          %p708 = scmp.lt.s32.totalorder %s34, 2
          %s709 = scalar_select %p708, %s34, 2
          %s710 = scalar_lea.vmem %s15, %s709
        $region88: #{regression_forward.2} parent=35 // pred_fallthru
          _
        // Predicated region
        $region89: #{regression_forward.2} parent=35 // pred_check
          %p711 = pneg %p455
        $region90: #{regression_forward.2} parent=35 // pred_check_branch
          %713 = sbr.rel (%p711) target = $region92
        $region91: #{regression_forward.2} parent=35 // pred_region
          %s714 = sand.u32 %s34, 1
          %s715 = scalar_lea.sflag [#allocation8], %s714
          %s716 = sand.u32 %s445, 1
          %s717 = scalar_lea.vmem [#allocation9], %s716
          %719 = vsyncadd %s715, 0
          %s720 = scalar_lea.hbm %s16, %s34
          %s722 = sshll.u32 %s720, 4
          %s723 = int_to_ptr.hbm [resolvable:$true] %s722
          %s724 = sshll.u32 %s717, 4
          %s725 = int_to_ptr.vmem [resolvable:$true] %s724
          %727 = dma.hbm_to_vmem [thread:$0]  %s723, 16, %s725, %s715
        $region92: #{regression_forward.2} parent=35 // pred_fallthru
          _
      $region36: #{regression_forward.2} parent=5 // pred_fallthru
        _
      %p728 = scmp.le.s32.totalorder 1, %s34
      %p729 = scmp.lt.s32.totalorder %s34, 4
      %p730 = pnand %p728, %p729
      %p731 = pneg %p730
      // Predicated region
      $region93: #{regression_forward.2} parent=5 // pred_check
        _
      $region94: #{regression_forward.2} parent=5 // pred_check_branch
        %733 = sbr.rel (%p730) target = $region96
      $region95: #{regression_forward.2} parent=5 // pred_region
        %s734 = ssub.s32 %s34, 1
        %s735 = sand.u32 %s162, 1
        %s736 = scalar_lea.sflag [#allocation3], %s735
        %s737 = sand.u32 %s162, 1
        %s738 = smul.addr %s737, 32
        %s739 = scalar_lea.vmem [#allocation2], %s738
        // Predicated region
        $region97: #{regression_forward.2} parent=95 // pred_check
          %p740 = pneg %p175
        $region98: #{regression_forward.2} parent=95 // pred_check_branch
          %742 = sbr.rel (%p740) target = $region100
        $region99: #{regression_forward.2} parent=95 // pred_region
          %744 = dma.done %s736, 512
        $region100: #{regression_forward.2} parent=95 // pred_fallthru
          _
        %s745 = sand.u32 %s39, 1
        %s746 = scalar_lea.sflag [#allocation5], %s745
        %s747 = sand.u32 %s240, 1
        %s748 = smul.addr %s747, 56
        %s749 = scalar_lea.vmem [#allocation4], %s748
        // Predicated region
        $region101: #{regression_forward.2} parent=95 // pred_check
          %p750 = pneg %p253
        $region102: #{regression_forward.2} parent=95 // pred_check_branch
          %752 = sbr.rel (%p750) target = $region104
        $region103: #{regression_forward.2} parent=95 // pred_region
          %754 = dma.done %s746, 896
        $region104: #{regression_forward.2} parent=95 // pred_fallthru
          _
        %s755 = sand.u32 %s39, 1
        %s756 = scalar_lea.sflag [#allocation5], %s755
        %s757 = sand.u32 %s266, 1
        %s758 = smul.addr %s757, 24
        %s759 = scalar_lea.vmem [#allocation6], %s758
        // Predicated region
        $region105: #{regression_forward.2} parent=95 // pred_check
          %p760 = pneg %p279
        $region106: #{regression_forward.2} parent=95 // pred_check_branch
          %762 = sbr.rel (%p760) target = $region108
        $region107: #{regression_forward.2} parent=95 // pred_region
          %764 = dma.done %s756, 384
        $region108: #{regression_forward.2} parent=95 // pred_fallthru
          _
        %s765 = sand.u32 %s39, 1
        %s766 = scalar_lea.sflag [#allocation8], %s765
        %s767 = sand.u32 %s396, 1
        %s768 = smul.addr %s767, 16
        %s769 = scalar_lea.vmem [#allocation7], %s768
        // Predicated region
        $region109: #{regression_forward.2} parent=95 // pred_check
          %p770 = pneg %p409
        $region110: #{regression_forward.2} parent=95 // pred_check_branch
          %772 = sbr.rel (%p770) target = $region112
        $region111: #{regression_forward.2} parent=95 // pred_region
          %774 = dma.done %s766, 256
        $region112: #{regression_forward.2} parent=95 // pred_fallthru
          _
        %s775 = sand.u32 %s39, 1
        %s776 = scalar_lea.sflag [#allocation8], %s775
        %s777 = sand.u32 %s448, 1
        %s778 = scalar_lea.vmem [#allocation9], %s777
        // Predicated region
        $region113: #{regression_forward.2} parent=95 // pred_check
          %p779 = pneg %p461
        $region114: #{regression_forward.2} parent=95 // pred_check_branch
          %781 = sbr.rel (%p779) target = $region116
        $region115: #{regression_forward.2} parent=95 // pred_region
          %783 = dma.done %s776, 16
        $region116: #{regression_forward.2} parent=95 // pred_fallthru
          _
        %p784 = scmp.lt.s32.totalorder %s39, 2
        %s785 = scalar_select %p784, %s39, 2
        %s786 = smul.addr %s785, 6
        %s787 = smul.addr %s786, 2
        %s788 = scalar_lea.vmem %s0, %s787
        %p789 = pneg %p60
        %p790 = pneg %p57
        %p791 = pneg %p81
        %p792 = pneg %p78
        %p793 = pneg %p102
        %p794 = pneg %p99
        %p795 = pneg %p123
        %p796 = pneg %p120
        %p797 = scmp.lt.s32.totalorder %s39, 2
        %s798 = scalar_select %p797, %s39, 2
        %s799 = smul.addr %s798, 6
        %s800 = smul.addr %s799, 8
        %s801 = scalar_lea.vmem %s4, %s800
        %p802 = pneg %p149
        %p803 = pneg %p146
        %s804 = sand.u32 %s162, 1
        %s805 = scalar_lea.sflag [#allocation3], %s804
        %s806 = sand.u32 %s162, 1
        %s807 = smul.addr %s806, 32
        %s808 = scalar_lea.vmem [#allocation2], %s807
        %p809 = pneg %p175
        %p810 = pneg %p172
        %p811 = scmp.lt.s32.totalorder %s39, 2
        %s812 = scalar_select %p811, %s39, 2
        %s813 = scalar_lea.vmem %s6, %s812
        %p814 = pneg %p201
        %p815 = pneg %p198
        %p816 = scmp.lt.s32.totalorder %s39, 2
        %s817 = scalar_select %p816, %s39, 2
        %s818 = scalar_lea.vmem %s7, %s817
        %p819 = pneg %p227
        %p820 = pneg %p224
        %s821 = sand.u32 %s39, 1
        %s822 = scalar_lea.sflag [#allocation5], %s821
        %s823 = sand.u32 %s240, 1
        %s824 = smul.addr %s823, 56
        %s825 = scalar_lea.vmem [#allocation4], %s824
        %p826 = pneg %p253
        %p827 = pneg %p250
        %s828 = sand.u32 %s39, 1
        %s829 = scalar_lea.sflag [#allocation5], %s828
        %s830 = sand.u32 %s266, 1
        %s831 = smul.addr %s830, 24
        %s832 = scalar_lea.vmem [#allocation6], %s831
        %p833 = pneg %p279
        %p834 = pneg %p276
        %p835 = scmp.lt.s32.totalorder %s39, 2
        %s836 = scalar_select %p835, %s39, 2
        %s837 = scalar_lea.vmem %s10, %s836
        %p838 = pneg %p305
        %p839 = pneg %p302
        %p840 = scmp.lt.s32.totalorder %s39, 2
        %s841 = scalar_select %p840, %s39, 2
        %s842 = scalar_lea.vmem %s11, %s841
        %p843 = pneg %p331
        %p844 = pneg %p328
        %p845 = scmp.lt.s32.totalorder %s39, 2
        %s846 = scalar_select %p845, %s39, 2
        %s847 = smul.addr %s846, 3
        %s848 = smul.addr %s847, 8
        %s849 = scalar_lea.vmem %s12, %s848
        %p850 = pneg %p357
        %p851 = pneg %p354
        %p852 = scmp.lt.s32.totalorder %s39, 2
        %s853 = scalar_select %p852, %s39, 2
        %s854 = scalar_lea.vmem %s13, %s853
        %p855 = pneg %p383
        %p856 = pneg %p380
        %s857 = sand.u32 %s39, 1
        %s858 = scalar_lea.sflag [#allocation8], %s857
        %s859 = sand.u32 %s396, 1
        %s860 = smul.addr %s859, 16
        %s861 = scalar_lea.vmem [#allocation7], %s860
        %p862 = pneg %p409
        %p863 = pneg %p406
        %p864 = scmp.lt.s32.totalorder %s39, 2
        %s865 = scalar_select %p864, %s39, 2
        %s866 = scalar_lea.vmem %s15, %s865
        %p867 = pneg %p435
        %p868 = pneg %p432
        %s869 = sand.u32 %s39, 1
        %s870 = scalar_lea.sflag [#allocation8], %s869
        %s871 = sand.u32 %s448, 1
        %s872 = scalar_lea.vmem [#allocation9], %s871
        %p873 = pneg %p461
        %p874 = pneg %p458
        %p875 = pneg %p482
        %p876 = pneg %p479
        %p877 = pneg %p503
        %p878 = pneg %p500
        %p879 = pneg %p529
        %p880 = pneg %p526
        %p881 = scmp.lt.s32.totalorder %s39, 2
        %s882 = scalar_select %p881, %s39, 2
        %s883 = smul.addr %s882, 2
        %s884 = smul.addr %s883, 8
        %s885 = scalar_lea.vmem %s19, %s884
        %p886 = scmp.lt.s32.totalorder %s39, 2
        %s887 = scalar_select %p886, %s39, 2
        %s888 = smul.addr %s887, 6
        %s889 = smul.addr %s888, 2
        %s890 = scalar_lea.vmem %s0, %s889
        %p891 = scmp.lt.s32.totalorder %s39, 2
        %s892 = scalar_select %p891, %s39, 2
        %s893 = smul.addr %s892, 6
        %s894 = smul.addr %s893, 8
        %s895 = scalar_lea.vmem %s4, %s894
        %p896 = scmp.lt.s32.totalorder %s39, 2
        %s897 = scalar_select %p896, %s39, 2
        %s898 = scalar_lea.vmem %s6, %s897
        %p899 = scmp.lt.s32.totalorder %s39, 2
        %s900 = scalar_select %p899, %s39, 2
        %s901 = scalar_lea.vmem %s7, %s900
        %p902 = scmp.lt.s32.totalorder %s39, 2
        %s903 = scalar_select %p902, %s39, 2
        %s904 = scalar_lea.vmem %s10, %s903
        %p905 = scmp.lt.s32.totalorder %s39, 2
        %s906 = scalar_select %p905, %s39, 2
        %s907 = scalar_lea.vmem %s11, %s906
        %p908 = scmp.lt.s32.totalorder %s39, 2
        %s909 = scalar_select %p908, %s39, 2
        %s910 = smul.addr %s909, 3
        %s911 = smul.addr %s910, 8
        %s912 = scalar_lea.vmem %s12, %s911
        %p913 = scmp.lt.s32.totalorder %s39, 2
        %s914 = scalar_select %p913, %s39, 2
        %s915 = scalar_lea.vmem %s13, %s914
        %p916 = scmp.lt.s32.totalorder %s39, 2
        %s917 = scalar_select %p916, %s39, 2
        %s918 = scalar_lea.vmem %s15, %s917
        %p919 = scmp.lt.s32.totalorder %s39, 2
        %s920 = scalar_select %p919, %s39, 2
        %s921 = smul.addr %s920, 2
        %s922 = smul.addr %s921, 8
        %s923 = scalar_lea.vmem %s19, %s922
        %v924 = vld [vmem:[%s895] sm:$0xff]
        %v925 = vld [vmem:[%s895 + $0x8] sm:$0xff]
        %v926 = vld [vmem:[%s895 + $0x10] sm:$0xff]
        %v927 = vld [vmem:[%s895 + $0x18] sm:$0xff]
        %v928 = vld [vmem:[%s895 + $0x20] sm:$0xff]
        %v929 = vld [vmem:[%s895 + $0x28] sm:$0xf]
        %v930 = vld [vmem:[%s739] sm:$0xff]
        %v931 = vld [vmem:[%s739 + $0x8] sm:$0xff]
        %v932 = vld [vmem:[%s739 + $0x10] sm:$0xff]
        %v933 = vld [vmem:[%s739 + $0x18] sm:$0xff]
        %v934 = vld [vmem:[%s898] sm:$0x1]
        %v935 = vld [vmem:[%s901] sm:$0x1]
        %v936 = vld [vmem:[%s749] sm:$0xff]
        %v937 = vld [vmem:[%s749 + $0x8] sm:$0xff]
        %v938 = vld [vmem:[%s749 + $0x10] sm:$0xff]
        %v939 = vld [vmem:[%s749 + $0x18] sm:$0xff]
        %v940 = vld [vmem:[%s749 + $0x20] sm:$0xff]
        %v941 = vld [vmem:[%s749 + $0x28] sm:$0xff]
        %v942 = vld [vmem:[%s749 + $0x30] sm:$0xff]
        %v943 = vld [vmem:[%s759] sm:$0xff]
        %v944 = vld [vmem:[%s759 + $0x8] sm:$0xff]
        %v945 = vld [vmem:[%s759 + $0x10] sm:$0xff]
        %v946 = vld [vmem:[%s904] sm:$0x1]
        %v947 = vld [vmem:[%s907] sm:$0x1]
        %v948 = vld [vmem:[%s912] sm:$0xff]
        %v949 = vld [vmem:[%s912 + $0x8] sm:$0xff]
        %v950 = vld [vmem:[%s912 + $0x10] sm:$0xff]
        %v951 = vld [vmem:[%s915] sm:$0x1]
        %v952 = vld [vmem:[%s769] sm:$0xff]
        %v953 = vld [vmem:[%s769 + $0x8] sm:$0xff]
        %v954 = vld [vmem:[%s918] sm:$0x1]
        %v955 = vld [vmem:[%s778] sm:$0x1]
        %v956 = vld [vmem:[%s17] sm:$0xff]
        %v957 = vld [vmem:[%s17 + $0x8] sm:$0xff]
        %v958 = vld [vmem:[%s18] sm:$0x1]
        %v959 = vlaneseq
        %v960 = vand.u32 %v959, 127
        %v961 = vld [vmem:[%s890] sm:$0x3]
        %v962 = vld [vmem:[%s1] sm:$0x3]
        %v963 = vld [vmem:[%s2] sm:$0x3]
        %v964 = vld [vmem:[%s3] sm:$0x3]
        %vm965 = vcmask 9216
        %v966 = vsel %vm965, %v963, -inf
        %967 = vmax.xlane.f32.xlu0 %v966
        %v968 = vpop.xlane.xlu0 %967
        %vm969 = vcmp.eq.f32.partialorder %v963, %v968
        %v970 = vsel %vm969, %v960, 2
        %v971 = vsel %vm965, %v970, 2147483647
        %v972 = vand.u32 %v971, 65535
        %v973 = vshra.s32 %v971, 16
        %v974 = vcvt.s32.f32 %v972
        %v975 = vcvt.s32.f32 %v973
        %976 = vmin.xlane.f32.xlu0 %v975
        %v977 = vpop.xlane.xlu0 %976
        %vm978 = vcmp.eq.f32.partialorder %v975, %v977
        %v979 = vsel %vm978, %v974, inf
        %980 = vmin.xlane.f32.xlu0 %v979
        %v981 = vpop.xlane.xlu0 %980
        %v982 = vcvt.f32.s32 %v981
        %v983 = vcvt.f32.s32 %v977
        %v984 = vshll.u32 %v983, 16
        %v985 = vadd.s32 %v984, %v982
        %vm986 = vcmp.eq.s32.totalorder %v960, %v985
        %v987 = vsel %vm986, 1, 0
        %v988 = vcvt.s32.f32 %v987
        %990 = vset.pattern.permute.xlu0 0
        %991 = vperm.xlu0 %990, %v988
        %v992 = vpop.permute.xlu0 %991
        %v994 = vmul.f32 %v992, 0.0
        %995 = vset.pattern.permute.xlu0 1
        %996 = vperm.xlu0 %995, %v988
        %v997 = vpop.permute.xlu0 %996
        %v999 = vmul.f32 %v997, 0.0
        %v1000 = vadd.f32 %v994, %v999
        %vm1001 = vcmask 162816
        %v1002 = vsel %vm1001, %v962, %v1000
        %v1004 = vperm.slane %v934, 0
        %vm1006 = vcmask 359424
        %v1008 = vsel %vm1006, %v1002, 0
        %vm1010 = vcmask 1043456
        %v1012 = vsel %vm1010, %v929, 0
        %1014 = vmatpush.msra.mxu0 0.0
        %1015 = vmatpush.msra.mxu0 0.0
        %1016 = vmatpush.msra.mxu0 0.0
        %1017 = vmatpush.msra.mxu0 0.0
        %1018 = vmatpush.msra.mxu0 0.0
        %1019 = vmatpush.msra.mxu0 0.0
        %1020 = vmatpush.msra.mxu0 0.0
        %1021 = vmatpush.msra.mxu0 0.0
        %1022 = vmatpush.msra.mxu0 0.0
        %1023 = vmatpush.msra.mxu0 0.0
        %1024 = vmatpush.msra.mxu0 %v1012
        %1025 = vmatpush.msra.mxu0 %v928
        %1026 = vmatpush.msra.mxu0 %v927
        %1027 = vmatpush.msra.mxu0 %v926
        %1028 = vmatpush.msra.mxu0 %v925
        %1029 = vmatpush.msra.mxu0 %v924
        %1030 = vmatmul.f32.gmra.mxu0 %v1008
        %v1031 = vpop.f32.mrf.mxu0
        %v1032 = vadd.f32 %v1004, %v1031
        %1033 = vdwg.mxu0
        %v1035 = vperm.slane %v935, 0
        %vm1037 = vcmask 261120
        %v1039 = vsel %vm1037, 0.0, 0
        %1041 = vmatpush.msra.mxu0 0.0
        %1042 = vmatpush.msra.mxu0 0.0
        %1043 = vmatpush.msra.mxu0 0.0
        %1044 = vmatpush.msra.mxu0 0.0
        %1045 = vmatpush.msra.mxu0 0.0
        %1046 = vmatpush.msra.mxu0 0.0
        %1047 = vmatpush.msra.mxu0 0.0
        %1048 = vmatpush.msra.mxu0 0.0
        %1049 = vmatpush.msra.mxu0 0.0
        %1050 = vmatpush.msra.mxu0 0.0
        %1051 = vmatpush.msra.mxu0 0.0
        %1052 = vmatpush.msra.mxu0 0.0
        %1053 = vmatpush.msra.mxu0 %v933
        %1054 = vmatpush.msra.mxu0 %v932
        %1055 = vmatpush.msra.mxu0 %v931
        %1056 = vmatpush.msra.mxu0 %v930
        %1057 = vmatmul.f32.gmra.mxu0 %v1039
        %v1058 = vpop.f32.mrf.mxu0
        %v1059 = vadd.f32 %v1035, %v1058
        %1060 = vdwg.mxu0
        %v1061 = vadd.f32 %v1032, %v1059
        %v1062 = vxor.u32 %v1061, 2147483648
        %v1063 = vmul.f32 %v1062, 1.442695
        %v1064 = vpow.pop %v1063
        %v1065 = vadd.f32 %v1064, 1.0
        %v1066 = vrcp.pop %v1065
        %v1067 = vmul.f32 %v1065, %v1066
        %v1068 = vsub.f32 1.0, %v1067
        %v1069 = vmul.f32 %v1066, %v1068
        %v1070 = vadd.f32 %v1066, %v1069
        %vm1071 = vweird.f32 %v1065
        %vm1072 = vweird.f32 %v1066
        %vm1073 = vmor %vm1071, %vm1072
        %v1074 = vsel %vm1073, %v1066, %v1070
        %v1075 = vand.u32 2147483647, %v1065
        %vm1076 = vcmp.eq.f32.partialorder %v1075, 8.507059e+37
        %v1077 = vand.u32 %v1065, 2147483648
        %v1078 = vor.u32 1.1754944e-38, %v1077
        %v1079 = vsel %vm1076, %v1078, %v1074
        %v1080 = vmul.f32 1.0, %v1079
        %1082 = vrot.lane.b32.xlu0 %v1059, 64
        %v1083 = vpop.permute.xlu0 %1082
        %v1085 = vmul.f32 %v1080, %v1083
        %1087 = vrot.lane.b32.xlu0 %v1085, 64
        %v1088 = vpop.permute.xlu0 %1087
        %v1090 = vadd.f32 %v1032, %v1088
        %v1091 = vtanh.pop %v1090
        %v1092 = vsub.f32 1.0, %v1080
        %1094 = vrot.lane.b32.xlu0 %v1091, 96
        %v1095 = vpop.permute.xlu0 %1094
        %v1097 = vmul.f32 %v1092, %v1095
        %v1098 = vmul.f32 %v1080, 0.0
        %v1099 = vadd.f32 %v1097, %v1098
        %vm1100 = vcmask 195584
        %v1101 = vsel %vm1100, %v961, 0.0
        %v1103 = vperm.slane %v946, 0
        %vm1105 = vcmask 457728
        %v1107 = vsel %vm1105, %v1101, 0
        %1109 = vmatpush.msra.mxu0 0.0
        %1110 = vmatpush.msra.mxu0 0.0
        %1111 = vmatpush.msra.mxu0 0.0
        %1112 = vmatpush.msra.mxu0 0.0
        %1113 = vmatpush.msra.mxu0 0.0
        %1114 = vmatpush.msra.mxu0 0.0
        %1115 = vmatpush.msra.mxu0 0.0
        %1116 = vmatpush.msra.mxu0 0.0
        %1117 = vmatpush.msra.mxu0 0.0
        %1118 = vmatpush.msra.mxu0 %v942
        %1119 = vmatpush.msra.mxu0 %v941
        %1120 = vmatpush.msra.mxu0 %v940
        %1121 = vmatpush.msra.mxu0 %v939
        %1122 = vmatpush.msra.mxu0 %v938
        %1123 = vmatpush.msra.mxu0 %v937
        %1124 = vmatpush.msra.mxu0 %v936
        %1125 = vmatmul.f32.gmra.mxu0 %v1107
        %v1126 = vpop.f32.mrf.mxu0
        %v1127 = vadd.f32 %v1103, %v1126
        %1128 = vdwg.mxu0
        %v1130 = vperm.slane %v947, 0
        %v1132 = vsel %vm1100, 0.0, 0
        %1134 = vmatpush.msra.mxu0 0.0
        %1135 = vmatpush.msra.mxu0 0.0
        %1136 = vmatpush.msra.mxu0 0.0
        %1137 = vmatpush.msra.mxu0 0.0
        %1138 = vmatpush.msra.mxu0 0.0
        %1139 = vmatpush.msra.mxu0 0.0
        %1140 = vmatpush.msra.mxu0 0.0
        %1141 = vmatpush.msra.mxu0 0.0
        %1142 = vmatpush.msra.mxu0 0.0
        %1143 = vmatpush.msra.mxu0 0.0
        %1144 = vmatpush.msra.mxu0 0.0
        %1145 = vmatpush.msra.mxu0 0.0
        %1146 = vmatpush.msra.mxu0 0.0
        %1147 = vmatpush.msra.mxu0 %v945
        %1148 = vmatpush.msra.mxu0 %v944
        %1149 = vmatpush.msra.mxu0 %v943
        %1150 = vmatmul.f32.gmra.mxu0 %v1132
        %v1151 = vpop.f32.mrf.mxu0
        %v1152 = vadd.f32 %v1130, %v1151
        %1153 = vdwg.mxu0
        %v1154 = vadd.f32 %v1127, %v1152
        %v1155 = vxor.u32 %v1154, 2147483648
        %v1156 = vmul.f32 %v1155, 1.442695
        %v1157 = vpow.pop %v1156
        %v1158 = vadd.f32 %v1157, 1.0
        %v1159 = vrcp.pop %v1158
        %v1160 = vmul.f32 %v1158, %v1159
        %v1161 = vsub.f32 1.0, %v1160
        %v1162 = vmul.f32 %v1159, %v1161
        %v1163 = vadd.f32 %v1159, %v1162
        %vm1164 = vweird.f32 %v1158
        %vm1165 = vweird.f32 %v1159
        %vm1166 = vmor %vm1164, %vm1165
        %v1167 = vsel %vm1166, %v1159, %v1163
        %v1168 = vand.u32 2147483647, %v1158
        %vm1169 = vcmp.eq.f32.partialorder %v1168, 8.507059e+37
        %v1170 = vand.u32 %v1158, 2147483648
        %v1171 = vor.u32 1.1754944e-38, %v1170
        %v1172 = vsel %vm1169, %v1171, %v1167
        %v1173 = vmul.f32 1.0, %v1172
        %1175 = vrot.lane.b32.xlu0 %v1152, 80
        %v1176 = vpop.permute.xlu0 %1175
        %v1178 = vmul.f32 %v1173, %v1176
        %1180 = vrot.lane.b32.xlu0 %v1178, 48
        %v1181 = vpop.permute.xlu0 %1180
        %v1183 = vadd.f32 %v1127, %v1181
        %v1184 = vtanh.pop %v1183
        %v1185 = vsub.f32 1.0, %v1173
        %1187 = vrot.lane.b32.xlu0 %v1184, 104
        %v1188 = vpop.permute.xlu0 %1187
        %v1190 = vmul.f32 %v1185, %v1188
        %v1191 = vmul.f32 %v1173, 0.0
        %v1192 = vadd.f32 %v1190, %v1191
        %v1193 = vsub.f32 1.0, %v963
        %1195 = vset.pattern.permute.xlu0 0
        %1196 = vperm.xlu0 %1195, %v1193
        %v1197 = vpop.permute.xlu0 %1196
        %v1199 = vmul.f32 %v1197, 0.0
        %1201 = vset.pattern.permute.xlu0 0
        %1202 = vperm.xlu0 %1201, %v963
        %v1203 = vpop.permute.xlu0 %1202
        %v1205 = vmul.f32 %v1192, %v1203
        %v1206 = vadd.f32 %v1199, %v1205
        %1207 = vset.pattern.permute.xlu0 1
        %1208 = vperm.xlu0 %1207, %v1193
        %v1209 = vpop.permute.xlu0 %1208
        %v1211 = vmul.f32 %v1209, 0.0
        %1212 = vset.pattern.permute.xlu0 1
        %1213 = vperm.xlu0 %1212, %v963
        %v1214 = vpop.permute.xlu0 %1213
        %v1216 = vmul.f32 %v1192, %v1214
        %v1217 = vadd.f32 %v1211, %v1216
        %v1218 = vmul.f32 %v992, %v1206
        %v1219 = vmul.f32 %v997, %v1217
        %v1220 = vadd.f32 %v1218, %v1219
        %v1221 = vsub.f32 1.0, %v964
        %v1223 = vperm.slane %v951, 0
        %1226 = vrot.lane.b32.xlu0 %v1220, 104
        %v1227 = vpop.permute.xlu0 %1226
        %v1228 = vsel %vm1100, %v1227, 0
        %1230 = vmatpush.msra.mxu0 0.0
        %1231 = vmatpush.msra.mxu0 0.0
        %1232 = vmatpush.msra.mxu0 0.0
        %1233 = vmatpush.msra.mxu0 0.0
        %1234 = vmatpush.msra.mxu0 0.0
        %1235 = vmatpush.msra.mxu0 0.0
        %1236 = vmatpush.msra.mxu0 0.0
        %1237 = vmatpush.msra.mxu0 0.0
        %1238 = vmatpush.msra.mxu0 0.0
        %1239 = vmatpush.msra.mxu0 0.0
        %1240 = vmatpush.msra.mxu0 0.0
        %1241 = vmatpush.msra.mxu0 0.0
        %1242 = vmatpush.msra.mxu0 0.0
        %1243 = vmatpush.msra.mxu0 %v950
        %1244 = vmatpush.msra.mxu0 %v949
        %1245 = vmatpush.msra.mxu0 %v948
        %1246 = vmatmul.f32.gmra.mxu0 %v1228
        %v1247 = vpop.f32.mrf.mxu0
        %v1248 = vadd.f32 %v1223, %v1247
        %1249 = vdwg.mxu0
        %1251 = vset.pattern.permute.xlu0 1
        %1252 = vperm.xlu0 %1251, %v1221
        %v1253 = vpop.permute.xlu0 %1252
        %v1255 = vmul.f32 %v1253, 0.0
        %vm1256 = vcmask 130048
        %v1258 = vsel %vm1256, %v1255, 0
        %1260 = vmatpush.msra.mxu0 0.0
        %1261 = vmatpush.msra.mxu0 0.0
        %1262 = vmatpush.msra.mxu0 0.0
        %1263 = vmatpush.msra.mxu0 0.0
        %1264 = vmatpush.msra.mxu0 0.0
        %1265 = vmatpush.msra.mxu0 0.0
        %1266 = vmatpush.msra.mxu0 0.0
        %1267 = vmatpush.msra.mxu0 0.0
        %1268 = vmatpush.msra.mxu0 0.0
        %1269 = vmatpush.msra.mxu0 0.0
        %1270 = vmatpush.msra.mxu0 0.0
        %1271 = vmatpush.msra.mxu0 0.0
        %1272 = vmatpush.msra.mxu0 0.0
        %1273 = vmatpush.msra.mxu0 0.0
        %1274 = vmatpush.msra.mxu0 %v953
        %1275 = vmatpush.msra.mxu0 %v952
        %1276 = vmatmul.f32.gmra.mxu0 %v1258
        %v1277 = vpop.f32.mrf.mxu0
        %v1278 = vadd.f32 0.0, %v1277
        %1279 = vdwg.mxu0
        %v1280 = vadd.f32 %v1248, %v1278
        %v1282 = vperm.slane %v954, 0
        %v1284 = vadd.f32 %v1280, %v1282
        %v1285 = vtanh.pop %v1284
        %v1286 = vsub.f32 1.0, %v1221
        %1288 = vset.pattern.permute.xlu0 1
        %1289 = vperm.xlu0 %1288, %v1286
        %v1290 = vpop.permute.xlu0 %1289
        %v1292 = vmul.f32 %v1290, %v1285
        %v1293 = vadd.f32 %v1255, %v1292
        %v1295 = vperm.slane %v958, 0
        %v1298 = vsel %vm1256, %v1293, 0
        %1300 = vmatpush.msra.mxu0 0.0
        %1301 = vmatpush.msra.mxu0 0.0
        %1302 = vmatpush.msra.mxu0 0.0
        %1303 = vmatpush.msra.mxu0 0.0
        %1304 = vmatpush.msra.mxu0 0.0
        %1305 = vmatpush.msra.mxu0 0.0
        %1306 = vmatpush.msra.mxu0 0.0
        %1307 = vmatpush.msra.mxu0 0.0
        %1308 = vmatpush.msra.mxu0 0.0
        %1309 = vmatpush.msra.mxu0 0.0
        %1310 = vmatpush.msra.mxu0 0.0
        %1311 = vmatpush.msra.mxu0 0.0
        %1312 = vmatpush.msra.mxu0 0.0
        %1313 = vmatpush.msra.mxu0 0.0
        %1314 = vmatpush.msra.mxu0 %v957
        %1315 = vmatpush.msra.mxu0 %v956
        %1316 = vmatmul.f32.gmra.mxu0 %v1298
        %v1317 = vpop.f32.mrf.mxu0
        %v1318 = vadd.f32 %v1295, %v1317
        %1319 = vdwg.mxu0
        %v1321 = vrot.slane %v1318, 1
        %vm1323 = vcmask 253952
        %1324 = vst.msk [vmem:[%s923] sm:$0x1] %vm1323, %v1318
        %1325 = vst.msk [vmem:[%s923 + $0x8] sm:$0x1] %vm1323, %v1321
        %s1326 = scalar_lea.vmem %s890, 2
        %v1327 = vld [vmem:[%s1326] sm:$0x3]
        %s1328 = scalar_lea.vmem %s1, 2
        %v1329 = vld [vmem:[%s1328] sm:$0x3]
        %s1330 = scalar_lea.vmem %s2, 2
        %v1331 = vld [vmem:[%s1330] sm:$0x3]
        %s1332 = scalar_lea.vmem %s3, 2
        %v1333 = vld [vmem:[%s1332] sm:$0x3]
        %v1334 = vsel %vm965, %v1331, -inf
        %1335 = vmax.xlane.f32.xlu0 %v1334
        %v1336 = vpop.xlane.xlu0 %1335
        %vm1337 = vcmp.eq.f32.partialorder %v1331, %v1336
        %v1338 = vsel %vm1337, %v960, 2
        %v1339 = vsel %vm965, %v1338, 2147483647
        %v1340 = vand.u32 %v1339, 65535
        %v1341 = vshra.s32 %v1339, 16
        %v1342 = vcvt.s32.f32 %v1340
        %v1343 = vcvt.s32.f32 %v1341
        %1344 = vmin.xlane.f32.xlu0 %v1343
        %v1345 = vpop.xlane.xlu0 %1344
        %vm1346 = vcmp.eq.f32.partialorder %v1343, %v1345
        %v1347 = vsel %vm1346, %v1342, inf
        %1348 = vmin.xlane.f32.xlu0 %v1347
        %v1349 = vpop.xlane.xlu0 %1348
        %v1350 = vcvt.f32.s32 %v1349
        %v1351 = vcvt.f32.s32 %v1345
        %v1352 = vshll.u32 %v1351, 16
        %v1353 = vadd.s32 %v1352, %v1350
        %vm1354 = vcmp.eq.s32.totalorder %v960, %v1353
        %v1355 = vsel %vm1354, 1, 0
        %v1356 = vcvt.s32.f32 %v1355
        %1358 = vset.pattern.permute.xlu0 0
        %1359 = vperm.xlu0 %1358, %v1356
        %v1360 = vpop.permute.xlu0 %1359
        %v1362 = vmul.f32 %v1360, %v1206
        %1363 = vset.pattern.permute.xlu0 1
        %1364 = vperm.xlu0 %1363, %v1356
        %v1365 = vpop.permute.xlu0 %1364
        %v1367 = vmul.f32 %v1365, %v1217
        %v1368 = vadd.f32 %v1362, %v1367
        %1370 = vrot.lane.b32.xlu0 %v1368, 124
        %v1371 = vpop.permute.xlu0 %1370
        %v1373 = vsel %vm1001, %v1329, %v1371
        %v1375 = vsel %vm1006, %v1373, 0
        %1377 = vmatpush.msra.mxu0 0.0
        %1378 = vmatpush.msra.mxu0 0.0
        %1379 = vmatpush.msra.mxu0 0.0
        %1380 = vmatpush.msra.mxu0 0.0
        %1381 = vmatpush.msra.mxu0 0.0
        %1382 = vmatpush.msra.mxu0 0.0
        %1383 = vmatpush.msra.mxu0 0.0
        %1384 = vmatpush.msra.mxu0 0.0
        %1385 = vmatpush.msra.mxu0 0.0
        %1386 = vmatpush.msra.mxu0 0.0
        %1387 = vmatpush.msra.mxu0 %v1012
        %1388 = vmatpush.msra.mxu0 %v928
        %1389 = vmatpush.msra.mxu0 %v927
        %1390 = vmatpush.msra.mxu0 %v926
        %1391 = vmatpush.msra.mxu0 %v925
        %1392 = vmatpush.msra.mxu0 %v924
        %1393 = vmatmul.f32.gmra.mxu0 %v1375
        %v1394 = vpop.f32.mrf.mxu0
        %v1395 = vadd.f32 %v1004, %v1394
        %1396 = vdwg.mxu0
        %1398 = vrot.lane.b32.xlu0 %v1099, 96
        %v1399 = vpop.permute.xlu0 %1398
        %v1400 = vsel %vm1037, %v1399, 0
        %1402 = vmatpush.msra.mxu0 0.0
        %1403 = vmatpush.msra.mxu0 0.0
        %1404 = vmatpush.msra.mxu0 0.0
        %1405 = vmatpush.msra.mxu0 0.0
        %1406 = vmatpush.msra.mxu0 0.0
        %1407 = vmatpush.msra.mxu0 0.0
        %1408 = vmatpush.msra.mxu0 0.0
        %1409 = vmatpush.msra.mxu0 0.0
        %1410 = vmatpush.msra.mxu0 0.0
        %1411 = vmatpush.msra.mxu0 0.0
        %1412 = vmatpush.msra.mxu0 0.0
        %1413 = vmatpush.msra.mxu0 0.0
        %1414 = vmatpush.msra.mxu0 %v933
        %1415 = vmatpush.msra.mxu0 %v932
        %1416 = vmatpush.msra.mxu0 %v931
        %1417 = vmatpush.msra.mxu0 %v930
        %1418 = vmatmul.f32.gmra.mxu0 %v1400
        %v1419 = vpop.f32.mrf.mxu0
        %v1420 = vadd.f32 %v1035, %v1419
        %1421 = vdwg.mxu0
        %v1422 = vadd.f32 %v1395, %v1420
        %v1423 = vxor.u32 %v1422, 2147483648
        %v1424 = vmul.f32 %v1423, 1.442695
        %v1425 = vpow.pop %v1424
        %v1426 = vadd.f32 %v1425, 1.0
        %v1427 = vrcp.pop %v1426
        %v1428 = vmul.f32 %v1426, %v1427
        %v1429 = vsub.f32 1.0, %v1428
        %v1430 = vmul.f32 %v1427, %v1429
        %v1431 = vadd.f32 %v1427, %v1430
        %vm1432 = vweird.f32 %v1426
        %vm1433 = vweird.f32 %v1427
        %vm1434 = vmor %vm1432, %vm1433
        %v1435 = vsel %vm1434, %v1427, %v1431
        %v1436 = vand.u32 2147483647, %v1426
        %vm1437 = vcmp.eq.f32.partialorder %v1436, 8.507059e+37
        %v1438 = vand.u32 %v1426, 2147483648
        %v1439 = vor.u32 1.1754944e-38, %v1438
        %v1440 = vsel %vm1437, %v1439, %v1435
        %v1441 = vmul.f32 1.0, %v1440
        %1443 = vrot.lane.b32.xlu0 %v1420, 64
        %v1444 = vpop.permute.xlu0 %1443
        %v1446 = vmul.f32 %v1441, %v1444
        %1448 = vrot.lane.b32.xlu0 %v1446, 64
        %v1449 = vpop.permute.xlu0 %1448
        %v1451 = vadd.f32 %v1395, %v1449
        %v1452 = vtanh.pop %v1451
        %v1453 = vsub.f32 1.0, %v1441
        %1455 = vrot.lane.b32.xlu0 %v1452, 96
        %v1456 = vpop.permute.xlu0 %1455
        %v1458 = vmul.f32 %v1453, %v1456
        %v1459 = vmul.f32 %v1441, %v1099
        %v1460 = vadd.f32 %v1458, %v1459
        %v1462 = vperm.slane %v955, 0
        %1463 = vrot.lane.b32.xlu0 %v1462, 32
        %v1464 = vpop.permute.xlu0 %1463
        %v1466 = vmul.f32 %v1099, %v1464
        %1468 = vrot.lane.b32.xlu0 %v1466, 96
        %v1469 = vpop.permute.xlu0 %1468
        %vm1471 = vcmask 254976
        %v1472 = vsel %vm1471, %v1469, 0.0
        %1473 = vadd.xlane.f32.xlu0 %v1472
        %v1474 = vpop.xlane.xlu0 %1473
        %v1475 = vsub.f32 %v1474, %v1474
        %v1476 = vmul.f32 %v1475, 1.442695
        %v1477 = vpow.pop %v1476
        %v1478 = vrcp.pop %v1477
        %v1479 = vmul.f32 %v1477, %v1478
        %v1480 = vsub.f32 1.0, %v1479
        %v1481 = vmul.f32 %v1478, %v1480
        %v1482 = vadd.f32 %v1478, %v1481
        %vm1483 = vweird.f32 %v1477
        %vm1484 = vweird.f32 %v1478
        %vm1485 = vmor %vm1483, %vm1484
        %v1486 = vsel %vm1485, %v1478, %v1482
        %v1487 = vand.u32 2147483647, %v1477
        %vm1488 = vcmp.eq.f32.partialorder %v1487, 8.507059e+37
        %v1489 = vand.u32 %v1477, 2147483648
        %v1490 = vor.u32 1.1754944e-38, %v1489
        %v1491 = vsel %vm1488, %v1490, %v1486
        %v1492 = vmul.f32 1.0, %v1491
        %v1493 = vmul.f32 %v1477, %v1492
        %v1494 = vmul.f32 %v1493, %v1099
        %1496 = vrot.lane.b32.xlu0 %v1494, 120
        %v1497 = vpop.permute.xlu0 %1496
        %v1499 = vsel %vm1100, %v1327, %v1497
        %v1501 = vsel %vm1105, %v1499, 0
        %1503 = vmatpush.msra.mxu0 0.0
        %1504 = vmatpush.msra.mxu0 0.0
        %1505 = vmatpush.msra.mxu0 0.0
        %1506 = vmatpush.msra.mxu0 0.0
        %1507 = vmatpush.msra.mxu0 0.0
        %1508 = vmatpush.msra.mxu0 0.0
        %1509 = vmatpush.msra.mxu0 0.0
        %1510 = vmatpush.msra.mxu0 0.0
        %1511 = vmatpush.msra.mxu0 0.0
        %1512 = vmatpush.msra.mxu0 %v942
        %1513 = vmatpush.msra.mxu0 %v941
        %1514 = vmatpush.msra.mxu0 %v940
        %1515 = vmatpush.msra.mxu0 %v939
        %1516 = vmatpush.msra.mxu0 %v938
        %1517 = vmatpush.msra.mxu0 %v937
        %1518 = vmatpush.msra.mxu0 %v936
        %1519 = vmatmul.f32.gmra.mxu0 %v1501
        %v1520 = vpop.f32.mrf.mxu0
        %v1521 = vadd.f32 %v1103, %v1520
        %1522 = vdwg.mxu0
        %1524 = vrot.lane.b32.xlu0 %v1206, 104
        %v1525 = vpop.permute.xlu0 %1524
        %v1526 = vsel %vm1100, %v1525, 0
        %1528 = vmatpush.msra.mxu0 0.0
        %1529 = vmatpush.msra.mxu0 0.0
        %1530 = vmatpush.msra.mxu0 0.0
        %1531 = vmatpush.msra.mxu0 0.0
        %1532 = vmatpush.msra.mxu0 0.0
        %1533 = vmatpush.msra.mxu0 0.0
        %1534 = vmatpush.msra.mxu0 0.0
        %1535 = vmatpush.msra.mxu0 0.0
        %1536 = vmatpush.msra.mxu0 0.0
        %1537 = vmatpush.msra.mxu0 0.0
        %1538 = vmatpush.msra.mxu0 0.0
        %1539 = vmatpush.msra.mxu0 0.0
        %1540 = vmatpush.msra.mxu0 0.0
        %1541 = vmatpush.msra.mxu0 %v945
        %1542 = vmatpush.msra.mxu0 %v944
        %1543 = vmatpush.msra.mxu0 %v943
        %1544 = vmatmul.f32.gmra.mxu0 %v1526
        %v1545 = vpop.f32.mrf.mxu0
        %v1546 = vadd.f32 %v1130, %v1545
        %1547 = vdwg.mxu0
        %v1548 = vadd.f32 %v1521, %v1546
        %v1549 = vxor.u32 %v1548, 2147483648
        %v1550 = vmul.f32 %v1549, 1.442695
        %v1551 = vpow.pop %v1550
        %v1552 = vadd.f32 %v1551, 1.0
        %v1553 = vrcp.pop %v1552
        %v1554 = vmul.f32 %v1552, %v1553
        %v1555 = vsub.f32 1.0, %v1554
        %v1556 = vmul.f32 %v1553, %v1555
        %v1557 = vadd.f32 %v1553, %v1556
        %vm1558 = vweird.f32 %v1552
        %vm1559 = vweird.f32 %v1553
        %vm1560 = vmor %vm1558, %vm1559
        %v1561 = vsel %vm1560, %v1553, %v1557
        %v1562 = vand.u32 2147483647, %v1552
        %vm1563 = vcmp.eq.f32.partialorder %v1562, 8.507059e+37
        %v1564 = vand.u32 %v1552, 2147483648
        %v1565 = vor.u32 1.1754944e-38, %v1564
        %v1566 = vsel %vm1563, %v1565, %v1561
        %v1567 = vmul.f32 1.0, %v1566
        %1569 = vrot.lane.b32.xlu0 %v1546, 80
        %v1570 = vpop.permute.xlu0 %1569
        %v1572 = vmul.f32 %v1567, %v1570
        %1574 = vrot.lane.b32.xlu0 %v1572, 48
        %v1575 = vpop.permute.xlu0 %1574
        %v1577 = vadd.f32 %v1521, %v1575
        %v1578 = vtanh.pop %v1577
        %v1579 = vsub.f32 1.0, %v1567
        %1581 = vrot.lane.b32.xlu0 %v1578, 104
        %v1582 = vpop.permute.xlu0 %1581
        %v1584 = vmul.f32 %v1579, %v1582
        %v1585 = vmul.f32 %v1567, %v1206
        %v1586 = vadd.f32 %v1584, %v1585
        %v1587 = vsub.f32 1.0, %v1331
        %1589 = vset.pattern.permute.xlu0 0
        %1590 = vperm.xlu0 %1589, %v1587
        %v1591 = vpop.permute.xlu0 %1590
        %v1593 = vmul.f32 %v1206, %v1591
        %1595 = vset.pattern.permute.xlu0 0
        %1596 = vperm.xlu0 %1595, %v1331
        %v1597 = vpop.permute.xlu0 %1596
        %v1599 = vmul.f32 %v1586, %v1597
        %v1600 = vadd.f32 %v1593, %v1599
        %1602 = vrot.lane.b32.xlu0 %v1217, 104
        %v1603 = vpop.permute.xlu0 %1602
        %v1604 = vsel %vm1100, %v1603, 0
        %1606 = vmatpush.msra.mxu0 0.0
        %1607 = vmatpush.msra.mxu0 0.0
        %1608 = vmatpush.msra.mxu0 0.0
        %1609 = vmatpush.msra.mxu0 0.0
        %1610 = vmatpush.msra.mxu0 0.0
        %1611 = vmatpush.msra.mxu0 0.0
        %1612 = vmatpush.msra.mxu0 0.0
        %1613 = vmatpush.msra.mxu0 0.0
        %1614 = vmatpush.msra.mxu0 0.0
        %1615 = vmatpush.msra.mxu0 0.0
        %1616 = vmatpush.msra.mxu0 0.0
        %1617 = vmatpush.msra.mxu0 0.0
        %1618 = vmatpush.msra.mxu0 0.0
        %1619 = vmatpush.msra.mxu0 %v945
        %1620 = vmatpush.msra.mxu0 %v944
        %1621 = vmatpush.msra.mxu0 %v943
        %1622 = vmatmul.f32.gmra.mxu0 %v1604
        %v1623 = vpop.f32.mrf.mxu0
        %v1624 = vadd.f32 %v1130, %v1623
        %1625 = vdwg.mxu0
        %v1626 = vadd.f32 %v1521, %v1624
        %v1627 = vxor.u32 %v1626, 2147483648
        %v1628 = vmul.f32 %v1627, 1.442695
        %v1629 = vpow.pop %v1628
        %v1630 = vadd.f32 %v1629, 1.0
        %v1631 = vrcp.pop %v1630
        %v1632 = vmul.f32 %v1630, %v1631
        %v1633 = vsub.f32 1.0, %v1632
        %v1634 = vmul.f32 %v1631, %v1633
        %v1635 = vadd.f32 %v1631, %v1634
        %vm1636 = vweird.f32 %v1630
        %vm1637 = vweird.f32 %v1631
        %vm1638 = vmor %vm1636, %vm1637
        %v1639 = vsel %vm1638, %v1631, %v1635
        %v1640 = vand.u32 2147483647, %v1630
        %vm1641 = vcmp.eq.f32.partialorder %v1640, 8.507059e+37
        %v1642 = vand.u32 %v1630, 2147483648
        %v1643 = vor.u32 1.1754944e-38, %v1642
        %v1644 = vsel %vm1641, %v1643, %v1639
        %v1645 = vmul.f32 1.0, %v1644
        %1647 = vrot.lane.b32.xlu0 %v1624, 80
        %v1648 = vpop.permute.xlu0 %1647
        %v1650 = vmul.f32 %v1645, %v1648
        %1652 = vrot.lane.b32.xlu0 %v1650, 48
        %v1653 = vpop.permute.xlu0 %1652
        %v1655 = vadd.f32 %v1521, %v1653
        %v1656 = vtanh.pop %v1655
        %v1657 = vsub.f32 1.0, %v1645
        %1659 = vrot.lane.b32.xlu0 %v1656, 104
        %v1660 = vpop.permute.xlu0 %1659
        %v1662 = vmul.f32 %v1657, %v1660
        %v1663 = vmul.f32 %v1645, %v1217
        %v1664 = vadd.f32 %v1662, %v1663
        %1665 = vset.pattern.permute.xlu0 1
        %1666 = vperm.xlu0 %1665, %v1587
        %v1667 = vpop.permute.xlu0 %1666
        %v1669 = vmul.f32 %v1217, %v1667
        %1670 = vset.pattern.permute.xlu0 1
        %1671 = vperm.xlu0 %1670, %v1331
        %v1672 = vpop.permute.xlu0 %1671
        %v1674 = vmul.f32 %v1664, %v1672
        %v1675 = vadd.f32 %v1669, %v1674
        %v1676 = vmul.f32 %v1360, %v1600
        %v1677 = vmul.f32 %v1365, %v1675
        %v1678 = vadd.f32 %v1676, %v1677
        %v1679 = vsub.f32 1.0, %v1333
        %1681 = vrot.lane.b32.xlu0 %v1678, 104
        %v1682 = vpop.permute.xlu0 %1681
        %v1683 = vsel %vm1100, %v1682, 0
        %1685 = vmatpush.msra.mxu0 0.0
        %1686 = vmatpush.msra.mxu0 0.0
        %1687 = vmatpush.msra.mxu0 0.0
        %1688 = vmatpush.msra.mxu0 0.0
        %1689 = vmatpush.msra.mxu0 0.0
        %1690 = vmatpush.msra.mxu0 0.0
        %1691 = vmatpush.msra.mxu0 0.0
        %1692 = vmatpush.msra.mxu0 0.0
        %1693 = vmatpush.msra.mxu0 0.0
        %1694 = vmatpush.msra.mxu0 0.0
        %1695 = vmatpush.msra.mxu0 0.0
        %1696 = vmatpush.msra.mxu0 0.0
        %1697 = vmatpush.msra.mxu0 0.0
        %1698 = vmatpush.msra.mxu0 %v950
        %1699 = vmatpush.msra.mxu0 %v949
        %1700 = vmatpush.msra.mxu0 %v948
        %1701 = vmatmul.f32.gmra.mxu0 %v1683
        %v1702 = vpop.f32.mrf.mxu0
        %v1703 = vadd.f32 %v1223, %v1702
        %1704 = vdwg.mxu0
        %1706 = vset.pattern.permute.xlu0 1
        %1707 = vperm.xlu0 %1706, %v1679
        %v1708 = vpop.permute.xlu0 %1707
        %v1710 = vmul.f32 %v1708, %v1293
        %v1712 = vsel %vm1256, %v1710, 0
        %1714 = vmatpush.msra.mxu0 0.0
        %1715 = vmatpush.msra.mxu0 0.0
        %1716 = vmatpush.msra.mxu0 0.0
        %1717 = vmatpush.msra.mxu0 0.0
        %1718 = vmatpush.msra.mxu0 0.0
        %1719 = vmatpush.msra.mxu0 0.0
        %1720 = vmatpush.msra.mxu0 0.0
        %1721 = vmatpush.msra.mxu0 0.0
        %1722 = vmatpush.msra.mxu0 0.0
        %1723 = vmatpush.msra.mxu0 0.0
        %1724 = vmatpush.msra.mxu0 0.0
        %1725 = vmatpush.msra.mxu0 0.0
        %1726 = vmatpush.msra.mxu0 0.0
        %1727 = vmatpush.msra.mxu0 0.0
        %1728 = vmatpush.msra.mxu0 %v953
        %1729 = vmatpush.msra.mxu0 %v952
        %1730 = vmatmul.f32.gmra.mxu0 %v1712
        %v1731 = vpop.f32.mrf.mxu0
        %v1732 = vadd.f32 0.0, %v1731
        %1733 = vdwg.mxu0
        %v1734 = vadd.f32 %v1703, %v1732
        %v1735 = vadd.f32 %v1734, %v1282
        %v1736 = vtanh.pop %v1735
        %v1737 = vsub.f32 1.0, %v1679
        %1739 = vset.pattern.permute.xlu0 1
        %1740 = vperm.xlu0 %1739, %v1737
        %v1741 = vpop.permute.xlu0 %1740
        %v1743 = vmul.f32 %v1741, %v1736
        %v1744 = vadd.f32 %v1710, %v1743
        %v1746 = vsel %vm1256, %v1744, 0
        %1748 = vmatpush.msra.mxu0 0.0
        %1749 = vmatpush.msra.mxu0 0.0
        %1750 = vmatpush.msra.mxu0 0.0
        %1751 = vmatpush.msra.mxu0 0.0
        %1752 = vmatpush.msra.mxu0 0.0
        %1753 = vmatpush.msra.mxu0 0.0
        %1754 = vmatpush.msra.mxu0 0.0
        %1755 = vmatpush.msra.mxu0 0.0
        %1756 = vmatpush.msra.mxu0 0.0
        %1757 = vmatpush.msra.mxu0 0.0
        %1758 = vmatpush.msra.mxu0 0.0
        %1759 = vmatpush.msra.mxu0 0.0
        %1760 = vmatpush.msra.mxu0 0.0
        %1761 = vmatpush.msra.mxu0 0.0
        %1762 = vmatpush.msra.mxu0 %v957
        %1763 = vmatpush.msra.mxu0 %v956
        %1764 = vmatmul.f32.gmra.mxu0 %v1746
        %v1765 = vpop.f32.mrf.mxu0
        %v1766 = vadd.f32 %v1295, %v1765
        %1767 = vdwg.mxu0
        %v1769 = vrot.slane %v1766, 1
        %1771 = vst.msk [vmem:[%s923 + $0x1] sm:$0x1] %vm1323, %v1766
        %1772 = vst.msk [vmem:[%s923 + $0x9] sm:$0x1] %vm1323, %v1769
        %s1773 = scalar_lea.vmem %s890, 4
        %v1774 = vld [vmem:[%s1773] sm:$0x3]
        %s1775 = scalar_lea.vmem %s1, 4
        %v1776 = vld [vmem:[%s1775] sm:$0x3]
        %s1777 = scalar_lea.vmem %s2, 4
        %v1778 = vld [vmem:[%s1777] sm:$0x3]
        %s1779 = scalar_lea.vmem %s3, 4
        %v1780 = vld [vmem:[%s1779] sm:$0x3]
        %v1781 = vsel %vm965, %v1778, -inf
        %1782 = vmax.xlane.f32.xlu0 %v1781
        %v1783 = vpop.xlane.xlu0 %1782
        %vm1784 = vcmp.eq.f32.partialorder %v1778, %v1783
        %v1785 = vsel %vm1784, %v960, 2
        %v1786 = vsel %vm965, %v1785, 2147483647
        %v1787 = vand.u32 %v1786, 65535
        %v1788 = vshra.s32 %v1786, 16
        %v1789 = vcvt.s32.f32 %v1787
        %v1790 = vcvt.s32.f32 %v1788
        %1791 = vmin.xlane.f32.xlu0 %v1790
        %v1792 = vpop.xlane.xlu0 %1791
        %vm1793 = vcmp.eq.f32.partialorder %v1790, %v1792
        %v1794 = vsel %vm1793, %v1789, inf
        %1795 = vmin.xlane.f32.xlu0 %v1794
        %v1796 = vpop.xlane.xlu0 %1795
        %v1797 = vcvt.f32.s32 %v1796
        %v1798 = vcvt.f32.s32 %v1792
        %v1799 = vshll.u32 %v1798, 16
        %v1800 = vadd.s32 %v1799, %v1797
        %vm1801 = vcmp.eq.s32.totalorder %v960, %v1800
        %v1802 = vsel %vm1801, 1, 0
        %v1803 = vcvt.s32.f32 %v1802
        %1805 = vset.pattern.permute.xlu0 0
        %1806 = vperm.xlu0 %1805, %v1803
        %v1807 = vpop.permute.xlu0 %1806
        %v1809 = vmul.f32 %v1807, %v1600
        %1810 = vset.pattern.permute.xlu0 1
        %1811 = vperm.xlu0 %1810, %v1803
        %v1812 = vpop.permute.xlu0 %1811
        %v1814 = vmul.f32 %v1812, %v1675
        %v1815 = vadd.f32 %v1809, %v1814
        %1817 = vrot.lane.b32.xlu0 %v1815, 124
        %v1818 = vpop.permute.xlu0 %1817
        %v1820 = vsel %vm1001, %v1776, %v1818
        %v1822 = vsel %vm1006, %v1820, 0
        %1824 = vmatpush.msra.mxu0 0.0
        %1825 = vmatpush.msra.mxu0 0.0
        %1826 = vmatpush.msra.mxu0 0.0
        %1827 = vmatpush.msra.mxu0 0.0
        %1828 = vmatpush.msra.mxu0 0.0
        %1829 = vmatpush.msra.mxu0 0.0
        %1830 = vmatpush.msra.mxu0 0.0
        %1831 = vmatpush.msra.mxu0 0.0
        %1832 = vmatpush.msra.mxu0 0.0
        %1833 = vmatpush.msra.mxu0 0.0
        %1834 = vmatpush.msra.mxu0 %v1012
        %1835 = vmatpush.msra.mxu0 %v928
        %1836 = vmatpush.msra.mxu0 %v927
        %1837 = vmatpush.msra.mxu0 %v926
        %1838 = vmatpush.msra.mxu0 %v925
        %1839 = vmatpush.msra.mxu0 %v924
        %1840 = vmatmul.f32.gmra.mxu0 %v1822
        %v1841 = vpop.f32.mrf.mxu0
        %v1842 = vadd.f32 %v1004, %v1841
        %1843 = vdwg.mxu0
        %1845 = vrot.lane.b32.xlu0 %v1460, 96
        %v1846 = vpop.permute.xlu0 %1845
        %v1847 = vsel %vm1037, %v1846, 0
        %1849 = vmatpush.msra.mxu0 0.0
        %1850 = vmatpush.msra.mxu0 0.0
        %1851 = vmatpush.msra.mxu0 0.0
        %1852 = vmatpush.msra.mxu0 0.0
        %1853 = vmatpush.msra.mxu0 0.0
        %1854 = vmatpush.msra.mxu0 0.0
        %1855 = vmatpush.msra.mxu0 0.0
        %1856 = vmatpush.msra.mxu0 0.0
        %1857 = vmatpush.msra.mxu0 0.0
        %1858 = vmatpush.msra.mxu0 0.0
        %1859 = vmatpush.msra.mxu0 0.0
        %1860 = vmatpush.msra.mxu0 0.0
        %1861 = vmatpush.msra.mxu0 %v933
        %1862 = vmatpush.msra.mxu0 %v932
        %1863 = vmatpush.msra.mxu0 %v931
        %1864 = vmatpush.msra.mxu0 %v930
        %1865 = vmatmul.f32.gmra.mxu0 %v1847
        %v1866 = vpop.f32.mrf.mxu0
        %v1867 = vadd.f32 %v1035, %v1866
        %1868 = vdwg.mxu0
        %v1869 = vadd.f32 %v1842, %v1867
        %v1870 = vxor.u32 %v1869, 2147483648
        %v1871 = vmul.f32 %v1870, 1.442695
        %v1872 = vpow.pop %v1871
        %v1873 = vadd.f32 %v1872, 1.0
        %v1874 = vrcp.pop %v1873
        %v1875 = vmul.f32 %v1873, %v1874
        %v1876 = vsub.f32 1.0, %v1875
        %v1877 = vmul.f32 %v1874, %v1876
        %v1878 = vadd.f32 %v1874, %v1877
        %vm1879 = vweird.f32 %v1873
        %vm1880 = vweird.f32 %v1874
        %vm1881 = vmor %vm1879, %vm1880
        %v1882 = vsel %vm1881, %v1874, %v1878
        %v1883 = vand.u32 2147483647, %v1873
        %vm1884 = vcmp.eq.f32.partialorder %v1883, 8.507059e+37
        %v1885 = vand.u32 %v1873, 2147483648
        %v1886 = vor.u32 1.1754944e-38, %v1885
        %v1887 = vsel %vm1884, %v1886, %v1882
        %v1888 = vmul.f32 1.0, %v1887
        %1890 = vrot.lane.b32.xlu0 %v1867, 64
        %v1891 = vpop.permute.xlu0 %1890
        %v1893 = vmul.f32 %v1888, %v1891
        %1895 = vrot.lane.b32.xlu0 %v1893, 64
        %v1896 = vpop.permute.xlu0 %1895
        %v1898 = vadd.f32 %v1842, %v1896
        %v1899 = vtanh.pop %v1898
        %v1900 = vsub.f32 1.0, %v1888
        %1902 = vrot.lane.b32.xlu0 %v1899, 96
        %v1903 = vpop.permute.xlu0 %1902
        %v1905 = vmul.f32 %v1900, %v1903
        %v1906 = vmul.f32 %v1888, %v1460
        %v1907 = vadd.f32 %v1905, %v1906
        %v1908 = vmul.f32 %v1460, %v1464
        %1910 = vrot.lane.b32.xlu0 %v1908, 96
        %v1911 = vpop.permute.xlu0 %1910
        %v1913 = vsel %vm1471, %v1911, 0.0
        %1914 = vadd.xlane.f32.xlu0 %v1913
        %v1915 = vpop.xlane.xlu0 %1914
        %v1916 = vmax.f32 %v1474, %v1915
        %v1917 = vsub.f32 %v1474, %v1916
        %v1918 = vmul.f32 %v1917, 1.442695
        %v1919 = vpow.pop %v1918
        %v1920 = vsub.f32 %v1915, %v1916
        %v1921 = vmul.f32 %v1920, 1.442695
        %v1922 = vpow.pop %v1921
        %v1923 = vadd.f32 %v1919, %v1922
        %v1924 = vrcp.pop %v1923
        %v1925 = vmul.f32 %v1923, %v1924
        %v1926 = vsub.f32 1.0, %v1925
        %v1927 = vmul.f32 %v1924, %v1926
        %v1928 = vadd.f32 %v1924, %v1927
        %vm1929 = vweird.f32 %v1923
        %vm1930 = vweird.f32 %v1924
        %vm1931 = vmor %vm1929, %vm1930
        %v1932 = vsel %vm1931, %v1924, %v1928
        %v1933 = vand.u32 2147483647, %v1923
        %vm1934 = vcmp.eq.f32.partialorder %v1933, 8.507059e+37
        %v1935 = vand.u32 %v1923, 2147483648
        %v1936 = vor.u32 1.1754944e-38, %v1935
        %v1937 = vsel %vm1934, %v1936, %v1932
        %v1938 = vmul.f32 1.0, %v1937
        %v1939 = vmul.f32 %v1919, %v1938
        %v1940 = vmul.f32 %v1939, %v1099
        %v1941 = vmul.f32 %v1922, %v1938
        %v1942 = vmul.f32 %v1941, %v1460
        %v1943 = vadd.f32 %v1940, %v1942
        %1945 = vrot.lane.b32.xlu0 %v1943, 120
        %v1946 = vpop.permute.xlu0 %1945
        %v1948 = vsel %vm1100, %v1774, %v1946
        %v1950 = vsel %vm1105, %v1948, 0
        %1952 = vmatpush.msra.mxu0 0.0
        %1953 = vmatpush.msra.mxu0 0.0
        %1954 = vmatpush.msra.mxu0 0.0
        %1955 = vmatpush.msra.mxu0 0.0
        %1956 = vmatpush.msra.mxu0 0.0
        %1957 = vmatpush.msra.mxu0 0.0
        %1958 = vmatpush.msra.mxu0 0.0
        %1959 = vmatpush.msra.mxu0 0.0
        %1960 = vmatpush.msra.mxu0 0.0
        %1961 = vmatpush.msra.mxu0 %v942
        %1962 = vmatpush.msra.mxu0 %v941
        %1963 = vmatpush.msra.mxu0 %v940
        %1964 = vmatpush.msra.mxu0 %v939
        %1965 = vmatpush.msra.mxu0 %v938
        %1966 = vmatpush.msra.mxu0 %v937
        %1967 = vmatpush.msra.mxu0 %v936
        %1968 = vmatmul.f32.gmra.mxu0 %v1950
        %v1969 = vpop.f32.mrf.mxu0
        %v1970 = vadd.f32 %v1103, %v1969
        %1971 = vdwg.mxu0
        %1973 = vrot.lane.b32.xlu0 %v1600, 104
        %v1974 = vpop.permute.xlu0 %1973
        %v1975 = vsel %vm1100, %v1974, 0
        %1977 = vmatpush.msra.mxu0 0.0
        %1978 = vmatpush.msra.mxu0 0.0
        %1979 = vmatpush.msra.mxu0 0.0
        %1980 = vmatpush.msra.mxu0 0.0
        %1981 = vmatpush.msra.mxu0 0.0
        %1982 = vmatpush.msra.mxu0 0.0
        %1983 = vmatpush.msra.mxu0 0.0
        %1984 = vmatpush.msra.mxu0 0.0
        %1985 = vmatpush.msra.mxu0 0.0
        %1986 = vmatpush.msra.mxu0 0.0
        %1987 = vmatpush.msra.mxu0 0.0
        %1988 = vmatpush.msra.mxu0 0.0
        %1989 = vmatpush.msra.mxu0 0.0
        %1990 = vmatpush.msra.mxu0 %v945
        %1991 = vmatpush.msra.mxu0 %v944
        %1992 = vmatpush.msra.mxu0 %v943
        %1993 = vmatmul.f32.gmra.mxu0 %v1975
        %v1994 = vpop.f32.mrf.mxu0
        %v1995 = vadd.f32 %v1130, %v1994
        %1996 = vdwg.mxu0
        %v1997 = vadd.f32 %v1970, %v1995
        %v1998 = vxor.u32 %v1997, 2147483648
        %v1999 = vmul.f32 %v1998, 1.442695
        %v2000 = vpow.pop %v1999
        %v2001 = vadd.f32 %v2000, 1.0
        %v2002 = vrcp.pop %v2001
        %v2003 = vmul.f32 %v2001, %v2002
        %v2004 = vsub.f32 1.0, %v2003
        %v2005 = vmul.f32 %v2002, %v2004
        %v2006 = vadd.f32 %v2002, %v2005
        %vm2007 = vweird.f32 %v2001
        %vm2008 = vweird.f32 %v2002
        %vm2009 = vmor %vm2007, %vm2008
        %v2010 = vsel %vm2009, %v2002, %v2006
        %v2011 = vand.u32 2147483647, %v2001
        %vm2012 = vcmp.eq.f32.partialorder %v2011, 8.507059e+37
        %v2013 = vand.u32 %v2001, 2147483648
        %v2014 = vor.u32 1.1754944e-38, %v2013
        %v2015 = vsel %vm2012, %v2014, %v2010
        %v2016 = vmul.f32 1.0, %v2015
        %2018 = vrot.lane.b32.xlu0 %v1995, 80
        %v2019 = vpop.permute.xlu0 %2018
        %v2021 = vmul.f32 %v2016, %v2019
        %2023 = vrot.lane.b32.xlu0 %v2021, 48
        %v2024 = vpop.permute.xlu0 %2023
        %v2026 = vadd.f32 %v1970, %v2024
        %v2027 = vtanh.pop %v2026
        %v2028 = vsub.f32 1.0, %v2016
        %2030 = vrot.lane.b32.xlu0 %v2027, 104
        %v2031 = vpop.permute.xlu0 %2030
        %v2033 = vmul.f32 %v2028, %v2031
        %v2034 = vmul.f32 %v2016, %v1600
        %v2035 = vadd.f32 %v2033, %v2034
        %v2036 = vsub.f32 1.0, %v1778
        %2038 = vset.pattern.permute.xlu0 0
        %2039 = vperm.xlu0 %2038, %v2036
        %v2040 = vpop.permute.xlu0 %2039
        %v2042 = vmul.f32 %v1600, %v2040
        %2044 = vset.pattern.permute.xlu0 0
        %2045 = vperm.xlu0 %2044, %v1778
        %v2046 = vpop.permute.xlu0 %2045
        %v2048 = vmul.f32 %v2035, %v2046
        %v2049 = vadd.f32 %v2042, %v2048
        %2051 = vrot.lane.b32.xlu0 %v1675, 104
        %v2052 = vpop.permute.xlu0 %2051
        %v2053 = vsel %vm1100, %v2052, 0
        %2055 = vmatpush.msra.mxu0 0.0
        %2056 = vmatpush.msra.mxu0 0.0
        %2057 = vmatpush.msra.mxu0 0.0
        %2058 = vmatpush.msra.mxu0 0.0
        %2059 = vmatpush.msra.mxu0 0.0
        %2060 = vmatpush.msra.mxu0 0.0
        %2061 = vmatpush.msra.mxu0 0.0
        %2062 = vmatpush.msra.mxu0 0.0
        %2063 = vmatpush.msra.mxu0 0.0
        %2064 = vmatpush.msra.mxu0 0.0
        %2065 = vmatpush.msra.mxu0 0.0
        %2066 = vmatpush.msra.mxu0 0.0
        %2067 = vmatpush.msra.mxu0 0.0
        %2068 = vmatpush.msra.mxu0 %v945
        %2069 = vmatpush.msra.mxu0 %v944
        %2070 = vmatpush.msra.mxu0 %v943
        %2071 = vmatmul.f32.gmra.mxu0 %v2053
        %v2072 = vpop.f32.mrf.mxu0
        %v2073 = vadd.f32 %v1130, %v2072
        %2074 = vdwg.mxu0
        %v2075 = vadd.f32 %v1970, %v2073
        %v2076 = vxor.u32 %v2075, 2147483648
        %v2077 = vmul.f32 %v2076, 1.442695
        %v2078 = vpow.pop %v2077
        %v2079 = vadd.f32 %v2078, 1.0
        %v2080 = vrcp.pop %v2079
        %v2081 = vmul.f32 %v2079, %v2080
        %v2082 = vsub.f32 1.0, %v2081
        %v2083 = vmul.f32 %v2080, %v2082
        %v2084 = vadd.f32 %v2080, %v2083
        %vm2085 = vweird.f32 %v2079
        %vm2086 = vweird.f32 %v2080
        %vm2087 = vmor %vm2085, %vm2086
        %v2088 = vsel %vm2087, %v2080, %v2084
        %v2089 = vand.u32 2147483647, %v2079
        %vm2090 = vcmp.eq.f32.partialorder %v2089, 8.507059e+37
        %v2091 = vand.u32 %v2079, 2147483648
        %v2092 = vor.u32 1.1754944e-38, %v2091
        %v2093 = vsel %vm2090, %v2092, %v2088
        %v2094 = vmul.f32 1.0, %v2093
        %2096 = vrot.lane.b32.xlu0 %v2073, 80
        %v2097 = vpop.permute.xlu0 %2096
        %v2099 = vmul.f32 %v2094, %v2097
        %2101 = vrot.lane.b32.xlu0 %v2099, 48
        %v2102 = vpop.permute.xlu0 %2101
        %v2104 = vadd.f32 %v1970, %v2102
        %v2105 = vtanh.pop %v2104
        %v2106 = vsub.f32 1.0, %v2094
        %2108 = vrot.lane.b32.xlu0 %v2105, 104
        %v2109 = vpop.permute.xlu0 %2108
        %v2111 = vmul.f32 %v2106, %v2109
        %v2112 = vmul.f32 %v2094, %v1675
        %v2113 = vadd.f32 %v2111, %v2112
        %2114 = vset.pattern.permute.xlu0 1
        %2115 = vperm.xlu0 %2114, %v2036
        %v2116 = vpop.permute.xlu0 %2115
        %v2118 = vmul.f32 %v1675, %v2116
        %2119 = vset.pattern.permute.xlu0 1
        %2120 = vperm.xlu0 %2119, %v1778
        %v2121 = vpop.permute.xlu0 %2120
        %v2123 = vmul.f32 %v2113, %v2121
        %v2124 = vadd.f32 %v2118, %v2123
        %v2125 = vmul.f32 %v1807, %v2049
        %v2126 = vmul.f32 %v1812, %v2124
        %v2127 = vadd.f32 %v2125, %v2126
        %v2128 = vsub.f32 1.0, %v1780
        %2130 = vrot.lane.b32.xlu0 %v2127, 104
        %v2131 = vpop.permute.xlu0 %2130
        %v2132 = vsel %vm1100, %v2131, 0
        %2134 = vmatpush.msra.mxu0 0.0
        %2135 = vmatpush.msra.mxu0 0.0
        %2136 = vmatpush.msra.mxu0 0.0
        %2137 = vmatpush.msra.mxu0 0.0
        %2138 = vmatpush.msra.mxu0 0.0
        %2139 = vmatpush.msra.mxu0 0.0
        %2140 = vmatpush.msra.mxu0 0.0
        %2141 = vmatpush.msra.mxu0 0.0
        %2142 = vmatpush.msra.mxu0 0.0
        %2143 = vmatpush.msra.mxu0 0.0
        %2144 = vmatpush.msra.mxu0 0.0
        %2145 = vmatpush.msra.mxu0 0.0
        %2146 = vmatpush.msra.mxu0 0.0
        %2147 = vmatpush.msra.mxu0 %v950
        %2148 = vmatpush.msra.mxu0 %v949
        %2149 = vmatpush.msra.mxu0 %v948
        %2150 = vmatmul.f32.gmra.mxu0 %v2132
        %v2151 = vpop.f32.mrf.mxu0
        %v2152 = vadd.f32 %v1223, %v2151
        %2153 = vdwg.mxu0
        %2155 = vset.pattern.permute.xlu0 1
        %2156 = vperm.xlu0 %2155, %v2128
        %v2157 = vpop.permute.xlu0 %2156
        %v2159 = vmul.f32 %v2157, %v1744
        %v2161 = vsel %vm1256, %v2159, 0
        %2163 = vmatpush.msra.mxu0 0.0
        %2164 = vmatpush.msra.mxu0 0.0
        %2165 = vmatpush.msra.mxu0 0.0
        %2166 = vmatpush.msra.mxu0 0.0
        %2167 = vmatpush.msra.mxu0 0.0
        %2168 = vmatpush.msra.mxu0 0.0
        %2169 = vmatpush.msra.mxu0 0.0
        %2170 = vmatpush.msra.mxu0 0.0
        %2171 = vmatpush.msra.mxu0 0.0
        %2172 = vmatpush.msra.mxu0 0.0
        %2173 = vmatpush.msra.mxu0 0.0
        %2174 = vmatpush.msra.mxu0 0.0
        %2175 = vmatpush.msra.mxu0 0.0
        %2176 = vmatpush.msra.mxu0 0.0
        %2177 = vmatpush.msra.mxu0 %v953
        %2178 = vmatpush.msra.mxu0 %v952
        %2179 = vmatmul.f32.gmra.mxu0 %v2161
        %v2180 = vpop.f32.mrf.mxu0
        %v2181 = vadd.f32 0.0, %v2180
        %2182 = vdwg.mxu0
        %v2183 = vadd.f32 %v2152, %v2181
        %v2184 = vadd.f32 %v2183, %v1282
        %v2185 = vtanh.pop %v2184
        %v2186 = vsub.f32 1.0, %v2128
        %2188 = vset.pattern.permute.xlu0 1
        %2189 = vperm.xlu0 %2188, %v2186
        %v2190 = vpop.permute.xlu0 %2189
        %v2192 = vmul.f32 %v2190, %v2185
        %v2193 = vadd.f32 %v2159, %v2192
        %v2195 = vsel %vm1256, %v2193, 0
        %2197 = vmatpush.msra.mxu0 0.0
        %2198 = vmatpush.msra.mxu0 0.0
        %2199 = vmatpush.msra.mxu0 0.0
        %2200 = vmatpush.msra.mxu0 0.0
        %2201 = vmatpush.msra.mxu0 0.0
        %2202 = vmatpush.msra.mxu0 0.0
        %2203 = vmatpush.msra.mxu0 0.0
        %2204 = vmatpush.msra.mxu0 0.0
        %2205 = vmatpush.msra.mxu0 0.0
        %2206 = vmatpush.msra.mxu0 0.0
        %2207 = vmatpush.msra.mxu0 0.0
        %2208 = vmatpush.msra.mxu0 0.0
        %2209 = vmatpush.msra.mxu0 0.0
        %2210 = vmatpush.msra.mxu0 0.0
        %2211 = vmatpush.msra.mxu0 %v957
        %2212 = vmatpush.msra.mxu0 %v956
        %2213 = vmatmul.f32.gmra.mxu0 %v2195
        %v2214 = vpop.f32.mrf.mxu0
        %v2215 = vadd.f32 %v1295, %v2214
        %2216 = vdwg.mxu0
        %v2218 = vrot.slane %v2215, 1
        %2220 = vst.msk [vmem:[%s923 + $0x2] sm:$0x1] %vm1323, %v2215
        %2221 = vst.msk [vmem:[%s923 + $0xa] sm:$0x1] %vm1323, %v2218
        %s2222 = scalar_lea.vmem %s890, 6
        %v2223 = vld [vmem:[%s2222] sm:$0x3]
        %s2224 = scalar_lea.vmem %s1, 6
        %v2225 = vld [vmem:[%s2224] sm:$0x3]
        %s2226 = scalar_lea.vmem %s2, 6
        %v2227 = vld [vmem:[%s2226] sm:$0x3]
        %s2228 = scalar_lea.vmem %s3, 6
        %v2229 = vld [vmem:[%s2228] sm:$0x3]
        %v2230 = vsel %vm965, %v2227, -inf
        %2231 = vmax.xlane.f32.xlu0 %v2230
        %v2232 = vpop.xlane.xlu0 %2231
        %vm2233 = vcmp.eq.f32.partialorder %v2227, %v2232
        %v2234 = vsel %vm2233, %v960, 2
        %v2235 = vsel %vm965, %v2234, 2147483647
        %v2236 = vand.u32 %v2235, 65535
        %v2237 = vshra.s32 %v2235, 16
        %v2238 = vcvt.s32.f32 %v2236
        %v2239 = vcvt.s32.f32 %v2237
        %2240 = vmin.xlane.f32.xlu0 %v2239
        %v2241 = vpop.xlane.xlu0 %2240
        %vm2242 = vcmp.eq.f32.partialorder %v2239, %v2241
        %v2243 = vsel %vm2242, %v2238, inf
        %2244 = vmin.xlane.f32.xlu0 %v2243
        %v2245 = vpop.xlane.xlu0 %2244
        %v2246 = vcvt.f32.s32 %v2245
        %v2247 = vcvt.f32.s32 %v2241
        %v2248 = vshll.u32 %v2247, 16
        %v2249 = vadd.s32 %v2248, %v2246
        %vm2250 = vcmp.eq.s32.totalorder %v960, %v2249
        %v2251 = vsel %vm2250, 1, 0
        %v2252 = vcvt.s32.f32 %v2251
        %2254 = vset.pattern.permute.xlu0 0
        %2255 = vperm.xlu0 %2254, %v2252
        %v2256 = vpop.permute.xlu0 %2255
        %v2258 = vmul.f32 %v2256, %v2049
        %2259 = vset.pattern.permute.xlu0 1
        %2260 = vperm.xlu0 %2259, %v2252
        %v2261 = vpop.permute.xlu0 %2260
        %v2263 = vmul.f32 %v2261, %v2124
        %v2264 = vadd.f32 %v2258, %v2263
        %2266 = vrot.lane.b32.xlu0 %v2264, 124
        %v2267 = vpop.permute.xlu0 %2266
        %v2269 = vsel %vm1001, %v2225, %v2267
        %v2271 = vsel %vm1006, %v2269, 0
        %2273 = vmatpush.msra.mxu0 0.0
        %2274 = vmatpush.msra.mxu0 0.0
        %2275 = vmatpush.msra.mxu0 0.0
        %2276 = vmatpush.msra.mxu0 0.0
        %2277 = vmatpush.msra.mxu0 0.0
        %2278 = vmatpush.msra.mxu0 0.0
        %2279 = vmatpush.msra.mxu0 0.0
        %2280 = vmatpush.msra.mxu0 0.0
        %2281 = vmatpush.msra.mxu0 0.0
        %2282 = vmatpush.msra.mxu0 0.0
        %2283 = vmatpush.msra.mxu0 %v1012
        %2284 = vmatpush.msra.mxu0 %v928
        %2285 = vmatpush.msra.mxu0 %v927
        %2286 = vmatpush.msra.mxu0 %v926
        %2287 = vmatpush.msra.mxu0 %v925
        %2288 = vmatpush.msra.mxu0 %v924
        %2289 = vmatmul.f32.gmra.mxu0 %v2271
        %v2290 = vpop.f32.mrf.mxu0
        %v2291 = vadd.f32 %v1004, %v2290
        %2292 = vdwg.mxu0
        %2294 = vrot.lane.b32.xlu0 %v1907, 96
        %v2295 = vpop.permute.xlu0 %2294
        %v2296 = vsel %vm1037, %v2295, 0
        %2298 = vmatpush.msra.mxu0 0.0
        %2299 = vmatpush.msra.mxu0 0.0
        %2300 = vmatpush.msra.mxu0 0.0
        %2301 = vmatpush.msra.mxu0 0.0
        %2302 = vmatpush.msra.mxu0 0.0
        %2303 = vmatpush.msra.mxu0 0.0
        %2304 = vmatpush.msra.mxu0 0.0
        %2305 = vmatpush.msra.mxu0 0.0
        %2306 = vmatpush.msra.mxu0 0.0
        %2307 = vmatpush.msra.mxu0 0.0
        %2308 = vmatpush.msra.mxu0 0.0
        %2309 = vmatpush.msra.mxu0 0.0
        %2310 = vmatpush.msra.mxu0 %v933
        %2311 = vmatpush.msra.mxu0 %v932
        %2312 = vmatpush.msra.mxu0 %v931
        %2313 = vmatpush.msra.mxu0 %v930
        %2314 = vmatmul.f32.gmra.mxu0 %v2296
        %v2315 = vpop.f32.mrf.mxu0
        %v2316 = vadd.f32 %v1035, %v2315
        %2317 = vdwg.mxu0
        %v2318 = vadd.f32 %v2291, %v2316
        %v2319 = vxor.u32 %v2318, 2147483648
        %v2320 = vmul.f32 %v2319, 1.442695
        %v2321 = vpow.pop %v2320
        %v2322 = vadd.f32 %v2321, 1.0
        %v2323 = vrcp.pop %v2322
        %v2324 = vmul.f32 %v2322, %v2323
        %v2325 = vsub.f32 1.0, %v2324
        %v2326 = vmul.f32 %v2323, %v2325
        %v2327 = vadd.f32 %v2323, %v2326
        %vm2328 = vweird.f32 %v2322
        %vm2329 = vweird.f32 %v2323
        %vm2330 = vmor %vm2328, %vm2329
        %v2331 = vsel %vm2330, %v2323, %v2327
        %v2332 = vand.u32 2147483647, %v2322
        %vm2333 = vcmp.eq.f32.partialorder %v2332, 8.507059e+37
        %v2334 = vand.u32 %v2322, 2147483648
        %v2335 = vor.u32 1.1754944e-38, %v2334
        %v2336 = vsel %vm2333, %v2335, %v2331
        %v2337 = vmul.f32 1.0, %v2336
        %2339 = vrot.lane.b32.xlu0 %v2316, 64
        %v2340 = vpop.permute.xlu0 %2339
        %v2342 = vmul.f32 %v2337, %v2340
        %2344 = vrot.lane.b32.xlu0 %v2342, 64
        %v2345 = vpop.permute.xlu0 %2344
        %v2347 = vadd.f32 %v2291, %v2345
        %v2348 = vtanh.pop %v2347
        %v2349 = vsub.f32 1.0, %v2337
        %2351 = vrot.lane.b32.xlu0 %v2348, 96
        %v2352 = vpop.permute.xlu0 %2351
        %v2354 = vmul.f32 %v2349, %v2352
        %v2355 = vmul.f32 %v2337, %v1907
        %v2356 = vadd.f32 %v2354, %v2355
        %v2357 = vmul.f32 %v1907, %v1464
        %2359 = vrot.lane.b32.xlu0 %v2357, 96
        %v2360 = vpop.permute.xlu0 %2359
        %v2362 = vsel %vm1471, %v2360, 0.0
        %2363 = vadd.xlane.f32.xlu0 %v2362
        %v2364 = vpop.xlane.xlu0 %2363
        %v2365 = vmax.f32 %v1916, %v2364
        %v2366 = vsub.f32 %v1474, %v2365
        %v2367 = vmul.f32 %v2366, 1.442695
        %v2368 = vpow.pop %v2367
        %v2369 = vsub.f32 %v1915, %v2365
        %v2370 = vmul.f32 %v2369, 1.442695
        %v2371 = vpow.pop %v2370
        %v2372 = vsub.f32 %v2364, %v2365
        %v2373 = vmul.f32 %v2372, 1.442695
        %v2374 = vpow.pop %v2373
        %v2375 = vadd.f32 %v2368, %v2371
        %v2376 = vadd.f32 %v2375, %v2374
        %v2377 = vrcp.pop %v2376
        %v2378 = vmul.f32 %v2376, %v2377
        %v2379 = vsub.f32 1.0, %v2378
        %v2380 = vmul.f32 %v2377, %v2379
        %v2381 = vadd.f32 %v2377, %v2380
        %vm2382 = vweird.f32 %v2376
        %vm2383 = vweird.f32 %v2377
        %vm2384 = vmor %vm2382, %vm2383
        %v2385 = vsel %vm2384, %v2377, %v2381
        %v2386 = vand.u32 2147483647, %v2376
        %vm2387 = vcmp.eq.f32.partialorder %v2386, 8.507059e+37
        %v2388 = vand.u32 %v2376, 2147483648
        %v2389 = vor.u32 1.1754944e-38, %v2388
        %v2390 = vsel %vm2387, %v2389, %v2385
        %v2391 = vmul.f32 1.0, %v2390
        %v2392 = vmul.f32 %v2368, %v2391
        %v2393 = vmul.f32 %v2392, %v1099
        %v2394 = vmul.f32 %v2371, %v2391
        %v2395 = vmul.f32 %v2394, %v1460
        %v2396 = vadd.f32 %v2393, %v2395
        %v2397 = vmul.f32 %v2374, %v2391
        %v2398 = vmul.f32 %v2397, %v1907
        %v2399 = vadd.f32 %v2396, %v2398
        %2401 = vrot.lane.b32.xlu0 %v2399, 120
        %v2402 = vpop.permute.xlu0 %2401
        %v2404 = vsel %vm1100, %v2223, %v2402
        %v2406 = vsel %vm1105, %v2404, 0
        %2408 = vmatpush.msra.mxu0 0.0
        %2409 = vmatpush.msra.mxu0 0.0
        %2410 = vmatpush.msra.mxu0 0.0
        %2411 = vmatpush.msra.mxu0 0.0
        %2412 = vmatpush.msra.mxu0 0.0
        %2413 = vmatpush.msra.mxu0 0.0
        %2414 = vmatpush.msra.mxu0 0.0
        %2415 = vmatpush.msra.mxu0 0.0
        %2416 = vmatpush.msra.mxu0 0.0
        %2417 = vmatpush.msra.mxu0 %v942
        %2418 = vmatpush.msra.mxu0 %v941
        %2419 = vmatpush.msra.mxu0 %v940
        %2420 = vmatpush.msra.mxu0 %v939
        %2421 = vmatpush.msra.mxu0 %v938
        %2422 = vmatpush.msra.mxu0 %v937
        %2423 = vmatpush.msra.mxu0 %v936
        %2424 = vmatmul.f32.gmra.mxu0 %v2406
        %v2425 = vpop.f32.mrf.mxu0
        %v2426 = vadd.f32 %v1103, %v2425
        %2427 = vdwg.mxu0
        %2429 = vrot.lane.b32.xlu0 %v2049, 104
        %v2430 = vpop.permute.xlu0 %2429
        %v2431 = vsel %vm1100, %v2430, 0
        %2433 = vmatpush.msra.mxu0 0.0
        %2434 = vmatpush.msra.mxu0 0.0
        %2435 = vmatpush.msra.mxu0 0.0
        %2436 = vmatpush.msra.mxu0 0.0
        %2437 = vmatpush.msra.mxu0 0.0
        %2438 = vmatpush.msra.mxu0 0.0
        %2439 = vmatpush.msra.mxu0 0.0
        %2440 = vmatpush.msra.mxu0 0.0
        %2441 = vmatpush.msra.mxu0 0.0
        %2442 = vmatpush.msra.mxu0 0.0
        %2443 = vmatpush.msra.mxu0 0.0
        %2444 = vmatpush.msra.mxu0 0.0
        %2445 = vmatpush.msra.mxu0 0.0
        %2446 = vmatpush.msra.mxu0 %v945
        %2447 = vmatpush.msra.mxu0 %v944
        %2448 = vmatpush.msra.mxu0 %v943
        %2449 = vmatmul.f32.gmra.mxu0 %v2431
        %v2450 = vpop.f32.mrf.mxu0
        %v2451 = vadd.f32 %v1130, %v2450
        %2452 = vdwg.mxu0
        %v2453 = vadd.f32 %v2426, %v2451
        %v2454 = vxor.u32 %v2453, 2147483648
        %v2455 = vmul.f32 %v2454, 1.442695
        %v2456 = vpow.pop %v2455
        %v2457 = vadd.f32 %v2456, 1.0
        %v2458 = vrcp.pop %v2457
        %v2459 = vmul.f32 %v2457, %v2458
        %v2460 = vsub.f32 1.0, %v2459
        %v2461 = vmul.f32 %v2458, %v2460
        %v2462 = vadd.f32 %v2458, %v2461
        %vm2463 = vweird.f32 %v2457
        %vm2464 = vweird.f32 %v2458
        %vm2465 = vmor %vm2463, %vm2464
        %v2466 = vsel %vm2465, %v2458, %v2462
        %v2467 = vand.u32 2147483647, %v2457
        %vm2468 = vcmp.eq.f32.partialorder %v2467, 8.507059e+37
        %v2469 = vand.u32 %v2457, 2147483648
        %v2470 = vor.u32 1.1754944e-38, %v2469
        %v2471 = vsel %vm2468, %v2470, %v2466
        %v2472 = vmul.f32 1.0, %v2471
        %2474 = vrot.lane.b32.xlu0 %v2451, 80
        %v2475 = vpop.permute.xlu0 %2474
        %v2477 = vmul.f32 %v2472, %v2475
        %2479 = vrot.lane.b32.xlu0 %v2477, 48
        %v2480 = vpop.permute.xlu0 %2479
        %v2482 = vadd.f32 %v2426, %v2480
        %v2483 = vtanh.pop %v2482
        %v2484 = vsub.f32 1.0, %v2472
        %2486 = vrot.lane.b32.xlu0 %v2483, 104
        %v2487 = vpop.permute.xlu0 %2486
        %v2489 = vmul.f32 %v2484, %v2487
        %v2490 = vmul.f32 %v2472, %v2049
        %v2491 = vadd.f32 %v2489, %v2490
        %v2492 = vsub.f32 1.0, %v2227
        %2494 = vset.pattern.permute.xlu0 0
        %2495 = vperm.xlu0 %2494, %v2492
        %v2496 = vpop.permute.xlu0 %2495
        %v2498 = vmul.f32 %v2049, %v2496
        %2500 = vset.pattern.permute.xlu0 0
        %2501 = vperm.xlu0 %2500, %v2227
        %v2502 = vpop.permute.xlu0 %2501
        %v2504 = vmul.f32 %v2491, %v2502
        %v2505 = vadd.f32 %v2498, %v2504
        %2507 = vrot.lane.b32.xlu0 %v2124, 104
        %v2508 = vpop.permute.xlu0 %2507
        %v2509 = vsel %vm1100, %v2508, 0
        %2511 = vmatpush.msra.mxu0 0.0
        %2512 = vmatpush.msra.mxu0 0.0
        %2513 = vmatpush.msra.mxu0 0.0
        %2514 = vmatpush.msra.mxu0 0.0
        %2515 = vmatpush.msra.mxu0 0.0
        %2516 = vmatpush.msra.mxu0 0.0
        %2517 = vmatpush.msra.mxu0 0.0
        %2518 = vmatpush.msra.mxu0 0.0
        %2519 = vmatpush.msra.mxu0 0.0
        %2520 = vmatpush.msra.mxu0 0.0
        %2521 = vmatpush.msra.mxu0 0.0
        %2522 = vmatpush.msra.mxu0 0.0
        %2523 = vmatpush.msra.mxu0 0.0
        %2524 = vmatpush.msra.mxu0 %v945
        %2525 = vmatpush.msra.mxu0 %v944
        %2526 = vmatpush.msra.mxu0 %v943
        %2527 = vmatmul.f32.gmra.mxu0 %v2509
        %v2528 = vpop.f32.mrf.mxu0
        %v2529 = vadd.f32 %v1130, %v2528
        %2530 = vdwg.mxu0
        %v2531 = vadd.f32 %v2426, %v2529
        %v2532 = vxor.u32 %v2531, 2147483648
        %v2533 = vmul.f32 %v2532, 1.442695
        %v2534 = vpow.pop %v2533
        %v2535 = vadd.f32 %v2534, 1.0
        %v2536 = vrcp.pop %v2535
        %v2537 = vmul.f32 %v2535, %v2536
        %v2538 = vsub.f32 1.0, %v2537
        %v2539 = vmul.f32 %v2536, %v2538
        %v2540 = vadd.f32 %v2536, %v2539
        %vm2541 = vweird.f32 %v2535
        %vm2542 = vweird.f32 %v2536
        %vm2543 = vmor %vm2541, %vm2542
        %v2544 = vsel %vm2543, %v2536, %v2540
        %v2545 = vand.u32 2147483647, %v2535
        %vm2546 = vcmp.eq.f32.partialorder %v2545, 8.507059e+37
        %v2547 = vand.u32 %v2535, 2147483648
        %v2548 = vor.u32 1.1754944e-38, %v2547
        %v2549 = vsel %vm2546, %v2548, %v2544
        %v2550 = vmul.f32 1.0, %v2549
        %2552 = vrot.lane.b32.xlu0 %v2529, 80
        %v2553 = vpop.permute.xlu0 %2552
        %v2555 = vmul.f32 %v2550, %v2553
        %2557 = vrot.lane.b32.xlu0 %v2555, 48
        %v2558 = vpop.permute.xlu0 %2557
        %v2560 = vadd.f32 %v2426, %v2558
        %v2561 = vtanh.pop %v2560
        %v2562 = vsub.f32 1.0, %v2550
        %2564 = vrot.lane.b32.xlu0 %v2561, 104
        %v2565 = vpop.permute.xlu0 %2564
        %v2567 = vmul.f32 %v2562, %v2565
        %v2568 = vmul.f32 %v2550, %v2124
        %v2569 = vadd.f32 %v2567, %v2568
        %2570 = vset.pattern.permute.xlu0 1
        %2571 = vperm.xlu0 %2570, %v2492
        %v2572 = vpop.permute.xlu0 %2571
        %v2574 = vmul.f32 %v2124, %v2572
        %2575 = vset.pattern.permute.xlu0 1
        %2576 = vperm.xlu0 %2575, %v2227
        %v2577 = vpop.permute.xlu0 %2576
        %v2579 = vmul.f32 %v2569, %v2577
        %v2580 = vadd.f32 %v2574, %v2579
        %v2581 = vmul.f32 %v2256, %v2505
        %v2582 = vmul.f32 %v2261, %v2580
        %v2583 = vadd.f32 %v2581, %v2582
        %v2584 = vsub.f32 1.0, %v2229
        %2586 = vrot.lane.b32.xlu0 %v2583, 104
        %v2587 = vpop.permute.xlu0 %2586
        %v2588 = vsel %vm1100, %v2587, 0
        %2590 = vmatpush.msra.mxu0 0.0
        %2591 = vmatpush.msra.mxu0 0.0
        %2592 = vmatpush.msra.mxu0 0.0
        %2593 = vmatpush.msra.mxu0 0.0
        %2594 = vmatpush.msra.mxu0 0.0
        %2595 = vmatpush.msra.mxu0 0.0
        %2596 = vmatpush.msra.mxu0 0.0
        %2597 = vmatpush.msra.mxu0 0.0
        %2598 = vmatpush.msra.mxu0 0.0
        %2599 = vmatpush.msra.mxu0 0.0
        %2600 = vmatpush.msra.mxu0 0.0
        %2601 = vmatpush.msra.mxu0 0.0
        %2602 = vmatpush.msra.mxu0 0.0
        %2603 = vmatpush.msra.mxu0 %v950
        %2604 = vmatpush.msra.mxu0 %v949
        %2605 = vmatpush.msra.mxu0 %v948
        %2606 = vmatmul.f32.gmra.mxu0 %v2588
        %v2607 = vpop.f32.mrf.mxu0
        %v2608 = vadd.f32 %v1223, %v2607
        %2609 = vdwg.mxu0
        %2611 = vset.pattern.permute.xlu0 1
        %2612 = vperm.xlu0 %2611, %v2584
        %v2613 = vpop.permute.xlu0 %2612
        %v2615 = vmul.f32 %v2613, %v2193
        %v2617 = vsel %vm1256, %v2615, 0
        %2619 = vmatpush.msra.mxu0 0.0
        %2620 = vmatpush.msra.mxu0 0.0
        %2621 = vmatpush.msra.mxu0 0.0
        %2622 = vmatpush.msra.mxu0 0.0
        %2623 = vmatpush.msra.mxu0 0.0
        %2624 = vmatpush.msra.mxu0 0.0
        %2625 = vmatpush.msra.mxu0 0.0
        %2626 = vmatpush.msra.mxu0 0.0
        %2627 = vmatpush.msra.mxu0 0.0
        %2628 = vmatpush.msra.mxu0 0.0
        %2629 = vmatpush.msra.mxu0 0.0
        %2630 = vmatpush.msra.mxu0 0.0
        %2631 = vmatpush.msra.mxu0 0.0
        %2632 = vmatpush.msra.mxu0 0.0
        %2633 = vmatpush.msra.mxu0 %v953
        %2634 = vmatpush.msra.mxu0 %v952
        %2635 = vmatmul.f32.gmra.mxu0 %v2617
        %v2636 = vpop.f32.mrf.mxu0
        %v2637 = vadd.f32 0.0, %v2636
        %2638 = vdwg.mxu0
        %v2639 = vadd.f32 %v2608, %v2637
        %v2640 = vadd.f32 %v2639, %v1282
        %v2641 = vtanh.pop %v2640
        %v2642 = vsub.f32 1.0, %v2584
        %2644 = vset.pattern.permute.xlu0 1
        %2645 = vperm.xlu0 %2644, %v2642
        %v2646 = vpop.permute.xlu0 %2645
        %v2648 = vmul.f32 %v2646, %v2641
        %v2649 = vadd.f32 %v2615, %v2648
        %v2651 = vsel %vm1256, %v2649, 0
        %2653 = vmatpush.msra.mxu0 0.0
        %2654 = vmatpush.msra.mxu0 0.0
        %2655 = vmatpush.msra.mxu0 0.0
        %2656 = vmatpush.msra.mxu0 0.0
        %2657 = vmatpush.msra.mxu0 0.0
        %2658 = vmatpush.msra.mxu0 0.0
        %2659 = vmatpush.msra.mxu0 0.0
        %2660 = vmatpush.msra.mxu0 0.0
        %2661 = vmatpush.msra.mxu0 0.0
        %2662 = vmatpush.msra.mxu0 0.0
        %2663 = vmatpush.msra.mxu0 0.0
        %2664 = vmatpush.msra.mxu0 0.0
        %2665 = vmatpush.msra.mxu0 0.0
        %2666 = vmatpush.msra.mxu0 0.0
        %2667 = vmatpush.msra.mxu0 %v957
        %2668 = vmatpush.msra.mxu0 %v956
        %2669 = vmatmul.f32.gmra.mxu0 %v2651
        %v2670 = vpop.f32.mrf.mxu0
        %v2671 = vadd.f32 %v1295, %v2670
        %2672 = vdwg.mxu0
        %v2674 = vrot.slane %v2671, 1
        %2676 = vst.msk [vmem:[%s923 + $0x3] sm:$0x1] %vm1323, %v2671
        %2677 = vst.msk [vmem:[%s923 + $0xb] sm:$0x1] %vm1323, %v2674
        %s2678 = scalar_lea.vmem %s890, 8
        %v2679 = vld [vmem:[%s2678] sm:$0x3]
        %s2680 = scalar_lea.vmem %s1, 8
        %v2681 = vld [vmem:[%s2680] sm:$0x3]
        %s2682 = scalar_lea.vmem %s2, 8
        %v2683 = vld [vmem:[%s2682] sm:$0x3]
        %s2684 = scalar_lea.vmem %s3, 8
        %v2685 = vld [vmem:[%s2684] sm:$0x3]
        %v2686 = vsel %vm965, %v2683, -inf
        %2687 = vmax.xlane.f32.xlu0 %v2686
        %v2688 = vpop.xlane.xlu0 %2687
        %vm2689 = vcmp.eq.f32.partialorder %v2683, %v2688
        %v2690 = vsel %vm2689, %v960, 2
        %v2691 = vsel %vm965, %v2690, 2147483647
        %v2692 = vand.u32 %v2691, 65535
        %v2693 = vshra.s32 %v2691, 16
        %v2694 = vcvt.s32.f32 %v2692
        %v2695 = vcvt.s32.f32 %v2693
        %2696 = vmin.xlane.f32.xlu0 %v2695
        %v2697 = vpop.xlane.xlu0 %2696
        %vm2698 = vcmp.eq.f32.partialorder %v2695, %v2697
        %v2699 = vsel %vm2698, %v2694, inf
        %2700 = vmin.xlane.f32.xlu0 %v2699
        %v2701 = vpop.xlane.xlu0 %2700
        %v2702 = vcvt.f32.s32 %v2701
        %v2703 = vcvt.f32.s32 %v2697
        %v2704 = vshll.u32 %v2703, 16
        %v2705 = vadd.s32 %v2704, %v2702
        %vm2706 = vcmp.eq.s32.totalorder %v960, %v2705
        %v2707 = vsel %vm2706, 1, 0
        %v2708 = vcvt.s32.f32 %v2707
        %2710 = vset.pattern.permute.xlu0 0
        %2711 = vperm.xlu0 %2710, %v2708
        %v2712 = vpop.permute.xlu0 %2711
        %v2714 = vmul.f32 %v2712, %v2505
        %2715 = vset.pattern.permute.xlu0 1
        %2716 = vperm.xlu0 %2715, %v2708
        %v2717 = vpop.permute.xlu0 %2716
        %v2719 = vmul.f32 %v2717, %v2580
        %v2720 = vadd.f32 %v2714, %v2719
        %2722 = vrot.lane.b32.xlu0 %v2720, 124
        %v2723 = vpop.permute.xlu0 %2722
        %v2725 = vsel %vm1001, %v2681, %v2723
        %v2727 = vsel %vm1006, %v2725, 0
        %2729 = vmatpush.msra.mxu0 0.0
        %2730 = vmatpush.msra.mxu0 0.0
        %2731 = vmatpush.msra.mxu0 0.0
        %2732 = vmatpush.msra.mxu0 0.0
        %2733 = vmatpush.msra.mxu0 0.0
        %2734 = vmatpush.msra.mxu0 0.0
        %2735 = vmatpush.msra.mxu0 0.0
        %2736 = vmatpush.msra.mxu0 0.0
        %2737 = vmatpush.msra.mxu0 0.0
        %2738 = vmatpush.msra.mxu0 0.0
        %2739 = vmatpush.msra.mxu0 %v1012
        %2740 = vmatpush.msra.mxu0 %v928
        %2741 = vmatpush.msra.mxu0 %v927
        %2742 = vmatpush.msra.mxu0 %v926
        %2743 = vmatpush.msra.mxu0 %v925
        %2744 = vmatpush.msra.mxu0 %v924
        %2745 = vmatmul.f32.gmra.mxu0 %v2727
        %v2746 = vpop.f32.mrf.mxu0
        %v2747 = vadd.f32 %v1004, %v2746
        %2748 = vdwg.mxu0
        %2750 = vrot.lane.b32.xlu0 %v2356, 96
        %v2751 = vpop.permute.xlu0 %2750
        %v2752 = vsel %vm1037, %v2751, 0
        %2754 = vmatpush.msra.mxu0 0.0
        %2755 = vmatpush.msra.mxu0 0.0
        %2756 = vmatpush.msra.mxu0 0.0
        %2757 = vmatpush.msra.mxu0 0.0
        %2758 = vmatpush.msra.mxu0 0.0
        %2759 = vmatpush.msra.mxu0 0.0
        %2760 = vmatpush.msra.mxu0 0.0
        %2761 = vmatpush.msra.mxu0 0.0
        %2762 = vmatpush.msra.mxu0 0.0
        %2763 = vmatpush.msra.mxu0 0.0
        %2764 = vmatpush.msra.mxu0 0.0
        %2765 = vmatpush.msra.mxu0 0.0
        %2766 = vmatpush.msra.mxu0 %v933
        %2767 = vmatpush.msra.mxu0 %v932
        %2768 = vmatpush.msra.mxu0 %v931
        %2769 = vmatpush.msra.mxu0 %v930
        %2770 = vmatmul.f32.gmra.mxu0 %v2752
        %v2771 = vpop.f32.mrf.mxu0
        %v2772 = vadd.f32 %v1035, %v2771
        %2773 = vdwg.mxu0
        %v2774 = vadd.f32 %v2747, %v2772
        %v2775 = vxor.u32 %v2774, 2147483648
        %v2776 = vmul.f32 %v2775, 1.442695
        %v2777 = vpow.pop %v2776
        %v2778 = vadd.f32 %v2777, 1.0
        %v2779 = vrcp.pop %v2778
        %v2780 = vmul.f32 %v2778, %v2779
        %v2781 = vsub.f32 1.0, %v2780
        %v2782 = vmul.f32 %v2779, %v2781
        %v2783 = vadd.f32 %v2779, %v2782
        %vm2784 = vweird.f32 %v2778
        %vm2785 = vweird.f32 %v2779
        %vm2786 = vmor %vm2784, %vm2785
        %v2787 = vsel %vm2786, %v2779, %v2783
        %v2788 = vand.u32 2147483647, %v2778
        %vm2789 = vcmp.eq.f32.partialorder %v2788, 8.507059e+37
        %v2790 = vand.u32 %v2778, 2147483648
        %v2791 = vor.u32 1.1754944e-38, %v2790
        %v2792 = vsel %vm2789, %v2791, %v2787
        %v2793 = vmul.f32 1.0, %v2792
        %2795 = vrot.lane.b32.xlu0 %v2772, 64
        %v2796 = vpop.permute.xlu0 %2795
        %v2798 = vmul.f32 %v2793, %v2796
        %2800 = vrot.lane.b32.xlu0 %v2798, 64
        %v2801 = vpop.permute.xlu0 %2800
        %v2803 = vadd.f32 %v2747, %v2801
        %v2804 = vtanh.pop %v2803
        %v2805 = vsub.f32 1.0, %v2793
        %2807 = vrot.lane.b32.xlu0 %v2804, 96
        %v2808 = vpop.permute.xlu0 %2807
        %v2810 = vmul.f32 %v2805, %v2808
        %v2811 = vmul.f32 %v2793, %v2356
        %v2812 = vadd.f32 %v2810, %v2811
        %v2813 = vmul.f32 %v2356, %v1464
        %2815 = vrot.lane.b32.xlu0 %v2813, 96
        %v2816 = vpop.permute.xlu0 %2815
        %v2818 = vsel %vm1471, %v2816, 0.0
        %2819 = vadd.xlane.f32.xlu0 %v2818
        %v2820 = vpop.xlane.xlu0 %2819
        %v2821 = vmax.f32 %v2365, %v2820
        %v2822 = vsub.f32 %v1474, %v2821
        %v2823 = vmul.f32 %v2822, 1.442695
        %v2824 = vpow.pop %v2823
        %v2825 = vsub.f32 %v1915, %v2821
        %v2826 = vmul.f32 %v2825, 1.442695
        %v2827 = vpow.pop %v2826
        %v2828 = vsub.f32 %v2364, %v2821
        %v2829 = vmul.f32 %v2828, 1.442695
        %v2830 = vpow.pop %v2829
        %v2831 = vsub.f32 %v2820, %v2821
        %v2832 = vmul.f32 %v2831, 1.442695
        %v2833 = vpow.pop %v2832
        %v2834 = vadd.f32 %v2824, %v2827
        %v2835 = vadd.f32 %v2834, %v2830
        %v2836 = vadd.f32 %v2835, %v2833
        %v2837 = vrcp.pop %v2836
        %v2838 = vmul.f32 %v2836, %v2837
        %v2839 = vsub.f32 1.0, %v2838
        %v2840 = vmul.f32 %v2837, %v2839
        %v2841 = vadd.f32 %v2837, %v2840
        %vm2842 = vweird.f32 %v2836
        %vm2843 = vweird.f32 %v2837
        %vm2844 = vmor %vm2842, %vm2843
        %v2845 = vsel %vm2844, %v2837, %v2841
        %v2846 = vand.u32 2147483647, %v2836
        %vm2847 = vcmp.eq.f32.partialorder %v2846, 8.507059e+37
        %v2848 = vand.u32 %v2836, 2147483648
        %v2849 = vor.u32 1.1754944e-38, %v2848
        %v2850 = vsel %vm2847, %v2849, %v2845
        %v2851 = vmul.f32 1.0, %v2850
        %v2852 = vmul.f32 %v2824, %v2851
        %v2853 = vmul.f32 %v2852, %v1099
        %v2854 = vmul.f32 %v2827, %v2851
        %v2855 = vmul.f32 %v2854, %v1460
        %v2856 = vadd.f32 %v2853, %v2855
        %v2857 = vmul.f32 %v2830, %v2851
        %v2858 = vmul.f32 %v2857, %v1907
        %v2859 = vadd.f32 %v2856, %v2858
        %v2860 = vmul.f32 %v2833, %v2851
        %v2861 = vmul.f32 %v2860, %v2356
        %v2862 = vadd.f32 %v2859, %v2861
        %2864 = vrot.lane.b32.xlu0 %v2862, 120
        %v2865 = vpop.permute.xlu0 %2864
        %v2867 = vsel %vm1100, %v2679, %v2865
        %v2869 = vsel %vm1105, %v2867, 0
        %2871 = vmatpush.msra.mxu0 0.0
        %2872 = vmatpush.msra.mxu0 0.0
        %2873 = vmatpush.msra.mxu0 0.0
        %2874 = vmatpush.msra.mxu0 0.0
        %2875 = vmatpush.msra.mxu0 0.0
        %2876 = vmatpush.msra.mxu0 0.0
        %2877 = vmatpush.msra.mxu0 0.0
        %2878 = vmatpush.msra.mxu0 0.0
        %2879 = vmatpush.msra.mxu0 0.0
        %2880 = vmatpush.msra.mxu0 %v942
        %2881 = vmatpush.msra.mxu0 %v941
        %2882 = vmatpush.msra.mxu0 %v940
        %2883 = vmatpush.msra.mxu0 %v939
        %2884 = vmatpush.msra.mxu0 %v938
        %2885 = vmatpush.msra.mxu0 %v937
        %2886 = vmatpush.msra.mxu0 %v936
        %2887 = vmatmul.f32.gmra.mxu0 %v2869
        %v2888 = vpop.f32.mrf.mxu0
        %v2889 = vadd.f32 %v1103, %v2888
        %2890 = vdwg.mxu0
        %2892 = vrot.lane.b32.xlu0 %v2505, 104
        %v2893 = vpop.permute.xlu0 %2892
        %v2894 = vsel %vm1100, %v2893, 0
        %2896 = vmatpush.msra.mxu0 0.0
        %2897 = vmatpush.msra.mxu0 0.0
        %2898 = vmatpush.msra.mxu0 0.0
        %2899 = vmatpush.msra.mxu0 0.0
        %2900 = vmatpush.msra.mxu0 0.0
        %2901 = vmatpush.msra.mxu0 0.0
        %2902 = vmatpush.msra.mxu0 0.0
        %2903 = vmatpush.msra.mxu0 0.0
        %2904 = vmatpush.msra.mxu0 0.0
        %2905 = vmatpush.msra.mxu0 0.0
        %2906 = vmatpush.msra.mxu0 0.0
        %2907 = vmatpush.msra.mxu0 0.0
        %2908 = vmatpush.msra.mxu0 0.0
        %2909 = vmatpush.msra.mxu0 %v945
        %2910 = vmatpush.msra.mxu0 %v944
        %2911 = vmatpush.msra.mxu0 %v943
        %2912 = vmatmul.f32.gmra.mxu0 %v2894
        %v2913 = vpop.f32.mrf.mxu0
        %v2914 = vadd.f32 %v1130, %v2913
        %2915 = vdwg.mxu0
        %v2916 = vadd.f32 %v2889, %v2914
        %v2917 = vxor.u32 %v2916, 2147483648
        %v2918 = vmul.f32 %v2917, 1.442695
        %v2919 = vpow.pop %v2918
        %v2920 = vadd.f32 %v2919, 1.0
        %v2921 = vrcp.pop %v2920
        %v2922 = vmul.f32 %v2920, %v2921
        %v2923 = vsub.f32 1.0, %v2922
        %v2924 = vmul.f32 %v2921, %v2923
        %v2925 = vadd.f32 %v2921, %v2924
        %vm2926 = vweird.f32 %v2920
        %vm2927 = vweird.f32 %v2921
        %vm2928 = vmor %vm2926, %vm2927
        %v2929 = vsel %vm2928, %v2921, %v2925
        %v2930 = vand.u32 2147483647, %v2920
        %vm2931 = vcmp.eq.f32.partialorder %v2930, 8.507059e+37
        %v2932 = vand.u32 %v2920, 2147483648
        %v2933 = vor.u32 1.1754944e-38, %v2932
        %v2934 = vsel %vm2931, %v2933, %v2929
        %v2935 = vmul.f32 1.0, %v2934
        %2937 = vrot.lane.b32.xlu0 %v2914, 80
        %v2938 = vpop.permute.xlu0 %2937
        %v2940 = vmul.f32 %v2935, %v2938
        %2942 = vrot.lane.b32.xlu0 %v2940, 48
        %v2943 = vpop.permute.xlu0 %2942
        %v2945 = vadd.f32 %v2889, %v2943
        %v2946 = vtanh.pop %v2945
        %v2947 = vsub.f32 1.0, %v2935
        %2949 = vrot.lane.b32.xlu0 %v2946, 104
        %v2950 = vpop.permute.xlu0 %2949
        %v2952 = vmul.f32 %v2947, %v2950
        %v2953 = vmul.f32 %v2935, %v2505
        %v2954 = vadd.f32 %v2952, %v2953
        %v2955 = vsub.f32 1.0, %v2683
        %2957 = vset.pattern.permute.xlu0 0
        %2958 = vperm.xlu0 %2957, %v2955
        %v2959 = vpop.permute.xlu0 %2958
        %v2961 = vmul.f32 %v2505, %v2959
        %2963 = vset.pattern.permute.xlu0 0
        %2964 = vperm.xlu0 %2963, %v2683
        %v2965 = vpop.permute.xlu0 %2964
        %v2967 = vmul.f32 %v2954, %v2965
        %v2968 = vadd.f32 %v2961, %v2967
        %2970 = vrot.lane.b32.xlu0 %v2580, 104
        %v2971 = vpop.permute.xlu0 %2970
        %v2972 = vsel %vm1100, %v2971, 0
        %2974 = vmatpush.msra.mxu0 0.0
        %2975 = vmatpush.msra.mxu0 0.0
        %2976 = vmatpush.msra.mxu0 0.0
        %2977 = vmatpush.msra.mxu0 0.0
        %2978 = vmatpush.msra.mxu0 0.0
        %2979 = vmatpush.msra.mxu0 0.0
        %2980 = vmatpush.msra.mxu0 0.0
        %2981 = vmatpush.msra.mxu0 0.0
        %2982 = vmatpush.msra.mxu0 0.0
        %2983 = vmatpush.msra.mxu0 0.0
        %2984 = vmatpush.msra.mxu0 0.0
        %2985 = vmatpush.msra.mxu0 0.0
        %2986 = vmatpush.msra.mxu0 0.0
        %2987 = vmatpush.msra.mxu0 %v945
        %2988 = vmatpush.msra.mxu0 %v944
        %2989 = vmatpush.msra.mxu0 %v943
        %2990 = vmatmul.f32.gmra.mxu0 %v2972
        %v2991 = vpop.f32.mrf.mxu0
        %v2992 = vadd.f32 %v1130, %v2991
        %2993 = vdwg.mxu0
        %v2994 = vadd.f32 %v2889, %v2992
        %v2995 = vxor.u32 %v2994, 2147483648
        %v2996 = vmul.f32 %v2995, 1.442695
        %v2997 = vpow.pop %v2996
        %v2998 = vadd.f32 %v2997, 1.0
        %v2999 = vrcp.pop %v2998
        %v3000 = vmul.f32 %v2998, %v2999
        %v3001 = vsub.f32 1.0, %v3000
        %v3002 = vmul.f32 %v2999, %v3001
        %v3003 = vadd.f32 %v2999, %v3002
        %vm3004 = vweird.f32 %v2998
        %vm3005 = vweird.f32 %v2999
        %vm3006 = vmor %vm3004, %vm3005
        %v3007 = vsel %vm3006, %v2999, %v3003
        %v3008 = vand.u32 2147483647, %v2998
        %vm3009 = vcmp.eq.f32.partialorder %v3008, 8.507059e+37
        %v3010 = vand.u32 %v2998, 2147483648
        %v3011 = vor.u32 1.1754944e-38, %v3010
        %v3012 = vsel %vm3009, %v3011, %v3007
        %v3013 = vmul.f32 1.0, %v3012
        %3015 = vrot.lane.b32.xlu0 %v2992, 80
        %v3016 = vpop.permute.xlu0 %3015
        %v3018 = vmul.f32 %v3013, %v3016
        %3020 = vrot.lane.b32.xlu0 %v3018, 48
        %v3021 = vpop.permute.xlu0 %3020
        %v3023 = vadd.f32 %v2889, %v3021
        %v3024 = vtanh.pop %v3023
        %v3025 = vsub.f32 1.0, %v3013
        %3027 = vrot.lane.b32.xlu0 %v3024, 104
        %v3028 = vpop.permute.xlu0 %3027
        %v3030 = vmul.f32 %v3025, %v3028
        %v3031 = vmul.f32 %v3013, %v2580
        %v3032 = vadd.f32 %v3030, %v3031
        %3033 = vset.pattern.permute.xlu0 1
        %3034 = vperm.xlu0 %3033, %v2955
        %v3035 = vpop.permute.xlu0 %3034
        %v3037 = vmul.f32 %v2580, %v3035
        %3038 = vset.pattern.permute.xlu0 1
        %3039 = vperm.xlu0 %3038, %v2683
        %v3040 = vpop.permute.xlu0 %3039
        %v3042 = vmul.f32 %v3032, %v3040
        %v3043 = vadd.f32 %v3037, %v3042
        %v3044 = vmul.f32 %v2712, %v2968
        %v3045 = vmul.f32 %v2717, %v3043
        %v3046 = vadd.f32 %v3044, %v3045
        %v3047 = vsub.f32 1.0, %v2685
        %3049 = vrot.lane.b32.xlu0 %v3046, 104
        %v3050 = vpop.permute.xlu0 %3049
        %v3051 = vsel %vm1100, %v3050, 0
        %3053 = vmatpush.msra.mxu0 0.0
        %3054 = vmatpush.msra.mxu0 0.0
        %3055 = vmatpush.msra.mxu0 0.0
        %3056 = vmatpush.msra.mxu0 0.0
        %3057 = vmatpush.msra.mxu0 0.0
        %3058 = vmatpush.msra.mxu0 0.0
        %3059 = vmatpush.msra.mxu0 0.0
        %3060 = vmatpush.msra.mxu0 0.0
        %3061 = vmatpush.msra.mxu0 0.0
        %3062 = vmatpush.msra.mxu0 0.0
        %3063 = vmatpush.msra.mxu0 0.0
        %3064 = vmatpush.msra.mxu0 0.0
        %3065 = vmatpush.msra.mxu0 0.0
        %3066 = vmatpush.msra.mxu0 %v950
        %3067 = vmatpush.msra.mxu0 %v949
        %3068 = vmatpush.msra.mxu0 %v948
        %3069 = vmatmul.f32.gmra.mxu0 %v3051
        %v3070 = vpop.f32.mrf.mxu0
        %v3071 = vadd.f32 %v1223, %v3070
        %3072 = vdwg.mxu0
        %3074 = vset.pattern.permute.xlu0 1
        %3075 = vperm.xlu0 %3074, %v3047
        %v3076 = vpop.permute.xlu0 %3075
        %v3078 = vmul.f32 %v3076, %v2649
        %v3080 = vsel %vm1256, %v3078, 0
        %3082 = vmatpush.msra.mxu0 0.0
        %3083 = vmatpush.msra.mxu0 0.0
        %3084 = vmatpush.msra.mxu0 0.0
        %3085 = vmatpush.msra.mxu0 0.0
        %3086 = vmatpush.msra.mxu0 0.0
        %3087 = vmatpush.msra.mxu0 0.0
        %3088 = vmatpush.msra.mxu0 0.0
        %3089 = vmatpush.msra.mxu0 0.0
        %3090 = vmatpush.msra.mxu0 0.0
        %3091 = vmatpush.msra.mxu0 0.0
        %3092 = vmatpush.msra.mxu0 0.0
        %3093 = vmatpush.msra.mxu0 0.0
        %3094 = vmatpush.msra.mxu0 0.0
        %3095 = vmatpush.msra.mxu0 0.0
        %3096 = vmatpush.msra.mxu0 %v953
        %3097 = vmatpush.msra.mxu0 %v952
        %3098 = vmatmul.f32.gmra.mxu0 %v3080
        %v3099 = vpop.f32.mrf.mxu0
        %v3100 = vadd.f32 0.0, %v3099
        %3101 = vdwg.mxu0
        %v3102 = vadd.f32 %v3071, %v3100
        %v3103 = vadd.f32 %v3102, %v1282
        %v3104 = vtanh.pop %v3103
        %v3105 = vsub.f32 1.0, %v3047
        %3107 = vset.pattern.permute.xlu0 1
        %3108 = vperm.xlu0 %3107, %v3105
        %v3109 = vpop.permute.xlu0 %3108
        %v3111 = vmul.f32 %v3109, %v3104
        %v3112 = vadd.f32 %v3078, %v3111
        %v3114 = vsel %vm1256, %v3112, 0
        %3116 = vmatpush.msra.mxu0 0.0
        %3117 = vmatpush.msra.mxu0 0.0
        %3118 = vmatpush.msra.mxu0 0.0
        %3119 = vmatpush.msra.mxu0 0.0
        %3120 = vmatpush.msra.mxu0 0.0
        %3121 = vmatpush.msra.mxu0 0.0
        %3122 = vmatpush.msra.mxu0 0.0
        %3123 = vmatpush.msra.mxu0 0.0
        %3124 = vmatpush.msra.mxu0 0.0
        %3125 = vmatpush.msra.mxu0 0.0
        %3126 = vmatpush.msra.mxu0 0.0
        %3127 = vmatpush.msra.mxu0 0.0
        %3128 = vmatpush.msra.mxu0 0.0
        %3129 = vmatpush.msra.mxu0 0.0
        %3130 = vmatpush.msra.mxu0 %v957
        %3131 = vmatpush.msra.mxu0 %v956
        %3132 = vmatmul.f32.gmra.mxu0 %v3114
        %v3133 = vpop.f32.mrf.mxu0
        %v3134 = vadd.f32 %v1295, %v3133
        %3135 = vdwg.mxu0
        %v3137 = vrot.slane %v3134, 1
        %3139 = vst.msk [vmem:[%s923 + $0x4] sm:$0x1] %vm1323, %v3134
        %3140 = vst.msk [vmem:[%s923 + $0xc] sm:$0x1] %vm1323, %v3137
        %s3141 = scalar_lea.vmem %s890, 10
        %v3142 = vld [vmem:[%s3141] sm:$0x3]
        %s3143 = scalar_lea.vmem %s2, 10
        %v3144 = vld [vmem:[%s3143] sm:$0x3]
        %s3145 = scalar_lea.vmem %s3, 10
        %v3146 = vld [vmem:[%s3145] sm:$0x3]
        %v3147 = vsel %vm965, %v3144, -inf
        %3148 = vmax.xlane.f32.xlu0 %v3147
        %v3149 = vpop.xlane.xlu0 %3148
        %vm3150 = vcmp.eq.f32.partialorder %v3144, %v3149
        %v3151 = vsel %vm3150, %v960, 2
        %v3152 = vsel %vm965, %v3151, 2147483647
        %v3153 = vand.u32 %v3152, 65535
        %v3154 = vshra.s32 %v3152, 16
        %v3155 = vcvt.s32.f32 %v3153
        %v3156 = vcvt.s32.f32 %v3154
        %3157 = vmin.xlane.f32.xlu0 %v3156
        %v3158 = vpop.xlane.xlu0 %3157
        %vm3159 = vcmp.eq.f32.partialorder %v3156, %v3158
        %v3160 = vsel %vm3159, %v3155, inf
        %3161 = vmin.xlane.f32.xlu0 %v3160
        %v3162 = vpop.xlane.xlu0 %3161
        %v3163 = vcvt.f32.s32 %v3162
        %v3164 = vcvt.f32.s32 %v3158
        %v3165 = vshll.u32 %v3164, 16
        %v3166 = vadd.s32 %v3165, %v3163
        %vm3167 = vcmp.eq.s32.totalorder %v960, %v3166
        %v3168 = vsel %vm3167, 1, 0
        %v3169 = vcvt.s32.f32 %v3168
        %v3170 = vmul.f32 %v2812, %v1464
        %3172 = vrot.lane.b32.xlu0 %v3170, 96
        %v3173 = vpop.permute.xlu0 %3172
        %v3175 = vsel %vm1471, %v3173, 0.0
        %3176 = vadd.xlane.f32.xlu0 %v3175
        %v3177 = vpop.xlane.xlu0 %3176
        %v3178 = vmax.f32 %v2821, %v3177
        %v3179 = vsub.f32 %v1474, %v3178
        %v3180 = vmul.f32 %v3179, 1.442695
        %v3181 = vpow.pop %v3180
        %v3182 = vsub.f32 %v1915, %v3178
        %v3183 = vmul.f32 %v3182, 1.442695
        %v3184 = vpow.pop %v3183
        %v3185 = vsub.f32 %v2364, %v3178
        %v3186 = vmul.f32 %v3185, 1.442695
        %v3187 = vpow.pop %v3186
        %v3188 = vsub.f32 %v2820, %v3178
        %v3189 = vmul.f32 %v3188, 1.442695
        %v3190 = vpow.pop %v3189
        %v3191 = vsub.f32 %v3177, %v3178
        %v3192 = vmul.f32 %v3191, 1.442695
        %v3193 = vpow.pop %v3192
        %v3194 = vadd.f32 %v3181, %v3184
        %v3195 = vadd.f32 %v3194, %v3187
        %v3196 = vadd.f32 %v3195, %v3190
        %v3197 = vadd.f32 %v3196, %v3193
        %v3198 = vrcp.pop %v3197
        %v3199 = vmul.f32 %v3197, %v3198
        %v3200 = vsub.f32 1.0, %v3199
        %v3201 = vmul.f32 %v3198, %v3200
        %v3202 = vadd.f32 %v3198, %v3201
        %vm3203 = vweird.f32 %v3197
        %vm3204 = vweird.f32 %v3198
        %vm3205 = vmor %vm3203, %vm3204
        %v3206 = vsel %vm3205, %v3198, %v3202
        %v3207 = vand.u32 2147483647, %v3197
        %vm3208 = vcmp.eq.f32.partialorder %v3207, 8.507059e+37
        %v3209 = vand.u32 %v3197, 2147483648
        %v3210 = vor.u32 1.1754944e-38, %v3209
        %v3211 = vsel %vm3208, %v3210, %v3206
        %v3212 = vmul.f32 1.0, %v3211
        %v3213 = vmul.f32 %v3181, %v3212
        %v3214 = vmul.f32 %v3213, %v1099
        %v3215 = vmul.f32 %v3184, %v3212
        %v3216 = vmul.f32 %v3215, %v1460
        %v3217 = vadd.f32 %v3214, %v3216
        %v3218 = vmul.f32 %v3187, %v3212
        %v3219 = vmul.f32 %v3218, %v1907
        %v3220 = vadd.f32 %v3217, %v3219
        %v3221 = vmul.f32 %v3190, %v3212
        %v3222 = vmul.f32 %v3221, %v2356
        %v3223 = vadd.f32 %v3220, %v3222
        %v3224 = vmul.f32 %v3193, %v3212
        %v3225 = vmul.f32 %v3224, %v2812
        %v3226 = vadd.f32 %v3223, %v3225
        %3228 = vrot.lane.b32.xlu0 %v3226, 120
        %v3229 = vpop.permute.xlu0 %3228
        %v3231 = vsel %vm1100, %v3142, %v3229
        %v3233 = vsel %vm1105, %v3231, 0
        %3235 = vmatpush.msra.mxu0 0.0
        %3236 = vmatpush.msra.mxu0 0.0
        %3237 = vmatpush.msra.mxu0 0.0
        %3238 = vmatpush.msra.mxu0 0.0
        %3239 = vmatpush.msra.mxu0 0.0
        %3240 = vmatpush.msra.mxu0 0.0
        %3241 = vmatpush.msra.mxu0 0.0
        %3242 = vmatpush.msra.mxu0 0.0
        %3243 = vmatpush.msra.mxu0 0.0
        %3244 = vmatpush.msra.mxu0 %v942
        %3245 = vmatpush.msra.mxu0 %v941
        %3246 = vmatpush.msra.mxu0 %v940
        %3247 = vmatpush.msra.mxu0 %v939
        %3248 = vmatpush.msra.mxu0 %v938
        %3249 = vmatpush.msra.mxu0 %v937
        %3250 = vmatpush.msra.mxu0 %v936
        %3251 = vmatmul.f32.gmra.mxu0 %v3233
        %v3252 = vpop.f32.mrf.mxu0
        %v3253 = vadd.f32 %v1103, %v3252
        %3254 = vdwg.mxu0
        %3256 = vrot.lane.b32.xlu0 %v2968, 104
        %v3257 = vpop.permute.xlu0 %3256
        %v3258 = vsel %vm1100, %v3257, 0
        %3260 = vmatpush.msra.mxu0 0.0
        %3261 = vmatpush.msra.mxu0 0.0
        %3262 = vmatpush.msra.mxu0 0.0
        %3263 = vmatpush.msra.mxu0 0.0
        %3264 = vmatpush.msra.mxu0 0.0
        %3265 = vmatpush.msra.mxu0 0.0
        %3266 = vmatpush.msra.mxu0 0.0
        %3267 = vmatpush.msra.mxu0 0.0
        %3268 = vmatpush.msra.mxu0 0.0
        %3269 = vmatpush.msra.mxu0 0.0
        %3270 = vmatpush.msra.mxu0 0.0
        %3271 = vmatpush.msra.mxu0 0.0
        %3272 = vmatpush.msra.mxu0 0.0
        %3273 = vmatpush.msra.mxu0 %v945
        %3274 = vmatpush.msra.mxu0 %v944
        %3275 = vmatpush.msra.mxu0 %v943
        %3276 = vmatmul.f32.gmra.mxu0 %v3258
        %v3277 = vpop.f32.mrf.mxu0
        %v3278 = vadd.f32 %v1130, %v3277
        %3279 = vdwg.mxu0
        %v3280 = vadd.f32 %v3253, %v3278
        %v3281 = vxor.u32 %v3280, 2147483648
        %v3282 = vmul.f32 %v3281, 1.442695
        %v3283 = vpow.pop %v3282
        %v3284 = vadd.f32 %v3283, 1.0
        %v3285 = vrcp.pop %v3284
        %v3286 = vmul.f32 %v3284, %v3285
        %v3287 = vsub.f32 1.0, %v3286
        %v3288 = vmul.f32 %v3285, %v3287
        %v3289 = vadd.f32 %v3285, %v3288
        %vm3290 = vweird.f32 %v3284
        %vm3291 = vweird.f32 %v3285
        %vm3292 = vmor %vm3290, %vm3291
        %v3293 = vsel %vm3292, %v3285, %v3289
        %v3294 = vand.u32 2147483647, %v3284
        %vm3295 = vcmp.eq.f32.partialorder %v3294, 8.507059e+37
        %v3296 = vand.u32 %v3284, 2147483648
        %v3297 = vor.u32 1.1754944e-38, %v3296
        %v3298 = vsel %vm3295, %v3297, %v3293
        %v3299 = vmul.f32 1.0, %v3298
        %3301 = vrot.lane.b32.xlu0 %v3278, 80
        %v3302 = vpop.permute.xlu0 %3301
        %v3304 = vmul.f32 %v3299, %v3302
        %3306 = vrot.lane.b32.xlu0 %v3304, 48
        %v3307 = vpop.permute.xlu0 %3306
        %v3309 = vadd.f32 %v3253, %v3307
        %v3310 = vtanh.pop %v3309
        %v3311 = vsub.f32 1.0, %v3299
        %3313 = vrot.lane.b32.xlu0 %v3310, 104
        %v3314 = vpop.permute.xlu0 %3313
        %v3316 = vmul.f32 %v3311, %v3314
        %v3317 = vmul.f32 %v3299, %v2968
        %v3318 = vadd.f32 %v3316, %v3317
        %v3319 = vsub.f32 1.0, %v3144
        %3321 = vset.pattern.permute.xlu0 0
        %3322 = vperm.xlu0 %3321, %v3319
        %v3323 = vpop.permute.xlu0 %3322
        %v3325 = vmul.f32 %v2968, %v3323
        %3327 = vset.pattern.permute.xlu0 0
        %3328 = vperm.xlu0 %3327, %v3144
        %v3329 = vpop.permute.xlu0 %3328
        %v3331 = vmul.f32 %v3318, %v3329
        %v3332 = vadd.f32 %v3325, %v3331
        %3334 = vrot.lane.b32.xlu0 %v3043, 104
        %v3335 = vpop.permute.xlu0 %3334
        %v3336 = vsel %vm1100, %v3335, 0
        %3338 = vmatpush.msra.mxu0 0.0
        %3339 = vmatpush.msra.mxu0 0.0
        %3340 = vmatpush.msra.mxu0 0.0
        %3341 = vmatpush.msra.mxu0 0.0
        %3342 = vmatpush.msra.mxu0 0.0
        %3343 = vmatpush.msra.mxu0 0.0
        %3344 = vmatpush.msra.mxu0 0.0
        %3345 = vmatpush.msra.mxu0 0.0
        %3346 = vmatpush.msra.mxu0 0.0
        %3347 = vmatpush.msra.mxu0 0.0
        %3348 = vmatpush.msra.mxu0 0.0
        %3349 = vmatpush.msra.mxu0 0.0
        %3350 = vmatpush.msra.mxu0 0.0
        %3351 = vmatpush.msra.mxu0 %v945
        %3352 = vmatpush.msra.mxu0 %v944
        %3353 = vmatpush.msra.mxu0 %v943
        %3354 = vmatmul.f32.gmra.mxu0 %v3336
        %v3355 = vpop.f32.mrf.mxu0
        %v3356 = vadd.f32 %v1130, %v3355
        %3357 = vdwg.mxu0
        %v3358 = vadd.f32 %v3253, %v3356
        %v3359 = vxor.u32 %v3358, 2147483648
        %v3360 = vmul.f32 %v3359, 1.442695
        %v3361 = vpow.pop %v3360
        %v3362 = vadd.f32 %v3361, 1.0
        %v3363 = vrcp.pop %v3362
        %v3364 = vmul.f32 %v3362, %v3363
        %v3365 = vsub.f32 1.0, %v3364
        %v3366 = vmul.f32 %v3363, %v3365
        %v3367 = vadd.f32 %v3363, %v3366
        %vm3368 = vweird.f32 %v3362
        %vm3369 = vweird.f32 %v3363
        %vm3370 = vmor %vm3368, %vm3369
        %v3371 = vsel %vm3370, %v3363, %v3367
        %v3372 = vand.u32 2147483647, %v3362
        %vm3373 = vcmp.eq.f32.partialorder %v3372, 8.507059e+37
        %v3374 = vand.u32 %v3362, 2147483648
        %v3375 = vor.u32 1.1754944e-38, %v3374
        %v3376 = vsel %vm3373, %v3375, %v3371
        %v3377 = vmul.f32 1.0, %v3376
        %3379 = vrot.lane.b32.xlu0 %v3356, 80
        %v3380 = vpop.permute.xlu0 %3379
        %v3382 = vmul.f32 %v3377, %v3380
        %3384 = vrot.lane.b32.xlu0 %v3382, 48
        %v3385 = vpop.permute.xlu0 %3384
        %v3387 = vadd.f32 %v3253, %v3385
        %v3388 = vtanh.pop %v3387
        %v3389 = vsub.f32 1.0, %v3377
        %3391 = vrot.lane.b32.xlu0 %v3388, 104
        %v3392 = vpop.permute.xlu0 %3391
        %v3394 = vmul.f32 %v3389, %v3392
        %v3395 = vmul.f32 %v3377, %v3043
        %v3396 = vadd.f32 %v3394, %v3395
        %3397 = vset.pattern.permute.xlu0 1
        %3398 = vperm.xlu0 %3397, %v3319
        %v3399 = vpop.permute.xlu0 %3398
        %v3401 = vmul.f32 %v3043, %v3399
        %3402 = vset.pattern.permute.xlu0 1
        %3403 = vperm.xlu0 %3402, %v3144
        %v3404 = vpop.permute.xlu0 %3403
        %v3406 = vmul.f32 %v3396, %v3404
        %v3407 = vadd.f32 %v3401, %v3406
        %3409 = vset.pattern.permute.xlu0 0
        %3410 = vperm.xlu0 %3409, %v3169
        %v3411 = vpop.permute.xlu0 %3410
        %v3413 = vmul.f32 %v3411, %v3332
        %3414 = vset.pattern.permute.xlu0 1
        %3415 = vperm.xlu0 %3414, %v3169
        %v3416 = vpop.permute.xlu0 %3415
        %v3418 = vmul.f32 %v3416, %v3407
        %v3419 = vadd.f32 %v3413, %v3418
        %v3420 = vsub.f32 1.0, %v3146
        %3422 = vrot.lane.b32.xlu0 %v3419, 104
        %v3423 = vpop.permute.xlu0 %3422
        %v3424 = vsel %vm1100, %v3423, 0
        %3426 = vmatpush.msra.mxu0 0.0
        %3427 = vmatpush.msra.mxu0 0.0
        %3428 = vmatpush.msra.mxu0 0.0
        %3429 = vmatpush.msra.mxu0 0.0
        %3430 = vmatpush.msra.mxu0 0.0
        %3431 = vmatpush.msra.mxu0 0.0
        %3432 = vmatpush.msra.mxu0 0.0
        %3433 = vmatpush.msra.mxu0 0.0
        %3434 = vmatpush.msra.mxu0 0.0
        %3435 = vmatpush.msra.mxu0 0.0
        %3436 = vmatpush.msra.mxu0 0.0
        %3437 = vmatpush.msra.mxu0 0.0
        %3438 = vmatpush.msra.mxu0 0.0
        %3439 = vmatpush.msra.mxu0 %v950
        %3440 = vmatpush.msra.mxu0 %v949
        %3441 = vmatpush.msra.mxu0 %v948
        %3442 = vmatmul.f32.gmra.mxu0 %v3424
        %v3443 = vpop.f32.mrf.mxu0
        %v3444 = vadd.f32 %v1223, %v3443
        %3445 = vdwg.mxu0
        %3447 = vset.pattern.permute.xlu0 1
        %3448 = vperm.xlu0 %3447, %v3420
        %v3449 = vpop.permute.xlu0 %3448
        %v3451 = vmul.f32 %v3449, %v3112
        %v3453 = vsel %vm1256, %v3451, 0
        %3455 = vmatpush.msra.mxu0 0.0
        %3456 = vmatpush.msra.mxu0 0.0
        %3457 = vmatpush.msra.mxu0 0.0
        %3458 = vmatpush.msra.mxu0 0.0
        %3459 = vmatpush.msra.mxu0 0.0
        %3460 = vmatpush.msra.mxu0 0.0
        %3461 = vmatpush.msra.mxu0 0.0
        %3462 = vmatpush.msra.mxu0 0.0
        %3463 = vmatpush.msra.mxu0 0.0
        %3464 = vmatpush.msra.mxu0 0.0
        %3465 = vmatpush.msra.mxu0 0.0
        %3466 = vmatpush.msra.mxu0 0.0
        %3467 = vmatpush.msra.mxu0 0.0
        %3468 = vmatpush.msra.mxu0 0.0
        %3469 = vmatpush.msra.mxu0 %v953
        %3470 = vmatpush.msra.mxu0 %v952
        %3471 = vmatmul.f32.gmra.mxu0 %v3453
        %v3472 = vpop.f32.mrf.mxu0
        %v3473 = vadd.f32 0.0, %v3472
        %3474 = vdwg.mxu0
        %v3475 = vadd.f32 %v3444, %v3473
        %v3476 = vadd.f32 %v3475, %v1282
        %v3477 = vtanh.pop %v3476
        %v3478 = vsub.f32 1.0, %v3420
        %3480 = vset.pattern.permute.xlu0 1
        %3481 = vperm.xlu0 %3480, %v3478
        %v3482 = vpop.permute.xlu0 %3481
        %v3484 = vmul.f32 %v3482, %v3477
        %v3485 = vadd.f32 %v3451, %v3484
        %v3487 = vsel %vm1256, %v3485, 0
        %3489 = vmatpush.msra.mxu0 0.0
        %3490 = vmatpush.msra.mxu0 0.0
        %3491 = vmatpush.msra.mxu0 0.0
        %3492 = vmatpush.msra.mxu0 0.0
        %3493 = vmatpush.msra.mxu0 0.0
        %3494 = vmatpush.msra.mxu0 0.0
        %3495 = vmatpush.msra.mxu0 0.0
        %3496 = vmatpush.msra.mxu0 0.0
        %3497 = vmatpush.msra.mxu0 0.0
        %3498 = vmatpush.msra.mxu0 0.0
        %3499 = vmatpush.msra.mxu0 0.0
        %3500 = vmatpush.msra.mxu0 0.0
        %3501 = vmatpush.msra.mxu0 0.0
        %3502 = vmatpush.msra.mxu0 0.0
        %3503 = vmatpush.msra.mxu0 %v957
        %3504 = vmatpush.msra.mxu0 %v956
        %3505 = vmatmul.f32.gmra.mxu0 %v3487
        %v3506 = vpop.f32.mrf.mxu0
        %v3507 = vadd.f32 %v1295, %v3506
        %3508 = vdwg.mxu0
        %v3510 = vrot.slane %v3507, 1
        %3512 = vst.msk [vmem:[%s923 + $0x5] sm:$0x1] %vm1323, %v3507
        %3513 = vst.msk [vmem:[%s923 + $0xd] sm:$0x1] %vm1323, %v3510
        %p3514 = scmp.lt.s32.totalorder %s39, 2
        %s3515 = scalar_select %p3514, %s39, 2
        %s3516 = smul.addr %s3515, 2
        %s3517 = smul.addr %s3516, 8
        %s3518 = scalar_lea.vmem %s19, %s3517
        // Predicated region
        $region117: #{regression_forward.2} parent=95 // pred_check
          %p3519 = pneg %p526
        $region118: #{regression_forward.2} parent=95 // pred_check_branch
          %3521 = sbr.rel (%p3519) target = $region120
        $region119: #{regression_forward.2} parent=95 // pred_region
          _
        $region120: #{regression_forward.2} parent=95 // pred_fallthru
          _
      $region96: #{regression_forward.2} parent=5 // pred_fallthru
        _
      %p3522 = scmp.le.s32.totalorder 2, %s34
      // Predicated region
      $region121: #{regression_forward.2} parent=5 // pred_check
        %p3523 = pneg %p3522
      $region122: #{regression_forward.2} parent=5 // pred_check_branch
        %3525 = sbr.rel (%p3523) target = $region124
      $region123: #{regression_forward.2} parent=5 // pred_region
        %s3526 = ssub.s32 %s34, 2
        // Predicated region
        $region125: #{regression_forward.2} parent=123 // pred_check
          %p3527 = pneg %p532
        $region126: #{regression_forward.2} parent=123 // pred_check_branch
          %3529 = sbr.rel (%p3527) target = $region128
        $region127: #{regression_forward.2} parent=123 // pred_region
          %p3530 = scmp.lt.s32.totalorder %s40, 2
          %s3531 = scalar_select %p3530, %s40, 2
          %s3532 = smul.addr %s3531, 2
          %s3533 = smul.addr %s3532, 8
          %s3534 = scalar_lea.vmem %s19, %s3533
        $region128: #{regression_forward.2} parent=123 // pred_fallthru
          _
      $region124: #{regression_forward.2} parent=5 // pred_fallthru
        _
    $region6: #{regression_forward.2} parent=1 // loop_footer
      %s38 = sadd.s32 1, %s34
    $region7: #{regression_forward.2} parent=1 // loop_footer_branch
      %33 = sbr.rel target = $region3
    $region8: #{regression_forward.2} parent=1 // loop_exit
      _
    %3535 = vsyncpa [#allocation3], 1
    %s3536 = scalar_lea.sflag [#allocation3], 1
    %3537 = vsyncpa %s3536, 1
    %3538 = vsyncpa [#allocation5], 1
    %s3539 = scalar_lea.sflag [#allocation5], 1
    %3540 = vsyncpa %s3539, 1
    %3541 = vsyncpa [#allocation8], 1
    %s3542 = scalar_lea.sflag [#allocation8], 1
    %3543 = vsyncpa %s3542, 1

</llo_original>
